<compile_context>
chip_gen: v7x
topology: tpu7x:2x2x1
jax: 0.10.0
libtpu: 0.0.40
codegen_flags: <defaults>
</compile_context>

<pallas_src>
import math
import functools

import numpy as np
import jax
import jax.numpy as jnp
from jax.experimental import pallas as pl
from jax.experimental.pallas import tpu as pltpu


# ----------------------------- hyper-parameters (small) -----------------------------
class HP:
    n_src_vocab = 40
    max_seq_len = 64
    encoder_hidden = 32
    encoder_layer = 2
    encoder_head = 2
    decoder_hidden = 32
    decoder_layer = 2
    decoder_head = 2
    fft_conv1d_filter_size = 64
    fft_conv1d_kernel_size = (9, 1)
    variance_predictor_filter_size = 32
    variance_predictor_kernel_size = 3
    n_bins = 16
    f0_min = 71.0
    f0_max = 800.0
    energy_min = 0.0
    energy_max = 100.0
    n_mel_channels = 20
    postnet_embedding_dim = 32
    postnet_kernel_size = 5
    postnet_n_convolutions = 5
    n_speaker = 4
    n_emotion = 4


# ----------------------------- in-kernel helpers (traced inside Pallas) -----------------------------
def _layer_norm(y, g, b, eps=1e-5):
    mu = jnp.mean(y, axis=-1, keepdims=True)
    var = jnp.mean(jnp.square(y - mu), axis=-1, keepdims=True)
    return (y - mu) * jax.lax.rsqrt(var + eps) * g + b


def _conv1d_same(x, w, b, relu=False, tanh=False):
    # x: (T, Cin); w: (K*Cin, Cout) tap-major im2col layout; b: (1, Cout).
    # 'same' padding for odd K (matches PyTorch Conv1d(padding=(K-1)//2)); one MXU matmul.
    T, cin = x.shape
    K = w.shape[0] // cin
    if K > 1:
        pad = (K - 1) // 2
        zpad = jnp.zeros((pad, cin), jnp.float32)
        xp = jnp.concatenate([zpad, x, zpad], axis=0)                         # (T+K-1, Cin)
        cols = jnp.concatenate([xp[k:k + T, :] for k in range(K)], axis=-1)   # (T, K*Cin)
    else:
        cols = x
    out = jnp.dot(cols, w, preferred_element_type=jnp.float32) + b
    if relu:
        out = jnp.maximum(out, 0.0)
    if tanh:
        out = jnp.tanh(out)
    return out


# ----------------------------------- fused Pallas kernels -----------------------------------
def _fft_block_kernel(x_ref, padk_ref, padq_ref,
                      wqkv_ref, bqkv_ref, wfc_ref, bfc_ref,
                      ga_ref, ba_ref,
                      wc1_ref, bc1_ref, wc2_ref, bc2_ref,
                      gf_ref, bf_ref,
                      o_ref, *, n_head):
    x = x_ref[0]                       # (T, D)
    padk = padk_ref[0]                 # (1, T)  1.0 == padded key
    padq = padq_ref[0]                 # (T, 1)  1.0 == padded position
    T, D = x.shape
    dk = D // n_head
    scale = 1.0 / math.sqrt(dk)

    # ---- multi-head self-attention: single fused QKV matmul (N = 3D) ----
    qkv = jnp.dot(x, wqkv_ref[...], preferred_element_type=jnp.float32) + bqkv_ref[...]
    heads = []
    for h in range(n_head):            # static loop, tiny H
        q = qkv[:, h * dk:(h + 1) * dk]
        k = qkv[:, D + h * dk:D + (h + 1) * dk]
        v = qkv[:, 2 * D + h * dk:2 * D + (h + 1) * dk]
        s = jax.lax.dot_general(q, k, (((1,), (1,)), ((), ())),
                                preferred_element_type=jnp.float32) * scale
        s = jnp.where(padk > 0.5, jnp.float32(-1e30), s)
        s = s - jnp.max(s, axis=-1, keepdims=True)
        e = jnp.exp(s)
        p = e * pl.reciprocal(jnp.sum(e, axis=-1, keepdims=True), approx=True)
        heads.append(jnp.dot(p, v, preferred_element_type=jnp.float32))
    attn = heads[0] if n_head == 1 else jnp.concatenate(heads, axis=-1)
    attn = jnp.dot(attn, wfc_ref[...], preferred_element_type=jnp.float32) + bfc_ref[...]

    # add + LayerNorm, mask padded rows (dropout is eval-mode identity)
    y = _layer_norm(attn + x, ga_ref[...], ba_ref[...])
    y = jnp.where(padq > 0.5, 0.0, y)

    # ---- position-wise FFN: conv1d(K1)+ReLU -> conv1d(K2) -> add + LayerNorm ----
    h1 = _conv1d_same(y, wc1_ref[...], bc1_ref[...], relu=True)
    h2 = _conv1d_same(h1, wc2_ref[...], bc2_ref[...])
    z = _layer_norm(h2 + y, gf_ref[...], bf_ref[...])
    o_ref[0] = jnp.where(padq > 0.5, 0.0, z)


def _variance_predictor_kernel(x_ref, padk_ref,
                               wc1_ref, bc1_ref, g1_ref, b1_ref,
                               wc2_ref, bc2_ref, g2_ref, b2_ref,
                               wl_ref, bl_ref, o_ref):
    x = x_ref[0]                       # (T, D)
    padk = padk_ref[0]                 # (1, T)
    h = _conv1d_same(x, wc1_ref[...], bc1_ref[...], relu=True)
    h = _layer_norm(h, g1_ref[...], b1_ref[...])
    h = _conv1d_same(h, wc2_ref[...], bc2_ref[...], relu=True)
    h = _layer_norm(h, g2_ref[...], b2_ref[...])
    # final Linear(F -> 1) folded in, written as a single (1, T) row
    out = jax.lax.dot_general(wl_ref[...], h, (((1,), (1,)), ((), ())),
                              preferred_element_type=jnp.float32) + bl_ref[...]
    o_ref[0] = jnp.where(padk > 0.5, 0.0, out)


def _mel_postnet_kernel(*refs, n_convs):
    dec_ref, wmel_ref, bmel_ref = refs[:3]
    conv_refs = refs[3:3 + 2 * n_convs]
    mel_ref, post_ref = refs[3 + 2 * n_convs:]
    dec = dec_ref[0]                   # (T, D)
    mel = jnp.dot(dec, wmel_ref[...], preferred_element_type=jnp.float32) + bmel_ref[...]
    x = mel
    for i in range(n_convs):           # eval-mode BatchNorm folded into the conv weights
        x = _conv1d_same(x, conv_refs[2 * i][...], conv_refs[2 * i + 1][...],
                         tanh=(i < n_convs - 1))
    mel_ref[0] = mel
    post_ref[0] = x + mel              # PostNet residual fused in


# ----------------------------------- pallas_call wrappers -----------------------------------
_PARALLEL_B = pltpu.CompilerParams(dimension_semantics=("parallel",))


def _full_spec(shape):
    nd = len(shape)
    return pl.BlockSpec(tuple(shape), lambda b, _n=nd: (0,) * _n)


def _batched_spec(shape):
    nd = len(shape)
    return pl.BlockSpec((1,) + tuple(shape[1:]), lambda b, _n=nd: (b,) + (0,) * (_n - 1))


def fft_block(p, x, padk, padq):
    B, T, D = x.shape
    weights = [p["w_qkv"], p["b_qkv"], p["w_fc"], p["b_fc"],
               p["ln_attn_g"], p["ln_attn_b"],
               p["conv1_w"], p["conv1_b"], p["conv2_w"], p["conv2_b"],
               p["ln_ffn_g"], p["ln_ffn_b"]]
    return pl.pallas_call(
        functools.partial(_fft_block_kernel, n_head=p["n_head"]),
        out_shape=jax.ShapeDtypeStruct((B, T, D), jnp.float32),
        grid=(B,),
        in_specs=[_batched_spec(x.shape), _batched_spec(padk.shape),
                  _batched_spec(padq.shape)] + [_full_spec(w.shape) for w in weights],
        out_specs=_batched_spec((B, T, D)),
        compiler_params=_PARALLEL_B,
    )(x, padk, padq, *weights)


def variance_predictor(p, x, padk):
    B, T, D = x.shape
    weights = [p["conv1_w"], p["conv1_b"], p["ln1_g"], p["ln1_b"],
               p["conv2_w"], p["conv2_b"], p["ln2_g"], p["ln2_b"],
               p["lin_w"], p["lin_b"]]
    out = pl.pallas_call(
        _variance_predictor_kernel,
        out_shape=jax.ShapeDtypeStruct((B, 1, T), jnp.float32),
        grid=(B,),
        in_specs=[_batched_spec(x.shape), _batched_spec(padk.shape)]
                 + [_full_spec(w.shape) for w in weights],
        out_specs=_batched_spec((B, 1, T)),
        compiler_params=_PARALLEL_B,
    )(x, padk, *weights)
    return out[:, 0, :]                                   # (B, T)


def mel_and_postnet(mel_p, post_p, dec):
    B, T, D = dec.shape
    n_mel = mel_p["w"].shape[-1]
    weights = [mel_p["w"], mel_p["b"]]
    for w, b in post_p["convs"]:
        weights += [w, b]
    n_convs = len(post_p["convs"])
    mel, post = pl.pallas_call(
        functools.partial(_mel_postnet_kernel, n_convs=n_convs),
        out_shape=(jax.ShapeDtypeStruct((B, T, n_mel), jnp.float32),
                   jax.ShapeDtypeStruct((B, T, n_mel), jnp.float32)),
        grid=(B,),
        in_specs=[_batched_spec(dec.shape)] + [_full_spec(w.shape) for w in weights],
        out_specs=(_batched_spec((B, T, n_mel)), _batched_spec((B, T, n_mel))),
        compiler_params=_PARALLEL_B,
    )(dec, *weights)
    return mel, post


# ----------------------------------- model pieces (JAX glue) -----------------------------------
def get_mask_from_lengths(lengths, max_len):
    ids = jnp.arange(max_len)[None, :]
    return ids >= lengths[:, None]          # True == padded


def encoder(p, src_seq, padk, padq):
    _, T = src_seq.shape
    x = p["word_emb"][src_seq] + p["pos_enc"][:T][None, :, :]
    for layer in p["layers"]:
        x = fft_block(layer, x, padk, padq)
    return x


def decoder(p, x, padk, padq):
    T = x.shape[1]
    x = x + p["pos_enc"][:T][None, :, :]
    for layer in p["layers"]:
        x = fft_block(layer, x, padk, padq)
    return x


def length_regulator(x, duration, max_len):
    # expand each source frame by its (integer) duration, zero-pad to max_len
    cum = jnp.cumsum(duration, axis=1)                           # (B, Ts)
    t = jnp.arange(max_len)[None, :]                             # (1, Tm)
    idx = jnp.sum(cum[:, None, :] <= t[:, :, None], axis=-1)     # (B, Tm)
    valid = t < cum[:, -1:]
    idx = jnp.minimum(idx, x.shape[1] - 1)
    out = jnp.take_along_axis(x, idx[..., None], axis=1)
    out = jnp.where(valid[..., None], out, 0.0)
    return out, cum[:, -1]


def variance_adaptor(p, x, src_padk, mel_padk, d_target, p_target, e_target, max_mel_len):
    log_d_pred = variance_predictor(p["duration"], x, src_padk)
    x, _ = length_regulator(x, d_target, max_mel_len)
    p_pred = variance_predictor(p["pitch"], x, mel_padk)
    pitch_emb = p["pitch_emb"][jnp.searchsorted(p["pitch_bins"], p_target)]
    e_pred = variance_predictor(p["energy"], x, mel_padk)
    energy_emb = p["energy_emb"][jnp.searchsorted(p["energy_bins"], e_target)]
    x = x + pitch_emb + energy_emb
    return x, log_d_pred, p_pred, e_pred


def fastspeech2_forward(params, src_seq, src_len, speaker, emotion, mel_len,
                        d_target, p_target, e_target, max_src_len, max_mel_len):
    src_mask = get_mask_from_lengths(src_len, max_src_len)   # (B, Ts) bool
    mel_mask = get_mask_from_lengths(mel_len, max_mel_len)   # (B, Tm) bool
    # padding masks in the layouts the fused kernels consume (no (B*H, T, T) blow-up)
    src_padk = src_mask[:, None, :].astype(jnp.float32)      # (B, 1, Ts)
    src_padq = src_mask[:, :, None].astype(jnp.float32)      # (B, Ts, 1)
    mel_padk = mel_mask[:, None, :].astype(jnp.float32)
    mel_padq = mel_mask[:, :, None].astype(jnp.float32)

    enc = encoder(params["encoder"], src_seq, src_padk, src_padq)
    enc = (enc + params["speaker_emb"][speaker][:, None, :]
               + params["emotion_emb"][emotion][:, None, :])

    va_out, d_pred, p_pred, e_pred = variance_adaptor(
        params["variance_adaptor"], enc, src_padk, mel_padk,
        d_target, p_target, e_target, max_mel_len)

    dec = decoder(params["decoder"], va_out, mel_padk, mel_padq)
    mel, mel_post = mel_and_postnet(params["mel_linear"], params["postnet"], dec)
    return mel, mel_post, d_pred, p_pred, e_pred, src_mask, mel_mask, mel_len


# ----------------------------------- parameter init -----------------------------------
def sinusoid_table(n_position, d_hid):
    pos = np.arange(n_position)[:, None].astype(np.float64)
    i = np.arange(d_hid)[None, :]
    angle = pos / np.power(10000.0, 2.0 * (i // 2) / d_hid)
    table = np.zeros((n_position, d_hid))
    table[:, 0::2] = np.sin(angle[:, 0::2])
    table[:, 1::2] = np.cos(angle[:, 1::2])
    return jnp.asarray(table, jnp.float32)


def init_params(key):
    D = HP.encoder_hidden
    cnt = [0]

    def nk():
        cnt[0] += 1
        return jax.random.fold_in(key, cnt[0])

    def rnd(shape, scale=0.05):
        return scale * jax.random.normal(nk(), shape, jnp.float32)

    def ones(shape):
        return jnp.ones(shape, jnp.float32)

    def zeros(shape):
        return jnp.zeros(shape, jnp.float32)

    def fft(d_model, n_head, d_inner, ks):
        K1, K2 = ks
        return {"n_head": n_head,
                "w_qkv": rnd((d_model, 3 * d_model)), "b_qkv": rnd((1, 3 * d_model), 0.01),
                "w_fc": rnd((d_model, d_model)), "b_fc": rnd((1, d_model), 0.01),
                "ln_attn_g": ones((1, d_model)), "ln_attn_b": zeros((1, d_model)),
                "conv1_w": rnd((K1 * d_model, d_inner)), "conv1_b": rnd((1, d_inner), 0.01),
                "conv2_w": rnd((K2 * d_inner, d_model)), "conv2_b": rnd((1, d_model), 0.01),
                "ln_ffn_g": ones((1, d_model)), "ln_ffn_b": zeros((1, d_model))}

    def vpredictor(din, dfilt, k):
        return {"conv1_w": rnd((k * din, dfilt)), "conv1_b": rnd((1, dfilt), 0.01),
                "ln1_g": ones((1, dfilt)), "ln1_b": zeros((1, dfilt)),
                "conv2_w": rnd((k * dfilt, dfilt)), "conv2_b": rnd((1, dfilt), 0.01),
                "ln2_g": ones((1, dfilt)), "ln2_b": zeros((1, dfilt)),
                "lin_w": rnd((1, dfilt)), "lin_b": rnd((1, 1), 0.01)}

    def postnet_convs():
        eps = 1e-5
        K = HP.postnet_kernel_size
        dims = ([HP.n_mel_channels]
                + [HP.postnet_embedding_dim] * (HP.postnet_n_convolutions - 1)
                + [HP.n_mel_channels])
        convs = []
        for i in range(HP.postnet_n_convolutions):
            cin, cout = dims[i], dims[i + 1]
            w = rnd((K * cin, cout))
            b = rnd((cout,), 0.01)
            gamma = 1.0 + rnd((cout,), 0.1)
            beta = rnd((cout,), 0.05)
            # eval-mode BatchNorm1d (running_mean=0, running_var=1) folded into the conv
            scale = gamma / jnp.sqrt(1.0 + eps)
            convs.append((w * scale[None, :], (b * scale + beta)[None, :]))
        return convs

    word_emb = rnd((HP.n_src_vocab, D), 0.1).at[0].set(0.0)     # padding_idx=0

    return {
        "encoder": {
            "word_emb": word_emb,
            "pos_enc": sinusoid_table(HP.max_seq_len + 1, D),
            "layers": [fft(D, HP.encoder_head, HP.fft_conv1d_filter_size,
                           HP.fft_conv1d_kernel_size) for _ in range(HP.encoder_layer)],
        },
        "decoder": {
            "pos_enc": sinusoid_table(HP.max_seq_len + 1, HP.decoder_hidden),
            "layers": [fft(HP.decoder_hidden, HP.decoder_head, HP.fft_conv1d_filter_size,
                           HP.fft_conv1d_kernel_size) for _ in range(HP.decoder_layer)],
        },
        "variance_adaptor": {
            "duration": vpredictor(D, HP.variance_predictor_filter_size,
                                   HP.variance_predictor_kernel_size),
            "pitch": vpredictor(D, HP.variance_predictor_filter_size,
                                HP.variance_predictor_kernel_size),
            "energy": vpredictor(D, HP.variance_predictor_filter_size,
                                 HP.variance_predictor_kernel_size),
            "pitch_bins": jnp.exp(jnp.linspace(math.log(HP.f0_min), math.log(HP.f0_max),
                                               HP.n_bins - 1)).astype(jnp.float32),
            "energy_bins": jnp.linspace(HP.energy_min, HP.energy_max,
                                        HP.n_bins - 1).astype(jnp.float32),
            "pitch_emb": rnd((HP.n_bins, D), 0.1),
            "energy_emb": rnd((HP.n_bins, D), 0.1),
        },
        "mel_linear": {"w": rnd((HP.decoder_hidden, HP.n_mel_channels)),
                       "b": rnd((1, HP.n_mel_channels), 0.01)},
        "speaker_emb": rnd((HP.n_speaker, D), 0.1),
        "emotion_emb": rnd((HP.n_emotion, D), 0.1),
        "postnet": {"convs": postnet_convs()},
    }


# --------------------------------------- main ---------------------------------------
if __name__ == "__main__":
    key = jax.random.PRNGKey(0)
    k_param, k_data = jax.random.split(key)
    params = init_params(k_param)

    B, Ts, Tm = 2, 8, 24
    src_len = jnp.array([8, 6], jnp.int32)
    ks = jax.random.split(k_data, 4)

    src_seq = jax.random.randint(ks[0], (B, Ts), 1, HP.n_src_vocab)
    valid_src = jnp.arange(Ts)[None, :] < src_len[:, None]
    src_seq = jnp.where(valid_src, src_seq, 0).astype(jnp.int32)

    speaker = jnp.array([0, 1], jnp.int32)
    emotion = jnp.array([1, 2], jnp.int32)

    d_target = jax.random.randint(ks[1], (B, Ts), 1, 4)
    d_target = jnp.where(valid_src, d_target, 0).astype(jnp.int32)
    mel_len = jnp.sum(d_target, axis=1).astype(jnp.int32)
    valid_mel = jnp.arange(Tm)[None, :] < mel_len[:, None]
    p_target = jnp.where(
        valid_mel, jax.random.uniform(ks[2], (B, Tm), minval=HP.f0_min, maxval=HP.f0_max), 0.0)
    e_target = jnp.where(
        valid_mel, jax.random.uniform(ks[3], (B, Tm), minval=HP.energy_min,
                                      maxval=HP.energy_max), 0.0)

    # jit the whole forward (params closed over as constants; max lens static)
    fwd = jax.jit(functools.partial(fastspeech2_forward, params,
                                    max_src_len=Ts, max_mel_len=Tm))

    outs = fwd(src_seq, src_len, speaker, emotion, mel_len=mel_len,
               d_target=d_target, p_target=p_target, e_target=e_target)
    outs = jax.block_until_ready(outs)

    mel, mel_post, d_pred, p_pred, e_pred, src_mask, mel_mask, mel_len_out = outs
    assert mel.shape == (B, Tm, HP.n_mel_channels)
    assert mel_post.shape == (B, Tm, HP.n_mel_channels)
    assert d_pred.shape == (B, Ts) and p_pred.shape == (B, Tm) and e_pred.shape == (B, Tm)
    assert bool(jnp.all(jnp.isfinite(mel_post))) and bool(jnp.all(jnp.isfinite(mel)))
    print("KERNEL_OK")
</pallas_src>

<mosaic_0001>
module attributes {stable_mosaic.version = 11 : i64} {
  func.func @_variance_predictor_kernel(%arg0: i32, %arg1: memref<1x8x32xf32, #tpu.memory_space<vmem>>, %arg2: memref<1x1x8xf32, #tpu.memory_space<vmem>>, %arg3: memref<96x32xf32, #tpu.memory_space<vmem>>, %arg4: memref<1x32xf32, #tpu.memory_space<vmem>>, %arg5: memref<1x32xf32, #tpu.memory_space<vmem>>, %arg6: memref<1x32xf32, #tpu.memory_space<vmem>>, %arg7: memref<96x32xf32, #tpu.memory_space<vmem>>, %arg8: memref<1x32xf32, #tpu.memory_space<vmem>>, %arg9: memref<1x32xf32, #tpu.memory_space<vmem>>, %arg10: memref<1x32xf32, #tpu.memory_space<vmem>>, %arg11: memref<1x32xf32, #tpu.memory_space<vmem>>, %arg12: memref<1x1xf32, #tpu.memory_space<vmem>>, %arg13: memref<1x1x8xf32, #tpu.memory_space<vmem>>) attributes {dimension_semantics = [#tpu.dimension_semantics<parallel>], iteration_bounds = array<i64: 2>, scalar_prefetch = 0 : i64, scratch_operands = 0 : i64, tpu.core_type = #tpu.core_type<tc>, window_params = [{transform_indices = @transform_0, window_bounds = array<i64: 1, 8, 32>}, {transform_indices = @transform_1, window_bounds = array<i64: 1, 1, 8>}, {pipeline_mode = #tpu.pipeline_mode<synchronous>, transform_indices = @transform_2, window_bounds = array<i64: 96, 32>}, {pipeline_mode = #tpu.pipeline_mode<synchronous>, transform_indices = @transform_3, window_bounds = array<i64: 1, 32>}, {pipeline_mode = #tpu.pipeline_mode<synchronous>, transform_indices = @transform_4, window_bounds = array<i64: 1, 32>}, {pipeline_mode = #tpu.pipeline_mode<synchronous>, transform_indices = @transform_5, window_bounds = array<i64: 1, 32>}, {pipeline_mode = #tpu.pipeline_mode<synchronous>, transform_indices = @transform_6, window_bounds = array<i64: 96, 32>}, {pipeline_mode = #tpu.pipeline_mode<synchronous>, transform_indices = @transform_7, window_bounds = array<i64: 1, 32>}, {pipeline_mode = #tpu.pipeline_mode<synchronous>, transform_indices = @transform_8, window_bounds = array<i64: 1, 32>}, {pipeline_mode = #tpu.pipeline_mode<synchronous>, transform_indices = @transform_9, window_bounds = array<i64: 1, 32>}, {pipeline_mode = #tpu.pipeline_mode<synchronous>, transform_indices = @transform_10, window_bounds = array<i64: 1, 32>}, {pipeline_mode = #tpu.pipeline_mode<synchronous>, transform_indices = @transform_11, window_bounds = array<i64: 1, 1>}, {transform_indices = @transform_12, window_bounds = array<i64: 1, 1, 8>}]} {
    %c0 = arith.constant 0 : index
    %c0_0 = arith.constant 0 : index
    %c0_1 = arith.constant 0 : index
    %0 = vector.load %arg1[%c0, %c0_0, %c0_1] : memref<1x8x32xf32, #tpu.memory_space<vmem>>, vector<1x8x32xf32>
    %1 = vector.shape_cast %0 : vector<1x8x32xf32> to vector<8x32xf32>
    %c0_2 = arith.constant 0 : index
    %c0_3 = arith.constant 0 : index
    %c0_4 = arith.constant 0 : index
    %2 = vector.load %arg2[%c0_2, %c0_3, %c0_4] : memref<1x1x8xf32, #tpu.memory_space<vmem>>, vector<1x1x8xf32>
    %3 = vector.shape_cast %2 : vector<1x1x8xf32> to vector<1x8xf32>
    %c0_5 = arith.constant 0 : index
    %c0_6 = arith.constant 0 : index
    %4 = vector.load %arg3[%c0_5, %c0_6] : memref<96x32xf32, #tpu.memory_space<vmem>>, vector<96x32xf32>
    %c0_7 = arith.constant 0 : index
    %c0_8 = arith.constant 0 : index
    %5 = vector.load %arg4[%c0_7, %c0_8] : memref<1x32xf32, #tpu.memory_space<vmem>>, vector<1x32xf32>
    %cst = arith.constant 0.000000e+00 : f32
    %6 = vector.broadcast %cst : f32 to vector<1x32xf32>
    %7 = tpu.concatenate %6, %1, %6 in 0 : vector<1x32xf32>, vector<8x32xf32>, vector<1x32xf32> -> vector<10x32xf32>
    %8 = vector.extract_strided_slice %7 {offsets = [0, 0], sizes = [8, 32], strides = [1, 1]} : vector<10x32xf32> to vector<8x32xf32>
    %9 = vector.extract_strided_slice %7 {offsets = [1, 0], sizes = [8, 32], strides = [1, 1]} : vector<10x32xf32> to vector<8x32xf32>
    %10 = vector.extract_strided_slice %7 {offsets = [2, 0], sizes = [8, 32], strides = [1, 1]} : vector<10x32xf32> to vector<8x32xf32>
    %11 = tpu.concatenate %8, %9, %10 in 1 : vector<8x32xf32>, vector<8x32xf32>, vector<8x32xf32> -> vector<8x96xf32>
    %cst_9 = arith.constant dense<0.000000e+00> : vector<8x32xf32>
    %12 = tpu.matmul %11, %4, %cst_9 {dimension_numbers = #tpu.dot_dimension_numbers<[1], [0], [0], [1], [0, 0, 1, 1], [], []>} : vector<8x96xf32>, vector<96x32xf32>, vector<8x32xf32> -> vector<8x32xf32>
    %13 = vector.broadcast %5 : vector<1x32xf32> to vector<8x32xf32>
    %14 = arith.addf %12, %13 : vector<8x32xf32>
    %cst_10 = arith.constant 0.000000e+00 : f32
    %15 = vector.broadcast %cst_10 : f32 to vector<8x32xf32>
    %16 = arith.maximumf %14, %15 : vector<8x32xf32>
    %c0_11 = arith.constant 0 : index
    %c0_12 = arith.constant 0 : index
    %17 = vector.load %arg5[%c0_11, %c0_12] : memref<1x32xf32, #tpu.memory_space<vmem>>, vector<1x32xf32>
    %c0_13 = arith.constant 0 : index
    %c0_14 = arith.constant 0 : index
    %18 = vector.load %arg6[%c0_13, %c0_14] : memref<1x32xf32, #tpu.memory_space<vmem>>, vector<1x32xf32>
    %cst_15 = arith.constant dense<0.000000e+00> : vector<8xf32>
    %19 = vector.multi_reduction <add>, %16, %cst_15 [1] : vector<8x32xf32> to vector<8xf32>
    %20 = vector.shape_cast %19 : vector<8xf32> to vector<8x1xf32>
    %cst_16 = arith.constant 3.200000e+01 : f32
    %21 = vector.broadcast %cst_16 : f32 to vector<8x1xf32>
    %22 = arith.divf %20, %21 : vector<8x1xf32>
    %23 = vector.broadcast %22 : vector<8x1xf32> to vector<8x32xf32>
    %24 = arith.subf %16, %23 : vector<8x32xf32>
    %25 = arith.mulf %24, %24 : vector<8x32xf32>
    %cst_17 = arith.constant dense<0.000000e+00> : vector<8xf32>
    %26 = vector.multi_reduction <add>, %25, %cst_17 [1] : vector<8x32xf32> to vector<8xf32>
    %27 = vector.shape_cast %26 : vector<8xf32> to vector<8x1xf32>
    %cst_18 = arith.constant 3.200000e+01 : f32
    %28 = vector.broadcast %cst_18 : f32 to vector<8x1xf32>
    %29 = arith.divf %27, %28 : vector<8x1xf32>
    %30 = vector.broadcast %22 : vector<8x1xf32> to vector<8x32xf32>
    %31 = arith.subf %16, %30 : vector<8x32xf32>
    %cst_19 = arith.constant 9.99999974E-6 : f32
    %32 = vector.broadcast %cst_19 : f32 to vector<8x1xf32>
    %33 = arith.addf %29, %32 : vector<8x1xf32>
    %34 = math.rsqrt %33 : vector<8x1xf32>
    %35 = vector.broadcast %34 : vector<8x1xf32> to vector<8x32xf32>
    %36 = arith.mulf %31, %35 : vector<8x32xf32>
    %37 = vector.broadcast %17 : vector<1x32xf32> to vector<8x32xf32>
    %38 = arith.mulf %36, %37 : vector<8x32xf32>
    %39 = vector.broadcast %18 : vector<1x32xf32> to vector<8x32xf32>
    %40 = arith.addf %38, %39 : vector<8x32xf32>
    %c0_20 = arith.constant 0 : index
    %c0_21 = arith.constant 0 : index
    %41 = vector.load %arg7[%c0_20, %c0_21] : memref<96x32xf32, #tpu.memory_space<vmem>>, vector<96x32xf32>
    %c0_22 = arith.constant 0 : index
    %c0_23 = arith.constant 0 : index
    %42 = vector.load %arg8[%c0_22, %c0_23] : memref<1x32xf32, #tpu.memory_space<vmem>>, vector<1x32xf32>
    %cst_24 = arith.constant 0.000000e+00 : f32
    %43 = vector.broadcast %cst_24 : f32 to vector<1x32xf32>
    %44 = tpu.concatenate %43, %40, %43 in 0 : vector<1x32xf32>, vector<8x32xf32>, vector<1x32xf32> -> vector<10x32xf32>
    %45 = vector.extract_strided_slice %44 {offsets = [0, 0], sizes = [8, 32], strides = [1, 1]} : vector<10x32xf32> to vector<8x32xf32>
    %46 = vector.extract_strided_slice %44 {offsets = [1, 0], sizes = [8, 32], strides = [1, 1]} : vector<10x32xf32> to vector<8x32xf32>
    %47 = vector.extract_strided_slice %44 {offsets = [2, 0], sizes = [8, 32], strides = [1, 1]} : vector<10x32xf32> to vector<8x32xf32>
    %48 = tpu.concatenate %45, %46, %47 in 1 : vector<8x32xf32>, vector<8x32xf32>, vector<8x32xf32> -> vector<8x96xf32>
    %cst_25 = arith.constant dense<0.000000e+00> : vector<8x32xf32>
    %49 = tpu.matmul %48, %41, %cst_25 {dimension_numbers = #tpu.dot_dimension_numbers<[1], [0], [0], [1], [0, 0, 1, 1], [], []>} : vector<8x96xf32>, vector<96x32xf32>, vector<8x32xf32> -> vector<8x32xf32>
    %50 = vector.broadcast %42 : vector<1x32xf32> to vector<8x32xf32>
    %51 = arith.addf %49, %50 : vector<8x32xf32>
    %cst_26 = arith.constant 0.000000e+00 : f32
    %52 = vector.broadcast %cst_26 : f32 to vector<8x32xf32>
    %53 = arith.maximumf %51, %52 : vector<8x32xf32>
    %c0_27 = arith.constant 0 : index
    %c0_28 = arith.constant 0 : index
    %54 = vector.load %arg9[%c0_27, %c0_28] : memref<1x32xf32, #tpu.memory_space<vmem>>, vector<1x32xf32>
    %c0_29 = arith.constant 0 : index
    %c0_30 = arith.constant 0 : index
    %55 = vector.load %arg10[%c0_29, %c0_30] : memref<1x32xf32, #tpu.memory_space<vmem>>, vector<1x32xf32>
    %cst_31 = arith.constant dense<0.000000e+00> : vector<8xf32>
    %56 = vector.multi_reduction <add>, %53, %cst_31 [1] : vector<8x32xf32> to vector<8xf32>
    %57 = vector.shape_cast %56 : vector<8xf32> to vector<8x1xf32>
    %cst_32 = arith.constant 3.200000e+01 : f32
    %58 = vector.broadcast %cst_32 : f32 to vector<8x1xf32>
    %59 = arith.divf %57, %58 : vector<8x1xf32>
    %60 = vector.broadcast %59 : vector<8x1xf32> to vector<8x32xf32>
    %61 = arith.subf %53, %60 : vector<8x32xf32>
    %62 = arith.mulf %61, %61 : vector<8x32xf32>
    %cst_33 = arith.constant dense<0.000000e+00> : vector<8xf32>
    %63 = vector.multi_reduction <add>, %62, %cst_33 [1] : vector<8x32xf32> to vector<8xf32>
    %64 = vector.shape_cast %63 : vector<8xf32> to vector<8x1xf32>
    %cst_34 = arith.constant 3.200000e+01 : f32
    %65 = vector.broadcast %cst_34 : f32 to vector<8x1xf32>
    %66 = arith.divf %64, %65 : vector<8x1xf32>
    %67 = vector.broadcast %59 : vector<8x1xf32> to vector<8x32xf32>
    %68 = arith.subf %53, %67 : vector<8x32xf32>
    %cst_35 = arith.constant 9.99999974E-6 : f32
    %69 = vector.broadcast %cst_35 : f32 to vector<8x1xf32>
    %70 = arith.addf %66, %69 : vector<8x1xf32>
    %71 = math.rsqrt %70 : vector<8x1xf32>
    %72 = vector.broadcast %71 : vector<8x1xf32> to vector<8x32xf32>
    %73 = arith.mulf %68, %72 : vector<8x32xf32>
    %74 = vector.broadcast %54 : vector<1x32xf32> to vector<8x32xf32>
    %75 = arith.mulf %73, %74 : vector<8x32xf32>
    %76 = vector.broadcast %55 : vector<1x32xf32> to vector<8x32xf32>
    %77 = arith.addf %75, %76 : vector<8x32xf32>
    %c0_36 = arith.constant 0 : index
    %c0_37 = arith.constant 0 : index
    %78 = vector.load %arg11[%c0_36, %c0_37] : memref<1x32xf32, #tpu.memory_space<vmem>>, vector<1x32xf32>
    %cst_38 = arith.constant dense<0.000000e+00> : vector<1x8xf32>
    %79 = tpu.matmul %78, %77, %cst_38 {dimension_numbers = #tpu.dot_dimension_numbers<[1], [1], [0], [0], [0, 0, 1, 0], [], []>} : vector<1x32xf32>, vector<8x32xf32>, vector<1x8xf32> -> vector<1x8xf32>
    %c0_39 = arith.constant 0 : index
    %c0_40 = arith.constant 0 : index
    %80 = vector.load %arg12[%c0_39, %c0_40] : memref<1x1xf32, #tpu.memory_space<vmem>>, vector<1x1xf32>
    %81 = vector.broadcast %80 : vector<1x1xf32> to vector<1x8xf32>
    %82 = arith.addf %79, %81 : vector<1x8xf32>
    %cst_41 = arith.constant 5.000000e-01 : f32
    %83 = vector.broadcast %cst_41 : f32 to vector<1x8xf32>
    %84 = arith.cmpf ogt, %3, %83 : vector<1x8xf32>
    %cst_42 = arith.constant 0.000000e+00 : f32
    %85 = vector.broadcast %cst_42 : f32 to vector<1x8xf32>
    %86 = arith.select %84, %85, %82 : vector<1x8xi1>, vector<1x8xf32>
    %c0_43 = arith.constant 0 : index
    %c0_44 = arith.constant 0 : index
    %c0_45 = arith.constant 0 : index
    %87 = vector.load %arg13[%c0_43, %c0_44, %c0_45] : memref<1x1x8xf32, #tpu.memory_space<vmem>>, vector<1x1x8xf32>
    %88 = vector.shape_cast %87 : vector<1x1x8xf32> to vector<1x8xf32>
    %89 = vector.shape_cast %86 : vector<1x8xf32> to vector<1x1x8xf32>
    tpu.vector_store %arg13[%c0_43, %c0_44, %c0_45], %89 {strides = array<i32>} : memref<1x1x8xf32, #tpu.memory_space<vmem>>, vector<1x1x8xf32>,
    return
  }
  func.func @transform_0(%arg0: i32) -> (i32, i32, i32) {
    %c0_i32 = arith.constant 0 : i32
    %c0_i32_0 = arith.constant 0 : i32
    %c0_i32_1 = arith.constant 0 : i32
    return %arg0, %c0_i32, %c0_i32_0 : i32, i32, i32
  }
  func.func @transform_1(%arg0: i32) -> (i32, i32, i32) {
    %c0_i32 = arith.constant 0 : i32
    %c0_i32_0 = arith.constant 0 : i32
    %c0_i32_1 = arith.constant 0 : i32
    return %arg0, %c0_i32, %c0_i32_0 : i32, i32, i32
  }
  func.func @transform_2(%arg0: i32) -> (i32, i32) {
    %c0_i32 = arith.constant 0 : i32
    %c0_i32_0 = arith.constant 0 : i32
    %c0_i32_1 = arith.constant 0 : i32
    return %c0_i32, %c0_i32_0 : i32, i32
  }
  func.func @transform_3(%arg0: i32) -> (i32, i32) {
    %c0_i32 = arith.constant 0 : i32
    %c0_i32_0 = arith.constant 0 : i32
    %c0_i32_1 = arith.constant 0 : i32
    return %c0_i32, %c0_i32_0 : i32, i32
  }
  func.func @transform_4(%arg0: i32) -> (i32, i32) {
    %c0_i32 = arith.constant 0 : i32
    %c0_i32_0 = arith.constant 0 : i32
    %c0_i32_1 = arith.constant 0 : i32
    return %c0_i32, %c0_i32_0 : i32, i32
  }
  func.func @transform_5(%arg0: i32) -> (i32, i32) {
    %c0_i32 = arith.constant 0 : i32
    %c0_i32_0 = arith.constant 0 : i32
    %c0_i32_1 = arith.constant 0 : i32
    return %c0_i32, %c0_i32_0 : i32, i32
  }
  func.func @transform_6(%arg0: i32) -> (i32, i32) {
    %c0_i32 = arith.constant 0 : i32
    %c0_i32_0 = arith.constant 0 : i32
    %c0_i32_1 = arith.constant 0 : i32
    return %c0_i32, %c0_i32_0 : i32, i32
  }
  func.func @transform_7(%arg0: i32) -> (i32, i32) {
    %c0_i32 = arith.constant 0 : i32
    %c0_i32_0 = arith.constant 0 : i32
    %c0_i32_1 = arith.constant 0 : i32
    return %c0_i32, %c0_i32_0 : i32, i32
  }
  func.func @transform_8(%arg0: i32) -> (i32, i32) {
    %c0_i32 = arith.constant 0 : i32
    %c0_i32_0 = arith.constant 0 : i32
    %c0_i32_1 = arith.constant 0 : i32
    return %c0_i32, %c0_i32_0 : i32, i32
  }
  func.func @transform_9(%arg0: i32) -> (i32, i32) {
    %c0_i32 = arith.constant 0 : i32
    %c0_i32_0 = arith.constant 0 : i32
    %c0_i32_1 = arith.constant 0 : i32
    return %c0_i32, %c0_i32_0 : i32, i32
  }
  func.func @transform_10(%arg0: i32) -> (i32, i32) {
    %c0_i32 = arith.constant 0 : i32
    %c0_i32_0 = arith.constant 0 : i32
    %c0_i32_1 = arith.constant 0 : i32
    return %c0_i32, %c0_i32_0 : i32, i32
  }
  func.func @transform_11(%arg0: i32) -> (i32, i32) {
    %c0_i32 = arith.constant 0 : i32
    %c0_i32_0 = arith.constant 0 : i32
    %c0_i32_1 = arith.constant 0 : i32
    return %c0_i32, %c0_i32_0 : i32, i32
  }
  func.func @transform_12(%arg0: i32) -> (i32, i32, i32) {
    %c0_i32 = arith.constant 0 : i32
    %c0_i32_0 = arith.constant 0 : i32
    %c0_i32_1 = arith.constant 0 : i32
    return %arg0, %c0_i32, %c0_i32_0 : i32, i32, i32
  }
}

module attributes {stable_mosaic.version = 11 : i64} {
  func.func @_fft_block_kernel(%arg0: i32, %arg1: memref<1x8x32xf32, #tpu.memory_space<vmem>>, %arg2: memref<1x1x8xf32, #tpu.memory_space<vmem>>, %arg3: memref<1x8x1xf32, #tpu.memory_space<vmem>>, %arg4: memref<32x96xf32, #tpu.memory_space<vmem>>, %arg5: memref<1x96xf32, #tpu.memory_space<vmem>>, %arg6: memref<32x32xf32, #tpu.memory_space<vmem>>, %arg7: memref<1x32xf32, #tpu.memory_space<vmem>>, %arg8: memref<1x32xf32, #tpu.memory_space<vmem>>, %arg9: memref<1x32xf32, #tpu.memory_space<vmem>>, %arg10: memref<288x64xf32, #tpu.memory_space<vmem>>, %arg11: memref<1x64xf32, #tpu.memory_space<vmem>>, %arg12: memref<64x32xf32, #tpu.memory_space<vmem>>, %arg13: memref<1x32xf32, #tpu.memory_space<vmem>>, %arg14: memref<1x32xf32, #tpu.memory_space<vmem>>, %arg15: memref<1x32xf32, #tpu.memory_space<vmem>>, %arg16: memref<1x8x32xf32, #tpu.memory_space<vmem>>) attributes {dimension_semantics = [#tpu.dimension_semantics<parallel>], iteration_bounds = array<i64: 2>, scalar_prefetch = 0 : i64, scratch_operands = 0 : i64, tpu.core_type = #tpu.core_type<tc>, window_params = [{transform_indices = @transform_0, window_bounds = array<i64: 1, 8, 32>}, {transform_indices = @transform_1, window_bounds = array<i64: 1, 1, 8>}, {transform_indices = @transform_2, window_bounds = array<i64: 1, 8, 1>}, {pipeline_mode = #tpu.pipeline_mode<synchronous>, transform_indices = @transform_3, window_bounds = array<i64: 32, 96>}, {pipeline_mode = #tpu.pipeline_mode<synchronous>, transform_indices = @transform_4, window_bounds = array<i64: 1, 96>}, {pipeline_mode = #tpu.pipeline_mode<synchronous>, transform_indices = @transform_5, window_bounds = array<i64: 32, 32>}, {pipeline_mode = #tpu.pipeline_mode<synchronous>, transform_indices = @transform_6, window_bounds = array<i64: 1, 32>}, {pipeline_mode = #tpu.pipeline_mode<synchronous>, transform_indices = @transform_7, window_bounds = array<i64: 1, 32>}, {pipeline_mode = #tpu.pipeline_mode<synchronous>, transform_indices = @transform_8, window_bounds = array<i64: 1, 32>}, {pipeline_mode = #tpu.pipeline_mode<synchronous>, transform_indices = @transform_9, window_bounds = array<i64: 288, 64>}, {pipeline_mode = #tpu.pipeline_mode<synchronous>, transform_indices = @transform_10, window_bounds = array<i64: 1, 64>}, {pipeline_mode = #tpu.pipeline_mode<synchronous>, transform_indices = @transform_11, window_bounds = array<i64: 64, 32>}, {pipeline_mode = #tpu.pipeline_mode<synchronous>, transform_indices = @transform_12, window_bounds = array<i64: 1, 32>}, {pipeline_mode = #tpu.pipeline_mode<synchronous>, transform_indices = @transform_13, window_bounds = array<i64: 1, 32>}, {pipeline_mode = #tpu.pipeline_mode<synchronous>, transform_indices = @transform_14, window_bounds = array<i64: 1, 32>}, {transform_indices = @transform_15, window_bounds = array<i64: 1, 8, 32>}]} {
    %c0 = arith.constant 0 : index
    %c0_0 = arith.constant 0 : index
    %c0_1 = arith.constant 0 : index
    %0 = vector.load %arg1[%c0, %c0_0, %c0_1] : memref<1x8x32xf32, #tpu.memory_space<vmem>>, vector<1x8x32xf32>
    %1 = vector.shape_cast %0 : vector<1x8x32xf32> to vector<8x32xf32>
    %c0_2 = arith.constant 0 : index
    %c0_3 = arith.constant 0 : index
    %c0_4 = arith.constant 0 : index
    %2 = vector.load %arg2[%c0_2, %c0_3, %c0_4] : memref<1x1x8xf32, #tpu.memory_space<vmem>>, vector<1x1x8xf32>
    %3 = vector.shape_cast %2 : vector<1x1x8xf32> to vector<1x8xf32>
    %c0_5 = arith.constant 0 : index
    %c0_6 = arith.constant 0 : index
    %c0_7 = arith.constant 0 : index
    %4 = vector.load %arg3[%c0_5, %c0_6, %c0_7] : memref<1x8x1xf32, #tpu.memory_space<vmem>>, vector<1x8x1xf32>
    %5 = vector.shape_cast %4 : vector<1x8x1xf32> to vector<8x1xf32>
    %c0_8 = arith.constant 0 : index
    %c0_9 = arith.constant 0 : index
    %6 = vector.load %arg4[%c0_8, %c0_9] : memref<32x96xf32, #tpu.memory_space<vmem>>, vector<32x96xf32>
    %cst = arith.constant dense<0.000000e+00> : vector<8x96xf32>
    %7 = tpu.matmul %1, %6, %cst {dimension_numbers = #tpu.dot_dimension_numbers<[1], [0], [0], [1], [0, 0, 1, 1], [], []>} : vector<8x32xf32>, vector<32x96xf32>, vector<8x96xf32> -> vector<8x96xf32>
    %c0_10 = arith.constant 0 : index
    %c0_11 = arith.constant 0 : index
    %8 = vector.load %arg5[%c0_10, %c0_11] : memref<1x96xf32, #tpu.memory_space<vmem>>, vector<1x96xf32>
    %9 = vector.broadcast %8 : vector<1x96xf32> to vector<8x96xf32>
    %10 = arith.addf %7, %9 : vector<8x96xf32>
    %11 = vector.extract_strided_slice %10 {offsets = [0, 0], sizes = [8, 16], strides = [1, 1]} : vector<8x96xf32> to vector<8x16xf32>
    %12 = vector.extract_strided_slice %10 {offsets = [0, 32], sizes = [8, 16], strides = [1, 1]} : vector<8x96xf32> to vector<8x16xf32>
    %13 = vector.extract_strided_slice %10 {offsets = [0, 64], sizes = [8, 16], strides = [1, 1]} : vector<8x96xf32> to vector<8x16xf32>
    %cst_12 = arith.constant dense<0.000000e+00> : vector<8x8xf32>
    %14 = tpu.matmul %11, %12, %cst_12 {dimension_numbers = #tpu.dot_dimension_numbers<[1], [1], [0], [0], [0, 0, 1, 0], [], []>} : vector<8x16xf32>, vector<8x16xf32>, vector<8x8xf32> -> vector<8x8xf32>
    %cst_13 = arith.constant 2.500000e-01 : f32
    %15 = vector.broadcast %cst_13 : f32 to vector<8x8xf32>
    %16 = arith.mulf %14, %15 : vector<8x8xf32>
    %cst_14 = arith.constant 5.000000e-01 : f32
    %17 = vector.broadcast %cst_14 : f32 to vector<1x8xf32>
    %18 = arith.cmpf ogt, %3, %17 : vector<1x8xf32>
    %cst_15 = arith.constant -1.000000e+30 : f32
    %19 = vector.shape_cast %18 : vector<1x8xi1> to vector<1x8xi1>
    %20 = vector.broadcast %19 : vector<1x8xi1> to vector<8x8xi1>
    %21 = vector.broadcast %cst_15 : f32 to vector<8x8xf32>
    %22 = arith.select %20, %21, %16 : vector<8x8xi1>, vector<8x8xf32>
    %cst_16 = arith.constant dense<0xFF800000> : vector<8xf32>
    %23 = vector.multi_reduction <maximumf>, %22, %cst_16 [1] : vector<8x8xf32> to vector<8xf32>
    %24 = vector.shape_cast %23 : vector<8xf32> to vector<8x1xf32>
    %25 = vector.broadcast %24 : vector<8x1xf32> to vector<8x8xf32>
    %26 = arith.subf %22, %25 : vector<8x8xf32>
    %27 = math.exp %26 : vector<8x8xf32>
    %cst_17 = arith.constant dense<0.000000e+00> : vector<8xf32>
    %28 = vector.multi_reduction <add>, %27, %cst_17 [1] : vector<8x8xf32> to vector<8xf32>
    %29 = vector.shape_cast %28 : vector<8xf32> to vector<8x1xf32>
    %30 = tpu.reciprocal %29 {approx = true} : vector<8x1xf32> -> vector<8x1xf32>
    %31 = vector.broadcast %30 : vector<8x1xf32> to vector<8x8xf32>
    %32 = arith.mulf %27, %31 : vector<8x8xf32>
    %cst_18 = arith.constant dense<0.000000e+00> : vector<8x16xf32>
    %33 = tpu.matmul %32, %13, %cst_18 {dimension_numbers = #tpu.dot_dimension_numbers<[1], [0], [0], [1], [0, 0, 1, 1], [], []>} : vector<8x8xf32>, vector<8x16xf32>, vector<8x16xf32> -> vector<8x16xf32>
    %34 = vector.extract_strided_slice %10 {offsets = [0, 16], sizes = [8, 16], strides = [1, 1]} : vector<8x96xf32> to vector<8x16xf32>
    %35 = vector.extract_strided_slice %10 {offsets = [0, 48], sizes = [8, 16], strides = [1, 1]} : vector<8x96xf32> to vector<8x16xf32>
    %36 = vector.extract_strided_slice %10 {offsets = [0, 80], sizes = [8, 16], strides = [1, 1]} : vector<8x96xf32> to vector<8x16xf32>
    %cst_19 = arith.constant dense<0.000000e+00> : vector<8x8xf32>
    %37 = tpu.matmul %34, %35, %cst_19 {dimension_numbers = #tpu.dot_dimension_numbers<[1], [1], [0], [0], [0, 0, 1, 0], [], []>} : vector<8x16xf32>, vector<8x16xf32>, vector<8x8xf32> -> vector<8x8xf32>
    %cst_20 = arith.constant 2.500000e-01 : f32
    %38 = vector.broadcast %cst_20 : f32 to vector<8x8xf32>
    %39 = arith.mulf %37, %38 : vector<8x8xf32>
    %cst_21 = arith.constant 5.000000e-01 : f32
    %40 = vector.broadcast %cst_21 : f32 to vector<1x8xf32>
    %41 = arith.cmpf ogt, %3, %40 : vector<1x8xf32>
    %cst_22 = arith.constant -1.000000e+30 : f32
    %42 = vector.shape_cast %41 : vector<1x8xi1> to vector<1x8xi1>
    %43 = vector.broadcast %42 : vector<1x8xi1> to vector<8x8xi1>
    %44 = vector.broadcast %cst_22 : f32 to vector<8x8xf32>
    %45 = arith.select %43, %44, %39 : vector<8x8xi1>, vector<8x8xf32>
    %cst_23 = arith.constant dense<0xFF800000> : vector<8xf32>
    %46 = vector.multi_reduction <maximumf>, %45, %cst_23 [1] : vector<8x8xf32> to vector<8xf32>
    %47 = vector.shape_cast %46 : vector<8xf32> to vector<8x1xf32>
    %48 = vector.broadcast %47 : vector<8x1xf32> to vector<8x8xf32>
    %49 = arith.subf %45, %48 : vector<8x8xf32>
    %50 = math.exp %49 : vector<8x8xf32>
    %cst_24 = arith.constant dense<0.000000e+00> : vector<8xf32>
    %51 = vector.multi_reduction <add>, %50, %cst_24 [1] : vector<8x8xf32> to vector<8xf32>
    %52 = vector.shape_cast %51 : vector<8xf32> to vector<8x1xf32>
    %53 = tpu.reciprocal %52 {approx = true} : vector<8x1xf32> -> vector<8x1xf32>
    %54 = vector.broadcast %53 : vector<8x1xf32> to vector<8x8xf32>
    %55 = arith.mulf %50, %54 : vector<8x8xf32>
    %cst_25 = arith.constant dense<0.000000e+00> : vector<8x16xf32>
    %56 = tpu.matmul %55, %36, %cst_25 {dimension_numbers = #tpu.dot_dimension_numbers<[1], [0], [0], [1], [0, 0, 1, 1], [], []>} : vector<8x8xf32>, vector<8x16xf32>, vector<8x16xf32> -> vector<8x16xf32>
    %57 = tpu.concatenate %33, %56 in 1 : vector<8x16xf32>, vector<8x16xf32> -> vector<8x32xf32>
    %c0_26 = arith.constant 0 : index
    %c0_27 = arith.constant 0 : index
    %58 = vector.load %arg6[%c0_26, %c0_27] : memref<32x32xf32, #tpu.memory_space<vmem>>, vector<32x32xf32>
    %cst_28 = arith.constant dense<0.000000e+00> : vector<8x32xf32>
    %59 = tpu.matmul %57, %58, %cst_28 {dimension_numbers = #tpu.dot_dimension_numbers<[1], [0], [0], [1], [0, 0, 1, 1], [], []>} : vector<8x32xf32>, vector<32x32xf32>, vector<8x32xf32> -> vector<8x32xf32>
    %c0_29 = arith.constant 0 : index
    %c0_30 = arith.constant 0 : index
    %60 = vector.load %arg7[%c0_29, %c0_30] : memref<1x32xf32, #tpu.memory_space<vmem>>, vector<1x32xf32>
    %61 = vector.broadcast %60 : vector<1x32xf32> to vector<8x32xf32>
    %62 = arith.addf %59, %61 : vector<8x32xf32>
    %63 = arith.addf %62, %1 : vector<8x32xf32>
    %c0_31 = arith.constant 0 : index
    %c0_32 = arith.constant 0 : index
    %64 = vector.load %arg8[%c0_31, %c0_32] : memref<1x32xf32, #tpu.memory_space<vmem>>, vector<1x32xf32>
    %c0_33 = arith.constant 0 : index
    %c0_34 = arith.constant 0 : index
    %65 = vector.load %arg9[%c0_33, %c0_34] : memref<1x32xf32, #tpu.memory_space<vmem>>, vector<1x32xf32>
    %cst_35 = arith.constant dense<0.000000e+00> : vector<8xf32>
    %66 = vector.multi_reduction <add>, %63, %cst_35 [1] : vector<8x32xf32> to vector<8xf32>
    %67 = vector.shape_cast %66 : vector<8xf32> to vector<8x1xf32>
    %cst_36 = arith.constant 3.200000e+01 : f32
    %68 = vector.broadcast %cst_36 : f32 to vector<8x1xf32>
    %69 = arith.divf %67, %68 : vector<8x1xf32>
    %70 = vector.broadcast %69 : vector<8x1xf32> to vector<8x32xf32>
    %71 = arith.subf %63, %70 : vector<8x32xf32>
    %72 = arith.mulf %71, %71 : vector<8x32xf32>
    %cst_37 = arith.constant dense<0.000000e+00> : vector<8xf32>
    %73 = vector.multi_reduction <add>, %72, %cst_37 [1] : vector<8x32xf32> to vector<8xf32>
    %74 = vector.shape_cast %73 : vector<8xf32> to vector<8x1xf32>
    %cst_38 = arith.constant 3.200000e+01 : f32
    %75 = vector.broadcast %cst_38 : f32 to vector<8x1xf32>
    %76 = arith.divf %74, %75 : vector<8x1xf32>
    %77 = vector.broadcast %69 : vector<8x1xf32> to vector<8x32xf32>
    %78 = arith.subf %63, %77 : vector<8x32xf32>
    %cst_39 = arith.constant 9.99999974E-6 : f32
    %79 = vector.broadcast %cst_39 : f32 to vector<8x1xf32>
    %80 = arith.addf %76, %79 : vector<8x1xf32>
    %81 = math.rsqrt %80 : vector<8x1xf32>
    %82 = vector.broadcast %81 : vector<8x1xf32> to vector<8x32xf32>
    %83 = arith.mulf %78, %82 : vector<8x32xf32>
    %84 = vector.broadcast %64 : vector<1x32xf32> to vector<8x32xf32>
    %85 = arith.mulf %83, %84 : vector<8x32xf32>
    %86 = vector.broadcast %65 : vector<1x32xf32> to vector<8x32xf32>
    %87 = arith.addf %85, %86 : vector<8x32xf32>
    %cst_40 = arith.constant 5.000000e-01 : f32
    %88 = vector.broadcast %cst_40 : f32 to vector<8x1xf32>
    %89 = arith.cmpf ogt, %5, %88 : vector<8x1xf32>
    %cst_41 = arith.constant 0.000000e+00 : f32
    %90 = vector.shape_cast %89 : vector<8x1xi1> to vector<8x1xi1>
    %91 = vector.broadcast %90 : vector<8x1xi1> to vector<8x32xi1>
    %92 = vector.broadcast %cst_41 : f32 to vector<8x32xf32>
    %93 = arith.select %91, %92, %87 : vector<8x32xi1>, vector<8x32xf32>
    %c0_42 = arith.constant 0 : index
    %c0_43 = arith.constant 0 : index
    %94 = vector.load %arg10[%c0_42, %c0_43] : memref<288x64xf32, #tpu.memory_space<vmem>>, vector<288x64xf32>
    %c0_44 = arith.constant 0 : index
    %c0_45 = arith.constant 0 : index
    %95 = vector.load %arg11[%c0_44, %c0_45] : memref<1x64xf32, #tpu.memory_space<vmem>>, vector<1x64xf32>
    %cst_46 = arith.constant 0.000000e+00 : f32
    %96 = vector.broadcast %cst_46 : f32 to vector<4x32xf32>
    %97 = tpu.concatenate %96, %93, %96 in 0 : vector<4x32xf32>, vector<8x32xf32>, vector<4x32xf32> -> vector<16x32xf32>
    %98 = vector.extract_strided_slice %97 {offsets = [0, 0], sizes = [8, 32], strides = [1, 1]} : vector<16x32xf32> to vector<8x32xf32>
    %99 = vector.extract_strided_slice %97 {offsets = [1, 0], sizes = [8, 32], strides = [1, 1]} : vector<16x32xf32> to vector<8x32xf32>
    %100 = vector.extract_strided_slice %97 {offsets = [2, 0], sizes = [8, 32], strides = [1, 1]} : vector<16x32xf32> to vector<8x32xf32>
    %101 = vector.extract_strided_slice %97 {offsets = [3, 0], sizes = [8, 32], strides = [1, 1]} : vector<16x32xf32> to vector<8x32xf32>
    %102 = vector.extract_strided_slice %97 {offsets = [4, 0], sizes = [8, 32], strides = [1, 1]} : vector<16x32xf32> to vector<8x32xf32>
    %103 = vector.extract_strided_slice %97 {offsets = [5, 0], sizes = [8, 32], strides = [1, 1]} : vector<16x32xf32> to vector<8x32xf32>
    %104 = vector.extract_strided_slice %97 {offsets = [6, 0], sizes = [8, 32], strides = [1, 1]} : vector<16x32xf32> to vector<8x32xf32>
    %105 = vector.extract_strided_slice %97 {offsets = [7, 0], sizes = [8, 32], strides = [1, 1]} : vector<16x32xf32> to vector<8x32xf32>
    %106 = vector.extract_strided_slice %97 {offsets = [8, 0], sizes = [8, 32], strides = [1, 1]} : vector<16x32xf32> to vector<8x32xf32>
    %107 = tpu.concatenate %98, %99, %100, %101, %102, %103, %104, %105, %106 in 1 : vector<8x32xf32>, vector<8x32xf32>, vector<8x32xf32>, vector<8x32xf32>, vector<8x32xf32>, vector<8x32xf32>, vector<8x32xf32>, vector<8x32xf32>, vector<8x32xf32> -> vector<8x288xf32>
    %cst_47 = arith.constant dense<0.000000e+00> : vector<8x64xf32>
    %108 = tpu.matmul %107, %94, %cst_47 {dimension_numbers = #tpu.dot_dimension_numbers<[1], [0], [0], [1], [0, 0, 1, 1], [], []>} : vector<8x288xf32>, vector<288x64xf32>, vector<8x64xf32> -> vector<8x64xf32>
    %109 = vector.broadcast %95 : vector<1x64xf32> to vector<8x64xf32>
    %110 = arith.addf %108, %109 : vector<8x64xf32>
    %cst_48 = arith.constant 0.000000e+00 : f32
    %111 = vector.broadcast %cst_48 : f32 to vector<8x64xf32>
    %112 = arith.maximumf %110, %111 : vector<8x64xf32>
    %c0_49 = arith.constant 0 : index
    %c0_50 = arith.constant 0 : index
    %113 = vector.load %arg12[%c0_49, %c0_50] : memref<64x32xf32, #tpu.memory_space<vmem>>, vector<64x32xf32>
    %c0_51 = arith.constant 0 : index
    %c0_52 = arith.constant 0 : index
    %114 = vector.load %arg13[%c0_51, %c0_52] : memref<1x32xf32, #tpu.memory_space<vmem>>, vector<1x32xf32>
    %cst_53 = arith.constant dense<0.000000e+00> : vector<8x32xf32>
    %115 = tpu.matmul %112, %113, %cst_53 {dimension_numbers = #tpu.dot_dimension_numbers<[1], [0], [0], [1], [0, 0, 1, 1], [], []>} : vector<8x64xf32>, vector<64x32xf32>, vector<8x32xf32> -> vector<8x32xf32>
    %116 = vector.broadcast %114 : vector<1x32xf32> to vector<8x32xf32>
    %117 = arith.addf %115, %116 : vector<8x32xf32>
    %118 = arith.addf %117, %93 : vector<8x32xf32>
    %c0_54 = arith.constant 0 : index
    %c0_55 = arith.constant 0 : index
    %119 = vector.load %arg14[%c0_54, %c0_55] : memref<1x32xf32, #tpu.memory_space<vmem>>, vector<1x32xf32>
    %c0_56 = arith.constant 0 : index
    %c0_57 = arith.constant 0 : index
    %120 = vector.load %arg15[%c0_56, %c0_57] : memref<1x32xf32, #tpu.memory_space<vmem>>, vector<1x32xf32>
    %cst_58 = arith.constant dense<0.000000e+00> : vector<8xf32>
    %121 = vector.multi_reduction <add>, %118, %cst_58 [1] : vector<8x32xf32> to vector<8xf32>
    %122 = vector.shape_cast %121 : vector<8xf32> to vector<8x1xf32>
    %cst_59 = arith.constant 3.200000e+01 : f32
    %123 = vector.broadcast %cst_59 : f32 to vector<8x1xf32>
    %124 = arith.divf %122, %123 : vector<8x1xf32>
    %125 = vector.broadcast %124 : vector<8x1xf32> to vector<8x32xf32>
    %126 = arith.subf %118, %125 : vector<8x32xf32>
    %127 = arith.mulf %126, %126 : vector<8x32xf32>
    %cst_60 = arith.constant dense<0.000000e+00> : vector<8xf32>
    %128 = vector.multi_reduction <add>, %127, %cst_60 [1] : vector<8x32xf32> to vector<8xf32>
    %129 = vector.shape_cast %128 : vector<8xf32> to vector<8x1xf32>
    %cst_61 = arith.constant 3.200000e+01 : f32
    %130 = vector.broadcast %cst_61 : f32 to vector<8x1xf32>
    %131 = arith.divf %129, %130 : vector<8x1xf32>
    %132 = vector.broadcast %124 : vector<8x1xf32> to vector<8x32xf32>
    %133 = arith.subf %118, %132 : vector<8x32xf32>
    %cst_62 = arith.constant 9.99999974E-6 : f32
    %134 = vector.broadcast %cst_62 : f32 to vector<8x1xf32>
    %135 = arith.addf %131, %134 : vector<8x1xf32>
    %136 = math.rsqrt %135 : vector<8x1xf32>
    %137 = vector.broadcast %136 : vector<8x1xf32> to vector<8x32xf32>
    %138 = arith.mulf %133, %137 : vector<8x32xf32>
    %139 = vector.broadcast %119 : vector<1x32xf32> to vector<8x32xf32>
    %140 = arith.mulf %138, %139 : vector<8x32xf32>
    %141 = vector.broadcast %120 : vector<1x32xf32> to vector<8x32xf32>
    %142 = arith.addf %140, %141 : vector<8x32xf32>
    %cst_63 = arith.constant 5.000000e-01 : f32
    %143 = vector.broadcast %cst_63 : f32 to vector<8x1xf32>
    %144 = arith.cmpf ogt, %5, %143 : vector<8x1xf32>
    %cst_64 = arith.constant 0.000000e+00 : f32
    %145 = vector.shape_cast %144 : vector<8x1xi1> to vector<8x1xi1>
    %146 = vector.broadcast %145 : vector<8x1xi1> to vector<8x32xi1>
    %147 = vector.broadcast %cst_64 : f32 to vector<8x32xf32>
    %148 = arith.select %146, %147, %142 : vector<8x32xi1>, vector<8x32xf32>
    %c0_65 = arith.constant 0 : index
    %c0_66 = arith.constant 0 : index
    %c0_67 = arith.constant 0 : index
    %149 = vector.load %arg16[%c0_65, %c0_66, %c0_67] : memref<1x8x32xf32, #tpu.memory_space<vmem>>, vector<1x8x32xf32>
    %150 = vector.shape_cast %149 : vector<1x8x32xf32> to vector<8x32xf32>
    %151 = vector.shape_cast %148 : vector<8x32xf32> to vector<1x8x32xf32>
    tpu.vector_store %arg16[%c0_65, %c0_66, %c0_67], %151 {strides = array<i32>} : memref<1x8x32xf32, #tpu.memory_space<vmem>>, vector<1x8x32xf32>,
    return
  }
  func.func @transform_0(%arg0: i32) -> (i32, i32, i32) {
    %c0_i32 = arith.constant 0 : i32
    %c0_i32_0 = arith.constant 0 : i32
    %c0_i32_1 = arith.constant 0 : i32
    return %arg0, %c0_i32, %c0_i32_0 : i32, i32, i32
  }
  func.func @transform_1(%arg0: i32) -> (i32, i32, i32) {
    %c0_i32 = arith.constant 0 : i32
    %c0_i32_0 = arith.constant 0 : i32
    %c0_i32_1 = arith.constant 0 : i32
    return %arg0, %c0_i32, %c0_i32_0 : i32, i32, i32
  }
  func.func @transform_2(%arg0: i32) -> (i32, i32, i32) {
    %c0_i32 = arith.constant 0 : i32
    %c0_i32_0 = arith.constant 0 : i32
    %c0_i32_1 = arith.constant 0 : i32
    return %arg0, %c0_i32, %c0_i32_0 : i32, i32, i32
  }
  func.func @transform_3(%arg0: i32) -> (i32, i32) {
    %c0_i32 = arith.constant 0 : i32
    %c0_i32_0 = arith.constant 0 : i32
    %c0_i32_1 = arith.constant 0 : i32
    return %c0_i32, %c0_i32_0 : i32, i32
  }
  func.func @transform_4(%arg0: i32) -> (i32, i32) {
    %c0_i32 = arith.constant 0 : i32
    %c0_i32_0 = arith.constant 0 : i32
    %c0_i32_1 = arith.constant 0 : i32
    return %c0_i32, %c0_i32_0 : i32, i32
  }
  func.func @transform_5(%arg0: i32) -> (i32, i32) {
    %c0_i32 = arith.constant 0 : i32
    %c0_i32_0 = arith.constant 0 : i32
    %c0_i32_1 = arith.constant 0 : i32
    return %c0_i32, %c0_i32_0 : i32, i32
  }
  func.func @transform_6(%arg0: i32) -> (i32, i32) {
    %c0_i32 = arith.constant 0 : i32
    %c0_i32_0 = arith.constant 0 : i32
    %c0_i32_1 = arith.constant 0 : i32
    return %c0_i32, %c0_i32_0 : i32, i32
  }
  func.func @transform_7(%arg0: i32) -> (i32, i32) {
    %c0_i32 = arith.constant 0 : i32
    %c0_i32_0 = arith.constant 0 : i32
    %c0_i32_1 = arith.constant 0 : i32
    return %c0_i32, %c0_i32_0 : i32, i32
  }
  func.func @transform_8(%arg0: i32) -> (i32, i32) {
    %c0_i32 = arith.constant 0 : i32
    %c0_i32_0 = arith.constant 0 : i32
    %c0_i32_1 = arith.constant 0 : i32
    return %c0_i32, %c0_i32_0 : i32, i32
  }
  func.func @transform_9(%arg0: i32) -> (i32, i32) {
    %c0_i32 = arith.constant 0 : i32
    %c0_i32_0 = arith.constant 0 : i32
    %c0_i32_1 = arith.constant 0 : i32
    return %c0_i32, %c0_i32_0 : i32, i32
  }
  func.func @transform_10(%arg0: i32) -> (i32, i32) {
    %c0_i32 = arith.constant 0 : i32
    %c0_i32_0 = arith.constant 0 : i32
    %c0_i32_1 = arith.constant 0 : i32
    return %c0_i32, %c0_i32_0 : i32, i32
  }
  func.func @transform_11(%arg0: i32) -> (i32, i32) {
    %c0_i32 = arith.constant 0 : i32
    %c0_i32_0 = arith.constant 0 : i32
    %c0_i32_1 = arith.constant 0 : i32
    return %c0_i32, %c0_i32_0 : i32, i32
  }
  func.func @transform_12(%arg0: i32) -> (i32, i32) {
    %c0_i32 = arith.constant 0 : i32
    %c0_i32_0 = arith.constant 0 : i32
    %c0_i32_1 = arith.constant 0 : i32
    return %c0_i32, %c0_i32_0 : i32, i32
  }
  func.func @transform_13(%arg0: i32) -> (i32, i32) {
    %c0_i32 = arith.constant 0 : i32
    %c0_i32_0 = arith.constant 0 : i32
    %c0_i32_1 = arith.constant 0 : i32
    return %c0_i32, %c0_i32_0 : i32, i32
  }
  func.func @transform_14(%arg0: i32) -> (i32, i32) {
    %c0_i32 = arith.constant 0 : i32
    %c0_i32_0 = arith.constant 0 : i32
    %c0_i32_1 = arith.constant 0 : i32
    return %c0_i32, %c0_i32_0 : i32, i32
  }
  func.func @transform_15(%arg0: i32) -> (i32, i32, i32) {
    %c0_i32 = arith.constant 0 : i32
    %c0_i32_0 = arith.constant 0 : i32
    %c0_i32_1 = arith.constant 0 : i32
    return %arg0, %c0_i32, %c0_i32_0 : i32, i32, i32
  }
}

module attributes {stable_mosaic.version = 11 : i64} {
  func.func @_variance_predictor_kernel(%arg0: i32, %arg1: memref<1x24x32xf32, #tpu.memory_space<vmem>>, %arg2: memref<1x1x24xf32, #tpu.memory_space<vmem>>, %arg3: memref<96x32xf32, #tpu.memory_space<vmem>>, %arg4: memref<1x32xf32, #tpu.memory_space<vmem>>, %arg5: memref<1x32xf32, #tpu.memory_space<vmem>>, %arg6: memref<1x32xf32, #tpu.memory_space<vmem>>, %arg7: memref<96x32xf32, #tpu.memory_space<vmem>>, %arg8: memref<1x32xf32, #tpu.memory_space<vmem>>, %arg9: memref<1x32xf32, #tpu.memory_space<vmem>>, %arg10: memref<1x32xf32, #tpu.memory_space<vmem>>, %arg11: memref<1x32xf32, #tpu.memory_space<vmem>>, %arg12: memref<1x1xf32, #tpu.memory_space<vmem>>, %arg13: memref<1x1x24xf32, #tpu.memory_space<vmem>>) attributes {dimension_semantics = [#tpu.dimension_semantics<parallel>], iteration_bounds = array<i64: 2>, scalar_prefetch = 0 : i64, scratch_operands = 0 : i64, tpu.core_type = #tpu.core_type<tc>, window_params = [{transform_indices = @transform_0, window_bounds = array<i64: 1, 24, 32>}, {transform_indices = @transform_1, window_bounds = array<i64: 1, 1, 24>}, {pipeline_mode = #tpu.pipeline_mode<synchronous>, transform_indices = @transform_2, window_bounds = array<i64: 96, 32>}, {pipeline_mode = #tpu.pipeline_mode<synchronous>, transform_indices = @transform_3, window_bounds = array<i64: 1, 32>}, {pipeline_mode = #tpu.pipeline_mode<synchronous>, transform_indices = @transform_4, window_bounds = array<i64: 1, 32>}, {pipeline_mode = #tpu.pipeline_mode<synchronous>, transform_indices = @transform_5, window_bounds = array<i64: 1, 32>}, {pipeline_mode = #tpu.pipeline_mode<synchronous>, transform_indices = @transform_6, window_bounds = array<i64: 96, 32>}, {pipeline_mode = #tpu.pipeline_mode<synchronous>, transform_indices = @transform_7, window_bounds = array<i64: 1, 32>}, {pipeline_mode = #tpu.pipeline_mode<synchronous>, transform_indices = @transform_8, window_bounds = array<i64: 1, 32>}, {pipeline_mode = #tpu.pipeline_mode<synchronous>, transform_indices = @transform_9, window_bounds = array<i64: 1, 32>}, {pipeline_mode = #tpu.pipeline_mode<synchronous>, transform_indices = @transform_10, window_bounds = array<i64: 1, 32>}, {pipeline_mode = #tpu.pipeline_mode<synchronous>, transform_indices = @transform_11, window_bounds = array<i64: 1, 1>}, {transform_indices = @transform_12, window_bounds = array<i64: 1, 1, 24>}]} {
    %c0 = arith.constant 0 : index
    %c0_0 = arith.constant 0 : index
    %c0_1 = arith.constant 0 : index
    %0 = vector.load %arg1[%c0, %c0_0, %c0_1] : memref<1x24x32xf32, #tpu.memory_space<vmem>>, vector<1x24x32xf32>
    %1 = vector.shape_cast %0 : vector<1x24x32xf32> to vector<24x32xf32>
    %c0_2 = arith.constant 0 : index
    %c0_3 = arith.constant 0 : index
    %c0_4 = arith.constant 0 : index
    %2 = vector.load %arg2[%c0_2, %c0_3, %c0_4] : memref<1x1x24xf32, #tpu.memory_space<vmem>>, vector<1x1x24xf32>
    %3 = vector.shape_cast %2 : vector<1x1x24xf32> to vector<1x24xf32>
    %c0_5 = arith.constant 0 : index
    %c0_6 = arith.constant 0 : index
    %4 = vector.load %arg3[%c0_5, %c0_6] : memref<96x32xf32, #tpu.memory_space<vmem>>, vector<96x32xf32>
    %c0_7 = arith.constant 0 : index
    %c0_8 = arith.constant 0 : index
    %5 = vector.load %arg4[%c0_7, %c0_8] : memref<1x32xf32, #tpu.memory_space<vmem>>, vector<1x32xf32>
    %cst = arith.constant 0.000000e+00 : f32
    %6 = vector.broadcast %cst : f32 to vector<1x32xf32>
    %7 = tpu.concatenate %6, %1, %6 in 0 : vector<1x32xf32>, vector<24x32xf32>, vector<1x32xf32> -> vector<26x32xf32>
    %8 = vector.extract_strided_slice %7 {offsets = [0, 0], sizes = [24, 32], strides = [1, 1]} : vector<26x32xf32> to vector<24x32xf32>
    %9 = vector.extract_strided_slice %7 {offsets = [1, 0], sizes = [24, 32], strides = [1, 1]} : vector<26x32xf32> to vector<24x32xf32>
    %10 = vector.extract_strided_slice %7 {offsets = [2, 0], sizes = [24, 32], strides = [1, 1]} : vector<26x32xf32> to vector<24x32xf32>
    %11 = tpu.concatenate %8, %9, %10 in 1 : vector<24x32xf32>, vector<24x32xf32>, vector<24x32xf32> -> vector<24x96xf32>
    %cst_9 = arith.constant dense<0.000000e+00> : vector<24x32xf32>
    %12 = tpu.matmul %11, %4, %cst_9 {dimension_numbers = #tpu.dot_dimension_numbers<[1], [0], [0], [1], [0, 0, 1, 1], [], []>} : vector<24x96xf32>, vector<96x32xf32>, vector<24x32xf32> -> vector<24x32xf32>
    %13 = vector.broadcast %5 : vector<1x32xf32> to vector<24x32xf32>
    %14 = arith.addf %12, %13 : vector<24x32xf32>
    %cst_10 = arith.constant 0.000000e+00 : f32
    %15 = vector.broadcast %cst_10 : f32 to vector<24x32xf32>
    %16 = arith.maximumf %14, %15 : vector<24x32xf32>
    %c0_11 = arith.constant 0 : index
    %c0_12 = arith.constant 0 : index
    %17 = vector.load %arg5[%c0_11, %c0_12] : memref<1x32xf32, #tpu.memory_space<vmem>>, vector<1x32xf32>
    %c0_13 = arith.constant 0 : index
    %c0_14 = arith.constant 0 : index
    %18 = vector.load %arg6[%c0_13, %c0_14] : memref<1x32xf32, #tpu.memory_space<vmem>>, vector<1x32xf32>
    %cst_15 = arith.constant dense<0.000000e+00> : vector<24xf32>
    %19 = vector.multi_reduction <add>, %16, %cst_15 [1] : vector<24x32xf32> to vector<24xf32>
    %20 = vector.shape_cast %19 : vector<24xf32> to vector<24x1xf32>
    %cst_16 = arith.constant 3.200000e+01 : f32
    %21 = vector.broadcast %cst_16 : f32 to vector<24x1xf32>
    %22 = arith.divf %20, %21 : vector<24x1xf32>
    %23 = vector.broadcast %22 : vector<24x1xf32> to vector<24x32xf32>
    %24 = arith.subf %16, %23 : vector<24x32xf32>
    %25 = arith.mulf %24, %24 : vector<24x32xf32>
    %cst_17 = arith.constant dense<0.000000e+00> : vector<24xf32>
    %26 = vector.multi_reduction <add>, %25, %cst_17 [1] : vector<24x32xf32> to vector<24xf32>
    %27 = vector.shape_cast %26 : vector<24xf32> to vector<24x1xf32>
    %cst_18 = arith.constant 3.200000e+01 : f32
    %28 = vector.broadcast %cst_18 : f32 to vector<24x1xf32>
    %29 = arith.divf %27, %28 : vector<24x1xf32>
    %30 = vector.broadcast %22 : vector<24x1xf32> to vector<24x32xf32>
    %31 = arith.subf %16, %30 : vector<24x32xf32>
    %cst_19 = arith.constant 9.99999974E-6 : f32
    %32 = vector.broadcast %cst_19 : f32 to vector<24x1xf32>
    %33 = arith.addf %29, %32 : vector<24x1xf32>
    %34 = math.rsqrt %33 : vector<24x1xf32>
    %35 = vector.broadcast %34 : vector<24x1xf32> to vector<24x32xf32>
    %36 = arith.mulf %31, %35 : vector<24x32xf32>
    %37 = vector.broadcast %17 : vector<1x32xf32> to vector<24x32xf32>
    %38 = arith.mulf %36, %37 : vector<24x32xf32>
    %39 = vector.broadcast %18 : vector<1x32xf32> to vector<24x32xf32>
    %40 = arith.addf %38, %39 : vector<24x32xf32>
    %c0_20 = arith.constant 0 : index
    %c0_21 = arith.constant 0 : index
    %41 = vector.load %arg7[%c0_20, %c0_21] : memref<96x32xf32, #tpu.memory_space<vmem>>, vector<96x32xf32>
    %c0_22 = arith.constant 0 : index
    %c0_23 = arith.constant 0 : index
    %42 = vector.load %arg8[%c0_22, %c0_23] : memref<1x32xf32, #tpu.memory_space<vmem>>, vector<1x32xf32>
    %cst_24 = arith.constant 0.000000e+00 : f32
    %43 = vector.broadcast %cst_24 : f32 to vector<1x32xf32>
    %44 = tpu.concatenate %43, %40, %43 in 0 : vector<1x32xf32>, vector<24x32xf32>, vector<1x32xf32> -> vector<26x32xf32>
    %45 = vector.extract_strided_slice %44 {offsets = [0, 0], sizes = [24, 32], strides = [1, 1]} : vector<26x32xf32> to vector<24x32xf32>
    %46 = vector.extract_strided_slice %44 {offsets = [1, 0], sizes = [24, 32], strides = [1, 1]} : vector<26x32xf32> to vector<24x32xf32>
    %47 = vector.extract_strided_slice %44 {offsets = [2, 0], sizes = [24, 32], strides = [1, 1]} : vector<26x32xf32> to vector<24x32xf32>
    %48 = tpu.concatenate %45, %46, %47 in 1 : vector<24x32xf32>, vector<24x32xf32>, vector<24x32xf32> -> vector<24x96xf32>
    %cst_25 = arith.constant dense<0.000000e+00> : vector<24x32xf32>
    %49 = tpu.matmul %48, %41, %cst_25 {dimension_numbers = #tpu.dot_dimension_numbers<[1], [0], [0], [1], [0, 0, 1, 1], [], []>} : vector<24x96xf32>, vector<96x32xf32>, vector<24x32xf32> -> vector<24x32xf32>
    %50 = vector.broadcast %42 : vector<1x32xf32> to vector<24x32xf32>
    %51 = arith.addf %49, %50 : vector<24x32xf32>
    %cst_26 = arith.constant 0.000000e+00 : f32
    %52 = vector.broadcast %cst_26 : f32 to vector<24x32xf32>
    %53 = arith.maximumf %51, %52 : vector<24x32xf32>
    %c0_27 = arith.constant 0 : index
    %c0_28 = arith.constant 0 : index
    %54 = vector.load %arg9[%c0_27, %c0_28] : memref<1x32xf32, #tpu.memory_space<vmem>>, vector<1x32xf32>
    %c0_29 = arith.constant 0 : index
    %c0_30 = arith.constant 0 : index
    %55 = vector.load %arg10[%c0_29, %c0_30] : memref<1x32xf32, #tpu.memory_space<vmem>>, vector<1x32xf32>
    %cst_31 = arith.constant dense<0.000000e+00> : vector<24xf32>
    %56 = vector.multi_reduction <add>, %53, %cst_31 [1] : vector<24x32xf32> to vector<24xf32>
    %57 = vector.shape_cast %56 : vector<24xf32> to vector<24x1xf32>
    %cst_32 = arith.constant 3.200000e+01 : f32
    %58 = vector.broadcast %cst_32 : f32 to vector<24x1xf32>
    %59 = arith.divf %57, %58 : vector<24x1xf32>
    %60 = vector.broadcast %59 : vector<24x1xf32> to vector<24x32xf32>
    %61 = arith.subf %53, %60 : vector<24x32xf32>
    %62 = arith.mulf %61, %61 : vector<24x32xf32>
    %cst_33 = arith.constant dense<0.000000e+00> : vector<24xf32>
    %63 = vector.multi_reduction <add>, %62, %cst_33 [1] : vector<24x32xf32> to vector<24xf32>
    %64 = vector.shape_cast %63 : vector<24xf32> to vector<24x1xf32>
    %cst_34 = arith.constant 3.200000e+01 : f32
    %65 = vector.broadcast %cst_34 : f32 to vector<24x1xf32>
    %66 = arith.divf %64, %65 : vector<24x1xf32>
    %67 = vector.broadcast %59 : vector<24x1xf32> to vector<24x32xf32>
    %68 = arith.subf %53, %67 : vector<24x32xf32>
    %cst_35 = arith.constant 9.99999974E-6 : f32
    %69 = vector.broadcast %cst_35 : f32 to vector<24x1xf32>
    %70 = arith.addf %66, %69 : vector<24x1xf32>
    %71 = math.rsqrt %70 : vector<24x1xf32>
    %72 = vector.broadcast %71 : vector<24x1xf32> to vector<24x32xf32>
    %73 = arith.mulf %68, %72 : vector<24x32xf32>
    %74 = vector.broadcast %54 : vector<1x32xf32> to vector<24x32xf32>
    %75 = arith.mulf %73, %74 : vector<24x32xf32>
    %76 = vector.broadcast %55 : vector<1x32xf32> to vector<24x32xf32>
    %77 = arith.addf %75, %76 : vector<24x32xf32>
    %c0_36 = arith.constant 0 : index
    %c0_37 = arith.constant 0 : index
    %78 = vector.load %arg11[%c0_36, %c0_37] : memref<1x32xf32, #tpu.memory_space<vmem>>, vector<1x32xf32>
    %cst_38 = arith.constant dense<0.000000e+00> : vector<1x24xf32>
    %79 = tpu.matmul %78, %77, %cst_38 {dimension_numbers = #tpu.dot_dimension_numbers<[1], [1], [0], [0], [0, 0, 1, 0], [], []>} : vector<1x32xf32>, vector<24x32xf32>, vector<1x24xf32> -> vector<1x24xf32>
    %c0_39 = arith.constant 0 : index
    %c0_40 = arith.constant 0 : index
    %80 = vector.load %arg12[%c0_39, %c0_40] : memref<1x1xf32, #tpu.memory_space<vmem>>, vector<1x1xf32>
    %81 = vector.broadcast %80 : vector<1x1xf32> to vector<1x24xf32>
    %82 = arith.addf %79, %81 : vector<1x24xf32>
    %cst_41 = arith.constant 5.000000e-01 : f32
    %83 = vector.broadcast %cst_41 : f32 to vector<1x24xf32>
    %84 = arith.cmpf ogt, %3, %83 : vector<1x24xf32>
    %cst_42 = arith.constant 0.000000e+00 : f32
    %85 = vector.broadcast %cst_42 : f32 to vector<1x24xf32>
    %86 = arith.select %84, %85, %82 : vector<1x24xi1>, vector<1x24xf32>
    %c0_43 = arith.constant 0 : index
    %c0_44 = arith.constant 0 : index
    %c0_45 = arith.constant 0 : index
    %87 = vector.load %arg13[%c0_43, %c0_44, %c0_45] : memref<1x1x24xf32, #tpu.memory_space<vmem>>, vector<1x1x24xf32>
    %88 = vector.shape_cast %87 : vector<1x1x24xf32> to vector<1x24xf32>
    %89 = vector.shape_cast %86 : vector<1x24xf32> to vector<1x1x24xf32>
    tpu.vector_store %arg13[%c0_43, %c0_44, %c0_45], %89 {strides = array<i32>} : memref<1x1x24xf32, #tpu.memory_space<vmem>>, vector<1x1x24xf32>,
    return
  }
  func.func @transform_0(%arg0: i32) -> (i32, i32, i32) {
    %c0_i32 = arith.constant 0 : i32
    %c0_i32_0 = arith.constant 0 : i32
    %c0_i32_1 = arith.constant 0 : i32
    return %arg0, %c0_i32, %c0_i32_0 : i32, i32, i32
  }
  func.func @transform_1(%arg0: i32) -> (i32, i32, i32) {
    %c0_i32 = arith.constant 0 : i32
    %c0_i32_0 = arith.constant 0 : i32
    %c0_i32_1 = arith.constant 0 : i32
    return %arg0, %c0_i32, %c0_i32_0 : i32, i32, i32
  }
  func.func @transform_2(%arg0: i32) -> (i32, i32) {
    %c0_i32 = arith.constant 0 : i32
    %c0_i32_0 = arith.constant 0 : i32
    %c0_i32_1 = arith.constant 0 : i32
    return %c0_i32, %c0_i32_0 : i32, i32
  }
  func.func @transform_3(%arg0: i32) -> (i32, i32) {
    %c0_i32 = arith.constant 0 : i32
    %c0_i32_0 = arith.constant 0 : i32
    %c0_i32_1 = arith.constant 0 : i32
    return %c0_i32, %c0_i32_0 : i32, i32
  }
  func.func @transform_4(%arg0: i32) -> (i32, i32) {
    %c0_i32 = arith.constant 0 : i32
    %c0_i32_0 = arith.constant 0 : i32
    %c0_i32_1 = arith.constant 0 : i32
    return %c0_i32, %c0_i32_0 : i32, i32
  }
  func.func @transform_5(%arg0: i32) -> (i32, i32) {
    %c0_i32 = arith.constant 0 : i32
    %c0_i32_0 = arith.constant 0 : i32
    %c0_i32_1 = arith.constant 0 : i32
    return %c0_i32, %c0_i32_0 : i32, i32
  }
  func.func @transform_6(%arg0: i32) -> (i32, i32) {
    %c0_i32 = arith.constant 0 : i32
    %c0_i32_0 = arith.constant 0 : i32
    %c0_i32_1 = arith.constant 0 : i32
    return %c0_i32, %c0_i32_0 : i32, i32
  }
  func.func @transform_7(%arg0: i32) -> (i32, i32) {
    %c0_i32 = arith.constant 0 : i32
    %c0_i32_0 = arith.constant 0 : i32
    %c0_i32_1 = arith.constant 0 : i32
    return %c0_i32, %c0_i32_0 : i32, i32
  }
  func.func @transform_8(%arg0: i32) -> (i32, i32) {
    %c0_i32 = arith.constant 0 : i32
    %c0_i32_0 = arith.constant 0 : i32
    %c0_i32_1 = arith.constant 0 : i32
    return %c0_i32, %c0_i32_0 : i32, i32
  }
  func.func @transform_9(%arg0: i32) -> (i32, i32) {
    %c0_i32 = arith.constant 0 : i32
    %c0_i32_0 = arith.constant 0 : i32
    %c0_i32_1 = arith.constant 0 : i32
    return %c0_i32, %c0_i32_0 : i32, i32
  }
  func.func @transform_10(%arg0: i32) -> (i32, i32) {
    %c0_i32 = arith.constant 0 : i32
    %c0_i32_0 = arith.constant 0 : i32
    %c0_i32_1 = arith.constant 0 : i32
    return %c0_i32, %c0_i32_0 : i32, i32
  }
  func.func @transform_11(%arg0: i32) -> (i32, i32) {
    %c0_i32 = arith.constant 0 : i32
    %c0_i32_0 = arith.constant 0 : i32
    %c0_i32_1 = arith.constant 0 : i32
    return %c0_i32, %c0_i32_0 : i32, i32
  }
  func.func @transform_12(%arg0: i32) -> (i32, i32, i32) {
    %c0_i32 = arith.constant 0 : i32
    %c0_i32_0 = arith.constant 0 : i32
    %c0_i32_1 = arith.constant 0 : i32
    return %arg0, %c0_i32, %c0_i32_0 : i32, i32, i32
  }
}

module attributes {stable_mosaic.version = 11 : i64} {
  func.func @_fft_block_kernel(%arg0: i32, %arg1: memref<1x24x32xf32, #tpu.memory_space<vmem>>, %arg2: memref<1x1x24xf32, #tpu.memory_space<vmem>>, %arg3: memref<1x24x1xf32, #tpu.memory_space<vmem>>, %arg4: memref<32x96xf32, #tpu.memory_space<vmem>>, %arg5: memref<1x96xf32, #tpu.memory_space<vmem>>, %arg6: memref<32x32xf32, #tpu.memory_space<vmem>>, %arg7: memref<1x32xf32, #tpu.memory_space<vmem>>, %arg8: memref<1x32xf32, #tpu.memory_space<vmem>>, %arg9: memref<1x32xf32, #tpu.memory_space<vmem>>, %arg10: memref<288x64xf32, #tpu.memory_space<vmem>>, %arg11: memref<1x64xf32, #tpu.memory_space<vmem>>, %arg12: memref<64x32xf32, #tpu.memory_space<vmem>>, %arg13: memref<1x32xf32, #tpu.memory_space<vmem>>, %arg14: memref<1x32xf32, #tpu.memory_space<vmem>>, %arg15: memref<1x32xf32, #tpu.memory_space<vmem>>, %arg16: memref<1x24x32xf32, #tpu.memory_space<vmem>>) attributes {dimension_semantics = [#tpu.dimension_semantics<parallel>], iteration_bounds = array<i64: 2>, scalar_prefetch = 0 : i64, scratch_operands = 0 : i64, tpu.core_type = #tpu.core_type<tc>, window_params = [{transform_indices = @transform_0, window_bounds = array<i64: 1, 24, 32>}, {transform_indices = @transform_1, window_bounds = array<i64: 1, 1, 24>}, {transform_indices = @transform_2, window_bounds = array<i64: 1, 24, 1>}, {pipeline_mode = #tpu.pipeline_mode<synchronous>, transform_indices = @transform_3, window_bounds = array<i64: 32, 96>}, {pipeline_mode = #tpu.pipeline_mode<synchronous>, transform_indices = @transform_4, window_bounds = array<i64: 1, 96>}, {pipeline_mode = #tpu.pipeline_mode<synchronous>, transform_indices = @transform_5, window_bounds = array<i64: 32, 32>}, {pipeline_mode = #tpu.pipeline_mode<synchronous>, transform_indices = @transform_6, window_bounds = array<i64: 1, 32>}, {pipeline_mode = #tpu.pipeline_mode<synchronous>, transform_indices = @transform_7, window_bounds = array<i64: 1, 32>}, {pipeline_mode = #tpu.pipeline_mode<synchronous>, transform_indices = @transform_8, window_bounds = array<i64: 1, 32>}, {pipeline_mode = #tpu.pipeline_mode<synchronous>, transform_indices = @transform_9, window_bounds = array<i64: 288, 64>}, {pipeline_mode = #tpu.pipeline_mode<synchronous>, transform_indices = @transform_10, window_bounds = array<i64: 1, 64>}, {pipeline_mode = #tpu.pipeline_mode<synchronous>, transform_indices = @transform_11, window_bounds = array<i64: 64, 32>}, {pipeline_mode = #tpu.pipeline_mode<synchronous>, transform_indices = @transform_12, window_bounds = array<i64: 1, 32>}, {pipeline_mode = #tpu.pipeline_mode<synchronous>, transform_indices = @transform_13, window_bounds = array<i64: 1, 32>}, {pipeline_mode = #tpu.pipeline_mode<synchronous>, transform_indices = @transform_14, window_bounds = array<i64: 1, 32>}, {transform_indices = @transform_15, window_bounds = array<i64: 1, 24, 32>}]} {
    %c0 = arith.constant 0 : index
    %c0_0 = arith.constant 0 : index
    %c0_1 = arith.constant 0 : index
    %0 = vector.load %arg1[%c0, %c0_0, %c0_1] : memref<1x24x32xf32, #tpu.memory_space<vmem>>, vector<1x24x32xf32>
    %1 = vector.shape_cast %0 : vector<1x24x32xf32> to vector<24x32xf32>
    %c0_2 = arith.constant 0 : index
    %c0_3 = arith.constant 0 : index
    %c0_4 = arith.constant 0 : index
    %2 = vector.load %arg2[%c0_2, %c0_3, %c0_4] : memref<1x1x24xf32, #tpu.memory_space<vmem>>, vector<1x1x24xf32>
    %3 = vector.shape_cast %2 : vector<1x1x24xf32> to vector<1x24xf32>
    %c0_5 = arith.constant 0 : index
    %c0_6 = arith.constant 0 : index
    %c0_7 = arith.constant 0 : index
    %4 = vector.load %arg3[%c0_5, %c0_6, %c0_7] : memref<1x24x1xf32, #tpu.memory_space<vmem>>, vector<1x24x1xf32>
    %5 = vector.shape_cast %4 : vector<1x24x1xf32> to vector<24x1xf32>
    %c0_8 = arith.constant 0 : index
    %c0_9 = arith.constant 0 : index
    %6 = vector.load %arg4[%c0_8, %c0_9] : memref<32x96xf32, #tpu.memory_space<vmem>>, vector<32x96xf32>
    %cst = arith.constant dense<0.000000e+00> : vector<24x96xf32>
    %7 = tpu.matmul %1, %6, %cst {dimension_numbers = #tpu.dot_dimension_numbers<[1], [0], [0], [1], [0, 0, 1, 1], [], []>} : vector<24x32xf32>, vector<32x96xf32>, vector<24x96xf32> -> vector<24x96xf32>
    %c0_10 = arith.constant 0 : index
    %c0_11 = arith.constant 0 : index
    %8 = vector.load %arg5[%c0_10, %c0_11] : memref<1x96xf32, #tpu.memory_space<vmem>>, vector<1x96xf32>
    %9 = vector.broadcast %8 : vector<1x96xf32> to vector<24x96xf32>
    %10 = arith.addf %7, %9 : vector<24x96xf32>
    %11 = vector.extract_strided_slice %10 {offsets = [0, 0], sizes = [24, 16], strides = [1, 1]} : vector<24x96xf32> to vector<24x16xf32>
    %12 = vector.extract_strided_slice %10 {offsets = [0, 32], sizes = [24, 16], strides = [1, 1]} : vector<24x96xf32> to vector<24x16xf32>
    %13 = vector.extract_strided_slice %10 {offsets = [0, 64], sizes = [24, 16], strides = [1, 1]} : vector<24x96xf32> to vector<24x16xf32>
    %cst_12 = arith.constant dense<0.000000e+00> : vector<24x24xf32>
    %14 = tpu.matmul %11, %12, %cst_12 {dimension_numbers = #tpu.dot_dimension_numbers<[1], [1], [0], [0], [0, 0, 1, 0], [], []>} : vector<24x16xf32>, vector<24x16xf32>, vector<24x24xf32> -> vector<24x24xf32>
    %cst_13 = arith.constant 2.500000e-01 : f32
    %15 = vector.broadcast %cst_13 : f32 to vector<24x24xf32>
    %16 = arith.mulf %14, %15 : vector<24x24xf32>
    %cst_14 = arith.constant 5.000000e-01 : f32
    %17 = vector.broadcast %cst_14 : f32 to vector<1x24xf32>
    %18 = arith.cmpf ogt, %3, %17 : vector<1x24xf32>
    %cst_15 = arith.constant -1.000000e+30 : f32
    %19 = vector.shape_cast %18 : vector<1x24xi1> to vector<1x24xi1>
    %20 = vector.broadcast %19 : vector<1x24xi1> to vector<24x24xi1>
    %21 = vector.broadcast %cst_15 : f32 to vector<24x24xf32>
    %22 = arith.select %20, %21, %16 : vector<24x24xi1>, vector<24x24xf32>
    %cst_16 = arith.constant dense<0xFF800000> : vector<24xf32>
    %23 = vector.multi_reduction <maximumf>, %22, %cst_16 [1] : vector<24x24xf32> to vector<24xf32>
    %24 = vector.shape_cast %23 : vector<24xf32> to vector<24x1xf32>
    %25 = vector.broadcast %24 : vector<24x1xf32> to vector<24x24xf32>
    %26 = arith.subf %22, %25 : vector<24x24xf32>
    %27 = math.exp %26 : vector<24x24xf32>
    %cst_17 = arith.constant dense<0.000000e+00> : vector<24xf32>
    %28 = vector.multi_reduction <add>, %27, %cst_17 [1] : vector<24x24xf32> to vector<24xf32>
    %29 = vector.shape_cast %28 : vector<24xf32> to vector<24x1xf32>
    %30 = tpu.reciprocal %29 {approx = true} : vector<24x1xf32> -> vector<24x1xf32>
    %31 = vector.broadcast %30 : vector<24x1xf32> to vector<24x24xf32>
    %32 = arith.mulf %27, %31 : vector<24x24xf32>
    %cst_18 = arith.constant dense<0.000000e+00> : vector<24x16xf32>
    %33 = tpu.matmul %32, %13, %cst_18 {dimension_numbers = #tpu.dot_dimension_numbers<[1], [0], [0], [1], [0, 0, 1, 1], [], []>} : vector<24x24xf32>, vector<24x16xf32>, vector<24x16xf32> -> vector<24x16xf32>
    %34 = vector.extract_strided_slice %10 {offsets = [0, 16], sizes = [24, 16], strides = [1, 1]} : vector<24x96xf32> to vector<24x16xf32>
    %35 = vector.extract_strided_slice %10 {offsets = [0, 48], sizes = [24, 16], strides = [1, 1]} : vector<24x96xf32> to vector<24x16xf32>
    %36 = vector.extract_strided_slice %10 {offsets = [0, 80], sizes = [24, 16], strides = [1, 1]} : vector<24x96xf32> to vector<24x16xf32>
    %cst_19 = arith.constant dense<0.000000e+00> : vector<24x24xf32>
    %37 = tpu.matmul %34, %35, %cst_19 {dimension_numbers = #tpu.dot_dimension_numbers<[1], [1], [0], [0], [0, 0, 1, 0], [], []>} : vector<24x16xf32>, vector<24x16xf32>, vector<24x24xf32> -> vector<24x24xf32>
    %cst_20 = arith.constant 2.500000e-01 : f32
    %38 = vector.broadcast %cst_20 : f32 to vector<24x24xf32>
    %39 = arith.mulf %37, %38 : vector<24x24xf32>
    %cst_21 = arith.constant 5.000000e-01 : f32
    %40 = vector.broadcast %cst_21 : f32 to vector<1x24xf32>
    %41 = arith.cmpf ogt, %3, %40 : vector<1x24xf32>
    %cst_22 = arith.constant -1.000000e+30 : f32
    %42 = vector.shape_cast %41 : vector<1x24xi1> to vector<1x24xi1>
    %43 = vector.broadcast %42 : vector<1x24xi1> to vector<24x24xi1>
    %44 = vector.broadcast %cst_22 : f32 to vector<24x24xf32>
    %45 = arith.select %43, %44, %39 : vector<24x24xi1>, vector<24x24xf32>
    %cst_23 = arith.constant dense<0xFF800000> : vector<24xf32>
    %46 = vector.multi_reduction <maximumf>, %45, %cst_23 [1] : vector<24x24xf32> to vector<24xf32>
    %47 = vector.shape_cast %46 : vector<24xf32> to vector<24x1xf32>
    %48 = vector.broadcast %47 : vector<24x1xf32> to vector<24x24xf32>
    %49 = arith.subf %45, %48 : vector<24x24xf32>
    %50 = math.exp %49 : vector<24x24xf32>
    %cst_24 = arith.constant dense<0.000000e+00> : vector<24xf32>
    %51 = vector.multi_reduction <add>, %50, %cst_24 [1] : vector<24x24xf32> to vector<24xf32>
    %52 = vector.shape_cast %51 : vector<24xf32> to vector<24x1xf32>
    %53 = tpu.reciprocal %52 {approx = true} : vector<24x1xf32> -> vector<24x1xf32>
    %54 = vector.broadcast %53 : vector<24x1xf32> to vector<24x24xf32>
    %55 = arith.mulf %50, %54 : vector<24x24xf32>
    %cst_25 = arith.constant dense<0.000000e+00> : vector<24x16xf32>
    %56 = tpu.matmul %55, %36, %cst_25 {dimension_numbers = #tpu.dot_dimension_numbers<[1], [0], [0], [1], [0, 0, 1, 1], [], []>} : vector<24x24xf32>, vector<24x16xf32>, vector<24x16xf32> -> vector<24x16xf32>
    %57 = tpu.concatenate %33, %56 in 1 : vector<24x16xf32>, vector<24x16xf32> -> vector<24x32xf32>
    %c0_26 = arith.constant 0 : index
    %c0_27 = arith.constant 0 : index
    %58 = vector.load %arg6[%c0_26, %c0_27] : memref<32x32xf32, #tpu.memory_space<vmem>>, vector<32x32xf32>
    %cst_28 = arith.constant dense<0.000000e+00> : vector<24x32xf32>
    %59 = tpu.matmul %57, %58, %cst_28 {dimension_numbers = #tpu.dot_dimension_numbers<[1], [0], [0], [1], [0, 0, 1, 1], [], []>} : vector<24x32xf32>, vector<32x32xf32>, vector<24x32xf32> -> vector<24x32xf32>
    %c0_29 = arith.constant 0 : index
    %c0_30 = arith.constant 0 : index
    %60 = vector.load %arg7[%c0_29, %c0_30] : memref<1x32xf32, #tpu.memory_space<vmem>>, vector<1x32xf32>
    %61 = vector.broadcast %60 : vector<1x32xf32> to vector<24x32xf32>
    %62 = arith.addf %59, %61 : vector<24x32xf32>
    %63 = arith.addf %62, %1 : vector<24x32xf32>
    %c0_31 = arith.constant 0 : index
    %c0_32 = arith.constant 0 : index
    %64 = vector.load %arg8[%c0_31, %c0_32] : memref<1x32xf32, #tpu.memory_space<vmem>>, vector<1x32xf32>
    %c0_33 = arith.constant 0 : index
    %c0_34 = arith.constant 0 : index
    %65 = vector.load %arg9[%c0_33, %c0_34] : memref<1x32xf32, #tpu.memory_space<vmem>>, vector<1x32xf32>
    %cst_35 = arith.constant dense<0.000000e+00> : vector<24xf32>
    %66 = vector.multi_reduction <add>, %63, %cst_35 [1] : vector<24x32xf32> to vector<24xf32>
    %67 = vector.shape_cast %66 : vector<24xf32> to vector<24x1xf32>
    %cst_36 = arith.constant 3.200000e+01 : f32
    %68 = vector.broadcast %cst_36 : f32 to vector<24x1xf32>
    %69 = arith.divf %67, %68 : vector<24x1xf32>
    %70 = vector.broadcast %69 : vector<24x1xf32> to vector<24x32xf32>
    %71 = arith.subf %63, %70 : vector<24x32xf32>
    %72 = arith.mulf %71, %71 : vector<24x32xf32>
    %cst_37 = arith.constant dense<0.000000e+00> : vector<24xf32>
    %73 = vector.multi_reduction <add>, %72, %cst_37 [1] : vector<24x32xf32> to vector<24xf32>
    %74 = vector.shape_cast %73 : vector<24xf32> to vector<24x1xf32>
    %cst_38 = arith.constant 3.200000e+01 : f32
    %75 = vector.broadcast %cst_38 : f32 to vector<24x1xf32>
    %76 = arith.divf %74, %75 : vector<24x1xf32>
    %77 = vector.broadcast %69 : vector<24x1xf32> to vector<24x32xf32>
    %78 = arith.subf %63, %77 : vector<24x32xf32>
    %cst_39 = arith.constant 9.99999974E-6 : f32
    %79 = vector.broadcast %cst_39 : f32 to vector<24x1xf32>
    %80 = arith.addf %76, %79 : vector<24x1xf32>
    %81 = math.rsqrt %80 : vector<24x1xf32>
    %82 = vector.broadcast %81 : vector<24x1xf32> to vector<24x32xf32>
    %83 = arith.mulf %78, %82 : vector<24x32xf32>
    %84 = vector.broadcast %64 : vector<1x32xf32> to vector<24x32xf32>
    %85 = arith.mulf %83, %84 : vector<24x32xf32>
    %86 = vector.broadcast %65 : vector<1x32xf32> to vector<24x32xf32>
    %87 = arith.addf %85, %86 : vector<24x32xf32>
    %cst_40 = arith.constant 5.000000e-01 : f32
    %88 = vector.broadcast %cst_40 : f32 to vector<24x1xf32>
    %89 = arith.cmpf ogt, %5, %88 : vector<24x1xf32>
    %cst_41 = arith.constant 0.000000e+00 : f32
    %90 = vector.shape_cast %89 : vector<24x1xi1> to vector<24x1xi1>
    %91 = vector.broadcast %90 : vector<24x1xi1> to vector<24x32xi1>
    %92 = vector.broadcast %cst_41 : f32 to vector<24x32xf32>
    %93 = arith.select %91, %92, %87 : vector<24x32xi1>, vector<24x32xf32>
    %c0_42 = arith.constant 0 : index
    %c0_43 = arith.constant 0 : index
    %94 = vector.load %arg10[%c0_42, %c0_43] : memref<288x64xf32, #tpu.memory_space<vmem>>, vector<288x64xf32>
    %c0_44 = arith.constant 0 : index
    %c0_45 = arith.constant 0 : index
    %95 = vector.load %arg11[%c0_44, %c0_45] : memref<1x64xf32, #tpu.memory_space<vmem>>, vector<1x64xf32>
    %cst_46 = arith.constant 0.000000e+00 : f32
    %96 = vector.broadcast %cst_46 : f32 to vector<4x32xf32>
    %97 = tpu.concatenate %96, %93, %96 in 0 : vector<4x32xf32>, vector<24x32xf32>, vector<4x32xf32> -> vector<32x32xf32>
    %98 = vector.extract_strided_slice %97 {offsets = [0, 0], sizes = [24, 32], strides = [1, 1]} : vector<32x32xf32> to vector<24x32xf32>
    %99 = vector.extract_strided_slice %97 {offsets = [1, 0], sizes = [24, 32], strides = [1, 1]} : vector<32x32xf32> to vector<24x32xf32>
    %100 = vector.extract_strided_slice %97 {offsets = [2, 0], sizes = [24, 32], strides = [1, 1]} : vector<32x32xf32> to vector<24x32xf32>
    %101 = vector.extract_strided_slice %97 {offsets = [3, 0], sizes = [24, 32], strides = [1, 1]} : vector<32x32xf32> to vector<24x32xf32>
    %102 = vector.extract_strided_slice %97 {offsets = [4, 0], sizes = [24, 32], strides = [1, 1]} : vector<32x32xf32> to vector<24x32xf32>
    %103 = vector.extract_strided_slice %97 {offsets = [5, 0], sizes = [24, 32], strides = [1, 1]} : vector<32x32xf32> to vector<24x32xf32>
    %104 = vector.extract_strided_slice %97 {offsets = [6, 0], sizes = [24, 32], strides = [1, 1]} : vector<32x32xf32> to vector<24x32xf32>
    %105 = vector.extract_strided_slice %97 {offsets = [7, 0], sizes = [24, 32], strides = [1, 1]} : vector<32x32xf32> to vector<24x32xf32>
    %106 = vector.extract_strided_slice %97 {offsets = [8, 0], sizes = [24, 32], strides = [1, 1]} : vector<32x32xf32> to vector<24x32xf32>
    %107 = tpu.concatenate %98, %99, %100, %101, %102, %103, %104, %105, %106 in 1 : vector<24x32xf32>, vector<24x32xf32>, vector<24x32xf32>, vector<24x32xf32>, vector<24x32xf32>, vector<24x32xf32>, vector<24x32xf32>, vector<24x32xf32>, vector<24x32xf32> -> vector<24x288xf32>
    %cst_47 = arith.constant dense<0.000000e+00> : vector<24x64xf32>
    %108 = tpu.matmul %107, %94, %cst_47 {dimension_numbers = #tpu.dot_dimension_numbers<[1], [0], [0], [1], [0, 0, 1, 1], [], []>} : vector<24x288xf32>, vector<288x64xf32>, vector<24x64xf32> -> vector<24x64xf32>
    %109 = vector.broadcast %95 : vector<1x64xf32> to vector<24x64xf32>
    %110 = arith.addf %108, %109 : vector<24x64xf32>
    %cst_48 = arith.constant 0.000000e+00 : f32
    %111 = vector.broadcast %cst_48 : f32 to vector<24x64xf32>
    %112 = arith.maximumf %110, %111 : vector<24x64xf32>
    %c0_49 = arith.constant 0 : index
    %c0_50 = arith.constant 0 : index
    %113 = vector.load %arg12[%c0_49, %c0_50] : memref<64x32xf32, #tpu.memory_space<vmem>>, vector<64x32xf32>
    %c0_51 = arith.constant 0 : index
    %c0_52 = arith.constant 0 : index
    %114 = vector.load %arg13[%c0_51, %c0_52] : memref<1x32xf32, #tpu.memory_space<vmem>>, vector<1x32xf32>
    %cst_53 = arith.constant dense<0.000000e+00> : vector<24x32xf32>
    %115 = tpu.matmul %112, %113, %cst_53 {dimension_numbers = #tpu.dot_dimension_numbers<[1], [0], [0], [1], [0, 0, 1, 1], [], []>} : vector<24x64xf32>, vector<64x32xf32>, vector<24x32xf32> -> vector<24x32xf32>
    %116 = vector.broadcast %114 : vector<1x32xf32> to vector<24x32xf32>
    %117 = arith.addf %115, %116 : vector<24x32xf32>
    %118 = arith.addf %117, %93 : vector<24x32xf32>
    %c0_54 = arith.constant 0 : index
    %c0_55 = arith.constant 0 : index
    %119 = vector.load %arg14[%c0_54, %c0_55] : memref<1x32xf32, #tpu.memory_space<vmem>>, vector<1x32xf32>
    %c0_56 = arith.constant 0 : index
    %c0_57 = arith.constant 0 : index
    %120 = vector.load %arg15[%c0_56, %c0_57] : memref<1x32xf32, #tpu.memory_space<vmem>>, vector<1x32xf32>
    %cst_58 = arith.constant dense<0.000000e+00> : vector<24xf32>
    %121 = vector.multi_reduction <add>, %118, %cst_58 [1] : vector<24x32xf32> to vector<24xf32>
    %122 = vector.shape_cast %121 : vector<24xf32> to vector<24x1xf32>
    %cst_59 = arith.constant 3.200000e+01 : f32
    %123 = vector.broadcast %cst_59 : f32 to vector<24x1xf32>
    %124 = arith.divf %122, %123 : vector<24x1xf32>
    %125 = vector.broadcast %124 : vector<24x1xf32> to vector<24x32xf32>
    %126 = arith.subf %118, %125 : vector<24x32xf32>
    %127 = arith.mulf %126, %126 : vector<24x32xf32>
    %cst_60 = arith.constant dense<0.000000e+00> : vector<24xf32>
    %128 = vector.multi_reduction <add>, %127, %cst_60 [1] : vector<24x32xf32> to vector<24xf32>
    %129 = vector.shape_cast %128 : vector<24xf32> to vector<24x1xf32>
    %cst_61 = arith.constant 3.200000e+01 : f32
    %130 = vector.broadcast %cst_61 : f32 to vector<24x1xf32>
    %131 = arith.divf %129, %130 : vector<24x1xf32>
    %132 = vector.broadcast %124 : vector<24x1xf32> to vector<24x32xf32>
    %133 = arith.subf %118, %132 : vector<24x32xf32>
    %cst_62 = arith.constant 9.99999974E-6 : f32
    %134 = vector.broadcast %cst_62 : f32 to vector<24x1xf32>
    %135 = arith.addf %131, %134 : vector<24x1xf32>
    %136 = math.rsqrt %135 : vector<24x1xf32>
    %137 = vector.broadcast %136 : vector<24x1xf32> to vector<24x32xf32>
    %138 = arith.mulf %133, %137 : vector<24x32xf32>
    %139 = vector.broadcast %119 : vector<1x32xf32> to vector<24x32xf32>
    %140 = arith.mulf %138, %139 : vector<24x32xf32>
    %141 = vector.broadcast %120 : vector<1x32xf32> to vector<24x32xf32>
    %142 = arith.addf %140, %141 : vector<24x32xf32>
    %cst_63 = arith.constant 5.000000e-01 : f32
    %143 = vector.broadcast %cst_63 : f32 to vector<24x1xf32>
    %144 = arith.cmpf ogt, %5, %143 : vector<24x1xf32>
    %cst_64 = arith.constant 0.000000e+00 : f32
    %145 = vector.shape_cast %144 : vector<24x1xi1> to vector<24x1xi1>
    %146 = vector.broadcast %145 : vector<24x1xi1> to vector<24x32xi1>
    %147 = vector.broadcast %cst_64 : f32 to vector<24x32xf32>
    %148 = arith.select %146, %147, %142 : vector<24x32xi1>, vector<24x32xf32>
    %c0_65 = arith.constant 0 : index
    %c0_66 = arith.constant 0 : index
    %c0_67 = arith.constant 0 : index
    %149 = vector.load %arg16[%c0_65, %c0_66, %c0_67] : memref<1x24x32xf32, #tpu.memory_space<vmem>>, vector<1x24x32xf32>
    %150 = vector.shape_cast %149 : vector<1x24x32xf32> to vector<24x32xf32>
    %151 = vector.shape_cast %148 : vector<24x32xf32> to vector<1x24x32xf32>
    tpu.vector_store %arg16[%c0_65, %c0_66, %c0_67], %151 {strides = array<i32>} : memref<1x24x32xf32, #tpu.memory_space<vmem>>, vector<1x24x32xf32>,
    return
  }
  func.func @transform_0(%arg0: i32) -> (i32, i32, i32) {
    %c0_i32 = arith.constant 0 : i32
    %c0_i32_0 = arith.constant 0 : i32
    %c0_i32_1 = arith.constant 0 : i32
    return %arg0, %c0_i32, %c0_i32_0 : i32, i32, i32
  }
  func.func @transform_1(%arg0: i32) -> (i32, i32, i32) {
    %c0_i32 = arith.constant 0 : i32
    %c0_i32_0 = arith.constant 0 : i32
    %c0_i32_1 = arith.constant 0 : i32
    return %arg0, %c0_i32, %c0_i32_0 : i32, i32, i32
  }
  func.func @transform_2(%arg0: i32) -> (i32, i32, i32) {
    %c0_i32 = arith.constant 0 : i32
    %c0_i32_0 = arith.constant 0 : i32
    %c0_i32_1 = arith.constant 0 : i32
    return %arg0, %c0_i32, %c0_i32_0 : i32, i32, i32
  }
  func.func @transform_3(%arg0: i32) -> (i32, i32) {
    %c0_i32 = arith.constant 0 : i32
    %c0_i32_0 = arith.constant 0 : i32
    %c0_i32_1 = arith.constant 0 : i32
    return %c0_i32, %c0_i32_0 : i32, i32
  }
  func.func @transform_4(%arg0: i32) -> (i32, i32) {
    %c0_i32 = arith.constant 0 : i32
    %c0_i32_0 = arith.constant 0 : i32
    %c0_i32_1 = arith.constant 0 : i32
    return %c0_i32, %c0_i32_0 : i32, i32
  }
  func.func @transform_5(%arg0: i32) -> (i32, i32) {
    %c0_i32 = arith.constant 0 : i32
    %c0_i32_0 = arith.constant 0 : i32
    %c0_i32_1 = arith.constant 0 : i32
    return %c0_i32, %c0_i32_0 : i32, i32
  }
  func.func @transform_6(%arg0: i32) -> (i32, i32) {
    %c0_i32 = arith.constant 0 : i32
    %c0_i32_0 = arith.constant 0 : i32
    %c0_i32_1 = arith.constant 0 : i32
    return %c0_i32, %c0_i32_0 : i32, i32
  }
  func.func @transform_7(%arg0: i32) -> (i32, i32) {
    %c0_i32 = arith.constant 0 : i32
    %c0_i32_0 = arith.constant 0 : i32
    %c0_i32_1 = arith.constant 0 : i32
    return %c0_i32, %c0_i32_0 : i32, i32
  }
  func.func @transform_8(%arg0: i32) -> (i32, i32) {
    %c0_i32 = arith.constant 0 : i32
    %c0_i32_0 = arith.constant 0 : i32
    %c0_i32_1 = arith.constant 0 : i32
    return %c0_i32, %c0_i32_0 : i32, i32
  }
  func.func @transform_9(%arg0: i32) -> (i32, i32) {
    %c0_i32 = arith.constant 0 : i32
    %c0_i32_0 = arith.constant 0 : i32
    %c0_i32_1 = arith.constant 0 : i32
    return %c0_i32, %c0_i32_0 : i32, i32
  }
  func.func @transform_10(%arg0: i32) -> (i32, i32) {
    %c0_i32 = arith.constant 0 : i32
    %c0_i32_0 = arith.constant 0 : i32
    %c0_i32_1 = arith.constant 0 : i32
    return %c0_i32, %c0_i32_0 : i32, i32
  }
  func.func @transform_11(%arg0: i32) -> (i32, i32) {
    %c0_i32 = arith.constant 0 : i32
    %c0_i32_0 = arith.constant 0 : i32
    %c0_i32_1 = arith.constant 0 : i32
    return %c0_i32, %c0_i32_0 : i32, i32
  }
  func.func @transform_12(%arg0: i32) -> (i32, i32) {
    %c0_i32 = arith.constant 0 : i32
    %c0_i32_0 = arith.constant 0 : i32
    %c0_i32_1 = arith.constant 0 : i32
    return %c0_i32, %c0_i32_0 : i32, i32
  }
  func.func @transform_13(%arg0: i32) -> (i32, i32) {
    %c0_i32 = arith.constant 0 : i32
    %c0_i32_0 = arith.constant 0 : i32
    %c0_i32_1 = arith.constant 0 : i32
    return %c0_i32, %c0_i32_0 : i32, i32
  }
  func.func @transform_14(%arg0: i32) -> (i32, i32) {
    %c0_i32 = arith.constant 0 : i32
    %c0_i32_0 = arith.constant 0 : i32
    %c0_i32_1 = arith.constant 0 : i32
    return %c0_i32, %c0_i32_0 : i32, i32
  }
  func.func @transform_15(%arg0: i32) -> (i32, i32, i32) {
    %c0_i32 = arith.constant 0 : i32
    %c0_i32_0 = arith.constant 0 : i32
    %c0_i32_1 = arith.constant 0 : i32
    return %arg0, %c0_i32, %c0_i32_0 : i32, i32, i32
  }
}

module attributes {stable_mosaic.version = 11 : i64} {
  func.func @_mel_postnet_kernel(%arg0: i32, %arg1: memref<1x24x32xf32, #tpu.memory_space<vmem>>, %arg2: memref<32x20xf32, #tpu.memory_space<vmem>>, %arg3: memref<1x20xf32, #tpu.memory_space<vmem>>, %arg4: memref<100x32xf32, #tpu.memory_space<vmem>>, %arg5: memref<1x32xf32, #tpu.memory_space<vmem>>, %arg6: memref<160x32xf32, #tpu.memory_space<vmem>>, %arg7: memref<1x32xf32, #tpu.memory_space<vmem>>, %arg8: memref<160x32xf32, #tpu.memory_space<vmem>>, %arg9: memref<1x32xf32, #tpu.memory_space<vmem>>, %arg10: memref<160x32xf32, #tpu.memory_space<vmem>>, %arg11: memref<1x32xf32, #tpu.memory_space<vmem>>, %arg12: memref<160x20xf32, #tpu.memory_space<vmem>>, %arg13: memref<1x20xf32, #tpu.memory_space<vmem>>, %arg14: memref<1x24x20xf32, #tpu.memory_space<vmem>>, %arg15: memref<1x24x20xf32, #tpu.memory_space<vmem>>) attributes {dimension_semantics = [#tpu.dimension_semantics<parallel>], iteration_bounds = array<i64: 2>, scalar_prefetch = 0 : i64, scratch_operands = 0 : i64, tpu.core_type = #tpu.core_type<tc>, window_params = [{transform_indices = @transform_0, window_bounds = array<i64: 1, 24, 32>}, {pipeline_mode = #tpu.pipeline_mode<synchronous>, transform_indices = @transform_1, window_bounds = array<i64: 32, 20>}, {pipeline_mode = #tpu.pipeline_mode<synchronous>, transform_indices = @transform_2, window_bounds = array<i64: 1, 20>}, {pipeline_mode = #tpu.pipeline_mode<synchronous>, transform_indices = @transform_3, window_bounds = array<i64: 100, 32>}, {pipeline_mode = #tpu.pipeline_mode<synchronous>, transform_indices = @transform_4, window_bounds = array<i64: 1, 32>}, {pipeline_mode = #tpu.pipeline_mode<synchronous>, transform_indices = @transform_5, window_bounds = array<i64: 160, 32>}, {pipeline_mode = #tpu.pipeline_mode<synchronous>, transform_indices = @transform_6, window_bounds = array<i64: 1, 32>}, {pipeline_mode = #tpu.pipeline_mode<synchronous>, transform_indices = @transform_7, window_bounds = array<i64: 160, 32>}, {pipeline_mode = #tpu.pipeline_mode<synchronous>, transform_indices = @transform_8, window_bounds = array<i64: 1, 32>}, {pipeline_mode = #tpu.pipeline_mode<synchronous>, transform_indices = @transform_9, window_bounds = array<i64: 160, 32>}, {pipeline_mode = #tpu.pipeline_mode<synchronous>, transform_indices = @transform_10, window_bounds = array<i64: 1, 32>}, {pipeline_mode = #tpu.pipeline_mode<synchronous>, transform_indices = @transform_11, window_bounds = array<i64: 160, 20>}, {pipeline_mode = #tpu.pipeline_mode<synchronous>, transform_indices = @transform_12, window_bounds = array<i64: 1, 20>}, {transform_indices = @transform_13, window_bounds = array<i64: 1, 24, 20>}, {transform_indices = @transform_14, window_bounds = array<i64: 1, 24, 20>}]} {
    %c0 = arith.constant 0 : index
    %c0_0 = arith.constant 0 : index
    %c0_1 = arith.constant 0 : index
    %0 = vector.load %arg1[%c0, %c0_0, %c0_1] : memref<1x24x32xf32, #tpu.memory_space<vmem>>, vector<1x24x32xf32>
    %1 = vector.shape_cast %0 : vector<1x24x32xf32> to vector<24x32xf32>
    %c0_2 = arith.constant 0 : index
    %c0_3 = arith.constant 0 : index
    %2 = vector.load %arg2[%c0_2, %c0_3] : memref<32x20xf32, #tpu.memory_space<vmem>>, vector<32x20xf32>
    %cst = arith.constant dense<0.000000e+00> : vector<24x20xf32>
    %3 = tpu.matmul %1, %2, %cst {dimension_numbers = #tpu.dot_dimension_numbers<[1], [0], [0], [1], [0, 0, 1, 1], [], []>} : vector<24x32xf32>, vector<32x20xf32>, vector<24x20xf32> -> vector<24x20xf32>
    %c0_4 = arith.constant 0 : index
    %c0_5 = arith.constant 0 : index
    %4 = vector.load %arg3[%c0_4, %c0_5] : memref<1x20xf32, #tpu.memory_space<vmem>>, vector<1x20xf32>
    %5 = vector.broadcast %4 : vector<1x20xf32> to vector<24x20xf32>
    %6 = arith.addf %3, %5 : vector<24x20xf32>
    %c0_6 = arith.constant 0 : index
    %c0_7 = arith.constant 0 : index
    %7 = vector.load %arg4[%c0_6, %c0_7] : memref<100x32xf32, #tpu.memory_space<vmem>>, vector<100x32xf32>
    %c0_8 = arith.constant 0 : index
    %c0_9 = arith.constant 0 : index
    %8 = vector.load %arg5[%c0_8, %c0_9] : memref<1x32xf32, #tpu.memory_space<vmem>>, vector<1x32xf32>
    %cst_10 = arith.constant 0.000000e+00 : f32
    %9 = vector.broadcast %cst_10 : f32 to vector<2x20xf32>
    %10 = tpu.concatenate %9, %6, %9 in 0 : vector<2x20xf32>, vector<24x20xf32>, vector<2x20xf32> -> vector<28x20xf32>
    %11 = vector.extract_strided_slice %10 {offsets = [0, 0], sizes = [24, 20], strides = [1, 1]} : vector<28x20xf32> to vector<24x20xf32>
    %12 = vector.extract_strided_slice %10 {offsets = [1, 0], sizes = [24, 20], strides = [1, 1]} : vector<28x20xf32> to vector<24x20xf32>
    %13 = vector.extract_strided_slice %10 {offsets = [2, 0], sizes = [24, 20], strides = [1, 1]} : vector<28x20xf32> to vector<24x20xf32>
    %14 = vector.extract_strided_slice %10 {offsets = [3, 0], sizes = [24, 20], strides = [1, 1]} : vector<28x20xf32> to vector<24x20xf32>
    %15 = vector.extract_strided_slice %10 {offsets = [4, 0], sizes = [24, 20], strides = [1, 1]} : vector<28x20xf32> to vector<24x20xf32>
    %16 = tpu.concatenate %11, %12, %13, %14, %15 in 1 : vector<24x20xf32>, vector<24x20xf32>, vector<24x20xf32>, vector<24x20xf32>, vector<24x20xf32> -> vector<24x100xf32>
    %cst_11 = arith.constant dense<0.000000e+00> : vector<24x32xf32>
    %17 = tpu.matmul %16, %7, %cst_11 {dimension_numbers = #tpu.dot_dimension_numbers<[1], [0], [0], [1], [0, 0, 1, 1], [], []>} : vector<24x100xf32>, vector<100x32xf32>, vector<24x32xf32> -> vector<24x32xf32>
    %18 = vector.broadcast %8 : vector<1x32xf32> to vector<24x32xf32>
    %19 = arith.addf %17, %18 : vector<24x32xf32>
    %20 = math.tanh %19 : vector<24x32xf32>
    %c0_12 = arith.constant 0 : index
    %c0_13 = arith.constant 0 : index
    %21 = vector.load %arg6[%c0_12, %c0_13] : memref<160x32xf32, #tpu.memory_space<vmem>>, vector<160x32xf32>
    %c0_14 = arith.constant 0 : index
    %c0_15 = arith.constant 0 : index
    %22 = vector.load %arg7[%c0_14, %c0_15] : memref<1x32xf32, #tpu.memory_space<vmem>>, vector<1x32xf32>
    %cst_16 = arith.constant 0.000000e+00 : f32
    %23 = vector.broadcast %cst_16 : f32 to vector<2x32xf32>
    %24 = tpu.concatenate %23, %20, %23 in 0 : vector<2x32xf32>, vector<24x32xf32>, vector<2x32xf32> -> vector<28x32xf32>
    %25 = vector.extract_strided_slice %24 {offsets = [0, 0], sizes = [24, 32], strides = [1, 1]} : vector<28x32xf32> to vector<24x32xf32>
    %26 = vector.extract_strided_slice %24 {offsets = [1, 0], sizes = [24, 32], strides = [1, 1]} : vector<28x32xf32> to vector<24x32xf32>
    %27 = vector.extract_strided_slice %24 {offsets = [2, 0], sizes = [24, 32], strides = [1, 1]} : vector<28x32xf32> to vector<24x32xf32>
    %28 = vector.extract_strided_slice %24 {offsets = [3, 0], sizes = [24, 32], strides = [1, 1]} : vector<28x32xf32> to vector<24x32xf32>
    %29 = vector.extract_strided_slice %24 {offsets = [4, 0], sizes = [24, 32], strides = [1, 1]} : vector<28x32xf32> to vector<24x32xf32>
    %30 = tpu.concatenate %25, %26, %27, %28, %29 in 1 : vector<24x32xf32>, vector<24x32xf32>, vector<24x32xf32>, vector<24x32xf32>, vector<24x32xf32> -> vector<24x160xf32>
    %cst_17 = arith.constant dense<0.000000e+00> : vector<24x32xf32>
    %31 = tpu.matmul %30, %21, %cst_17 {dimension_numbers = #tpu.dot_dimension_numbers<[1], [0], [0], [1], [0, 0, 1, 1], [], []>} : vector<24x160xf32>, vector<160x32xf32>, vector<24x32xf32> -> vector<24x32xf32>
    %32 = vector.broadcast %22 : vector<1x32xf32> to vector<24x32xf32>
    %33 = arith.addf %31, %32 : vector<24x32xf32>
    %34 = math.tanh %33 : vector<24x32xf32>
    %c0_18 = arith.constant 0 : index
    %c0_19 = arith.constant 0 : index
    %35 = vector.load %arg8[%c0_18, %c0_19] : memref<160x32xf32, #tpu.memory_space<vmem>>, vector<160x32xf32>
    %c0_20 = arith.constant 0 : index
    %c0_21 = arith.constant 0 : index
    %36 = vector.load %arg9[%c0_20, %c0_21] : memref<1x32xf32, #tpu.memory_space<vmem>>, vector<1x32xf32>
    %cst_22 = arith.constant 0.000000e+00 : f32
    %37 = vector.broadcast %cst_22 : f32 to vector<2x32xf32>
    %38 = tpu.concatenate %37, %34, %37 in 0 : vector<2x32xf32>, vector<24x32xf32>, vector<2x32xf32> -> vector<28x32xf32>
    %39 = vector.extract_strided_slice %38 {offsets = [0, 0], sizes = [24, 32], strides = [1, 1]} : vector<28x32xf32> to vector<24x32xf32>
    %40 = vector.extract_strided_slice %38 {offsets = [1, 0], sizes = [24, 32], strides = [1, 1]} : vector<28x32xf32> to vector<24x32xf32>
    %41 = vector.extract_strided_slice %38 {offsets = [2, 0], sizes = [24, 32], strides = [1, 1]} : vector<28x32xf32> to vector<24x32xf32>
    %42 = vector.extract_strided_slice %38 {offsets = [3, 0], sizes = [24, 32], strides = [1, 1]} : vector<28x32xf32> to vector<24x32xf32>
    %43 = vector.extract_strided_slice %38 {offsets = [4, 0], sizes = [24, 32], strides = [1, 1]} : vector<28x32xf32> to vector<24x32xf32>
    %44 = tpu.concatenate %39, %40, %41, %42, %43 in 1 : vector<24x32xf32>, vector<24x32xf32>, vector<24x32xf32>, vector<24x32xf32>, vector<24x32xf32> -> vector<24x160xf32>
    %cst_23 = arith.constant dense<0.000000e+00> : vector<24x32xf32>
    %45 = tpu.matmul %44, %35, %cst_23 {dimension_numbers = #tpu.dot_dimension_numbers<[1], [0], [0], [1], [0, 0, 1, 1], [], []>} : vector<24x160xf32>, vector<160x32xf32>, vector<24x32xf32> -> vector<24x32xf32>
    %46 = vector.broadcast %36 : vector<1x32xf32> to vector<24x32xf32>
    %47 = arith.addf %45, %46 : vector<24x32xf32>
    %48 = math.tanh %47 : vector<24x32xf32>
    %c0_24 = arith.constant 0 : index
    %c0_25 = arith.constant 0 : index
    %49 = vector.load %arg10[%c0_24, %c0_25] : memref<160x32xf32, #tpu.memory_space<vmem>>, vector<160x32xf32>
    %c0_26 = arith.constant 0 : index
    %c0_27 = arith.constant 0 : index
    %50 = vector.load %arg11[%c0_26, %c0_27] : memref<1x32xf32, #tpu.memory_space<vmem>>, vector<1x32xf32>
    %cst_28 = arith.constant 0.000000e+00 : f32
    %51 = vector.broadcast %cst_28 : f32 to vector<2x32xf32>
    %52 = tpu.concatenate %51, %48, %51 in 0 : vector<2x32xf32>, vector<24x32xf32>, vector<2x32xf32> -> vector<28x32xf32>
    %53 = vector.extract_strided_slice %52 {offsets = [0, 0], sizes = [24, 32], strides = [1, 1]} : vector<28x32xf32> to vector<24x32xf32>
    %54 = vector.extract_strided_slice %52 {offsets = [1, 0], sizes = [24, 32], strides = [1, 1]} : vector<28x32xf32> to vector<24x32xf32>
    %55 = vector.extract_strided_slice %52 {offsets = [2, 0], sizes = [24, 32], strides = [1, 1]} : vector<28x32xf32> to vector<24x32xf32>
    %56 = vector.extract_strided_slice %52 {offsets = [3, 0], sizes = [24, 32], strides = [1, 1]} : vector<28x32xf32> to vector<24x32xf32>
    %57 = vector.extract_strided_slice %52 {offsets = [4, 0], sizes = [24, 32], strides = [1, 1]} : vector<28x32xf32> to vector<24x32xf32>
    %58 = tpu.concatenate %53, %54, %55, %56, %57 in 1 : vector<24x32xf32>, vector<24x32xf32>, vector<24x32xf32>, vector<24x32xf32>, vector<24x32xf32> -> vector<24x160xf32>
    %cst_29 = arith.constant dense<0.000000e+00> : vector<24x32xf32>
    %59 = tpu.matmul %58, %49, %cst_29 {dimension_numbers = #tpu.dot_dimension_numbers<[1], [0], [0], [1], [0, 0, 1, 1], [], []>} : vector<24x160xf32>, vector<160x32xf32>, vector<24x32xf32> -> vector<24x32xf32>
    %60 = vector.broadcast %50 : vector<1x32xf32> to vector<24x32xf32>
    %61 = arith.addf %59, %60 : vector<24x32xf32>
    %62 = math.tanh %61 : vector<24x32xf32>
    %c0_30 = arith.constant 0 : index
    %c0_31 = arith.constant 0 : index
    %63 = vector.load %arg12[%c0_30, %c0_31] : memref<160x20xf32, #tpu.memory_space<vmem>>, vector<160x20xf32>
    %c0_32 = arith.constant 0 : index
    %c0_33 = arith.constant 0 : index
    %64 = vector.load %arg13[%c0_32, %c0_33] : memref<1x20xf32, #tpu.memory_space<vmem>>, vector<1x20xf32>
    %cst_34 = arith.constant 0.000000e+00 : f32
    %65 = vector.broadcast %cst_34 : f32 to vector<2x32xf32>
    %66 = tpu.concatenate %65, %62, %65 in 0 : vector<2x32xf32>, vector<24x32xf32>, vector<2x32xf32> -> vector<28x32xf32>
    %67 = vector.extract_strided_slice %66 {offsets = [0, 0], sizes = [24, 32], strides = [1, 1]} : vector<28x32xf32> to vector<24x32xf32>
    %68 = vector.extract_strided_slice %66 {offsets = [1, 0], sizes = [24, 32], strides = [1, 1]} : vector<28x32xf32> to vector<24x32xf32>
    %69 = vector.extract_strided_slice %66 {offsets = [2, 0], sizes = [24, 32], strides = [1, 1]} : vector<28x32xf32> to vector<24x32xf32>
    %70 = vector.extract_strided_slice %66 {offsets = [3, 0], sizes = [24, 32], strides = [1, 1]} : vector<28x32xf32> to vector<24x32xf32>
    %71 = vector.extract_strided_slice %66 {offsets = [4, 0], sizes = [24, 32], strides = [1, 1]} : vector<28x32xf32> to vector<24x32xf32>
    %72 = tpu.concatenate %67, %68, %69, %70, %71 in 1 : vector<24x32xf32>, vector<24x32xf32>, vector<24x32xf32>, vector<24x32xf32>, vector<24x32xf32> -> vector<24x160xf32>
    %cst_35 = arith.constant dense<0.000000e+00> : vector<24x20xf32>
    %73 = tpu.matmul %72, %63, %cst_35 {dimension_numbers = #tpu.dot_dimension_numbers<[1], [0], [0], [1], [0, 0, 1, 1], [], []>} : vector<24x160xf32>, vector<160x20xf32>, vector<24x20xf32> -> vector<24x20xf32>
    %74 = vector.broadcast %64 : vector<1x20xf32> to vector<24x20xf32>
    %75 = arith.addf %73, %74 : vector<24x20xf32>
    %c0_36 = arith.constant 0 : index
    %c0_37 = arith.constant 0 : index
    %c0_38 = arith.constant 0 : index
    %76 = vector.load %arg14[%c0_36, %c0_37, %c0_38] : memref<1x24x20xf32, #tpu.memory_space<vmem>>, vector<1x24x20xf32>
    %77 = vector.shape_cast %76 : vector<1x24x20xf32> to vector<24x20xf32>
    %78 = vector.shape_cast %6 : vector<24x20xf32> to vector<1x24x20xf32>
    tpu.vector_store %arg14[%c0_36, %c0_37, %c0_38], %78 {strides = array<i32>} : memref<1x24x20xf32, #tpu.memory_space<vmem>>, vector<1x24x20xf32>,
    %79 = arith.addf %75, %6 : vector<24x20xf32>
    %c0_39 = arith.constant 0 : index
    %c0_40 = arith.constant 0 : index
    %c0_41 = arith.constant 0 : index
    %80 = vector.load %arg15[%c0_39, %c0_40, %c0_41] : memref<1x24x20xf32, #tpu.memory_space<vmem>>, vector<1x24x20xf32>
    %81 = vector.shape_cast %80 : vector<1x24x20xf32> to vector<24x20xf32>
    %82 = vector.shape_cast %79 : vector<24x20xf32> to vector<1x24x20xf32>
    tpu.vector_store %arg15[%c0_39, %c0_40, %c0_41], %82 {strides = array<i32>} : memref<1x24x20xf32, #tpu.memory_space<vmem>>, vector<1x24x20xf32>,
    return
  }
  func.func @transform_0(%arg0: i32) -> (i32, i32, i32) {
    %c0_i32 = arith.constant 0 : i32
    %c0_i32_0 = arith.constant 0 : i32
    %c0_i32_1 = arith.constant 0 : i32
    return %arg0, %c0_i32, %c0_i32_0 : i32, i32, i32
  }
  func.func @transform_1(%arg0: i32) -> (i32, i32) {
    %c0_i32 = arith.constant 0 : i32
    %c0_i32_0 = arith.constant 0 : i32
    %c0_i32_1 = arith.constant 0 : i32
    return %c0_i32, %c0_i32_0 : i32, i32
  }
  func.func @transform_2(%arg0: i32) -> (i32, i32) {
    %c0_i32 = arith.constant 0 : i32
    %c0_i32_0 = arith.constant 0 : i32
    %c0_i32_1 = arith.constant 0 : i32
    return %c0_i32, %c0_i32_0 : i32, i32
  }
  func.func @transform_3(%arg0: i32) -> (i32, i32) {
    %c0_i32 = arith.constant 0 : i32
    %c0_i32_0 = arith.constant 0 : i32
    %c0_i32_1 = arith.constant 0 : i32
    return %c0_i32, %c0_i32_0 : i32, i32
  }
  func.func @transform_4(%arg0: i32) -> (i32, i32) {
    %c0_i32 = arith.constant 0 : i32
    %c0_i32_0 = arith.constant 0 : i32
    %c0_i32_1 = arith.constant 0 : i32
    return %c0_i32, %c0_i32_0 : i32, i32
  }
  func.func @transform_5(%arg0: i32) -> (i32, i32) {
    %c0_i32 = arith.constant 0 : i32
    %c0_i32_0 = arith.constant 0 : i32
    %c0_i32_1 = arith.constant 0 : i32
    return %c0_i32, %c0_i32_0 : i32, i32
  }
  func.func @transform_6(%arg0: i32) -> (i32, i32) {
    %c0_i32 = arith.constant 0 : i32
    %c0_i32_0 = arith.constant 0 : i32
    %c0_i32_1 = arith.constant 0 : i32
    return %c0_i32, %c0_i32_0 : i32, i32
  }
  func.func @transform_7(%arg0: i32) -> (i32, i32) {
    %c0_i32 = arith.constant 0 : i32
    %c0_i32_0 = arith.constant 0 : i32
    %c0_i32_1 = arith.constant 0 : i32
    return %c0_i32, %c0_i32_0 : i32, i32
  }
  func.func @transform_8(%arg0: i32) -> (i32, i32) {
    %c0_i32 = arith.constant 0 : i32
    %c0_i32_0 = arith.constant 0 : i32
    %c0_i32_1 = arith.constant 0 : i32
    return %c0_i32, %c0_i32_0 : i32, i32
  }
  func.func @transform_9(%arg0: i32) -> (i32, i32) {
    %c0_i32 = arith.constant 0 : i32
    %c0_i32_0 = arith.constant 0 : i32
    %c0_i32_1 = arith.constant 0 : i32
    return %c0_i32, %c0_i32_0 : i32, i32
  }
  func.func @transform_10(%arg0: i32) -> (i32, i32) {
    %c0_i32 = arith.constant 0 : i32
    %c0_i32_0 = arith.constant 0 : i32
    %c0_i32_1 = arith.constant 0 : i32
    return %c0_i32, %c0_i32_0 : i32, i32
  }
  func.func @transform_11(%arg0: i32) -> (i32, i32) {
    %c0_i32 = arith.constant 0 : i32
    %c0_i32_0 = arith.constant 0 : i32
    %c0_i32_1 = arith.constant 0 : i32
    return %c0_i32, %c0_i32_0 : i32, i32
  }
  func.func @transform_12(%arg0: i32) -> (i32, i32) {
    %c0_i32 = arith.constant 0 : i32
    %c0_i32_0 = arith.constant 0 : i32
    %c0_i32_1 = arith.constant 0 : i32
    return %c0_i32, %c0_i32_0 : i32, i32
  }
  func.func @transform_13(%arg0: i32) -> (i32, i32, i32) {
    %c0_i32 = arith.constant 0 : i32
    %c0_i32_0 = arith.constant 0 : i32
    %c0_i32_1 = arith.constant 0 : i32
    return %arg0, %c0_i32, %c0_i32_0 : i32, i32, i32
  }
  func.func @transform_14(%arg0: i32) -> (i32, i32, i32) {
    %c0_i32 = arith.constant 0 : i32
    %c0_i32_0 = arith.constant 0 : i32
    %c0_i32_1 = arith.constant 0 : i32
    return %arg0, %c0_i32, %c0_i32_0 : i32, i32, i32
  }
}

</mosaic_0001>

<llo_original>
// kernel: ne.11
$region0: #{ne.11}
  #allocation0 [shape = 's32[1]{0}', space=sflag, size = 0x4, scoped, tag = 'scoped memory for ne.11']
  %s0 = inlined_call_operand.vmem [shape: f32[2,24], index: 0, kind: input, shape index: {}, may-alias: {0,1}]
  %s1 = inlined_call_operand.vmem [shape: f32[2,24], index: 1, kind: input, shape index: {}, may-alias: {0,1}]
  %s2 = inlined_call_operand.vmem [shape: pred[2,24], index: 2, kind: output, shape index: {}]
  %v3 = vld [vmem:[%s0] sm:$0x3]
  %v4 = vld [vmem:[%s1] sm:$0x3]
  %5 = xla_tuple %v3, %v4
  %6 = xla_tuple %5
  %vm7 = vcmp.ne.f32.partialorder %v3, %v4
  %v8 = vsel %vm7, 1, 0
  %9 = xla_tuple %v8
  %v10 = vpack.c.b16 0, %v8
  %v11 = vpack.c.b8 0, %v10
  %13 = vst [vmem:[%s2] sm:$0x1] %v11

// kernel: custom-call.5
$region0: #{custom-call.5}
  %s0 = inlined_call_operand.vmem [shape: u32[2,24], index: 0, kind: output, shape index: {}]

// kernel: squeeze.17
$region0: #{squeeze.17}
  %s0 = inlined_call_operand.vmem [shape: f32[48], index: 0, kind: input, shape index: {}]
  %s1 = inlined_call_operand.vmem [shape: f32[2,24], index: 1, kind: output, shape index: {}]
  $region1: #{squeeze.17} parent=0
    #allocation0 [shape = 'u8[4096]{0}', space=vmem, size = 0x1000, scoped, tag = 'scoped mem for output reshape']
    #allocation1 [shape = 'u8[4096]{0}', space=vmem, size = 0x1000, scoped, tag = 'scoped mem for input reshape']
    %s3 = sshllo.u32 0, 1
    %v4 = vld [vmem:[%s0] sm:%s3]
    %5 = vst [vmem:[#allocation1] sm:%s3] %v4
    %v6 = vld [vmem:[#allocation1] sm:$0x1]
    %vm7 = vcmask 195584
    %8 = vst.msk [vmem:[#allocation0] sm:$0x1] %vm7, %v6
    %v9 = vld [vmem:[#allocation1] sm:$0x1]
    %10 = vrot.lane.b32.xlu0 %v9, 104
    %v11 = vpop.permute.xlu0 %10
    %vm12 = vcmask 195584
    %s13 = scalar_lea.vmem [#allocation0], 1
    %14 = vst.msk [vmem:[%s13] sm:$0x1] %vm12, %v11
    %s16 = sshllo.u32 0, 2
    %v18 = vld [vmem:[#allocation0] sm:%s16]
    %s19 = sshllo.u32 0, 2
    %20 = vst [vmem:[%s1] sm:%s19] %v18

// kernel: fastspeech2_forward.10
$region0: #{fastspeech2_forward.10}
  #allocation0 [shape = 'u32[]', space=smem, size = 0x4, offset = 0x4, fixed_abs, tag = 'smem constant byte address 0x4 - core index']
  #allocation1 [shape = 'u32[144,128]{1,0:T(1,128)}', space=vmem, size = 0x12000, scoped, tag = 'internal scratch']
  #allocation2 [shape = 'f32[1,1]{1,0:T(1,128)S(1)}', space=vmem, size = 0x200, scoped, tag = 'scoped memory for fastspeech2_forward.10']
  %s0 = inlined_call_operand.vmem [shape: f32[2,8,32], index: 0, kind: input, shape index: {}]
  %s1 = inlined_call_operand.vmem [shape: f32[2,1,8], index: 1, kind: input, shape index: {}]
  %s2 = inlined_call_operand.vmem [shape: f32[96,32], index: 2, kind: input, shape index: {}]
  %s3 = inlined_call_operand.vmem [shape: f32[1,32], index: 3, kind: input, shape index: {}]
  %s4 = inlined_call_operand.vmem [shape: f32[1,32], index: 4, kind: input, shape index: {}, may-alias: {4,8}]
  %s5 = inlined_call_operand.vmem [shape: f32[1,32], index: 5, kind: input, shape index: {}, may-alias: {5,9}]
  %s6 = inlined_call_operand.vmem [shape: f32[96,32], index: 6, kind: input, shape index: {}]
  %s7 = inlined_call_operand.vmem [shape: f32[1,32], index: 7, kind: input, shape index: {}]
  %s8 = inlined_call_operand.vmem [shape: f32[1,32], index: 8, kind: input, shape index: {}, may-alias: {4,8}]
  %s9 = inlined_call_operand.vmem [shape: f32[1,32], index: 9, kind: input, shape index: {}, may-alias: {5,9}]
  %s10 = inlined_call_operand.vmem [shape: f32[1,32], index: 10, kind: input, shape index: {}]
  %s11 = inlined_call_operand.<no memory space> [shape: f32[1,1], index: 11, kind: input, shape index: {}]
  %s12 = inlined_call_operand.hbm [shape: f32[2,1,8], index: 12, kind: output, shape index: {}]
  %s13 = sld [smem:[#allocation0]]
  $region81: #{fastspeech2_forward.10} parent=0
    _
  %s15 = ssub.s32 1, %s13
  %s16 = scalar_select 0, %s15, %s13
  %v17 = vstv %s11
  %18 = vst [vmem:[#allocation2] sm:$0x1] %v17
  $region1: #{fastspeech2_forward.10} parent=0
    #allocation3 [shape = 'u8[1024]{0}', space=vmem, size = 0x400, scoped, tag = 'output window, operand 0']
    #allocation4 [shape = 's32[2]{0}', space=sflag, size = 0x8, scoped, tag = 'scoped memory for fastspeech2_forward.10']
    %19 = vsyncpa [#allocation4], 0
    %s20 = scalar_lea.sflag [#allocation4], 1
    %21 = vsyncpa %s20, 0
    loop: start=0, step=1, limit=4
    $region2: #{fastspeech2_forward.10} parent=1 // loop_pre_header
      _
    $region3: #{fastspeech2_forward.10} parent=1 // loop_header
      %s23 = sphi 0, %s27
      %p24 = scmp.ge.s32.totalorder %s23, 4
      %s33 = sphi 0, %s35
      %s36 = sphi 0, %s33
      %s37 = sphi 0, %s36
      %s53 = sphi 0, %s37
      %s59 = sphi 0, %s61
      %s62 = sphi 0, %s59
      %s63 = sphi 0, %s62
      %s79 = sphi 0, %s63
      %s83 = sphi 0, %s83
      %s85 = sphi 0, %s83
      %s86 = sphi 0, %s85
      %s100 = sphi 0, %s86
      %s104 = sphi 0, %s104
      %s106 = sphi 0, %s104
      %s107 = sphi 0, %s106
      %s121 = sphi 0, %s107
      %s125 = sphi 0, %s125
      %s127 = sphi 0, %s125
      %s128 = sphi 0, %s127
      %s142 = sphi 0, %s128
      %s146 = sphi 0, %s146
      %s148 = sphi 0, %s146
      %s149 = sphi 0, %s148
      %s163 = sphi 0, %s149
      %s167 = sphi 0, %s167
      %s169 = sphi 0, %s167
      %s170 = sphi 0, %s169
      %s184 = sphi 0, %s170
      %s188 = sphi 0, %s188
      %s190 = sphi 0, %s188
      %s191 = sphi 0, %s190
      %s205 = sphi 0, %s191
      %s209 = sphi 0, %s209
      %s211 = sphi 0, %s209
      %s212 = sphi 0, %s211
      %s226 = sphi 0, %s212
      %s230 = sphi 0, %s230
      %s232 = sphi 0, %s230
      %s233 = sphi 0, %s232
      %s247 = sphi 0, %s233
      %s251 = sphi 0, %s251
      %s253 = sphi 0, %s251
      %s254 = sphi 0, %s253
      %s268 = sphi 0, %s254
      %s272 = sphi 0, %s272
      %s274 = sphi 0, %s272
      %s275 = sphi 0, %s274
      %s289 = sphi 0, %s275
      %s295 = sphi 0, %s297
      %s298 = sphi 0, %s295
      %s299 = sphi 0, %s298
      %s315 = sphi 0, %s299
    $region4: #{fastspeech2_forward.10} parent=1 // loop_header_branch
      %26 = sbr.rel (%p24) target = $region8
    $region5: #{fastspeech2_forward.10} parent=1 // loop_body
      %s28 = ssub.s32 %s23, 1
      %s29 = ssub.s32 %s23, 2
      %s30 = sadd.s32 %s23, 1
      %s31 = ssub.s32 %s23, %s30
      %p32 = scmp.eq.s32.totalorder %s31, 0
      %s34 = sadd.s32 %s33, 1
      %s35 = scalar_select %p32, %s33, %s34
      %p38 = pneg %p32
      %p39 = scmp.eq.s32.totalorder %s23, 1
      %p40 = por %p38, %p39
      %p41 = scmp.ne.s32.totalorder %s33, %s36
      %p42 = scmp.eq.s32.totalorder %s23, 0
      %p43 = por %p41, %p42
      %p44 = scmp.ne.s32.totalorder %s33, %s36
      %p45 = scmp.eq.s32.totalorder %s28, 1
      %p46 = por %p44, %p45
      %p47 = scmp.ne.s32.totalorder %s36, %s37
      %p48 = scmp.eq.s32.totalorder %s28, 0
      %p49 = por %p47, %p48
      %p50 = scmp.ne.s32.totalorder %s36, %s37
      %p51 = scmp.eq.s32.totalorder %s29, 1
      %p52 = por %p50, %p51
      %p54 = scmp.ne.s32.totalorder %s37, %s53
      %p55 = scmp.eq.s32.totalorder %s29, 0
      %p56 = por %p54, %p55
      %s57 = ssub.s32 %s23, %s30
      %p58 = scmp.eq.s32.totalorder %s57, 0
      %s60 = sadd.s32 %s59, 1
      %s61 = scalar_select %p58, %s59, %s60
      %p64 = pneg %p58
      %p65 = scmp.eq.s32.totalorder %s23, 1
      %p66 = por %p64, %p65
      %p67 = scmp.ne.s32.totalorder %s59, %s62
      %p68 = scmp.eq.s32.totalorder %s23, 0
      %p69 = por %p67, %p68
      %p70 = scmp.ne.s32.totalorder %s59, %s62
      %p71 = scmp.eq.s32.totalorder %s28, 1
      %p72 = por %p70, %p71
      %p73 = scmp.ne.s32.totalorder %s62, %s63
      %p74 = scmp.eq.s32.totalorder %s28, 0
      %p75 = por %p73, %p74
      %p76 = scmp.ne.s32.totalorder %s62, %s63
      %p77 = scmp.eq.s32.totalorder %s29, 1
      %p78 = por %p76, %p77
      %p80 = scmp.ne.s32.totalorder %s63, %s79
      %p81 = scmp.eq.s32.totalorder %s29, 0
      %p82 = por %p80, %p81
      %s84 = sadd.s32 %s83, 1
      %p87 = scmp.eq.s32.totalorder %s23, 1
      %p88 = scmp.ne.s32.totalorder %s83, %s85
      %p89 = scmp.eq.s32.totalorder %s23, 0
      %p90 = por %p88, %p89
      %p91 = scmp.ne.s32.totalorder %s83, %s85
      %p92 = scmp.eq.s32.totalorder %s28, 1
      %p93 = por %p91, %p92
      %p94 = scmp.ne.s32.totalorder %s85, %s86
      %p95 = scmp.eq.s32.totalorder %s28, 0
      %p96 = por %p94, %p95
      %p97 = scmp.ne.s32.totalorder %s85, %s86
      %p98 = scmp.eq.s32.totalorder %s29, 1
      %p99 = por %p97, %p98
      %p101 = scmp.ne.s32.totalorder %s86, %s100
      %p102 = scmp.eq.s32.totalorder %s29, 0
      %p103 = por %p101, %p102
      %s105 = sadd.s32 %s104, 1
      %p108 = scmp.eq.s32.totalorder %s23, 1
      %p109 = scmp.ne.s32.totalorder %s104, %s106
      %p110 = scmp.eq.s32.totalorder %s23, 0
      %p111 = por %p109, %p110
      %p112 = scmp.ne.s32.totalorder %s104, %s106
      %p113 = scmp.eq.s32.totalorder %s28, 1
      %p114 = por %p112, %p113
      %p115 = scmp.ne.s32.totalorder %s106, %s107
      %p116 = scmp.eq.s32.totalorder %s28, 0
      %p117 = por %p115, %p116
      %p118 = scmp.ne.s32.totalorder %s106, %s107
      %p119 = scmp.eq.s32.totalorder %s29, 1
      %p120 = por %p118, %p119
      %p122 = scmp.ne.s32.totalorder %s107, %s121
      %p123 = scmp.eq.s32.totalorder %s29, 0
      %p124 = por %p122, %p123
      %s126 = sadd.s32 %s125, 1
      %p129 = scmp.eq.s32.totalorder %s23, 1
      %p130 = scmp.ne.s32.totalorder %s125, %s127
      %p131 = scmp.eq.s32.totalorder %s23, 0
      %p132 = por %p130, %p131
      %p133 = scmp.ne.s32.totalorder %s125, %s127
      %p134 = scmp.eq.s32.totalorder %s28, 1
      %p135 = por %p133, %p134
      %p136 = scmp.ne.s32.totalorder %s127, %s128
      %p137 = scmp.eq.s32.totalorder %s28, 0
      %p138 = por %p136, %p137
      %p139 = scmp.ne.s32.totalorder %s127, %s128
      %p140 = scmp.eq.s32.totalorder %s29, 1
      %p141 = por %p139, %p140
      %p143 = scmp.ne.s32.totalorder %s128, %s142
      %p144 = scmp.eq.s32.totalorder %s29, 0
      %p145 = por %p143, %p144
      %s147 = sadd.s32 %s146, 1
      %p150 = scmp.eq.s32.totalorder %s23, 1
      %p151 = scmp.ne.s32.totalorder %s146, %s148
      %p152 = scmp.eq.s32.totalorder %s23, 0
      %p153 = por %p151, %p152
      %p154 = scmp.ne.s32.totalorder %s146, %s148
      %p155 = scmp.eq.s32.totalorder %s28, 1
      %p156 = por %p154, %p155
      %p157 = scmp.ne.s32.totalorder %s148, %s149
      %p158 = scmp.eq.s32.totalorder %s28, 0
      %p159 = por %p157, %p158
      %p160 = scmp.ne.s32.totalorder %s148, %s149
      %p161 = scmp.eq.s32.totalorder %s29, 1
      %p162 = por %p160, %p161
      %p164 = scmp.ne.s32.totalorder %s149, %s163
      %p165 = scmp.eq.s32.totalorder %s29, 0
      %p166 = por %p164, %p165
      %s168 = sadd.s32 %s167, 1
      %p171 = scmp.eq.s32.totalorder %s23, 1
      %p172 = scmp.ne.s32.totalorder %s167, %s169
      %p173 = scmp.eq.s32.totalorder %s23, 0
      %p174 = por %p172, %p173
      %p175 = scmp.ne.s32.totalorder %s167, %s169
      %p176 = scmp.eq.s32.totalorder %s28, 1
      %p177 = por %p175, %p176
      %p178 = scmp.ne.s32.totalorder %s169, %s170
      %p179 = scmp.eq.s32.totalorder %s28, 0
      %p180 = por %p178, %p179
      %p181 = scmp.ne.s32.totalorder %s169, %s170
      %p182 = scmp.eq.s32.totalorder %s29, 1
      %p183 = por %p181, %p182
      %p185 = scmp.ne.s32.totalorder %s170, %s184
      %p186 = scmp.eq.s32.totalorder %s29, 0
      %p187 = por %p185, %p186
      %s189 = sadd.s32 %s188, 1
      %p192 = scmp.eq.s32.totalorder %s23, 1
      %p193 = scmp.ne.s32.totalorder %s188, %s190
      %p194 = scmp.eq.s32.totalorder %s23, 0
      %p195 = por %p193, %p194
      %p196 = scmp.ne.s32.totalorder %s188, %s190
      %p197 = scmp.eq.s32.totalorder %s28, 1
      %p198 = por %p196, %p197
      %p199 = scmp.ne.s32.totalorder %s190, %s191
      %p200 = scmp.eq.s32.totalorder %s28, 0
      %p201 = por %p199, %p200
      %p202 = scmp.ne.s32.totalorder %s190, %s191
      %p203 = scmp.eq.s32.totalorder %s29, 1
      %p204 = por %p202, %p203
      %p206 = scmp.ne.s32.totalorder %s191, %s205
      %p207 = scmp.eq.s32.totalorder %s29, 0
      %p208 = por %p206, %p207
      %s210 = sadd.s32 %s209, 1
      %p213 = scmp.eq.s32.totalorder %s23, 1
      %p214 = scmp.ne.s32.totalorder %s209, %s211
      %p215 = scmp.eq.s32.totalorder %s23, 0
      %p216 = por %p214, %p215
      %p217 = scmp.ne.s32.totalorder %s209, %s211
      %p218 = scmp.eq.s32.totalorder %s28, 1
      %p219 = por %p217, %p218
      %p220 = scmp.ne.s32.totalorder %s211, %s212
      %p221 = scmp.eq.s32.totalorder %s28, 0
      %p222 = por %p220, %p221
      %p223 = scmp.ne.s32.totalorder %s211, %s212
      %p224 = scmp.eq.s32.totalorder %s29, 1
      %p225 = por %p223, %p224
      %p227 = scmp.ne.s32.totalorder %s212, %s226
      %p228 = scmp.eq.s32.totalorder %s29, 0
      %p229 = por %p227, %p228
      %s231 = sadd.s32 %s230, 1
      %p234 = scmp.eq.s32.totalorder %s23, 1
      %p235 = scmp.ne.s32.totalorder %s230, %s232
      %p236 = scmp.eq.s32.totalorder %s23, 0
      %p237 = por %p235, %p236
      %p238 = scmp.ne.s32.totalorder %s230, %s232
      %p239 = scmp.eq.s32.totalorder %s28, 1
      %p240 = por %p238, %p239
      %p241 = scmp.ne.s32.totalorder %s232, %s233
      %p242 = scmp.eq.s32.totalorder %s28, 0
      %p243 = por %p241, %p242
      %p244 = scmp.ne.s32.totalorder %s232, %s233
      %p245 = scmp.eq.s32.totalorder %s29, 1
      %p246 = por %p244, %p245
      %p248 = scmp.ne.s32.totalorder %s233, %s247
      %p249 = scmp.eq.s32.totalorder %s29, 0
      %p250 = por %p248, %p249
      %s252 = sadd.s32 %s251, 1
      %p255 = scmp.eq.s32.totalorder %s23, 1
      %p256 = scmp.ne.s32.totalorder %s251, %s253
      %p257 = scmp.eq.s32.totalorder %s23, 0
      %p258 = por %p256, %p257
      %p259 = scmp.ne.s32.totalorder %s251, %s253
      %p260 = scmp.eq.s32.totalorder %s28, 1
      %p261 = por %p259, %p260
      %p262 = scmp.ne.s32.totalorder %s253, %s254
      %p263 = scmp.eq.s32.totalorder %s28, 0
      %p264 = por %p262, %p263
      %p265 = scmp.ne.s32.totalorder %s253, %s254
      %p266 = scmp.eq.s32.totalorder %s29, 1
      %p267 = por %p265, %p266
      %p269 = scmp.ne.s32.totalorder %s254, %s268
      %p270 = scmp.eq.s32.totalorder %s29, 0
      %p271 = por %p269, %p270
      %s273 = sadd.s32 %s272, 1
      %p276 = scmp.eq.s32.totalorder %s23, 1
      %p277 = scmp.ne.s32.totalorder %s272, %s274
      %p278 = scmp.eq.s32.totalorder %s23, 0
      %p279 = por %p277, %p278
      %p280 = scmp.ne.s32.totalorder %s272, %s274
      %p281 = scmp.eq.s32.totalorder %s28, 1
      %p282 = por %p280, %p281
      %p283 = scmp.ne.s32.totalorder %s274, %s275
      %p284 = scmp.eq.s32.totalorder %s28, 0
      %p285 = por %p283, %p284
      %p286 = scmp.ne.s32.totalorder %s274, %s275
      %p287 = scmp.eq.s32.totalorder %s29, 1
      %p288 = por %p286, %p287
      %p290 = scmp.ne.s32.totalorder %s275, %s289
      %p291 = scmp.eq.s32.totalorder %s29, 0
      %p292 = por %p290, %p291
      %s293 = ssub.s32 %s23, %s30
      %p294 = scmp.eq.s32.totalorder %s293, 0
      %s296 = sadd.s32 %s295, 1
      %s297 = scalar_select %p294, %s295, %s296
      %p300 = pneg %p294
      %p301 = scmp.eq.s32.totalorder %s23, 1
      %p302 = por %p300, %p301
      %p303 = scmp.ne.s32.totalorder %s295, %s298
      %p304 = scmp.eq.s32.totalorder %s23, 0
      %p305 = por %p303, %p304
      %p306 = scmp.ne.s32.totalorder %s295, %s298
      %p307 = scmp.eq.s32.totalorder %s28, 1
      %p308 = por %p306, %p307
      %p309 = scmp.ne.s32.totalorder %s298, %s299
      %p310 = scmp.eq.s32.totalorder %s28, 0
      %p311 = por %p309, %p310
      %p312 = scmp.ne.s32.totalorder %s298, %s299
      %p313 = scmp.eq.s32.totalorder %s29, 1
      %p314 = por %p312, %p313
      %p316 = scmp.ne.s32.totalorder %s299, %s315
      %p317 = scmp.eq.s32.totalorder %s29, 0
      %p318 = por %p316, %p317
      %p319 = scmp.le.s32.totalorder 1, %s23
      %p320 = scmp.lt.s32.totalorder %s23, 3
      %p321 = pnand %p319, %p320
      %p322 = pneg %p321
      // Predicated region
      $region9: #{fastspeech2_forward.10} parent=5 // pred_check
        _
      $region10: #{fastspeech2_forward.10} parent=5 // pred_check_branch
        %324 = sbr.rel (%p321) target = $region12
      $region11: #{fastspeech2_forward.10} parent=5 // pred_region
        %s325 = ssub.s32 %s23, 1
        // Predicated region
        $region13: #{fastspeech2_forward.10} parent=11 // pred_check
          %p326 = pneg %p96
        $region14: #{fastspeech2_forward.10} parent=11 // pred_check_branch
          %328 = sbr.rel (%p326) target = $region16
        $region15: #{fastspeech2_forward.10} parent=11 // pred_region
          _
        $region16: #{fastspeech2_forward.10} parent=11 // pred_fallthru
          _
        // Predicated region
        $region17: #{fastspeech2_forward.10} parent=11 // pred_check
          %p329 = pneg %p117
        $region18: #{fastspeech2_forward.10} parent=11 // pred_check_branch
          %331 = sbr.rel (%p329) target = $region20
        $region19: #{fastspeech2_forward.10} parent=11 // pred_region
          _
        $region20: #{fastspeech2_forward.10} parent=11 // pred_fallthru
          _
        // Predicated region
        $region21: #{fastspeech2_forward.10} parent=11 // pred_check
          %p332 = pneg %p138
        $region22: #{fastspeech2_forward.10} parent=11 // pred_check_branch
          %334 = sbr.rel (%p332) target = $region24
        $region23: #{fastspeech2_forward.10} parent=11 // pred_region
          _
        $region24: #{fastspeech2_forward.10} parent=11 // pred_fallthru
          _
        // Predicated region
        $region25: #{fastspeech2_forward.10} parent=11 // pred_check
          %p335 = pneg %p159
        $region26: #{fastspeech2_forward.10} parent=11 // pred_check_branch
          %337 = sbr.rel (%p335) target = $region28
        $region27: #{fastspeech2_forward.10} parent=11 // pred_region
          _
        $region28: #{fastspeech2_forward.10} parent=11 // pred_fallthru
          _
        // Predicated region
        $region29: #{fastspeech2_forward.10} parent=11 // pred_check
          %p338 = pneg %p180
        $region30: #{fastspeech2_forward.10} parent=11 // pred_check_branch
          %340 = sbr.rel (%p338) target = $region32
        $region31: #{fastspeech2_forward.10} parent=11 // pred_region
          _
        $region32: #{fastspeech2_forward.10} parent=11 // pred_fallthru
          _
        // Predicated region
        $region33: #{fastspeech2_forward.10} parent=11 // pred_check
          %p341 = pneg %p201
        $region34: #{fastspeech2_forward.10} parent=11 // pred_check_branch
          %343 = sbr.rel (%p341) target = $region36
        $region35: #{fastspeech2_forward.10} parent=11 // pred_region
          _
        $region36: #{fastspeech2_forward.10} parent=11 // pred_fallthru
          _
        // Predicated region
        $region37: #{fastspeech2_forward.10} parent=11 // pred_check
          %p344 = pneg %p222
        $region38: #{fastspeech2_forward.10} parent=11 // pred_check_branch
          %346 = sbr.rel (%p344) target = $region40
        $region39: #{fastspeech2_forward.10} parent=11 // pred_region
          _
        $region40: #{fastspeech2_forward.10} parent=11 // pred_fallthru
          _
        // Predicated region
        $region41: #{fastspeech2_forward.10} parent=11 // pred_check
          %p347 = pneg %p243
        $region42: #{fastspeech2_forward.10} parent=11 // pred_check_branch
          %349 = sbr.rel (%p347) target = $region44
        $region43: #{fastspeech2_forward.10} parent=11 // pred_region
          _
        $region44: #{fastspeech2_forward.10} parent=11 // pred_fallthru
          _
        // Predicated region
        $region45: #{fastspeech2_forward.10} parent=11 // pred_check
          %p350 = pneg %p264
        $region46: #{fastspeech2_forward.10} parent=11 // pred_check_branch
          %352 = sbr.rel (%p350) target = $region48
        $region47: #{fastspeech2_forward.10} parent=11 // pred_region
          _
        $region48: #{fastspeech2_forward.10} parent=11 // pred_fallthru
          _
        // Predicated region
        $region49: #{fastspeech2_forward.10} parent=11 // pred_check
          %p353 = pneg %p285
        $region50: #{fastspeech2_forward.10} parent=11 // pred_check_branch
          %355 = sbr.rel (%p353) target = $region52
        $region51: #{fastspeech2_forward.10} parent=11 // pred_region
          _
        $region52: #{fastspeech2_forward.10} parent=11 // pred_fallthru
          _
      $region12: #{fastspeech2_forward.10} parent=5 // pred_fallthru
        _
      %p356 = scmp.lt.s32.totalorder %s23, 2
      // Predicated region
      $region53: #{fastspeech2_forward.10} parent=5 // pred_check
        %p357 = pneg %p356
      $region54: #{fastspeech2_forward.10} parent=5 // pred_check_branch
        %359 = sbr.rel (%p357) target = $region56
      $region55: #{fastspeech2_forward.10} parent=5 // pred_region
        // Predicated region
        $region57: #{fastspeech2_forward.10} parent=55 // pred_check
          %p360 = pneg %p43
        $region58: #{fastspeech2_forward.10} parent=55 // pred_check_branch
          %362 = sbr.rel (%p360) target = $region60
        $region59: #{fastspeech2_forward.10} parent=55 // pred_region
          %p363 = scmp.lt.s32.totalorder %s23, 1
          %s364 = scalar_select %p363, %s23, 1
          %s365 = smul.addr %s364, 8
          %s366 = scalar_lea.vmem %s0, %s365
        $region60: #{fastspeech2_forward.10} parent=55 // pred_fallthru
          _
        // Predicated region
        $region61: #{fastspeech2_forward.10} parent=55 // pred_check
          %p367 = pneg %p69
        $region62: #{fastspeech2_forward.10} parent=55 // pred_check_branch
          %369 = sbr.rel (%p367) target = $region64
        $region63: #{fastspeech2_forward.10} parent=55 // pred_region
          %p370 = scmp.lt.s32.totalorder %s23, 1
          %s371 = scalar_select %p370, %s23, 1
          %s372 = scalar_lea.vmem %s1, %s371
        $region64: #{fastspeech2_forward.10} parent=55 // pred_fallthru
          _
      $region56: #{fastspeech2_forward.10} parent=5 // pred_fallthru
        _
      %p373 = scmp.le.s32.totalorder 1, %s23
      %p374 = scmp.lt.s32.totalorder %s23, 3
      %p375 = pnand %p373, %p374
      %p376 = pneg %p375
      // Predicated region
      $region65: #{fastspeech2_forward.10} parent=5 // pred_check
        _
      $region66: #{fastspeech2_forward.10} parent=5 // pred_check_branch
        %378 = sbr.rel (%p375) target = $region68
      $region67: #{fastspeech2_forward.10} parent=5 // pred_region
        %s379 = ssub.s32 %s23, 1
        %p380 = scmp.lt.s32.totalorder %s28, 1
        %s381 = scalar_select %p380, %s28, 1
        %s382 = smul.addr %s381, 8
        %s383 = scalar_lea.vmem %s0, %s382
        %p384 = pneg %p49
        %p385 = pneg %p46
        %p386 = scmp.lt.s32.totalorder %s28, 1
        %s387 = scalar_select %p386, %s28, 1
        %s388 = scalar_lea.vmem %s1, %s387
        %p389 = pneg %p75
        %p390 = pneg %p72
        %p391 = pneg %p96
        %p392 = pneg %p93
        %p393 = pneg %p117
        %p394 = pneg %p114
        %p395 = pneg %p138
        %p396 = pneg %p135
        %p397 = pneg %p159
        %p398 = pneg %p156
        %p399 = pneg %p180
        %p400 = pneg %p177
        %p401 = pneg %p201
        %p402 = pneg %p198
        %p403 = pneg %p222
        %p404 = pneg %p219
        %p405 = pneg %p243
        %p406 = pneg %p240
        %p407 = pneg %p264
        %p408 = pneg %p261
        %p409 = pneg %p285
        %p410 = pneg %p282
        %p411 = pneg %p311
        %p412 = pneg %p308
        %s413 = sand.u32 %s298, 1
        %s414 = scalar_lea.sflag [#allocation4], %s413
        %s415 = sand.u32 %s298, 1
        %s416 = scalar_lea.vmem [#allocation3], %s415
        %p417 = scmp.lt.s32.totalorder %s28, 1
        %s418 = scalar_select %p417, %s28, 1
        %s419 = smul.addr %s418, 8
        %s420 = scalar_lea.vmem %s0, %s419
        %p421 = scmp.lt.s32.totalorder %s28, 1
        %s422 = scalar_select %p421, %s28, 1
        %s423 = scalar_lea.vmem %s1, %s422
        %v424 = vld [vmem:[%s420] sm:$0xff]
        %v425 = vld [vmem:[%s423] sm:$0x1]
        %v426 = vld [vmem:[%s2] sm:$0xff]
        %v427 = vld [vmem:[%s2 + $0x8] sm:$0xff]
        %v428 = vld [vmem:[%s2 + $0x10] sm:$0xff]
        %v429 = vld [vmem:[%s2 + $0x18] sm:$0xff]
        %v430 = vld [vmem:[%s2 + $0x20] sm:$0xff]
        %v431 = vld [vmem:[%s2 + $0x28] sm:$0xff]
        %v432 = vld [vmem:[%s2 + $0x30] sm:$0xff]
        %v433 = vld [vmem:[%s2 + $0x38] sm:$0xff]
        %v434 = vld [vmem:[%s2 + $0x40] sm:$0xff]
        %v435 = vld [vmem:[%s2 + $0x48] sm:$0xff]
        %v436 = vld [vmem:[%s2 + $0x50] sm:$0xff]
        %v437 = vld [vmem:[%s2 + $0x58] sm:$0xff]
        %v438 = vld [vmem:[%s3] sm:$0x1]
        %v440 = vrot.slane %v424, 7
        %vm442 = vcmask 1040384
        %v443 = vsel %vm442, 0.0, %v440
        %v444 = vsel %vm442, %v440, 0.0
        %vm447 = vcmask 1046528
        %v448 = vrot.slane %v443, 1
        %v449 = vrot.slane %v444, 1
        %v450 = vsel %vm447, %v448, %v449
        %451 = vrot.lane.b32.xlu0 %v450, 32
        %v452 = vpop.permute.xlu0 %451
        %vm454 = vcmask 1045504
        %v455 = vrot.slane %v443, 2
        %v456 = vrot.slane %v444, 2
        %v457 = vsel %vm454, %v455, %v456
        %458 = vrot.lane.b32.xlu0 %v457, 64
        %v459 = vpop.permute.xlu0 %458
        %vm461 = vcmask 261120
        %v462 = vsel %vm461, %v443, %v452
        %vm463 = vcmask 523264
        %v464 = vsel %vm463, %v462, %v459
        %v466 = vlaneseq
        %v467 = vshrl.u32 %v466, 7
        %v468 = vsub.s32 0, %v467
        %v469 = vrot.slane %v438, %v468
        %vm471 = vcmask 785408
        %v473 = vsel %vm471, %v464, 0
        %475 = vmatprep.subr.mxu0 0.0
        %476 = vmatpush1.msra.mxu0 %v426
        %477 = vmatprep.subr.mxu0 0.0
        %478 = vmatpush1.msra.mxu0 %v427
        %479 = vmatprep.subr.mxu0 0.0
        %480 = vmatpush1.msra.mxu0 %v428
        %481 = vmatprep.subr.mxu0 0.0
        %482 = vmatpush1.msra.mxu0 %v429
        %483 = vmatprep.subr.mxu0 0.0
        %484 = vmatpush1.msra.mxu0 %v430
        %485 = vmatprep.subr.mxu0 0.0
        %486 = vmatpush1.msra.mxu0 %v431
        %487 = vmatprep.subr.mxu0 0.0
        %488 = vmatpush1.msra.mxu0 %v432
        %489 = vmatprep.subr.mxu0 0.0
        %490 = vmatpush1.msra.mxu0 %v433
        %491 = vmatprep.subr.mxu0 0.0
        %492 = vmatpush1.msra.mxu0 %v434
        %493 = vmatprep.subr.mxu0 0.0
        %494 = vmatpush1.msra.mxu0 %v435
        %495 = vmatprep.subr.mxu0 0.0
        %496 = vmatpush1.msra.mxu0 %v436
        %497 = vmatprep.subr.mxu0 0.0
        %498 = vmatpush1.msra.mxu0 %v437
        %499 = vmatprep.subr.mxu0 0.0
        %500 = vmatpush1.msra.mxu0 0.0
        %501 = vmatprep.subr.mxu0 0.0
        %502 = vmatpush1.msra.mxu0 0.0
        %503 = vmatprep.subr.mxu0 0.0
        %504 = vmatpush1.msra.mxu0 0.0
        %505 = vmatprep.subr.mxu0 0.0
        %506 = vmatpush1.msra.mxu0 0.0
        %507 = vmatprep.subr.mxu0 0.0
        %508 = vmatpush1.msra.mxu0 0.0
        %509 = vmatprep.subr.mxu0 0.0
        %510 = vmatpush1.msra.mxu0 0.0
        %511 = vmatprep.subr.mxu0 0.0
        %512 = vmatpush1.msra.mxu0 0.0
        %513 = vmatprep.subr.mxu0 0.0
        %514 = vmatpush1.msra.mxu0 0.0
        %515 = vmatprep.subr.mxu0 0.0
        %516 = vmatpush1.msra.mxu0 0.0
        %517 = vmatprep.subr.mxu0 0.0
        %518 = vmatpush1.msra.mxu0 0.0
        %519 = vmatprep.subr.mxu0 0.0
        %520 = vmatpush1.msra.mxu0 0.0
        %521 = vmatprep.subr.mxu0 0.0
        %522 = vmatpush1.msra.mxu0 0.0
        %523 = vmatprep.subr.mxu0 0.0
        %524 = vmatpush1.msra.mxu0 0.0
        %525 = vmatprep.subr.mxu0 0.0
        %526 = vmatpush1.msra.mxu0 0.0
        %527 = vmatprep.subr.mxu0 0.0
        %528 = vmatpush1.msra.mxu0 0.0
        %529 = vmatprep.subr.mxu0 0.0
        %530 = vmatpush1.msra.mxu0 0.0
        %531 = vmatprep.subr.mxu0 0.0
        %532 = vmatpush1.msra.mxu0 0.0
        %533 = vmatprep.subr.mxu0 0.0
        %534 = vmatpush1.msra.mxu0 0.0
        %535 = vmatprep.subr.mxu0 0.0
        %536 = vmatpush1.msra.mxu0 0.0
        %537 = vmatprep.subr.mxu0 0.0
        %538 = vmatpush1.msra.mxu0 0.0
        %539 = vmatprep.mubr.f32.mxu0 0.0
        %540 = vmatmul.mubr.f32.gmra.mrb[0].mxu0 %v473
        %v541 = vpop.f32.mrb[0].mxu0
        %v542 = vadd.f32 %v469, %v541
        %v543 = vpop.f32.mrb[0].mxu0
        %544 = vdwg.mxu0
        %v545 = vmax.f32 %v542, 0.0
        %v546 = vld [vmem:[%s4] sm:$0x1]
        %v547 = vld [vmem:[%s5] sm:$0x1]
        %v548 = vsel %vm461, %v545, 0.0
        %549 = vadd.xlane.f32.xlu0 %v548
        %v550 = vpop.xlane.xlu0 %549
        %v551 = vrcp.pop 32.0
        %v552 = vmul.f32 %v550, %v551
        %v553 = vsub.f32 %v545, %v552
        %v554 = vmul.f32 %v553, %v553
        %v555 = vsel %vm461, %v554, 0.0
        %556 = vadd.xlane.f32.xlu0 %v555
        %v557 = vpop.xlane.xlu0 %556
        %v558 = vmul.f32 %v557, %v551
        %v559 = vadd.f32 %v558, 1e-05
        %v560 = vrsqrt.pop %v559
        %v561 = vmul.f32 %v553, %v560
        %v563 = vlaneseq
        %v564 = vshrl.u32 %v563, 7
        %v565 = vsub.s32 0, %v564
        %v566 = vrot.slane %v546, %v565
        %v568 = vmul.f32 %v561, %v566
        %v570 = vlaneseq
        %v571 = vshrl.u32 %v570, 7
        %v572 = vsub.s32 0, %v571
        %v573 = vrot.slane %v547, %v572
        %v575 = vadd.f32 %v568, %v573
        %v576 = vld [vmem:[%s6] sm:$0xff]
        %v577 = vld [vmem:[%s6 + $0x8] sm:$0xff]
        %v578 = vld [vmem:[%s6 + $0x10] sm:$0xff]
        %v579 = vld [vmem:[%s6 + $0x18] sm:$0xff]
        %v580 = vld [vmem:[%s6 + $0x20] sm:$0xff]
        %v581 = vld [vmem:[%s6 + $0x28] sm:$0xff]
        %v582 = vld [vmem:[%s6 + $0x30] sm:$0xff]
        %v583 = vld [vmem:[%s6 + $0x38] sm:$0xff]
        %v584 = vld [vmem:[%s6 + $0x40] sm:$0xff]
        %v585 = vld [vmem:[%s6 + $0x48] sm:$0xff]
        %v586 = vld [vmem:[%s6 + $0x50] sm:$0xff]
        %v587 = vld [vmem:[%s6 + $0x58] sm:$0xff]
        %v588 = vld [vmem:[%s7] sm:$0x1]
        %v590 = vrot.slane %v575, 7
        %v592 = vsel %vm442, 0.0, %v590
        %v593 = vsel %vm442, %v590, 0.0
        %v596 = vrot.slane %v592, 1
        %v597 = vrot.slane %v593, 1
        %v598 = vsel %vm447, %v596, %v597
        %599 = vrot.lane.b32.xlu0 %v598, 32
        %v600 = vpop.permute.xlu0 %599
        %v602 = vrot.slane %v592, 2
        %v603 = vrot.slane %v593, 2
        %v604 = vsel %vm454, %v602, %v603
        %605 = vrot.lane.b32.xlu0 %v604, 64
        %v606 = vpop.permute.xlu0 %605
        %v608 = vsel %vm461, %v592, %v600
        %v609 = vsel %vm463, %v608, %v606
        %v611 = vlaneseq
        %v612 = vshrl.u32 %v611, 7
        %v613 = vsub.s32 0, %v612
        %v614 = vrot.slane %v588, %v613
        %v617 = vsel %vm471, %v609, 0
        %619 = vmatprep.subr.mxu0 0.0
        %620 = vmatpush1.msra.mxu0 %v576
        %621 = vmatprep.subr.mxu0 0.0
        %622 = vmatpush1.msra.mxu0 %v577
        %623 = vmatprep.subr.mxu0 0.0
        %624 = vmatpush1.msra.mxu0 %v578
        %625 = vmatprep.subr.mxu0 0.0
        %626 = vmatpush1.msra.mxu0 %v579
        %627 = vmatprep.subr.mxu0 0.0
        %628 = vmatpush1.msra.mxu0 %v580
        %629 = vmatprep.subr.mxu0 0.0
        %630 = vmatpush1.msra.mxu0 %v581
        %631 = vmatprep.subr.mxu0 0.0
        %632 = vmatpush1.msra.mxu0 %v582
        %633 = vmatprep.subr.mxu0 0.0
        %634 = vmatpush1.msra.mxu0 %v583
        %635 = vmatprep.subr.mxu0 0.0
        %636 = vmatpush1.msra.mxu0 %v584
        %637 = vmatprep.subr.mxu0 0.0
        %638 = vmatpush1.msra.mxu0 %v585
        %639 = vmatprep.subr.mxu0 0.0
        %640 = vmatpush1.msra.mxu0 %v586
        %641 = vmatprep.subr.mxu0 0.0
        %642 = vmatpush1.msra.mxu0 %v587
        %643 = vmatprep.subr.mxu0 0.0
        %644 = vmatpush1.msra.mxu0 0.0
        %645 = vmatprep.subr.mxu0 0.0
        %646 = vmatpush1.msra.mxu0 0.0
        %647 = vmatprep.subr.mxu0 0.0
        %648 = vmatpush1.msra.mxu0 0.0
        %649 = vmatprep.subr.mxu0 0.0
        %650 = vmatpush1.msra.mxu0 0.0
        %651 = vmatprep.subr.mxu0 0.0
        %652 = vmatpush1.msra.mxu0 0.0
        %653 = vmatprep.subr.mxu0 0.0
        %654 = vmatpush1.msra.mxu0 0.0
        %655 = vmatprep.subr.mxu0 0.0
        %656 = vmatpush1.msra.mxu0 0.0
        %657 = vmatprep.subr.mxu0 0.0
        %658 = vmatpush1.msra.mxu0 0.0
        %659 = vmatprep.subr.mxu0 0.0
        %660 = vmatpush1.msra.mxu0 0.0
        %661 = vmatprep.subr.mxu0 0.0
        %662 = vmatpush1.msra.mxu0 0.0
        %663 = vmatprep.subr.mxu0 0.0
        %664 = vmatpush1.msra.mxu0 0.0
        %665 = vmatprep.subr.mxu0 0.0
        %666 = vmatpush1.msra.mxu0 0.0
        %667 = vmatprep.subr.mxu0 0.0
        %668 = vmatpush1.msra.mxu0 0.0
        %669 = vmatprep.subr.mxu0 0.0
        %670 = vmatpush1.msra.mxu0 0.0
        %671 = vmatprep.subr.mxu0 0.0
        %672 = vmatpush1.msra.mxu0 0.0
        %673 = vmatprep.subr.mxu0 0.0
        %674 = vmatpush1.msra.mxu0 0.0
        %675 = vmatprep.subr.mxu0 0.0
        %676 = vmatpush1.msra.mxu0 0.0
        %677 = vmatprep.subr.mxu0 0.0
        %678 = vmatpush1.msra.mxu0 0.0
        %679 = vmatprep.subr.mxu0 0.0
        %680 = vmatpush1.msra.mxu0 0.0
        %681 = vmatprep.subr.mxu0 0.0
        %682 = vmatpush1.msra.mxu0 0.0
        %683 = vmatprep.mubr.f32.mxu0 0.0
        %684 = vmatmul.mubr.f32.gmra.mrb[0].mxu0 %v617
        %v685 = vpop.f32.mrb[0].mxu0
        %v686 = vadd.f32 %v614, %v685
        %v687 = vpop.f32.mrb[0].mxu0
        %688 = vdwg.mxu0
        %v689 = vmax.f32 %v686, 0.0
        %v690 = vld [vmem:[%s8] sm:$0x1]
        %v691 = vld [vmem:[%s9] sm:$0x1]
        %v692 = vsel %vm461, %v689, 0.0
        %693 = vadd.xlane.f32.xlu0 %v692
        %v694 = vpop.xlane.xlu0 %693
        %v695 = vmul.f32 %v694, %v551
        %v696 = vsub.f32 %v689, %v695
        %v697 = vmul.f32 %v696, %v696
        %v698 = vsel %vm461, %v697, 0.0
        %699 = vadd.xlane.f32.xlu0 %v698
        %v700 = vpop.xlane.xlu0 %699
        %v701 = vmul.f32 %v700, %v551
        %v702 = vadd.f32 %v701, 1e-05
        %v703 = vrsqrt.pop %v702
        %v704 = vmul.f32 %v696, %v703
        %v706 = vlaneseq
        %v707 = vshrl.u32 %v706, 7
        %v708 = vsub.s32 0, %v707
        %v709 = vrot.slane %v690, %v708
        %v711 = vmul.f32 %v704, %v709
        %v713 = vlaneseq
        %v714 = vshrl.u32 %v713, 7
        %v715 = vsub.s32 0, %v714
        %v716 = vrot.slane %v691, %v715
        %v718 = vadd.f32 %v711, %v716
        %v719 = vld [vmem:[%s10] sm:$0x1]
        %v720 = vld [vmem:[#allocation2] sm:$0x1]
        %722 = vset.pattern.permute.xlu0 0
        %723 = vperm.xlu0 %722, %v720
        %v724 = vpop.permute.xlu0 %723
        %v726 = vlaneseq
        %v727 = vshrl.u32 %v726, 7
        %v728 = vsub.s32 0, %v727
        %v729 = vrot.slane %v724, %v728
        %v731 = vsel %vm461, %v719, 0
        %v734 = vsel %vm461, %v718, 0
        %736 = vmatprep.subr.mxu0 0.0
        %737 = vmatpush1.xpose.msra.mxu0 %v734
        %738 = vmatprep.subr.mxu0 0.0
        %739 = vmatpush1.xpose.msra.mxu0 0.0
        %740 = vmatprep.subr.mxu0 0.0
        %741 = vmatpush1.xpose.msra.mxu0 0.0
        %742 = vmatprep.subr.mxu0 0.0
        %743 = vmatpush1.xpose.msra.mxu0 0.0
        %744 = vmatprep.subr.mxu0 0.0
        %745 = vmatpush1.xpose.msra.mxu0 0.0
        %746 = vmatprep.subr.mxu0 0.0
        %747 = vmatpush1.xpose.msra.mxu0 0.0
        %748 = vmatprep.subr.mxu0 0.0
        %749 = vmatpush1.xpose.msra.mxu0 0.0
        %750 = vmatprep.subr.mxu0 0.0
        %751 = vmatpush1.xpose.msra.mxu0 0.0
        %752 = vmatprep.subr.mxu0 0.0
        %753 = vmatpush1.xpose.msra.mxu0 0.0
        %754 = vmatprep.subr.mxu0 0.0
        %755 = vmatpush1.xpose.msra.mxu0 0.0
        %756 = vmatprep.subr.mxu0 0.0
        %757 = vmatpush1.xpose.msra.mxu0 0.0
        %758 = vmatprep.subr.mxu0 0.0
        %759 = vmatpush1.xpose.msra.mxu0 0.0
        %760 = vmatprep.subr.mxu0 0.0
        %761 = vmatpush1.xpose.msra.mxu0 0.0
        %762 = vmatprep.subr.mxu0 0.0
        %763 = vmatpush1.xpose.msra.mxu0 0.0
        %764 = vmatprep.subr.mxu0 0.0
        %765 = vmatpush1.xpose.msra.mxu0 0.0
        %766 = vmatprep.subr.mxu0 0.0
        %767 = vmatpush1.xpose.msra.mxu0 0.0
        %768 = vmatprep.subr.mxu0 0.0
        %769 = vmatpush1.xpose.msra.mxu0 0.0
        %770 = vmatprep.subr.mxu0 0.0
        %771 = vmatpush1.xpose.msra.mxu0 0.0
        %772 = vmatprep.subr.mxu0 0.0
        %773 = vmatpush1.xpose.msra.mxu0 0.0
        %774 = vmatprep.subr.mxu0 0.0
        %775 = vmatpush1.xpose.msra.mxu0 0.0
        %776 = vmatprep.subr.mxu0 0.0
        %777 = vmatpush1.xpose.msra.mxu0 0.0
        %778 = vmatprep.subr.mxu0 0.0
        %779 = vmatpush1.xpose.msra.mxu0 0.0
        %780 = vmatprep.subr.mxu0 0.0
        %781 = vmatpush1.xpose.msra.mxu0 0.0
        %782 = vmatprep.subr.mxu0 0.0
        %783 = vmatpush1.xpose.msra.mxu0 0.0
        %784 = vmatprep.subr.mxu0 0.0
        %785 = vmatpush1.xpose.msra.mxu0 0.0
        %786 = vmatprep.subr.mxu0 0.0
        %787 = vmatpush1.xpose.msra.mxu0 0.0
        %788 = vmatprep.subr.mxu0 0.0
        %789 = vmatpush1.xpose.msra.mxu0 0.0
        %790 = vmatprep.subr.mxu0 0.0
        %791 = vmatpush1.xpose.msra.mxu0 0.0
        %792 = vmatprep.subr.mxu0 0.0
        %793 = vmatpush1.xpose.msra.mxu0 0.0
        %794 = vmatprep.subr.mxu0 0.0
        %795 = vmatpush1.xpose.msra.mxu0 0.0
        %796 = vmatprep.subr.mxu0 0.0
        %797 = vmatpush1.xpose.msra.mxu0 0.0
        %798 = vmatprep.subr.mxu0 0.0
        %799 = vmatpush1.xpose.msra.mxu0 0.0
        %800 = vmatprep.mubr.f32.mxu0 0.0
        %801 = vmatmul.mubr.f32.gmra.mrb[0].mxu0 %v731
        %v802 = vpop.f32.mrb[0].mxu0
        %v803 = vadd.f32 %v729, %v802
        %v804 = vpop.f32.mrb[0].mxu0
        %805 = vdwg.mxu0
        %vm806 = vcmp.gt.f32.partialorder %v425, 0.5
        %v807 = vsel %vm806, 0.0, %v803
        %vm808 = vcmask 57344
        %809 = vst.msk [vmem:[%s416] sm:$0x1] %vm808, %v807
        %s810 = sand.u32 %s298, 1
        %s811 = scalar_lea.sflag [#allocation4], %s810
        %s812 = sand.u32 %s298, 1
        %s813 = scalar_lea.vmem [#allocation3], %s812
        // Predicated region
        $region69: #{fastspeech2_forward.10} parent=67 // pred_check
          %p814 = pneg %p308
        $region70: #{fastspeech2_forward.10} parent=67 // pred_check_branch
          %816 = sbr.rel (%p814) target = $region72
        $region71: #{fastspeech2_forward.10} parent=67 // pred_region
          %s818 = ssub.s32 16, 16
          %819 = vsyncadd %s811, %s818
          %s820 = smul.addr %s28, 16
          %s821 = scalar_lea.hbm %s12, %s820
          %s823 = sshll.u32 %s813, 4
          %s824 = int_to_ptr.vmem [resolvable:$true] %s823
          %826 = dma.vmem_to_hbm [thread:$0]  %s824, 16, %s821, %s811
        $region72: #{fastspeech2_forward.10} parent=67 // pred_fallthru
          _
      $region68: #{fastspeech2_forward.10} parent=5 // pred_fallthru
        _
      %p827 = scmp.le.s32.totalorder 2, %s23
      // Predicated region
      $region73: #{fastspeech2_forward.10} parent=5 // pred_check
        %p828 = pneg %p827
      $region74: #{fastspeech2_forward.10} parent=5 // pred_check_branch
        %830 = sbr.rel (%p828) target = $region76
      $region75: #{fastspeech2_forward.10} parent=5 // pred_region
        %s831 = ssub.s32 %s23, 2
        // Predicated region
        $region77: #{fastspeech2_forward.10} parent=75 // pred_check
          %p832 = pneg %p314
        $region78: #{fastspeech2_forward.10} parent=75 // pred_check_branch
          %834 = sbr.rel (%p832) target = $region80
        $region79: #{fastspeech2_forward.10} parent=75 // pred_region
          %s835 = sand.u32 %s299, 1
          %s836 = scalar_lea.sflag [#allocation4], %s835
          %s837 = sand.u32 %s299, 1
          %s838 = scalar_lea.vmem [#allocation3], %s837
          %839 = dma.done %s836, 16
        $region80: #{fastspeech2_forward.10} parent=75 // pred_fallthru
          _
      $region76: #{fastspeech2_forward.10} parent=5 // pred_fallthru
        _
    $region6: #{fastspeech2_forward.10} parent=1 // loop_footer
      %s27 = sadd.s32 1, %s23
    $region7: #{fastspeech2_forward.10} parent=1 // loop_footer_branch
      %22 = sbr.rel target = $region3
    $region8: #{fastspeech2_forward.10} parent=1 // loop_exit
      _
    %840 = vsyncpa [#allocation4], 1
    %s841 = scalar_lea.sflag [#allocation4], 1
    %842 = vsyncpa %s841, 1

// kernel: fastspeech2_forward.8
$region0: #{fastspeech2_forward.8}
  #allocation0 [shape = 'u32[]', space=smem, size = 0x4, offset = 0x4, fixed_abs, tag = 'smem constant byte address 0x4 - core index']
  #allocation1 [shape = 'u32[144,128]{1,0:T(1,128)}', space=vmem, size = 0x12000, scoped, tag = 'internal scratch']
  %s0 = inlined_call_operand.vmem [shape: f32[2,8,32], index: 0, kind: input, shape index: {}]
  %s1 = inlined_call_operand.vmem [shape: f32[2,1,8], index: 1, kind: input, shape index: {}]
  %s2 = inlined_call_operand.vmem [shape: f32[2,8,1], index: 2, kind: input, shape index: {}]
  %s3 = inlined_call_operand.vmem [shape: f32[32,96], index: 3, kind: input, shape index: {}]
  %s4 = inlined_call_operand.vmem [shape: f32[1,96], index: 4, kind: input, shape index: {}]
  %s5 = inlined_call_operand.vmem [shape: f32[32,32], index: 5, kind: input, shape index: {}]
  %s6 = inlined_call_operand.vmem [shape: f32[1,32], index: 6, kind: input, shape index: {}]
  %s7 = inlined_call_operand.vmem [shape: f32[1,32], index: 7, kind: input, shape index: {}, may-alias: {7,13}]
  %s8 = inlined_call_operand.vmem [shape: f32[1,32], index: 8, kind: input, shape index: {}, may-alias: {8,14}]
  %s9 = inlined_call_operand.vmem [shape: f32[288,64], index: 9, kind: input, shape index: {}]
  %s10 = inlined_call_operand.vmem [shape: f32[1,64], index: 10, kind: input, shape index: {}]
  %s11 = inlined_call_operand.vmem [shape: f32[64,32], index: 11, kind: input, shape index: {}]
  %s12 = inlined_call_operand.vmem [shape: f32[1,32], index: 12, kind: input, shape index: {}]
  %s13 = inlined_call_operand.vmem [shape: f32[1,32], index: 13, kind: input, shape index: {}, may-alias: {7,13}]
  %s14 = inlined_call_operand.vmem [shape: f32[1,32], index: 14, kind: input, shape index: {}, may-alias: {8,14}]
  %s15 = inlined_call_operand.vmem [shape: f32[2,8,32], index: 15, kind: output, shape index: {}]
  %s16 = sld [smem:[#allocation0]]
  $region93: #{fastspeech2_forward.8} parent=0
    _
  %s18 = ssub.s32 1, %s16
  %s19 = scalar_select 0, %s18, %s16
  loop: start=0, step=1, limit=4
  $region2: #{fastspeech2_forward.8} parent=0 // loop_pre_header
    _
  $region3: #{fastspeech2_forward.8} parent=0 // loop_header
    %s21 = sphi 0, %s25
    %p22 = scmp.ge.s32.totalorder %s21, 4
    %s31 = sphi 0, %s33
    %s34 = sphi 0, %s31
    %s35 = sphi 0, %s34
    %s51 = sphi 0, %s35
    %s57 = sphi 0, %s59
    %s60 = sphi 0, %s57
    %s61 = sphi 0, %s60
    %s77 = sphi 0, %s61
    %s83 = sphi 0, %s85
    %s86 = sphi 0, %s83
    %s87 = sphi 0, %s86
    %s103 = sphi 0, %s87
    %s107 = sphi 0, %s107
    %s109 = sphi 0, %s107
    %s110 = sphi 0, %s109
    %s124 = sphi 0, %s110
    %s128 = sphi 0, %s128
    %s130 = sphi 0, %s128
    %s131 = sphi 0, %s130
    %s145 = sphi 0, %s131
    %s149 = sphi 0, %s149
    %s151 = sphi 0, %s149
    %s152 = sphi 0, %s151
    %s166 = sphi 0, %s152
    %s170 = sphi 0, %s170
    %s172 = sphi 0, %s170
    %s173 = sphi 0, %s172
    %s187 = sphi 0, %s173
    %s191 = sphi 0, %s191
    %s193 = sphi 0, %s191
    %s194 = sphi 0, %s193
    %s208 = sphi 0, %s194
    %s212 = sphi 0, %s212
    %s214 = sphi 0, %s212
    %s215 = sphi 0, %s214
    %s229 = sphi 0, %s215
    %s233 = sphi 0, %s233
    %s235 = sphi 0, %s233
    %s236 = sphi 0, %s235
    %s250 = sphi 0, %s236
    %s254 = sphi 0, %s254
    %s256 = sphi 0, %s254
    %s257 = sphi 0, %s256
    %s271 = sphi 0, %s257
    %s275 = sphi 0, %s275
    %s277 = sphi 0, %s275
    %s278 = sphi 0, %s277
    %s292 = sphi 0, %s278
    %s296 = sphi 0, %s296
    %s298 = sphi 0, %s296
    %s299 = sphi 0, %s298
    %s313 = sphi 0, %s299
    %s317 = sphi 0, %s317
    %s319 = sphi 0, %s317
    %s320 = sphi 0, %s319
    %s334 = sphi 0, %s320
    %s338 = sphi 0, %s338
    %s340 = sphi 0, %s338
    %s341 = sphi 0, %s340
    %s355 = sphi 0, %s341
    %s361 = sphi 0, %s363
    %s364 = sphi 0, %s361
    %s365 = sphi 0, %s364
    %s381 = sphi 0, %s365
  $region4: #{fastspeech2_forward.8} parent=0 // loop_header_branch
    %24 = sbr.rel (%p22) target = $region8
  $region5: #{fastspeech2_forward.8} parent=0 // loop_body
    %s26 = ssub.s32 %s21, 1
    %s27 = ssub.s32 %s21, 2
    %s28 = sadd.s32 %s21, 1
    %s29 = ssub.s32 %s21, %s28
    %p30 = scmp.eq.s32.totalorder %s29, 0
    %s32 = sadd.s32 %s31, 1
    %s33 = scalar_select %p30, %s31, %s32
    %p36 = pneg %p30
    %p37 = scmp.eq.s32.totalorder %s21, 1
    %p38 = por %p36, %p37
    %p39 = scmp.ne.s32.totalorder %s31, %s34
    %p40 = scmp.eq.s32.totalorder %s21, 0
    %p41 = por %p39, %p40
    %p42 = scmp.ne.s32.totalorder %s31, %s34
    %p43 = scmp.eq.s32.totalorder %s26, 1
    %p44 = por %p42, %p43
    %p45 = scmp.ne.s32.totalorder %s34, %s35
    %p46 = scmp.eq.s32.totalorder %s26, 0
    %p47 = por %p45, %p46
    %p48 = scmp.ne.s32.totalorder %s34, %s35
    %p49 = scmp.eq.s32.totalorder %s27, 1
    %p50 = por %p48, %p49
    %p52 = scmp.ne.s32.totalorder %s35, %s51
    %p53 = scmp.eq.s32.totalorder %s27, 0
    %p54 = por %p52, %p53
    %s55 = ssub.s32 %s21, %s28
    %p56 = scmp.eq.s32.totalorder %s55, 0
    %s58 = sadd.s32 %s57, 1
    %s59 = scalar_select %p56, %s57, %s58
    %p62 = pneg %p56
    %p63 = scmp.eq.s32.totalorder %s21, 1
    %p64 = por %p62, %p63
    %p65 = scmp.ne.s32.totalorder %s57, %s60
    %p66 = scmp.eq.s32.totalorder %s21, 0
    %p67 = por %p65, %p66
    %p68 = scmp.ne.s32.totalorder %s57, %s60
    %p69 = scmp.eq.s32.totalorder %s26, 1
    %p70 = por %p68, %p69
    %p71 = scmp.ne.s32.totalorder %s60, %s61
    %p72 = scmp.eq.s32.totalorder %s26, 0
    %p73 = por %p71, %p72
    %p74 = scmp.ne.s32.totalorder %s60, %s61
    %p75 = scmp.eq.s32.totalorder %s27, 1
    %p76 = por %p74, %p75
    %p78 = scmp.ne.s32.totalorder %s61, %s77
    %p79 = scmp.eq.s32.totalorder %s27, 0
    %p80 = por %p78, %p79
    %s81 = ssub.s32 %s21, %s28
    %p82 = scmp.eq.s32.totalorder %s81, 0
    %s84 = sadd.s32 %s83, 1
    %s85 = scalar_select %p82, %s83, %s84
    %p88 = pneg %p82
    %p89 = scmp.eq.s32.totalorder %s21, 1
    %p90 = por %p88, %p89
    %p91 = scmp.ne.s32.totalorder %s83, %s86
    %p92 = scmp.eq.s32.totalorder %s21, 0
    %p93 = por %p91, %p92
    %p94 = scmp.ne.s32.totalorder %s83, %s86
    %p95 = scmp.eq.s32.totalorder %s26, 1
    %p96 = por %p94, %p95
    %p97 = scmp.ne.s32.totalorder %s86, %s87
    %p98 = scmp.eq.s32.totalorder %s26, 0
    %p99 = por %p97, %p98
    %p100 = scmp.ne.s32.totalorder %s86, %s87
    %p101 = scmp.eq.s32.totalorder %s27, 1
    %p102 = por %p100, %p101
    %p104 = scmp.ne.s32.totalorder %s87, %s103
    %p105 = scmp.eq.s32.totalorder %s27, 0
    %p106 = por %p104, %p105
    %s108 = sadd.s32 %s107, 1
    %p111 = scmp.eq.s32.totalorder %s21, 1
    %p112 = scmp.ne.s32.totalorder %s107, %s109
    %p113 = scmp.eq.s32.totalorder %s21, 0
    %p114 = por %p112, %p113
    %p115 = scmp.ne.s32.totalorder %s107, %s109
    %p116 = scmp.eq.s32.totalorder %s26, 1
    %p117 = por %p115, %p116
    %p118 = scmp.ne.s32.totalorder %s109, %s110
    %p119 = scmp.eq.s32.totalorder %s26, 0
    %p120 = por %p118, %p119
    %p121 = scmp.ne.s32.totalorder %s109, %s110
    %p122 = scmp.eq.s32.totalorder %s27, 1
    %p123 = por %p121, %p122
    %p125 = scmp.ne.s32.totalorder %s110, %s124
    %p126 = scmp.eq.s32.totalorder %s27, 0
    %p127 = por %p125, %p126
    %s129 = sadd.s32 %s128, 1
    %p132 = scmp.eq.s32.totalorder %s21, 1
    %p133 = scmp.ne.s32.totalorder %s128, %s130
    %p134 = scmp.eq.s32.totalorder %s21, 0
    %p135 = por %p133, %p134
    %p136 = scmp.ne.s32.totalorder %s128, %s130
    %p137 = scmp.eq.s32.totalorder %s26, 1
    %p138 = por %p136, %p137
    %p139 = scmp.ne.s32.totalorder %s130, %s131
    %p140 = scmp.eq.s32.totalorder %s26, 0
    %p141 = por %p139, %p140
    %p142 = scmp.ne.s32.totalorder %s130, %s131
    %p143 = scmp.eq.s32.totalorder %s27, 1
    %p144 = por %p142, %p143
    %p146 = scmp.ne.s32.totalorder %s131, %s145
    %p147 = scmp.eq.s32.totalorder %s27, 0
    %p148 = por %p146, %p147
    %s150 = sadd.s32 %s149, 1
    %p153 = scmp.eq.s32.totalorder %s21, 1
    %p154 = scmp.ne.s32.totalorder %s149, %s151
    %p155 = scmp.eq.s32.totalorder %s21, 0
    %p156 = por %p154, %p155
    %p157 = scmp.ne.s32.totalorder %s149, %s151
    %p158 = scmp.eq.s32.totalorder %s26, 1
    %p159 = por %p157, %p158
    %p160 = scmp.ne.s32.totalorder %s151, %s152
    %p161 = scmp.eq.s32.totalorder %s26, 0
    %p162 = por %p160, %p161
    %p163 = scmp.ne.s32.totalorder %s151, %s152
    %p164 = scmp.eq.s32.totalorder %s27, 1
    %p165 = por %p163, %p164
    %p167 = scmp.ne.s32.totalorder %s152, %s166
    %p168 = scmp.eq.s32.totalorder %s27, 0
    %p169 = por %p167, %p168
    %s171 = sadd.s32 %s170, 1
    %p174 = scmp.eq.s32.totalorder %s21, 1
    %p175 = scmp.ne.s32.totalorder %s170, %s172
    %p176 = scmp.eq.s32.totalorder %s21, 0
    %p177 = por %p175, %p176
    %p178 = scmp.ne.s32.totalorder %s170, %s172
    %p179 = scmp.eq.s32.totalorder %s26, 1
    %p180 = por %p178, %p179
    %p181 = scmp.ne.s32.totalorder %s172, %s173
    %p182 = scmp.eq.s32.totalorder %s26, 0
    %p183 = por %p181, %p182
    %p184 = scmp.ne.s32.totalorder %s172, %s173
    %p185 = scmp.eq.s32.totalorder %s27, 1
    %p186 = por %p184, %p185
    %p188 = scmp.ne.s32.totalorder %s173, %s187
    %p189 = scmp.eq.s32.totalorder %s27, 0
    %p190 = por %p188, %p189
    %s192 = sadd.s32 %s191, 1
    %p195 = scmp.eq.s32.totalorder %s21, 1
    %p196 = scmp.ne.s32.totalorder %s191, %s193
    %p197 = scmp.eq.s32.totalorder %s21, 0
    %p198 = por %p196, %p197
    %p199 = scmp.ne.s32.totalorder %s191, %s193
    %p200 = scmp.eq.s32.totalorder %s26, 1
    %p201 = por %p199, %p200
    %p202 = scmp.ne.s32.totalorder %s193, %s194
    %p203 = scmp.eq.s32.totalorder %s26, 0
    %p204 = por %p202, %p203
    %p205 = scmp.ne.s32.totalorder %s193, %s194
    %p206 = scmp.eq.s32.totalorder %s27, 1
    %p207 = por %p205, %p206
    %p209 = scmp.ne.s32.totalorder %s194, %s208
    %p210 = scmp.eq.s32.totalorder %s27, 0
    %p211 = por %p209, %p210
    %s213 = sadd.s32 %s212, 1
    %p216 = scmp.eq.s32.totalorder %s21, 1
    %p217 = scmp.ne.s32.totalorder %s212, %s214
    %p218 = scmp.eq.s32.totalorder %s21, 0
    %p219 = por %p217, %p218
    %p220 = scmp.ne.s32.totalorder %s212, %s214
    %p221 = scmp.eq.s32.totalorder %s26, 1
    %p222 = por %p220, %p221
    %p223 = scmp.ne.s32.totalorder %s214, %s215
    %p224 = scmp.eq.s32.totalorder %s26, 0
    %p225 = por %p223, %p224
    %p226 = scmp.ne.s32.totalorder %s214, %s215
    %p227 = scmp.eq.s32.totalorder %s27, 1
    %p228 = por %p226, %p227
    %p230 = scmp.ne.s32.totalorder %s215, %s229
    %p231 = scmp.eq.s32.totalorder %s27, 0
    %p232 = por %p230, %p231
    %s234 = sadd.s32 %s233, 1
    %p237 = scmp.eq.s32.totalorder %s21, 1
    %p238 = scmp.ne.s32.totalorder %s233, %s235
    %p239 = scmp.eq.s32.totalorder %s21, 0
    %p240 = por %p238, %p239
    %p241 = scmp.ne.s32.totalorder %s233, %s235
    %p242 = scmp.eq.s32.totalorder %s26, 1
    %p243 = por %p241, %p242
    %p244 = scmp.ne.s32.totalorder %s235, %s236
    %p245 = scmp.eq.s32.totalorder %s26, 0
    %p246 = por %p244, %p245
    %p247 = scmp.ne.s32.totalorder %s235, %s236
    %p248 = scmp.eq.s32.totalorder %s27, 1
    %p249 = por %p247, %p248
    %p251 = scmp.ne.s32.totalorder %s236, %s250
    %p252 = scmp.eq.s32.totalorder %s27, 0
    %p253 = por %p251, %p252
    %s255 = sadd.s32 %s254, 1
    %p258 = scmp.eq.s32.totalorder %s21, 1
    %p259 = scmp.ne.s32.totalorder %s254, %s256
    %p260 = scmp.eq.s32.totalorder %s21, 0
    %p261 = por %p259, %p260
    %p262 = scmp.ne.s32.totalorder %s254, %s256
    %p263 = scmp.eq.s32.totalorder %s26, 1
    %p264 = por %p262, %p263
    %p265 = scmp.ne.s32.totalorder %s256, %s257
    %p266 = scmp.eq.s32.totalorder %s26, 0
    %p267 = por %p265, %p266
    %p268 = scmp.ne.s32.totalorder %s256, %s257
    %p269 = scmp.eq.s32.totalorder %s27, 1
    %p270 = por %p268, %p269
    %p272 = scmp.ne.s32.totalorder %s257, %s271
    %p273 = scmp.eq.s32.totalorder %s27, 0
    %p274 = por %p272, %p273
    %s276 = sadd.s32 %s275, 1
    %p279 = scmp.eq.s32.totalorder %s21, 1
    %p280 = scmp.ne.s32.totalorder %s275, %s277
    %p281 = scmp.eq.s32.totalorder %s21, 0
    %p282 = por %p280, %p281
    %p283 = scmp.ne.s32.totalorder %s275, %s277
    %p284 = scmp.eq.s32.totalorder %s26, 1
    %p285 = por %p283, %p284
    %p286 = scmp.ne.s32.totalorder %s277, %s278
    %p287 = scmp.eq.s32.totalorder %s26, 0
    %p288 = por %p286, %p287
    %p289 = scmp.ne.s32.totalorder %s277, %s278
    %p290 = scmp.eq.s32.totalorder %s27, 1
    %p291 = por %p289, %p290
    %p293 = scmp.ne.s32.totalorder %s278, %s292
    %p294 = scmp.eq.s32.totalorder %s27, 0
    %p295 = por %p293, %p294
    %s297 = sadd.s32 %s296, 1
    %p300 = scmp.eq.s32.totalorder %s21, 1
    %p301 = scmp.ne.s32.totalorder %s296, %s298
    %p302 = scmp.eq.s32.totalorder %s21, 0
    %p303 = por %p301, %p302
    %p304 = scmp.ne.s32.totalorder %s296, %s298
    %p305 = scmp.eq.s32.totalorder %s26, 1
    %p306 = por %p304, %p305
    %p307 = scmp.ne.s32.totalorder %s298, %s299
    %p308 = scmp.eq.s32.totalorder %s26, 0
    %p309 = por %p307, %p308
    %p310 = scmp.ne.s32.totalorder %s298, %s299
    %p311 = scmp.eq.s32.totalorder %s27, 1
    %p312 = por %p310, %p311
    %p314 = scmp.ne.s32.totalorder %s299, %s313
    %p315 = scmp.eq.s32.totalorder %s27, 0
    %p316 = por %p314, %p315
    %s318 = sadd.s32 %s317, 1
    %p321 = scmp.eq.s32.totalorder %s21, 1
    %p322 = scmp.ne.s32.totalorder %s317, %s319
    %p323 = scmp.eq.s32.totalorder %s21, 0
    %p324 = por %p322, %p323
    %p325 = scmp.ne.s32.totalorder %s317, %s319
    %p326 = scmp.eq.s32.totalorder %s26, 1
    %p327 = por %p325, %p326
    %p328 = scmp.ne.s32.totalorder %s319, %s320
    %p329 = scmp.eq.s32.totalorder %s26, 0
    %p330 = por %p328, %p329
    %p331 = scmp.ne.s32.totalorder %s319, %s320
    %p332 = scmp.eq.s32.totalorder %s27, 1
    %p333 = por %p331, %p332
    %p335 = scmp.ne.s32.totalorder %s320, %s334
    %p336 = scmp.eq.s32.totalorder %s27, 0
    %p337 = por %p335, %p336
    %s339 = sadd.s32 %s338, 1
    %p342 = scmp.eq.s32.totalorder %s21, 1
    %p343 = scmp.ne.s32.totalorder %s338, %s340
    %p344 = scmp.eq.s32.totalorder %s21, 0
    %p345 = por %p343, %p344
    %p346 = scmp.ne.s32.totalorder %s338, %s340
    %p347 = scmp.eq.s32.totalorder %s26, 1
    %p348 = por %p346, %p347
    %p349 = scmp.ne.s32.totalorder %s340, %s341
    %p350 = scmp.eq.s32.totalorder %s26, 0
    %p351 = por %p349, %p350
    %p352 = scmp.ne.s32.totalorder %s340, %s341
    %p353 = scmp.eq.s32.totalorder %s27, 1
    %p354 = por %p352, %p353
    %p356 = scmp.ne.s32.totalorder %s341, %s355
    %p357 = scmp.eq.s32.totalorder %s27, 0
    %p358 = por %p356, %p357
    %s359 = ssub.s32 %s21, %s28
    %p360 = scmp.eq.s32.totalorder %s359, 0
    %s362 = sadd.s32 %s361, 1
    %s363 = scalar_select %p360, %s361, %s362
    %p366 = pneg %p360
    %p367 = scmp.eq.s32.totalorder %s21, 1
    %p368 = por %p366, %p367
    %p369 = scmp.ne.s32.totalorder %s361, %s364
    %p370 = scmp.eq.s32.totalorder %s21, 0
    %p371 = por %p369, %p370
    %p372 = scmp.ne.s32.totalorder %s361, %s364
    %p373 = scmp.eq.s32.totalorder %s26, 1
    %p374 = por %p372, %p373
    %p375 = scmp.ne.s32.totalorder %s364, %s365
    %p376 = scmp.eq.s32.totalorder %s26, 0
    %p377 = por %p375, %p376
    %p378 = scmp.ne.s32.totalorder %s364, %s365
    %p379 = scmp.eq.s32.totalorder %s27, 1
    %p380 = por %p378, %p379
    %p382 = scmp.ne.s32.totalorder %s365, %s381
    %p383 = scmp.eq.s32.totalorder %s27, 0
    %p384 = por %p382, %p383
    %p385 = scmp.le.s32.totalorder 1, %s21
    %p386 = scmp.lt.s32.totalorder %s21, 3
    %p387 = pnand %p385, %p386
    %p388 = pneg %p387
    // Predicated region
    $region9: #{fastspeech2_forward.8} parent=5 // pred_check
      _
    $region10: #{fastspeech2_forward.8} parent=5 // pred_check_branch
      %390 = sbr.rel (%p387) target = $region12
    $region11: #{fastspeech2_forward.8} parent=5 // pred_region
      %s391 = ssub.s32 %s21, 1
      // Predicated region
      $region13: #{fastspeech2_forward.8} parent=11 // pred_check
        %p392 = pneg %p120
      $region14: #{fastspeech2_forward.8} parent=11 // pred_check_branch
        %394 = sbr.rel (%p392) target = $region16
      $region15: #{fastspeech2_forward.8} parent=11 // pred_region
        _
      $region16: #{fastspeech2_forward.8} parent=11 // pred_fallthru
        _
      // Predicated region
      $region17: #{fastspeech2_forward.8} parent=11 // pred_check
        %p395 = pneg %p141
      $region18: #{fastspeech2_forward.8} parent=11 // pred_check_branch
        %397 = sbr.rel (%p395) target = $region20
      $region19: #{fastspeech2_forward.8} parent=11 // pred_region
        _
      $region20: #{fastspeech2_forward.8} parent=11 // pred_fallthru
        _
      // Predicated region
      $region21: #{fastspeech2_forward.8} parent=11 // pred_check
        %p398 = pneg %p162
      $region22: #{fastspeech2_forward.8} parent=11 // pred_check_branch
        %400 = sbr.rel (%p398) target = $region24
      $region23: #{fastspeech2_forward.8} parent=11 // pred_region
        _
      $region24: #{fastspeech2_forward.8} parent=11 // pred_fallthru
        _
      // Predicated region
      $region25: #{fastspeech2_forward.8} parent=11 // pred_check
        %p401 = pneg %p183
      $region26: #{fastspeech2_forward.8} parent=11 // pred_check_branch
        %403 = sbr.rel (%p401) target = $region28
      $region27: #{fastspeech2_forward.8} parent=11 // pred_region
        _
      $region28: #{fastspeech2_forward.8} parent=11 // pred_fallthru
        _
      // Predicated region
      $region29: #{fastspeech2_forward.8} parent=11 // pred_check
        %p404 = pneg %p204
      $region30: #{fastspeech2_forward.8} parent=11 // pred_check_branch
        %406 = sbr.rel (%p404) target = $region32
      $region31: #{fastspeech2_forward.8} parent=11 // pred_region
        _
      $region32: #{fastspeech2_forward.8} parent=11 // pred_fallthru
        _
      // Predicated region
      $region33: #{fastspeech2_forward.8} parent=11 // pred_check
        %p407 = pneg %p225
      $region34: #{fastspeech2_forward.8} parent=11 // pred_check_branch
        %409 = sbr.rel (%p407) target = $region36
      $region35: #{fastspeech2_forward.8} parent=11 // pred_region
        _
      $region36: #{fastspeech2_forward.8} parent=11 // pred_fallthru
        _
      // Predicated region
      $region37: #{fastspeech2_forward.8} parent=11 // pred_check
        %p410 = pneg %p246
      $region38: #{fastspeech2_forward.8} parent=11 // pred_check_branch
        %412 = sbr.rel (%p410) target = $region40
      $region39: #{fastspeech2_forward.8} parent=11 // pred_region
        _
      $region40: #{fastspeech2_forward.8} parent=11 // pred_fallthru
        _
      // Predicated region
      $region41: #{fastspeech2_forward.8} parent=11 // pred_check
        %p413 = pneg %p267
      $region42: #{fastspeech2_forward.8} parent=11 // pred_check_branch
        %415 = sbr.rel (%p413) target = $region44
      $region43: #{fastspeech2_forward.8} parent=11 // pred_region
        _
      $region44: #{fastspeech2_forward.8} parent=11 // pred_fallthru
        _
      // Predicated region
      $region45: #{fastspeech2_forward.8} parent=11 // pred_check
        %p416 = pneg %p288
      $region46: #{fastspeech2_forward.8} parent=11 // pred_check_branch
        %418 = sbr.rel (%p416) target = $region48
      $region47: #{fastspeech2_forward.8} parent=11 // pred_region
        _
      $region48: #{fastspeech2_forward.8} parent=11 // pred_fallthru
        _
      // Predicated region
      $region49: #{fastspeech2_forward.8} parent=11 // pred_check
        %p419 = pneg %p309
      $region50: #{fastspeech2_forward.8} parent=11 // pred_check_branch
        %421 = sbr.rel (%p419) target = $region52
      $region51: #{fastspeech2_forward.8} parent=11 // pred_region
        _
      $region52: #{fastspeech2_forward.8} parent=11 // pred_fallthru
        _
      // Predicated region
      $region53: #{fastspeech2_forward.8} parent=11 // pred_check
        %p422 = pneg %p330
      $region54: #{fastspeech2_forward.8} parent=11 // pred_check_branch
        %424 = sbr.rel (%p422) target = $region56
      $region55: #{fastspeech2_forward.8} parent=11 // pred_region
        _
      $region56: #{fastspeech2_forward.8} parent=11 // pred_fallthru
        _
      // Predicated region
      $region57: #{fastspeech2_forward.8} parent=11 // pred_check
        %p425 = pneg %p351
      $region58: #{fastspeech2_forward.8} parent=11 // pred_check_branch
        %427 = sbr.rel (%p425) target = $region60
      $region59: #{fastspeech2_forward.8} parent=11 // pred_region
        _
      $region60: #{fastspeech2_forward.8} parent=11 // pred_fallthru
        _
    $region12: #{fastspeech2_forward.8} parent=5 // pred_fallthru
      _
    %p428 = scmp.lt.s32.totalorder %s21, 2
    // Predicated region
    $region61: #{fastspeech2_forward.8} parent=5 // pred_check
      %p429 = pneg %p428
    $region62: #{fastspeech2_forward.8} parent=5 // pred_check_branch
      %431 = sbr.rel (%p429) target = $region64
    $region63: #{fastspeech2_forward.8} parent=5 // pred_region
      // Predicated region
      $region65: #{fastspeech2_forward.8} parent=63 // pred_check
        %p432 = pneg %p41
      $region66: #{fastspeech2_forward.8} parent=63 // pred_check_branch
        %434 = sbr.rel (%p432) target = $region68
      $region67: #{fastspeech2_forward.8} parent=63 // pred_region
        %p435 = scmp.lt.s32.totalorder %s21, 1
        %s436 = scalar_select %p435, %s21, 1
        %s437 = smul.addr %s436, 8
        %s438 = scalar_lea.vmem %s0, %s437
      $region68: #{fastspeech2_forward.8} parent=63 // pred_fallthru
        _
      // Predicated region
      $region69: #{fastspeech2_forward.8} parent=63 // pred_check
        %p439 = pneg %p67
      $region70: #{fastspeech2_forward.8} parent=63 // pred_check_branch
        %441 = sbr.rel (%p439) target = $region72
      $region71: #{fastspeech2_forward.8} parent=63 // pred_region
        %p442 = scmp.lt.s32.totalorder %s21, 1
        %s443 = scalar_select %p442, %s21, 1
        %s444 = scalar_lea.vmem %s1, %s443
      $region72: #{fastspeech2_forward.8} parent=63 // pred_fallthru
        _
      // Predicated region
      $region73: #{fastspeech2_forward.8} parent=63 // pred_check
        %p445 = pneg %p93
      $region74: #{fastspeech2_forward.8} parent=63 // pred_check_branch
        %447 = sbr.rel (%p445) target = $region76
      $region75: #{fastspeech2_forward.8} parent=63 // pred_region
        %p448 = scmp.lt.s32.totalorder %s21, 1
        %s449 = scalar_select %p448, %s21, 1
        %s450 = smul.addr %s449, 8
        %s451 = scalar_lea.vmem %s2, %s450
      $region76: #{fastspeech2_forward.8} parent=63 // pred_fallthru
        _
    $region64: #{fastspeech2_forward.8} parent=5 // pred_fallthru
      _
    %p452 = scmp.le.s32.totalorder 1, %s21
    %p453 = scmp.lt.s32.totalorder %s21, 3
    %p454 = pnand %p452, %p453
    %p455 = pneg %p454
    // Predicated region
    $region77: #{fastspeech2_forward.8} parent=5 // pred_check
      _
    $region78: #{fastspeech2_forward.8} parent=5 // pred_check_branch
      %457 = sbr.rel (%p454) target = $region80
    $region79: #{fastspeech2_forward.8} parent=5 // pred_region
      %s458 = ssub.s32 %s21, 1
      %p459 = scmp.lt.s32.totalorder %s26, 1
      %s460 = scalar_select %p459, %s26, 1
      %s461 = smul.addr %s460, 8
      %s462 = scalar_lea.vmem %s0, %s461
      %p463 = pneg %p47
      %p464 = pneg %p44
      %p465 = scmp.lt.s32.totalorder %s26, 1
      %s466 = scalar_select %p465, %s26, 1
      %s467 = scalar_lea.vmem %s1, %s466
      %p468 = pneg %p73
      %p469 = pneg %p70
      %p470 = scmp.lt.s32.totalorder %s26, 1
      %s471 = scalar_select %p470, %s26, 1
      %s472 = smul.addr %s471, 8
      %s473 = scalar_lea.vmem %s2, %s472
      %p474 = pneg %p99
      %p475 = pneg %p96
      %p476 = pneg %p120
      %p477 = pneg %p117
      %p478 = pneg %p141
      %p479 = pneg %p138
      %p480 = pneg %p162
      %p481 = pneg %p159
      %p482 = pneg %p183
      %p483 = pneg %p180
      %p484 = pneg %p204
      %p485 = pneg %p201
      %p486 = pneg %p225
      %p487 = pneg %p222
      %p488 = pneg %p246
      %p489 = pneg %p243
      %p490 = pneg %p267
      %p491 = pneg %p264
      %p492 = pneg %p288
      %p493 = pneg %p285
      %p494 = pneg %p309
      %p495 = pneg %p306
      %p496 = pneg %p330
      %p497 = pneg %p327
      %p498 = pneg %p351
      %p499 = pneg %p348
      %p500 = pneg %p377
      %p501 = pneg %p374
      %p502 = scmp.lt.s32.totalorder %s26, 1
      %s503 = scalar_select %p502, %s26, 1
      %s504 = smul.addr %s503, 8
      %s505 = scalar_lea.vmem %s15, %s504
      %p506 = scmp.lt.s32.totalorder %s26, 1
      %s507 = scalar_select %p506, %s26, 1
      %s508 = smul.addr %s507, 8
      %s509 = scalar_lea.vmem %s0, %s508
      %p510 = scmp.lt.s32.totalorder %s26, 1
      %s511 = scalar_select %p510, %s26, 1
      %s512 = scalar_lea.vmem %s1, %s511
      %p513 = scmp.lt.s32.totalorder %s26, 1
      %s514 = scalar_select %p513, %s26, 1
      %s515 = smul.addr %s514, 8
      %s516 = scalar_lea.vmem %s2, %s515
      %p517 = scmp.lt.s32.totalorder %s26, 1
      %s518 = scalar_select %p517, %s26, 1
      %s519 = smul.addr %s518, 8
      %s520 = scalar_lea.vmem %s15, %s519
      %v521 = vld [vmem:[%s509] sm:$0xff]
      %v522 = vld [vmem:[%s512] sm:$0x1]
      %v523 = vld [vmem:[%s516] sm:$0xff]
      %v524 = vld [vmem:[%s3] sm:$0xff]
      %v525 = vld [vmem:[%s3 + $0x8] sm:$0xff]
      %v526 = vld [vmem:[%s3 + $0x10] sm:$0xff]
      %v527 = vld [vmem:[%s3 + $0x18] sm:$0xff]
      %v528 = vld [vmem:[%s4] sm:$0x1]
      %v530 = vlaneseq
      %v531 = vshrl.u32 %v530, 7
      %v532 = vsub.s32 0, %v531
      %v533 = vrot.slane %v528, %v532
      %vm535 = vcmask 261120
      %v537 = vsel %vm535, %v521, 0
      %539 = vmatprep.subr.mxu0 0.0
      %540 = vmatpush1.msra.mxu0 %v524
      %541 = vmatprep.subr.mxu0 0.0
      %542 = vmatpush1.msra.mxu0 %v525
      %543 = vmatprep.subr.mxu0 0.0
      %544 = vmatpush1.msra.mxu0 %v526
      %545 = vmatprep.subr.mxu0 0.0
      %546 = vmatpush1.msra.mxu0 %v527
      %547 = vmatprep.subr.mxu0 0.0
      %548 = vmatpush1.msra.mxu0 0.0
      %549 = vmatprep.subr.mxu0 0.0
      %550 = vmatpush1.msra.mxu0 0.0
      %551 = vmatprep.subr.mxu0 0.0
      %552 = vmatpush1.msra.mxu0 0.0
      %553 = vmatprep.subr.mxu0 0.0
      %554 = vmatpush1.msra.mxu0 0.0
      %555 = vmatprep.subr.mxu0 0.0
      %556 = vmatpush1.msra.mxu0 0.0
      %557 = vmatprep.subr.mxu0 0.0
      %558 = vmatpush1.msra.mxu0 0.0
      %559 = vmatprep.subr.mxu0 0.0
      %560 = vmatpush1.msra.mxu0 0.0
      %561 = vmatprep.subr.mxu0 0.0
      %562 = vmatpush1.msra.mxu0 0.0
      %563 = vmatprep.subr.mxu0 0.0
      %564 = vmatpush1.msra.mxu0 0.0
      %565 = vmatprep.subr.mxu0 0.0
      %566 = vmatpush1.msra.mxu0 0.0
      %567 = vmatprep.subr.mxu0 0.0
      %568 = vmatpush1.msra.mxu0 0.0
      %569 = vmatprep.subr.mxu0 0.0
      %570 = vmatpush1.msra.mxu0 0.0
      %571 = vmatprep.subr.mxu0 0.0
      %572 = vmatpush1.msra.mxu0 0.0
      %573 = vmatprep.subr.mxu0 0.0
      %574 = vmatpush1.msra.mxu0 0.0
      %575 = vmatprep.subr.mxu0 0.0
      %576 = vmatpush1.msra.mxu0 0.0
      %577 = vmatprep.subr.mxu0 0.0
      %578 = vmatpush1.msra.mxu0 0.0
      %579 = vmatprep.subr.mxu0 0.0
      %580 = vmatpush1.msra.mxu0 0.0
      %581 = vmatprep.subr.mxu0 0.0
      %582 = vmatpush1.msra.mxu0 0.0
      %583 = vmatprep.subr.mxu0 0.0
      %584 = vmatpush1.msra.mxu0 0.0
      %585 = vmatprep.subr.mxu0 0.0
      %586 = vmatpush1.msra.mxu0 0.0
      %587 = vmatprep.subr.mxu0 0.0
      %588 = vmatpush1.msra.mxu0 0.0
      %589 = vmatprep.subr.mxu0 0.0
      %590 = vmatpush1.msra.mxu0 0.0
      %591 = vmatprep.subr.mxu0 0.0
      %592 = vmatpush1.msra.mxu0 0.0
      %593 = vmatprep.subr.mxu0 0.0
      %594 = vmatpush1.msra.mxu0 0.0
      %595 = vmatprep.subr.mxu0 0.0
      %596 = vmatpush1.msra.mxu0 0.0
      %597 = vmatprep.subr.mxu0 0.0
      %598 = vmatpush1.msra.mxu0 0.0
      %599 = vmatprep.subr.mxu0 0.0
      %600 = vmatpush1.msra.mxu0 0.0
      %601 = vmatprep.subr.mxu0 0.0
      %602 = vmatpush1.msra.mxu0 0.0
      %603 = vmatprep.mubr.f32.mxu0 0.0
      %604 = vmatmul.mubr.f32.gmra.mrb[0].mxu0 %v537
      %v605 = vpop.f32.mrb[0].mxu0
      %v606 = vadd.f32 %v533, %v605
      %v607 = vpop.f32.mrb[0].mxu0
      %608 = vdwg.mxu0
      %610 = vrot.lane.b32.xlu0 %v606, 96
      %v611 = vpop.permute.xlu0 %610
      %vm612 = vcmask 130048
      %v613 = vsel %vm612, %v606, 0
      %v615 = vsel %vm612, %v611, 0
      %617 = vmatprep.subr.mxu0 0.0
      %618 = vmatpush1.xpose.msra.mxu0 %v615
      %619 = vmatprep.subr.mxu0 0.0
      %620 = vmatpush1.xpose.msra.mxu0 0.0
      %621 = vmatprep.subr.mxu0 0.0
      %622 = vmatpush1.xpose.msra.mxu0 0.0
      %623 = vmatprep.subr.mxu0 0.0
      %624 = vmatpush1.xpose.msra.mxu0 0.0
      %625 = vmatprep.subr.mxu0 0.0
      %626 = vmatpush1.xpose.msra.mxu0 0.0
      %627 = vmatprep.subr.mxu0 0.0
      %628 = vmatpush1.xpose.msra.mxu0 0.0
      %629 = vmatprep.subr.mxu0 0.0
      %630 = vmatpush1.xpose.msra.mxu0 0.0
      %631 = vmatprep.subr.mxu0 0.0
      %632 = vmatpush1.xpose.msra.mxu0 0.0
      %633 = vmatprep.subr.mxu0 0.0
      %634 = vmatpush1.xpose.msra.mxu0 0.0
      %635 = vmatprep.subr.mxu0 0.0
      %636 = vmatpush1.xpose.msra.mxu0 0.0
      %637 = vmatprep.subr.mxu0 0.0
      %638 = vmatpush1.xpose.msra.mxu0 0.0
      %639 = vmatprep.subr.mxu0 0.0
      %640 = vmatpush1.xpose.msra.mxu0 0.0
      %641 = vmatprep.subr.mxu0 0.0
      %642 = vmatpush1.xpose.msra.mxu0 0.0
      %643 = vmatprep.subr.mxu0 0.0
      %644 = vmatpush1.xpose.msra.mxu0 0.0
      %645 = vmatprep.subr.mxu0 0.0
      %646 = vmatpush1.xpose.msra.mxu0 0.0
      %647 = vmatprep.subr.mxu0 0.0
      %648 = vmatpush1.xpose.msra.mxu0 0.0
      %649 = vmatprep.subr.mxu0 0.0
      %650 = vmatpush1.xpose.msra.mxu0 0.0
      %651 = vmatprep.subr.mxu0 0.0
      %652 = vmatpush1.xpose.msra.mxu0 0.0
      %653 = vmatprep.subr.mxu0 0.0
      %654 = vmatpush1.xpose.msra.mxu0 0.0
      %655 = vmatprep.subr.mxu0 0.0
      %656 = vmatpush1.xpose.msra.mxu0 0.0
      %657 = vmatprep.subr.mxu0 0.0
      %658 = vmatpush1.xpose.msra.mxu0 0.0
      %659 = vmatprep.subr.mxu0 0.0
      %660 = vmatpush1.xpose.msra.mxu0 0.0
      %661 = vmatprep.subr.mxu0 0.0
      %662 = vmatpush1.xpose.msra.mxu0 0.0
      %663 = vmatprep.subr.mxu0 0.0
      %664 = vmatpush1.xpose.msra.mxu0 0.0
      %665 = vmatprep.subr.mxu0 0.0
      %666 = vmatpush1.xpose.msra.mxu0 0.0
      %667 = vmatprep.subr.mxu0 0.0
      %668 = vmatpush1.xpose.msra.mxu0 0.0
      %669 = vmatprep.subr.mxu0 0.0
      %670 = vmatpush1.xpose.msra.mxu0 0.0
      %671 = vmatprep.subr.mxu0 0.0
      %672 = vmatpush1.xpose.msra.mxu0 0.0
      %673 = vmatprep.subr.mxu0 0.0
      %674 = vmatpush1.xpose.msra.mxu0 0.0
      %675 = vmatprep.subr.mxu0 0.0
      %676 = vmatpush1.xpose.msra.mxu0 0.0
      %677 = vmatprep.subr.mxu0 0.0
      %678 = vmatpush1.xpose.msra.mxu0 0.0
      %679 = vmatprep.subr.mxu0 0.0
      %680 = vmatpush1.xpose.msra.mxu0 0.0
      %681 = vmatprep.mubr.f32.mxu0 0.0
      %682 = vmatmul.mubr.f32.gmra.mrb[0].mxu0 %v613
      %v683 = vpop.f32.mrb[0].mxu0
      %v684 = vadd.f32 0.0, %v683
      %v685 = vpop.f32.mrb[0].mxu0
      %686 = vdwg.mxu0
      %v687 = vmul.f32 %v684, 0.25
      %vm688 = vcmp.gt.f32.partialorder %v522, 0.5
      %v689 = vsel %vm688, 1, 0
      %v690 = vlaneseq
      %v691 = vshrl.u32 %v690, 7
      %v692 = vsub.s32 0, %v691
      %v693 = vrot.slane %v689, %v692
      %vm694 = vcmp.eq.s32.totalorder %v693, 1
      %v695 = vsel %vm694, -1e+30, %v687
      %vm696 = vcmask 64512
      %v697 = vsel %vm696, %v695, -inf
      %698 = vmax.xlane.f32.xlu0 %v697
      %v699 = vpop.xlane.xlu0 %698
      %v700 = vsub.f32 %v695, %v699
      %v701 = vmul.f32 %v700, 1.442695
      %v702 = vpow.pop %v701
      %v703 = vsel %vm696, %v702, 0.0
      %704 = vadd.xlane.f32.xlu0 %v703
      %v705 = vpop.xlane.xlu0 %704
      %v706 = vrcp.pop %v705
      %v707 = vmul.f32 %v702, %v706
      %708 = vrot.lane.b32.xlu0 %v606, 64
      %v709 = vpop.permute.xlu0 %708
      %v712 = vsel %vm696, %v707, 0
      %714 = vmatprep.subr.mxu0 0.0
      %715 = vmatpush1.msra.mxu0 %v709
      %716 = vmatprep.subr.mxu0 0.0
      %717 = vmatpush1.msra.mxu0 0.0
      %718 = vmatprep.subr.mxu0 0.0
      %719 = vmatpush1.msra.mxu0 0.0
      %720 = vmatprep.subr.mxu0 0.0
      %721 = vmatpush1.msra.mxu0 0.0
      %722 = vmatprep.subr.mxu0 0.0
      %723 = vmatpush1.msra.mxu0 0.0
      %724 = vmatprep.subr.mxu0 0.0
      %725 = vmatpush1.msra.mxu0 0.0
      %726 = vmatprep.subr.mxu0 0.0
      %727 = vmatpush1.msra.mxu0 0.0
      %728 = vmatprep.subr.mxu0 0.0
      %729 = vmatpush1.msra.mxu0 0.0
      %730 = vmatprep.subr.mxu0 0.0
      %731 = vmatpush1.msra.mxu0 0.0
      %732 = vmatprep.subr.mxu0 0.0
      %733 = vmatpush1.msra.mxu0 0.0
      %734 = vmatprep.subr.mxu0 0.0
      %735 = vmatpush1.msra.mxu0 0.0
      %736 = vmatprep.subr.mxu0 0.0
      %737 = vmatpush1.msra.mxu0 0.0
      %738 = vmatprep.subr.mxu0 0.0
      %739 = vmatpush1.msra.mxu0 0.0
      %740 = vmatprep.subr.mxu0 0.0
      %741 = vmatpush1.msra.mxu0 0.0
      %742 = vmatprep.subr.mxu0 0.0
      %743 = vmatpush1.msra.mxu0 0.0
      %744 = vmatprep.subr.mxu0 0.0
      %745 = vmatpush1.msra.mxu0 0.0
      %746 = vmatprep.subr.mxu0 0.0
      %747 = vmatpush1.msra.mxu0 0.0
      %748 = vmatprep.subr.mxu0 0.0
      %749 = vmatpush1.msra.mxu0 0.0
      %750 = vmatprep.subr.mxu0 0.0
      %751 = vmatpush1.msra.mxu0 0.0
      %752 = vmatprep.subr.mxu0 0.0
      %753 = vmatpush1.msra.mxu0 0.0
      %754 = vmatprep.subr.mxu0 0.0
      %755 = vmatpush1.msra.mxu0 0.0
      %756 = vmatprep.subr.mxu0 0.0
      %757 = vmatpush1.msra.mxu0 0.0
      %758 = vmatprep.subr.mxu0 0.0
      %759 = vmatpush1.msra.mxu0 0.0
      %760 = vmatprep.subr.mxu0 0.0
      %761 = vmatpush1.msra.mxu0 0.0
      %762 = vmatprep.subr.mxu0 0.0
      %763 = vmatpush1.msra.mxu0 0.0
      %764 = vmatprep.subr.mxu0 0.0
      %765 = vmatpush1.msra.mxu0 0.0
      %766 = vmatprep.subr.mxu0 0.0
      %767 = vmatpush1.msra.mxu0 0.0
      %768 = vmatprep.subr.mxu0 0.0
      %769 = vmatpush1.msra.mxu0 0.0
      %770 = vmatprep.subr.mxu0 0.0
      %771 = vmatpush1.msra.mxu0 0.0
      %772 = vmatprep.subr.mxu0 0.0
      %773 = vmatpush1.msra.mxu0 0.0
      %774 = vmatprep.subr.mxu0 0.0
      %775 = vmatpush1.msra.mxu0 0.0
      %776 = vmatprep.subr.mxu0 0.0
      %777 = vmatpush1.msra.mxu0 0.0
      %778 = vmatprep.mubr.f32.mxu0 0.0
      %779 = vmatmul.mubr.f32.gmra.mrb[0].mxu0 %v712
      %v780 = vpop.f32.mrb[0].mxu0
      %v781 = vadd.f32 0.0, %v780
      %v782 = vpop.f32.mrb[0].mxu0
      %783 = vdwg.mxu0
      %784 = vrot.lane.b32.xlu0 %v606, 112
      %v785 = vpop.permute.xlu0 %784
      %786 = vrot.lane.b32.xlu0 %v606, 80
      %v787 = vpop.permute.xlu0 %786
      %v788 = vsel %vm612, %v785, 0
      %v790 = vsel %vm612, %v787, 0
      %792 = vmatprep.subr.mxu0 0.0
      %793 = vmatpush1.xpose.msra.mxu0 %v790
      %794 = vmatprep.subr.mxu0 0.0
      %795 = vmatpush1.xpose.msra.mxu0 0.0
      %796 = vmatprep.subr.mxu0 0.0
      %797 = vmatpush1.xpose.msra.mxu0 0.0
      %798 = vmatprep.subr.mxu0 0.0
      %799 = vmatpush1.xpose.msra.mxu0 0.0
      %800 = vmatprep.subr.mxu0 0.0
      %801 = vmatpush1.xpose.msra.mxu0 0.0
      %802 = vmatprep.subr.mxu0 0.0
      %803 = vmatpush1.xpose.msra.mxu0 0.0
      %804 = vmatprep.subr.mxu0 0.0
      %805 = vmatpush1.xpose.msra.mxu0 0.0
      %806 = vmatprep.subr.mxu0 0.0
      %807 = vmatpush1.xpose.msra.mxu0 0.0
      %808 = vmatprep.subr.mxu0 0.0
      %809 = vmatpush1.xpose.msra.mxu0 0.0
      %810 = vmatprep.subr.mxu0 0.0
      %811 = vmatpush1.xpose.msra.mxu0 0.0
      %812 = vmatprep.subr.mxu0 0.0
      %813 = vmatpush1.xpose.msra.mxu0 0.0
      %814 = vmatprep.subr.mxu0 0.0
      %815 = vmatpush1.xpose.msra.mxu0 0.0
      %816 = vmatprep.subr.mxu0 0.0
      %817 = vmatpush1.xpose.msra.mxu0 0.0
      %818 = vmatprep.subr.mxu0 0.0
      %819 = vmatpush1.xpose.msra.mxu0 0.0
      %820 = vmatprep.subr.mxu0 0.0
      %821 = vmatpush1.xpose.msra.mxu0 0.0
      %822 = vmatprep.subr.mxu0 0.0
      %823 = vmatpush1.xpose.msra.mxu0 0.0
      %824 = vmatprep.subr.mxu0 0.0
      %825 = vmatpush1.xpose.msra.mxu0 0.0
      %826 = vmatprep.subr.mxu0 0.0
      %827 = vmatpush1.xpose.msra.mxu0 0.0
      %828 = vmatprep.subr.mxu0 0.0
      %829 = vmatpush1.xpose.msra.mxu0 0.0
      %830 = vmatprep.subr.mxu0 0.0
      %831 = vmatpush1.xpose.msra.mxu0 0.0
      %832 = vmatprep.subr.mxu0 0.0
      %833 = vmatpush1.xpose.msra.mxu0 0.0
      %834 = vmatprep.subr.mxu0 0.0
      %835 = vmatpush1.xpose.msra.mxu0 0.0
      %836 = vmatprep.subr.mxu0 0.0
      %837 = vmatpush1.xpose.msra.mxu0 0.0
      %838 = vmatprep.subr.mxu0 0.0
      %839 = vmatpush1.xpose.msra.mxu0 0.0
      %840 = vmatprep.subr.mxu0 0.0
      %841 = vmatpush1.xpose.msra.mxu0 0.0
      %842 = vmatprep.subr.mxu0 0.0
      %843 = vmatpush1.xpose.msra.mxu0 0.0
      %844 = vmatprep.subr.mxu0 0.0
      %845 = vmatpush1.xpose.msra.mxu0 0.0
      %846 = vmatprep.subr.mxu0 0.0
      %847 = vmatpush1.xpose.msra.mxu0 0.0
      %848 = vmatprep.subr.mxu0 0.0
      %849 = vmatpush1.xpose.msra.mxu0 0.0
      %850 = vmatprep.subr.mxu0 0.0
      %851 = vmatpush1.xpose.msra.mxu0 0.0
      %852 = vmatprep.subr.mxu0 0.0
      %853 = vmatpush1.xpose.msra.mxu0 0.0
      %854 = vmatprep.subr.mxu0 0.0
      %855 = vmatpush1.xpose.msra.mxu0 0.0
      %856 = vmatprep.mubr.f32.mxu0 0.0
      %857 = vmatmul.mubr.f32.gmra.mrb[0].mxu0 %v788
      %v858 = vpop.f32.mrb[0].mxu0
      %v859 = vadd.f32 0.0, %v858
      %v860 = vpop.f32.mrb[0].mxu0
      %861 = vdwg.mxu0
      %v862 = vmul.f32 %v859, 0.25
      %v863 = vsel %vm694, -1e+30, %v862
      %v864 = vsel %vm696, %v863, -inf
      %865 = vmax.xlane.f32.xlu0 %v864
      %v866 = vpop.xlane.xlu0 %865
      %v867 = vsub.f32 %v863, %v866
      %v868 = vmul.f32 %v867, 1.442695
      %v869 = vpow.pop %v868
      %v870 = vsel %vm696, %v869, 0.0
      %871 = vadd.xlane.f32.xlu0 %v870
      %v872 = vpop.xlane.xlu0 %871
      %v873 = vrcp.pop %v872
      %v874 = vmul.f32 %v869, %v873
      %875 = vrot.lane.b32.xlu0 %v606, 48
      %v876 = vpop.permute.xlu0 %875
      %v879 = vsel %vm696, %v874, 0
      %881 = vmatprep.subr.mxu0 0.0
      %882 = vmatpush1.msra.mxu0 %v876
      %883 = vmatprep.subr.mxu0 0.0
      %884 = vmatpush1.msra.mxu0 0.0
      %885 = vmatprep.subr.mxu0 0.0
      %886 = vmatpush1.msra.mxu0 0.0
      %887 = vmatprep.subr.mxu0 0.0
      %888 = vmatpush1.msra.mxu0 0.0
      %889 = vmatprep.subr.mxu0 0.0
      %890 = vmatpush1.msra.mxu0 0.0
      %891 = vmatprep.subr.mxu0 0.0
      %892 = vmatpush1.msra.mxu0 0.0
      %893 = vmatprep.subr.mxu0 0.0
      %894 = vmatpush1.msra.mxu0 0.0
      %895 = vmatprep.subr.mxu0 0.0
      %896 = vmatpush1.msra.mxu0 0.0
      %897 = vmatprep.subr.mxu0 0.0
      %898 = vmatpush1.msra.mxu0 0.0
      %899 = vmatprep.subr.mxu0 0.0
      %900 = vmatpush1.msra.mxu0 0.0
      %901 = vmatprep.subr.mxu0 0.0
      %902 = vmatpush1.msra.mxu0 0.0
      %903 = vmatprep.subr.mxu0 0.0
      %904 = vmatpush1.msra.mxu0 0.0
      %905 = vmatprep.subr.mxu0 0.0
      %906 = vmatpush1.msra.mxu0 0.0
      %907 = vmatprep.subr.mxu0 0.0
      %908 = vmatpush1.msra.mxu0 0.0
      %909 = vmatprep.subr.mxu0 0.0
      %910 = vmatpush1.msra.mxu0 0.0
      %911 = vmatprep.subr.mxu0 0.0
      %912 = vmatpush1.msra.mxu0 0.0
      %913 = vmatprep.subr.mxu0 0.0
      %914 = vmatpush1.msra.mxu0 0.0
      %915 = vmatprep.subr.mxu0 0.0
      %916 = vmatpush1.msra.mxu0 0.0
      %917 = vmatprep.subr.mxu0 0.0
      %918 = vmatpush1.msra.mxu0 0.0
      %919 = vmatprep.subr.mxu0 0.0
      %920 = vmatpush1.msra.mxu0 0.0
      %921 = vmatprep.subr.mxu0 0.0
      %922 = vmatpush1.msra.mxu0 0.0
      %923 = vmatprep.subr.mxu0 0.0
      %924 = vmatpush1.msra.mxu0 0.0
      %925 = vmatprep.subr.mxu0 0.0
      %926 = vmatpush1.msra.mxu0 0.0
      %927 = vmatprep.subr.mxu0 0.0
      %928 = vmatpush1.msra.mxu0 0.0
      %929 = vmatprep.subr.mxu0 0.0
      %930 = vmatpush1.msra.mxu0 0.0
      %931 = vmatprep.subr.mxu0 0.0
      %932 = vmatpush1.msra.mxu0 0.0
      %933 = vmatprep.subr.mxu0 0.0
      %934 = vmatpush1.msra.mxu0 0.0
      %935 = vmatprep.subr.mxu0 0.0
      %936 = vmatpush1.msra.mxu0 0.0
      %937 = vmatprep.subr.mxu0 0.0
      %938 = vmatpush1.msra.mxu0 0.0
      %939 = vmatprep.subr.mxu0 0.0
      %940 = vmatpush1.msra.mxu0 0.0
      %941 = vmatprep.subr.mxu0 0.0
      %942 = vmatpush1.msra.mxu0 0.0
      %943 = vmatprep.subr.mxu0 0.0
      %944 = vmatpush1.msra.mxu0 0.0
      %945 = vmatprep.mubr.f32.mxu0 0.0
      %946 = vmatmul.mubr.f32.gmra.mrb[0].mxu0 %v879
      %v947 = vpop.f32.mrb[0].mxu0
      %v948 = vadd.f32 0.0, %v947
      %v949 = vpop.f32.mrb[0].mxu0
      %950 = vdwg.mxu0
      %952 = vrot.lane.b32.xlu0 %v948, 16
      %v953 = vpop.permute.xlu0 %952
      %v955 = vsel %vm612, %v781, %v953
      %v956 = vld [vmem:[%s5] sm:$0xff]
      %v957 = vld [vmem:[%s5 + $0x8] sm:$0xff]
      %v958 = vld [vmem:[%s5 + $0x10] sm:$0xff]
      %v959 = vld [vmem:[%s5 + $0x18] sm:$0xff]
      %v960 = vld [vmem:[%s6] sm:$0x1]
      %v962 = vlaneseq
      %v963 = vshrl.u32 %v962, 7
      %v964 = vsub.s32 0, %v963
      %v965 = vrot.slane %v960, %v964
      %v968 = vsel %vm535, %v955, 0
      %970 = vmatprep.subr.mxu0 0.0
      %971 = vmatpush1.msra.mxu0 %v956
      %972 = vmatprep.subr.mxu0 0.0
      %973 = vmatpush1.msra.mxu0 %v957
      %974 = vmatprep.subr.mxu0 0.0
      %975 = vmatpush1.msra.mxu0 %v958
      %976 = vmatprep.subr.mxu0 0.0
      %977 = vmatpush1.msra.mxu0 %v959
      %978 = vmatprep.subr.mxu0 0.0
      %979 = vmatpush1.msra.mxu0 0.0
      %980 = vmatprep.subr.mxu0 0.0
      %981 = vmatpush1.msra.mxu0 0.0
      %982 = vmatprep.subr.mxu0 0.0
      %983 = vmatpush1.msra.mxu0 0.0
      %984 = vmatprep.subr.mxu0 0.0
      %985 = vmatpush1.msra.mxu0 0.0
      %986 = vmatprep.subr.mxu0 0.0
      %987 = vmatpush1.msra.mxu0 0.0
      %988 = vmatprep.subr.mxu0 0.0
      %989 = vmatpush1.msra.mxu0 0.0
      %990 = vmatprep.subr.mxu0 0.0
      %991 = vmatpush1.msra.mxu0 0.0
      %992 = vmatprep.subr.mxu0 0.0
      %993 = vmatpush1.msra.mxu0 0.0
      %994 = vmatprep.subr.mxu0 0.0
      %995 = vmatpush1.msra.mxu0 0.0
      %996 = vmatprep.subr.mxu0 0.0
      %997 = vmatpush1.msra.mxu0 0.0
      %998 = vmatprep.subr.mxu0 0.0
      %999 = vmatpush1.msra.mxu0 0.0
      %1000 = vmatprep.subr.mxu0 0.0
      %1001 = vmatpush1.msra.mxu0 0.0
      %1002 = vmatprep.subr.mxu0 0.0
      %1003 = vmatpush1.msra.mxu0 0.0
      %1004 = vmatprep.subr.mxu0 0.0
      %1005 = vmatpush1.msra.mxu0 0.0
      %1006 = vmatprep.subr.mxu0 0.0
      %1007 = vmatpush1.msra.mxu0 0.0
      %1008 = vmatprep.subr.mxu0 0.0
      %1009 = vmatpush1.msra.mxu0 0.0
      %1010 = vmatprep.subr.mxu0 0.0
      %1011 = vmatpush1.msra.mxu0 0.0
      %1012 = vmatprep.subr.mxu0 0.0
      %1013 = vmatpush1.msra.mxu0 0.0
      %1014 = vmatprep.subr.mxu0 0.0
      %1015 = vmatpush1.msra.mxu0 0.0
      %1016 = vmatprep.subr.mxu0 0.0
      %1017 = vmatpush1.msra.mxu0 0.0
      %1018 = vmatprep.subr.mxu0 0.0
      %1019 = vmatpush1.msra.mxu0 0.0
      %1020 = vmatprep.subr.mxu0 0.0
      %1021 = vmatpush1.msra.mxu0 0.0
      %1022 = vmatprep.subr.mxu0 0.0
      %1023 = vmatpush1.msra.mxu0 0.0
      %1024 = vmatprep.subr.mxu0 0.0
      %1025 = vmatpush1.msra.mxu0 0.0
      %1026 = vmatprep.subr.mxu0 0.0
      %1027 = vmatpush1.msra.mxu0 0.0
      %1028 = vmatprep.subr.mxu0 0.0
      %1029 = vmatpush1.msra.mxu0 0.0
      %1030 = vmatprep.subr.mxu0 0.0
      %1031 = vmatpush1.msra.mxu0 0.0
      %1032 = vmatprep.subr.mxu0 0.0
      %1033 = vmatpush1.msra.mxu0 0.0
      %1034 = vmatprep.mubr.f32.mxu0 0.0
      %1035 = vmatmul.mubr.f32.gmra.mrb[0].mxu0 %v968
      %v1036 = vpop.f32.mrb[0].mxu0
      %v1037 = vadd.f32 %v965, %v1036
      %v1038 = vpop.f32.mrb[0].mxu0
      %1039 = vdwg.mxu0
      %v1040 = vadd.f32 %v1037, %v521
      %v1041 = vld [vmem:[%s7] sm:$0x1]
      %v1042 = vld [vmem:[%s8] sm:$0x1]
      %v1043 = vsel %vm535, %v1040, 0.0
      %1044 = vadd.xlane.f32.xlu0 %v1043
      %v1045 = vpop.xlane.xlu0 %1044
      %v1046 = vrcp.pop 32.0
      %v1047 = vmul.f32 %v1045, %v1046
      %v1048 = vsub.f32 %v1040, %v1047
      %v1049 = vmul.f32 %v1048, %v1048
      %v1050 = vsel %vm535, %v1049, 0.0
      %1051 = vadd.xlane.f32.xlu0 %v1050
      %v1052 = vpop.xlane.xlu0 %1051
      %v1053 = vmul.f32 %v1052, %v1046
      %v1054 = vadd.f32 %v1053, 1e-05
      %v1055 = vrsqrt.pop %v1054
      %v1056 = vmul.f32 %v1048, %v1055
      %v1058 = vlaneseq
      %v1059 = vshrl.u32 %v1058, 7
      %v1060 = vsub.s32 0, %v1059
      %v1061 = vrot.slane %v1041, %v1060
      %v1063 = vmul.f32 %v1056, %v1061
      %v1065 = vlaneseq
      %v1066 = vshrl.u32 %v1065, 7
      %v1067 = vsub.s32 0, %v1066
      %v1068 = vrot.slane %v1042, %v1067
      %v1070 = vadd.f32 %v1063, %v1068
      %vm1071 = vcmp.gt.f32.partialorder %v523, 0.5
      %v1072 = vsel %vm1071, 1, 0
      %1073 = vset.pattern.permute.xlu0 0
      %1074 = vperm.xlu0 %1073, %v1072
      %v1075 = vpop.permute.xlu0 %1074
      %vm1076 = vcmp.eq.s32.totalorder %v1075, 1
      %v1077 = vsel %vm1076, 0.0, %v1070
      %v1078 = vld [vmem:[%s9] sm:$0xff]
      %v1079 = vld [vmem:[%s9 + $0x8] sm:$0xff]
      %v1080 = vld [vmem:[%s9 + $0x10] sm:$0xff]
      %v1081 = vld [vmem:[%s9 + $0x18] sm:$0xff]
      %v1082 = vld [vmem:[%s9 + $0x20] sm:$0xff]
      %v1083 = vld [vmem:[%s9 + $0x28] sm:$0xff]
      %v1084 = vld [vmem:[%s9 + $0x30] sm:$0xff]
      %v1085 = vld [vmem:[%s9 + $0x38] sm:$0xff]
      %v1086 = vld [vmem:[%s9 + $0x40] sm:$0xff]
      %v1087 = vld [vmem:[%s9 + $0x48] sm:$0xff]
      %v1088 = vld [vmem:[%s9 + $0x50] sm:$0xff]
      %v1089 = vld [vmem:[%s9 + $0x58] sm:$0xff]
      %v1090 = vld [vmem:[%s9 + $0x60] sm:$0xff]
      %v1091 = vld [vmem:[%s9 + $0x68] sm:$0xff]
      %v1092 = vld [vmem:[%s9 + $0x70] sm:$0xff]
      %v1093 = vld [vmem:[%s9 + $0x78] sm:$0xff]
      %v1094 = vld [vmem:[%s9 + $0x80] sm:$0xff]
      %v1095 = vld [vmem:[%s9 + $0x88] sm:$0xff]
      %v1096 = vld [vmem:[%s9 + $0x90] sm:$0xff]
      %v1097 = vld [vmem:[%s9 + $0x98] sm:$0xff]
      %v1098 = vld [vmem:[%s9 + $0xa0] sm:$0xff]
      %v1099 = vld [vmem:[%s9 + $0xa8] sm:$0xff]
      %v1100 = vld [vmem:[%s9 + $0xb0] sm:$0xff]
      %v1101 = vld [vmem:[%s9 + $0xb8] sm:$0xff]
      %v1102 = vld [vmem:[%s9 + $0xc0] sm:$0xff]
      %v1103 = vld [vmem:[%s9 + $0xc8] sm:$0xff]
      %v1104 = vld [vmem:[%s9 + $0xd0] sm:$0xff]
      %v1105 = vld [vmem:[%s9 + $0xd8] sm:$0xff]
      %v1106 = vld [vmem:[%s9 + $0xe0] sm:$0xff]
      %v1107 = vld [vmem:[%s9 + $0xe8] sm:$0xff]
      %v1108 = vld [vmem:[%s9 + $0xf0] sm:$0xff]
      %v1109 = vld [vmem:[%s9 + $0xf8] sm:$0xff]
      %v1110 = vld [vmem:[%s9 + $0x100] sm:$0xff]
      %v1111 = vld [vmem:[%s9 + $0x108] sm:$0xff]
      %v1112 = vld [vmem:[%s9 + $0x110] sm:$0xff]
      %v1113 = vld [vmem:[%s9 + $0x118] sm:$0xff]
      %v1114 = vld [vmem:[%s10] sm:$0x1]
      %v1116 = vrot.slane %v1077, 4
      %vm1118 = vcmask 1043456
      %v1119 = vsel %vm1118, 0.0, %v1116
      %v1120 = vsel %vm1118, %v1116, 0.0
      %vm1123 = vcmask 1046528
      %v1124 = vrot.slane %v1119, 1
      %v1125 = vrot.slane %v1120, 1
      %v1126 = vsel %vm1123, %v1124, %v1125
      %1127 = vrot.lane.b32.xlu0 %v1126, 32
      %v1128 = vpop.permute.xlu0 %1127
      %vm1130 = vcmask 1045504
      %v1131 = vrot.slane %v1119, 2
      %v1132 = vrot.slane %v1120, 2
      %v1133 = vsel %vm1130, %v1131, %v1132
      %1134 = vrot.lane.b32.xlu0 %v1133, 64
      %v1135 = vpop.permute.xlu0 %1134
      %vm1137 = vcmask 1044480
      %v1138 = vrot.slane %v1119, 3
      %v1139 = vrot.slane %v1120, 3
      %v1140 = vsel %vm1137, %v1138, %v1139
      %1141 = vrot.lane.b32.xlu0 %v1140, 96
      %v1142 = vpop.permute.xlu0 %1141
      %v1144 = vrot.slane %v1119, 4
      %v1145 = vrot.slane %v1120, 4
      %v1146 = vsel %vm1118, %v1144, %v1145
      %vm1148 = vcmask 1042432
      %v1149 = vrot.slane %v1119, 5
      %v1150 = vrot.slane %v1120, 5
      %v1151 = vsel %vm1148, %v1149, %v1150
      %1152 = vrot.lane.b32.xlu0 %v1151, 32
      %v1153 = vpop.permute.xlu0 %1152
      %vm1155 = vcmask 1041408
      %v1156 = vrot.slane %v1119, 6
      %v1157 = vrot.slane %v1120, 6
      %v1158 = vsel %vm1155, %v1156, %v1157
      %1159 = vrot.lane.b32.xlu0 %v1158, 64
      %v1160 = vpop.permute.xlu0 %1159
      %vm1162 = vcmask 1040384
      %v1163 = vrot.slane %v1119, 7
      %v1164 = vrot.slane %v1120, 7
      %v1165 = vsel %vm1162, %v1163, %v1164
      %1166 = vrot.lane.b32.xlu0 %v1165, 96
      %v1167 = vpop.permute.xlu0 %1166
      %v1169 = vsel %vm535, %v1119, %v1128
      %vm1170 = vcmask 523264
      %v1171 = vsel %vm1170, %v1169, %v1135
      %vm1172 = vcmask 785408
      %v1173 = vsel %vm1172, %v1171, %v1142
      %v1174 = vsel %vm535, %v1146, %v1153
      %v1175 = vsel %vm1170, %v1174, %v1160
      %v1176 = vsel %vm1172, %v1175, %v1167
      %v1178 = vlaneseq
      %v1179 = vshrl.u32 %v1178, 7
      %v1180 = vsub.s32 0, %v1179
      %v1181 = vrot.slane %v1114, %v1180
      %v1183 = vsel %vm535, %v1120, 0
      %1185 = vmatprep.subr.mxu0 0.0
      %1186 = vmatpush1.msra.mxu0 %v1078
      %1187 = vmatprep.subr.mxu0 0.0
      %1188 = vmatpush1.msra.mxu0 %v1079
      %1189 = vmatprep.subr.mxu0 0.0
      %1190 = vmatpush1.msra.mxu0 %v1080
      %1191 = vmatprep.subr.mxu0 0.0
      %1192 = vmatpush1.msra.mxu0 %v1081
      %1193 = vmatprep.subr.mxu0 0.0
      %1194 = vmatpush1.msra.mxu0 %v1082
      %1195 = vmatprep.subr.mxu0 0.0
      %1196 = vmatpush1.msra.mxu0 %v1083
      %1197 = vmatprep.subr.mxu0 0.0
      %1198 = vmatpush1.msra.mxu0 %v1084
      %1199 = vmatprep.subr.mxu0 0.0
      %1200 = vmatpush1.msra.mxu0 %v1085
      %1201 = vmatprep.subr.mxu0 0.0
      %1202 = vmatpush1.msra.mxu0 %v1086
      %1203 = vmatprep.subr.mxu0 0.0
      %1204 = vmatpush1.msra.mxu0 %v1087
      %1205 = vmatprep.subr.mxu0 0.0
      %1206 = vmatpush1.msra.mxu0 %v1088
      %1207 = vmatprep.subr.mxu0 0.0
      %1208 = vmatpush1.msra.mxu0 %v1089
      %1209 = vmatprep.subr.mxu0 0.0
      %1210 = vmatpush1.msra.mxu0 %v1090
      %1211 = vmatprep.subr.mxu0 0.0
      %1212 = vmatpush1.msra.mxu0 %v1091
      %1213 = vmatprep.subr.mxu0 0.0
      %1214 = vmatpush1.msra.mxu0 %v1092
      %1215 = vmatprep.subr.mxu0 0.0
      %1216 = vmatpush1.msra.mxu0 %v1093
      %1217 = vmatprep.subr.mxu0 0.0
      %1218 = vmatpush1.msra.mxu0 %v1094
      %1219 = vmatprep.subr.mxu0 0.0
      %1220 = vmatpush1.msra.mxu0 %v1095
      %1221 = vmatprep.subr.mxu0 0.0
      %1222 = vmatpush1.msra.mxu0 %v1096
      %1223 = vmatprep.subr.mxu0 0.0
      %1224 = vmatpush1.msra.mxu0 %v1097
      %1225 = vmatprep.subr.mxu0 0.0
      %1226 = vmatpush1.msra.mxu0 %v1098
      %1227 = vmatprep.subr.mxu0 0.0
      %1228 = vmatpush1.msra.mxu0 %v1099
      %1229 = vmatprep.subr.mxu0 0.0
      %1230 = vmatpush1.msra.mxu0 %v1100
      %1231 = vmatprep.subr.mxu0 0.0
      %1232 = vmatpush1.msra.mxu0 %v1101
      %1233 = vmatprep.subr.mxu0 0.0
      %1234 = vmatpush1.msra.mxu0 %v1102
      %1235 = vmatprep.subr.mxu0 0.0
      %1236 = vmatpush1.msra.mxu0 %v1103
      %1237 = vmatprep.subr.mxu0 0.0
      %1238 = vmatpush1.msra.mxu0 %v1104
      %1239 = vmatprep.subr.mxu0 0.0
      %1240 = vmatpush1.msra.mxu0 %v1105
      %1241 = vmatprep.subr.mxu0 0.0
      %1242 = vmatpush1.msra.mxu0 %v1106
      %1243 = vmatprep.subr.mxu0 0.0
      %1244 = vmatpush1.msra.mxu0 %v1107
      %1245 = vmatprep.subr.mxu0 0.0
      %1246 = vmatpush1.msra.mxu0 %v1108
      %1247 = vmatprep.subr.mxu0 0.0
      %1248 = vmatpush1.msra.mxu0 %v1109
      %1249 = vmatprep.mubr.f32.mxu0 %v1176
      %1250 = vmatmul.mubr.f32.gmra.mrb[0].mxu0 %v1173
      %v1251 = vpop.f32.mrb[0].mxu0
      %v1252 = vadd.f32 %v1181, %v1251
      %v1253 = vpop.f32.mrb[0].mxu0
      %1254 = vdwg.mxu0
      %1255 = vmatprep.subr.mxu0 0.0
      %1256 = vmatpush1.msra.mxu0 %v1110
      %1257 = vmatprep.subr.mxu0 0.0
      %1258 = vmatpush1.msra.mxu0 %v1111
      %1259 = vmatprep.subr.mxu0 0.0
      %1260 = vmatpush1.msra.mxu0 %v1112
      %1261 = vmatprep.subr.mxu0 0.0
      %1262 = vmatpush1.msra.mxu0 %v1113
      %1263 = vmatprep.subr.mxu0 0.0
      %1264 = vmatpush1.msra.mxu0 0.0
      %1265 = vmatprep.subr.mxu0 0.0
      %1266 = vmatpush1.msra.mxu0 0.0
      %1267 = vmatprep.subr.mxu0 0.0
      %1268 = vmatpush1.msra.mxu0 0.0
      %1269 = vmatprep.subr.mxu0 0.0
      %1270 = vmatpush1.msra.mxu0 0.0
      %1271 = vmatprep.subr.mxu0 0.0
      %1272 = vmatpush1.msra.mxu0 0.0
      %1273 = vmatprep.subr.mxu0 0.0
      %1274 = vmatpush1.msra.mxu0 0.0
      %1275 = vmatprep.subr.mxu0 0.0
      %1276 = vmatpush1.msra.mxu0 0.0
      %1277 = vmatprep.subr.mxu0 0.0
      %1278 = vmatpush1.msra.mxu0 0.0
      %1279 = vmatprep.subr.mxu0 0.0
      %1280 = vmatpush1.msra.mxu0 0.0
      %1281 = vmatprep.subr.mxu0 0.0
      %1282 = vmatpush1.msra.mxu0 0.0
      %1283 = vmatprep.subr.mxu0 0.0
      %1284 = vmatpush1.msra.mxu0 0.0
      %1285 = vmatprep.subr.mxu0 0.0
      %1286 = vmatpush1.msra.mxu0 0.0
      %1287 = vmatprep.subr.mxu0 0.0
      %1288 = vmatpush1.msra.mxu0 0.0
      %1289 = vmatprep.subr.mxu0 0.0
      %1290 = vmatpush1.msra.mxu0 0.0
      %1291 = vmatprep.subr.mxu0 0.0
      %1292 = vmatpush1.msra.mxu0 0.0
      %1293 = vmatprep.subr.mxu0 0.0
      %1294 = vmatpush1.msra.mxu0 0.0
      %1295 = vmatprep.subr.mxu0 0.0
      %1296 = vmatpush1.msra.mxu0 0.0
      %1297 = vmatprep.subr.mxu0 0.0
      %1298 = vmatpush1.msra.mxu0 0.0
      %1299 = vmatprep.subr.mxu0 0.0
      %1300 = vmatpush1.msra.mxu0 0.0
      %1301 = vmatprep.subr.mxu0 0.0
      %1302 = vmatpush1.msra.mxu0 0.0
      %1303 = vmatprep.subr.mxu0 0.0
      %1304 = vmatpush1.msra.mxu0 0.0
      %1305 = vmatprep.subr.mxu0 0.0
      %1306 = vmatpush1.msra.mxu0 0.0
      %1307 = vmatprep.subr.mxu0 0.0
      %1308 = vmatpush1.msra.mxu0 0.0
      %1309 = vmatprep.subr.mxu0 0.0
      %1310 = vmatpush1.msra.mxu0 0.0
      %1311 = vmatprep.subr.mxu0 0.0
      %1312 = vmatpush1.msra.mxu0 0.0
      %1313 = vmatprep.subr.mxu0 0.0
      %1314 = vmatpush1.msra.mxu0 0.0
      %1315 = vmatprep.subr.mxu0 0.0
      %1316 = vmatpush1.msra.mxu0 0.0
      %1317 = vmatprep.subr.mxu0 0.0
      %1318 = vmatpush1.msra.mxu0 0.0
      %1319 = vmatprep.mubr.f32.mxu0 0.0
      %1320 = vmatmul.mubr.f32.gmra.mrb[0].mxu0 %v1183
      %v1321 = vpop.f32.mrb[0].mxu0
      %v1322 = vadd.f32 %v1252, %v1321
      %v1323 = vpop.f32.mrb[0].mxu0
      %1324 = vdwg.mxu0
      %v1325 = vmax.f32 %v1322, 0.0
      %v1326 = vld [vmem:[%s11] sm:$0xff]
      %v1327 = vld [vmem:[%s11 + $0x8] sm:$0xff]
      %v1328 = vld [vmem:[%s11 + $0x10] sm:$0xff]
      %v1329 = vld [vmem:[%s11 + $0x18] sm:$0xff]
      %v1330 = vld [vmem:[%s11 + $0x20] sm:$0xff]
      %v1331 = vld [vmem:[%s11 + $0x28] sm:$0xff]
      %v1332 = vld [vmem:[%s11 + $0x30] sm:$0xff]
      %v1333 = vld [vmem:[%s11 + $0x38] sm:$0xff]
      %v1334 = vld [vmem:[%s12] sm:$0x1]
      %v1336 = vlaneseq
      %v1337 = vshrl.u32 %v1336, 7
      %v1338 = vsub.s32 0, %v1337
      %v1339 = vrot.slane %v1334, %v1338
      %v1342 = vsel %vm1170, %v1325, 0
      %1344 = vmatprep.subr.mxu0 0.0
      %1345 = vmatpush1.msra.mxu0 %v1326
      %1346 = vmatprep.subr.mxu0 0.0
      %1347 = vmatpush1.msra.mxu0 %v1327
      %1348 = vmatprep.subr.mxu0 0.0
      %1349 = vmatpush1.msra.mxu0 %v1328
      %1350 = vmatprep.subr.mxu0 0.0
      %1351 = vmatpush1.msra.mxu0 %v1329
      %1352 = vmatprep.subr.mxu0 0.0
      %1353 = vmatpush1.msra.mxu0 %v1330
      %1354 = vmatprep.subr.mxu0 0.0
      %1355 = vmatpush1.msra.mxu0 %v1331
      %1356 = vmatprep.subr.mxu0 0.0
      %1357 = vmatpush1.msra.mxu0 %v1332
      %1358 = vmatprep.subr.mxu0 0.0
      %1359 = vmatpush1.msra.mxu0 %v1333
      %1360 = vmatprep.subr.mxu0 0.0
      %1361 = vmatpush1.msra.mxu0 0.0
      %1362 = vmatprep.subr.mxu0 0.0
      %1363 = vmatpush1.msra.mxu0 0.0
      %1364 = vmatprep.subr.mxu0 0.0
      %1365 = vmatpush1.msra.mxu0 0.0
      %1366 = vmatprep.subr.mxu0 0.0
      %1367 = vmatpush1.msra.mxu0 0.0
      %1368 = vmatprep.subr.mxu0 0.0
      %1369 = vmatpush1.msra.mxu0 0.0
      %1370 = vmatprep.subr.mxu0 0.0
      %1371 = vmatpush1.msra.mxu0 0.0
      %1372 = vmatprep.subr.mxu0 0.0
      %1373 = vmatpush1.msra.mxu0 0.0
      %1374 = vmatprep.subr.mxu0 0.0
      %1375 = vmatpush1.msra.mxu0 0.0
      %1376 = vmatprep.subr.mxu0 0.0
      %1377 = vmatpush1.msra.mxu0 0.0
      %1378 = vmatprep.subr.mxu0 0.0
      %1379 = vmatpush1.msra.mxu0 0.0
      %1380 = vmatprep.subr.mxu0 0.0
      %1381 = vmatpush1.msra.mxu0 0.0
      %1382 = vmatprep.subr.mxu0 0.0
      %1383 = vmatpush1.msra.mxu0 0.0
      %1384 = vmatprep.subr.mxu0 0.0
      %1385 = vmatpush1.msra.mxu0 0.0
      %1386 = vmatprep.subr.mxu0 0.0
      %1387 = vmatpush1.msra.mxu0 0.0
      %1388 = vmatprep.subr.mxu0 0.0
      %1389 = vmatpush1.msra.mxu0 0.0
      %1390 = vmatprep.subr.mxu0 0.0
      %1391 = vmatpush1.msra.mxu0 0.0
      %1392 = vmatprep.subr.mxu0 0.0
      %1393 = vmatpush1.msra.mxu0 0.0
      %1394 = vmatprep.subr.mxu0 0.0
      %1395 = vmatpush1.msra.mxu0 0.0
      %1396 = vmatprep.subr.mxu0 0.0
      %1397 = vmatpush1.msra.mxu0 0.0
      %1398 = vmatprep.subr.mxu0 0.0
      %1399 = vmatpush1.msra.mxu0 0.0
      %1400 = vmatprep.subr.mxu0 0.0
      %1401 = vmatpush1.msra.mxu0 0.0
      %1402 = vmatprep.subr.mxu0 0.0
      %1403 = vmatpush1.msra.mxu0 0.0
      %1404 = vmatprep.subr.mxu0 0.0
      %1405 = vmatpush1.msra.mxu0 0.0
      %1406 = vmatprep.subr.mxu0 0.0
      %1407 = vmatpush1.msra.mxu0 0.0
      %1408 = vmatprep.mubr.f32.mxu0 0.0
      %1409 = vmatmul.mubr.f32.gmra.mrb[0].mxu0 %v1342
      %v1410 = vpop.f32.mrb[0].mxu0
      %v1411 = vadd.f32 %v1339, %v1410
      %v1412 = vpop.f32.mrb[0].mxu0
      %1413 = vdwg.mxu0
      %v1414 = vadd.f32 %v1411, %v1077
      %v1415 = vld [vmem:[%s13] sm:$0x1]
      %v1416 = vld [vmem:[%s14] sm:$0x1]
      %v1417 = vsel %vm535, %v1414, 0.0
      %1418 = vadd.xlane.f32.xlu0 %v1417
      %v1419 = vpop.xlane.xlu0 %1418
      %v1420 = vmul.f32 %v1419, %v1046
      %v1421 = vsub.f32 %v1414, %v1420
      %v1422 = vmul.f32 %v1421, %v1421
      %v1423 = vsel %vm535, %v1422, 0.0
      %1424 = vadd.xlane.f32.xlu0 %v1423
      %v1425 = vpop.xlane.xlu0 %1424
      %v1426 = vmul.f32 %v1425, %v1046
      %v1427 = vadd.f32 %v1426, 1e-05
      %v1428 = vrsqrt.pop %v1427
      %v1429 = vmul.f32 %v1421, %v1428
      %v1431 = vlaneseq
      %v1432 = vshrl.u32 %v1431, 7
      %v1433 = vsub.s32 0, %v1432
      %v1434 = vrot.slane %v1415, %v1433
      %v1436 = vmul.f32 %v1429, %v1434
      %v1438 = vlaneseq
      %v1439 = vshrl.u32 %v1438, 7
      %v1440 = vsub.s32 0, %v1439
      %v1441 = vrot.slane %v1416, %v1440
      %v1443 = vadd.f32 %v1436, %v1441
      %v1444 = vsel %vm1076, 0.0, %v1443
      %1445 = vst.msk [vmem:[%s520] sm:$0xff] %vm535, %v1444
      %p1446 = scmp.lt.s32.totalorder %s26, 1
      %s1447 = scalar_select %p1446, %s26, 1
      %s1448 = smul.addr %s1447, 8
      %s1449 = scalar_lea.vmem %s15, %s1448
      // Predicated region
      $region81: #{fastspeech2_forward.8} parent=79 // pred_check
        %p1450 = pneg %p374
      $region82: #{fastspeech2_forward.8} parent=79 // pred_check_branch
        %1452 = sbr.rel (%p1450) target = $region84
      $region83: #{fastspeech2_forward.8} parent=79 // pred_region
        _
      $region84: #{fastspeech2_forward.8} parent=79 // pred_fallthru
        _
    $region80: #{fastspeech2_forward.8} parent=5 // pred_fallthru
      _
    %p1453 = scmp.le.s32.totalorder 2, %s21
    // Predicated region
    $region85: #{fastspeech2_forward.8} parent=5 // pred_check
      %p1454 = pneg %p1453
    $region86: #{fastspeech2_forward.8} parent=5 // pred_check_branch
      %1456 = sbr.rel (%p1454) target = $region88
    $region87: #{fastspeech2_forward.8} parent=5 // pred_region
      %s1457 = ssub.s32 %s21, 2
      // Predicated region
      $region89: #{fastspeech2_forward.8} parent=87 // pred_check
        %p1458 = pneg %p380
      $region90: #{fastspeech2_forward.8} parent=87 // pred_check_branch
        %1460 = sbr.rel (%p1458) target = $region92
      $region91: #{fastspeech2_forward.8} parent=87 // pred_region
        %p1461 = scmp.lt.s32.totalorder %s27, 1
        %s1462 = scalar_select %p1461, %s27, 1
        %s1463 = smul.addr %s1462, 8
        %s1464 = scalar_lea.vmem %s15, %s1463
      $region92: #{fastspeech2_forward.8} parent=87 // pred_fallthru
        _
    $region88: #{fastspeech2_forward.8} parent=5 // pred_fallthru
      _
  $region6: #{fastspeech2_forward.8} parent=0 // loop_footer
    %s25 = sadd.s32 1, %s21
  $region7: #{fastspeech2_forward.8} parent=0 // loop_footer_branch
    %20 = sbr.rel target = $region3
  $region8: #{fastspeech2_forward.8} parent=0 // loop_exit
    _

// kernel: fastspeech2_forward.11
$region0: #{fastspeech2_forward.11}
  #allocation0 [shape = 'u32[]', space=smem, size = 0x4, offset = 0x4, fixed_abs, tag = 'smem constant byte address 0x4 - core index']
  #allocation1 [shape = 'u32[144,128]{1,0:T(1,128)}', space=vmem, size = 0x12000, scoped, tag = 'internal scratch']
  #allocation2 [shape = 'f32[1,1]{1,0:T(1,128)S(1)}', space=vmem, size = 0x200, scoped, tag = 'scoped memory for fastspeech2_forward.11']
  %s0 = inlined_call_operand.vmem [shape: f32[2,24,32], index: 0, kind: input, shape index: {}]
  %s1 = inlined_call_operand.vmem [shape: f32[2,1,24], index: 1, kind: input, shape index: {}]
  %s2 = inlined_call_operand.vmem [shape: f32[96,32], index: 2, kind: input, shape index: {}]
  %s3 = inlined_call_operand.vmem [shape: f32[1,32], index: 3, kind: input, shape index: {}]
  %s4 = inlined_call_operand.vmem [shape: f32[1,32], index: 4, kind: input, shape index: {}, may-alias: {4,8}]
  %s5 = inlined_call_operand.vmem [shape: f32[1,32], index: 5, kind: input, shape index: {}, may-alias: {5,9}]
  %s6 = inlined_call_operand.vmem [shape: f32[96,32], index: 6, kind: input, shape index: {}]
  %s7 = inlined_call_operand.vmem [shape: f32[1,32], index: 7, kind: input, shape index: {}]
  %s8 = inlined_call_operand.vmem [shape: f32[1,32], index: 8, kind: input, shape index: {}, may-alias: {4,8}]
  %s9 = inlined_call_operand.vmem [shape: f32[1,32], index: 9, kind: input, shape index: {}, may-alias: {5,9}]
  %s10 = inlined_call_operand.vmem [shape: f32[1,32], index: 10, kind: input, shape index: {}]
  %s11 = inlined_call_operand.<no memory space> [shape: f32[1,1], index: 11, kind: input, shape index: {}]
  %s12 = inlined_call_operand.hbm [shape: f32[2,1,24], index: 12, kind: output, shape index: {}]
  %s13 = sld [smem:[#allocation0]]
  $region81: #{fastspeech2_forward.11} parent=0
    _
  %s15 = ssub.s32 1, %s13
  %s16 = scalar_select 0, %s15, %s13
  %v17 = vstv %s11
  %18 = vst [vmem:[#allocation2] sm:$0x1] %v17
  $region1: #{fastspeech2_forward.11} parent=0
    #allocation3 [shape = 'u8[1024]{0}', space=vmem, size = 0x400, scoped, tag = 'output window, operand 0']
    #allocation4 [shape = 's32[2]{0}', space=sflag, size = 0x8, scoped, tag = 'scoped memory for fastspeech2_forward.11']
    %19 = vsyncpa [#allocation4], 0
    %s20 = scalar_lea.sflag [#allocation4], 1
    %21 = vsyncpa %s20, 0
    loop: start=0, step=1, limit=4
    $region2: #{fastspeech2_forward.11} parent=1 // loop_pre_header
      _
    $region3: #{fastspeech2_forward.11} parent=1 // loop_header
      %s23 = sphi 0, %s27
      %p24 = scmp.ge.s32.totalorder %s23, 4
      %s33 = sphi 0, %s35
      %s36 = sphi 0, %s33
      %s37 = sphi 0, %s36
      %s53 = sphi 0, %s37
      %s59 = sphi 0, %s61
      %s62 = sphi 0, %s59
      %s63 = sphi 0, %s62
      %s79 = sphi 0, %s63
      %s83 = sphi 0, %s83
      %s85 = sphi 0, %s83
      %s86 = sphi 0, %s85
      %s100 = sphi 0, %s86
      %s104 = sphi 0, %s104
      %s106 = sphi 0, %s104
      %s107 = sphi 0, %s106
      %s121 = sphi 0, %s107
      %s125 = sphi 0, %s125
      %s127 = sphi 0, %s125
      %s128 = sphi 0, %s127
      %s142 = sphi 0, %s128
      %s146 = sphi 0, %s146
      %s148 = sphi 0, %s146
      %s149 = sphi 0, %s148
      %s163 = sphi 0, %s149
      %s167 = sphi 0, %s167
      %s169 = sphi 0, %s167
      %s170 = sphi 0, %s169
      %s184 = sphi 0, %s170
      %s188 = sphi 0, %s188
      %s190 = sphi 0, %s188
      %s191 = sphi 0, %s190
      %s205 = sphi 0, %s191
      %s209 = sphi 0, %s209
      %s211 = sphi 0, %s209
      %s212 = sphi 0, %s211
      %s226 = sphi 0, %s212
      %s230 = sphi 0, %s230
      %s232 = sphi 0, %s230
      %s233 = sphi 0, %s232
      %s247 = sphi 0, %s233
      %s251 = sphi 0, %s251
      %s253 = sphi 0, %s251
      %s254 = sphi 0, %s253
      %s268 = sphi 0, %s254
      %s272 = sphi 0, %s272
      %s274 = sphi 0, %s272
      %s275 = sphi 0, %s274
      %s289 = sphi 0, %s275
      %s295 = sphi 0, %s297
      %s298 = sphi 0, %s295
      %s299 = sphi 0, %s298
      %s315 = sphi 0, %s299
    $region4: #{fastspeech2_forward.11} parent=1 // loop_header_branch
      %26 = sbr.rel (%p24) target = $region8
    $region5: #{fastspeech2_forward.11} parent=1 // loop_body
      %s28 = ssub.s32 %s23, 1
      %s29 = ssub.s32 %s23, 2
      %s30 = sadd.s32 %s23, 1
      %s31 = ssub.s32 %s23, %s30
      %p32 = scmp.eq.s32.totalorder %s31, 0
      %s34 = sadd.s32 %s33, 1
      %s35 = scalar_select %p32, %s33, %s34
      %p38 = pneg %p32
      %p39 = scmp.eq.s32.totalorder %s23, 1
      %p40 = por %p38, %p39
      %p41 = scmp.ne.s32.totalorder %s33, %s36
      %p42 = scmp.eq.s32.totalorder %s23, 0
      %p43 = por %p41, %p42
      %p44 = scmp.ne.s32.totalorder %s33, %s36
      %p45 = scmp.eq.s32.totalorder %s28, 1
      %p46 = por %p44, %p45
      %p47 = scmp.ne.s32.totalorder %s36, %s37
      %p48 = scmp.eq.s32.totalorder %s28, 0
      %p49 = por %p47, %p48
      %p50 = scmp.ne.s32.totalorder %s36, %s37
      %p51 = scmp.eq.s32.totalorder %s29, 1
      %p52 = por %p50, %p51
      %p54 = scmp.ne.s32.totalorder %s37, %s53
      %p55 = scmp.eq.s32.totalorder %s29, 0
      %p56 = por %p54, %p55
      %s57 = ssub.s32 %s23, %s30
      %p58 = scmp.eq.s32.totalorder %s57, 0
      %s60 = sadd.s32 %s59, 1
      %s61 = scalar_select %p58, %s59, %s60
      %p64 = pneg %p58
      %p65 = scmp.eq.s32.totalorder %s23, 1
      %p66 = por %p64, %p65
      %p67 = scmp.ne.s32.totalorder %s59, %s62
      %p68 = scmp.eq.s32.totalorder %s23, 0
      %p69 = por %p67, %p68
      %p70 = scmp.ne.s32.totalorder %s59, %s62
      %p71 = scmp.eq.s32.totalorder %s28, 1
      %p72 = por %p70, %p71
      %p73 = scmp.ne.s32.totalorder %s62, %s63
      %p74 = scmp.eq.s32.totalorder %s28, 0
      %p75 = por %p73, %p74
      %p76 = scmp.ne.s32.totalorder %s62, %s63
      %p77 = scmp.eq.s32.totalorder %s29, 1
      %p78 = por %p76, %p77
      %p80 = scmp.ne.s32.totalorder %s63, %s79
      %p81 = scmp.eq.s32.totalorder %s29, 0
      %p82 = por %p80, %p81
      %s84 = sadd.s32 %s83, 1
      %p87 = scmp.eq.s32.totalorder %s23, 1
      %p88 = scmp.ne.s32.totalorder %s83, %s85
      %p89 = scmp.eq.s32.totalorder %s23, 0
      %p90 = por %p88, %p89
      %p91 = scmp.ne.s32.totalorder %s83, %s85
      %p92 = scmp.eq.s32.totalorder %s28, 1
      %p93 = por %p91, %p92
      %p94 = scmp.ne.s32.totalorder %s85, %s86
      %p95 = scmp.eq.s32.totalorder %s28, 0
      %p96 = por %p94, %p95
      %p97 = scmp.ne.s32.totalorder %s85, %s86
      %p98 = scmp.eq.s32.totalorder %s29, 1
      %p99 = por %p97, %p98
      %p101 = scmp.ne.s32.totalorder %s86, %s100
      %p102 = scmp.eq.s32.totalorder %s29, 0
      %p103 = por %p101, %p102
      %s105 = sadd.s32 %s104, 1
      %p108 = scmp.eq.s32.totalorder %s23, 1
      %p109 = scmp.ne.s32.totalorder %s104, %s106
      %p110 = scmp.eq.s32.totalorder %s23, 0
      %p111 = por %p109, %p110
      %p112 = scmp.ne.s32.totalorder %s104, %s106
      %p113 = scmp.eq.s32.totalorder %s28, 1
      %p114 = por %p112, %p113
      %p115 = scmp.ne.s32.totalorder %s106, %s107
      %p116 = scmp.eq.s32.totalorder %s28, 0
      %p117 = por %p115, %p116
      %p118 = scmp.ne.s32.totalorder %s106, %s107
      %p119 = scmp.eq.s32.totalorder %s29, 1
      %p120 = por %p118, %p119
      %p122 = scmp.ne.s32.totalorder %s107, %s121
      %p123 = scmp.eq.s32.totalorder %s29, 0
      %p124 = por %p122, %p123
      %s126 = sadd.s32 %s125, 1
      %p129 = scmp.eq.s32.totalorder %s23, 1
      %p130 = scmp.ne.s32.totalorder %s125, %s127
      %p131 = scmp.eq.s32.totalorder %s23, 0
      %p132 = por %p130, %p131
      %p133 = scmp.ne.s32.totalorder %s125, %s127
      %p134 = scmp.eq.s32.totalorder %s28, 1
      %p135 = por %p133, %p134
      %p136 = scmp.ne.s32.totalorder %s127, %s128
      %p137 = scmp.eq.s32.totalorder %s28, 0
      %p138 = por %p136, %p137
      %p139 = scmp.ne.s32.totalorder %s127, %s128
      %p140 = scmp.eq.s32.totalorder %s29, 1
      %p141 = por %p139, %p140
      %p143 = scmp.ne.s32.totalorder %s128, %s142
      %p144 = scmp.eq.s32.totalorder %s29, 0
      %p145 = por %p143, %p144
      %s147 = sadd.s32 %s146, 1
      %p150 = scmp.eq.s32.totalorder %s23, 1
      %p151 = scmp.ne.s32.totalorder %s146, %s148
      %p152 = scmp.eq.s32.totalorder %s23, 0
      %p153 = por %p151, %p152
      %p154 = scmp.ne.s32.totalorder %s146, %s148
      %p155 = scmp.eq.s32.totalorder %s28, 1
      %p156 = por %p154, %p155
      %p157 = scmp.ne.s32.totalorder %s148, %s149
      %p158 = scmp.eq.s32.totalorder %s28, 0
      %p159 = por %p157, %p158
      %p160 = scmp.ne.s32.totalorder %s148, %s149
      %p161 = scmp.eq.s32.totalorder %s29, 1
      %p162 = por %p160, %p161
      %p164 = scmp.ne.s32.totalorder %s149, %s163
      %p165 = scmp.eq.s32.totalorder %s29, 0
      %p166 = por %p164, %p165
      %s168 = sadd.s32 %s167, 1
      %p171 = scmp.eq.s32.totalorder %s23, 1
      %p172 = scmp.ne.s32.totalorder %s167, %s169
      %p173 = scmp.eq.s32.totalorder %s23, 0
      %p174 = por %p172, %p173
      %p175 = scmp.ne.s32.totalorder %s167, %s169
      %p176 = scmp.eq.s32.totalorder %s28, 1
      %p177 = por %p175, %p176
      %p178 = scmp.ne.s32.totalorder %s169, %s170
      %p179 = scmp.eq.s32.totalorder %s28, 0
      %p180 = por %p178, %p179
      %p181 = scmp.ne.s32.totalorder %s169, %s170
      %p182 = scmp.eq.s32.totalorder %s29, 1
      %p183 = por %p181, %p182
      %p185 = scmp.ne.s32.totalorder %s170, %s184
      %p186 = scmp.eq.s32.totalorder %s29, 0
      %p187 = por %p185, %p186
      %s189 = sadd.s32 %s188, 1
      %p192 = scmp.eq.s32.totalorder %s23, 1
      %p193 = scmp.ne.s32.totalorder %s188, %s190
      %p194 = scmp.eq.s32.totalorder %s23, 0
      %p195 = por %p193, %p194
      %p196 = scmp.ne.s32.totalorder %s188, %s190
      %p197 = scmp.eq.s32.totalorder %s28, 1
      %p198 = por %p196, %p197
      %p199 = scmp.ne.s32.totalorder %s190, %s191
      %p200 = scmp.eq.s32.totalorder %s28, 0
      %p201 = por %p199, %p200
      %p202 = scmp.ne.s32.totalorder %s190, %s191
      %p203 = scmp.eq.s32.totalorder %s29, 1
      %p204 = por %p202, %p203
      %p206 = scmp.ne.s32.totalorder %s191, %s205
      %p207 = scmp.eq.s32.totalorder %s29, 0
      %p208 = por %p206, %p207
      %s210 = sadd.s32 %s209, 1
      %p213 = scmp.eq.s32.totalorder %s23, 1
      %p214 = scmp.ne.s32.totalorder %s209, %s211
      %p215 = scmp.eq.s32.totalorder %s23, 0
      %p216 = por %p214, %p215
      %p217 = scmp.ne.s32.totalorder %s209, %s211
      %p218 = scmp.eq.s32.totalorder %s28, 1
      %p219 = por %p217, %p218
      %p220 = scmp.ne.s32.totalorder %s211, %s212
      %p221 = scmp.eq.s32.totalorder %s28, 0
      %p222 = por %p220, %p221
      %p223 = scmp.ne.s32.totalorder %s211, %s212
      %p224 = scmp.eq.s32.totalorder %s29, 1
      %p225 = por %p223, %p224
      %p227 = scmp.ne.s32.totalorder %s212, %s226
      %p228 = scmp.eq.s32.totalorder %s29, 0
      %p229 = por %p227, %p228
      %s231 = sadd.s32 %s230, 1
      %p234 = scmp.eq.s32.totalorder %s23, 1
      %p235 = scmp.ne.s32.totalorder %s230, %s232
      %p236 = scmp.eq.s32.totalorder %s23, 0
      %p237 = por %p235, %p236
      %p238 = scmp.ne.s32.totalorder %s230, %s232
      %p239 = scmp.eq.s32.totalorder %s28, 1
      %p240 = por %p238, %p239
      %p241 = scmp.ne.s32.totalorder %s232, %s233
      %p242 = scmp.eq.s32.totalorder %s28, 0
      %p243 = por %p241, %p242
      %p244 = scmp.ne.s32.totalorder %s232, %s233
      %p245 = scmp.eq.s32.totalorder %s29, 1
      %p246 = por %p244, %p245
      %p248 = scmp.ne.s32.totalorder %s233, %s247
      %p249 = scmp.eq.s32.totalorder %s29, 0
      %p250 = por %p248, %p249
      %s252 = sadd.s32 %s251, 1
      %p255 = scmp.eq.s32.totalorder %s23, 1
      %p256 = scmp.ne.s32.totalorder %s251, %s253
      %p257 = scmp.eq.s32.totalorder %s23, 0
      %p258 = por %p256, %p257
      %p259 = scmp.ne.s32.totalorder %s251, %s253
      %p260 = scmp.eq.s32.totalorder %s28, 1
      %p261 = por %p259, %p260
      %p262 = scmp.ne.s32.totalorder %s253, %s254
      %p263 = scmp.eq.s32.totalorder %s28, 0
      %p264 = por %p262, %p263
      %p265 = scmp.ne.s32.totalorder %s253, %s254
      %p266 = scmp.eq.s32.totalorder %s29, 1
      %p267 = por %p265, %p266
      %p269 = scmp.ne.s32.totalorder %s254, %s268
      %p270 = scmp.eq.s32.totalorder %s29, 0
      %p271 = por %p269, %p270
      %s273 = sadd.s32 %s272, 1
      %p276 = scmp.eq.s32.totalorder %s23, 1
      %p277 = scmp.ne.s32.totalorder %s272, %s274
      %p278 = scmp.eq.s32.totalorder %s23, 0
      %p279 = por %p277, %p278
      %p280 = scmp.ne.s32.totalorder %s272, %s274
      %p281 = scmp.eq.s32.totalorder %s28, 1
      %p282 = por %p280, %p281
      %p283 = scmp.ne.s32.totalorder %s274, %s275
      %p284 = scmp.eq.s32.totalorder %s28, 0
      %p285 = por %p283, %p284
      %p286 = scmp.ne.s32.totalorder %s274, %s275
      %p287 = scmp.eq.s32.totalorder %s29, 1
      %p288 = por %p286, %p287
      %p290 = scmp.ne.s32.totalorder %s275, %s289
      %p291 = scmp.eq.s32.totalorder %s29, 0
      %p292 = por %p290, %p291
      %s293 = ssub.s32 %s23, %s30
      %p294 = scmp.eq.s32.totalorder %s293, 0
      %s296 = sadd.s32 %s295, 1
      %s297 = scalar_select %p294, %s295, %s296
      %p300 = pneg %p294
      %p301 = scmp.eq.s32.totalorder %s23, 1
      %p302 = por %p300, %p301
      %p303 = scmp.ne.s32.totalorder %s295, %s298
      %p304 = scmp.eq.s32.totalorder %s23, 0
      %p305 = por %p303, %p304
      %p306 = scmp.ne.s32.totalorder %s295, %s298
      %p307 = scmp.eq.s32.totalorder %s28, 1
      %p308 = por %p306, %p307
      %p309 = scmp.ne.s32.totalorder %s298, %s299
      %p310 = scmp.eq.s32.totalorder %s28, 0
      %p311 = por %p309, %p310
      %p312 = scmp.ne.s32.totalorder %s298, %s299
      %p313 = scmp.eq.s32.totalorder %s29, 1
      %p314 = por %p312, %p313
      %p316 = scmp.ne.s32.totalorder %s299, %s315
      %p317 = scmp.eq.s32.totalorder %s29, 0
      %p318 = por %p316, %p317
      %p319 = scmp.le.s32.totalorder 1, %s23
      %p320 = scmp.lt.s32.totalorder %s23, 3
      %p321 = pnand %p319, %p320
      %p322 = pneg %p321
      // Predicated region
      $region9: #{fastspeech2_forward.11} parent=5 // pred_check
        _
      $region10: #{fastspeech2_forward.11} parent=5 // pred_check_branch
        %324 = sbr.rel (%p321) target = $region12
      $region11: #{fastspeech2_forward.11} parent=5 // pred_region
        %s325 = ssub.s32 %s23, 1
        // Predicated region
        $region13: #{fastspeech2_forward.11} parent=11 // pred_check
          %p326 = pneg %p96
        $region14: #{fastspeech2_forward.11} parent=11 // pred_check_branch
          %328 = sbr.rel (%p326) target = $region16
        $region15: #{fastspeech2_forward.11} parent=11 // pred_region
          _
        $region16: #{fastspeech2_forward.11} parent=11 // pred_fallthru
          _
        // Predicated region
        $region17: #{fastspeech2_forward.11} parent=11 // pred_check
          %p329 = pneg %p117
        $region18: #{fastspeech2_forward.11} parent=11 // pred_check_branch
          %331 = sbr.rel (%p329) target = $region20
        $region19: #{fastspeech2_forward.11} parent=11 // pred_region
          _
        $region20: #{fastspeech2_forward.11} parent=11 // pred_fallthru
          _
        // Predicated region
        $region21: #{fastspeech2_forward.11} parent=11 // pred_check
          %p332 = pneg %p138
        $region22: #{fastspeech2_forward.11} parent=11 // pred_check_branch
          %334 = sbr.rel (%p332) target = $region24
        $region23: #{fastspeech2_forward.11} parent=11 // pred_region
          _
        $region24: #{fastspeech2_forward.11} parent=11 // pred_fallthru
          _
        // Predicated region
        $region25: #{fastspeech2_forward.11} parent=11 // pred_check
          %p335 = pneg %p159
        $region26: #{fastspeech2_forward.11} parent=11 // pred_check_branch
          %337 = sbr.rel (%p335) target = $region28
        $region27: #{fastspeech2_forward.11} parent=11 // pred_region
          _
        $region28: #{fastspeech2_forward.11} parent=11 // pred_fallthru
          _
        // Predicated region
        $region29: #{fastspeech2_forward.11} parent=11 // pred_check
          %p338 = pneg %p180
        $region30: #{fastspeech2_forward.11} parent=11 // pred_check_branch
          %340 = sbr.rel (%p338) target = $region32
        $region31: #{fastspeech2_forward.11} parent=11 // pred_region
          _
        $region32: #{fastspeech2_forward.11} parent=11 // pred_fallthru
          _
        // Predicated region
        $region33: #{fastspeech2_forward.11} parent=11 // pred_check
          %p341 = pneg %p201
        $region34: #{fastspeech2_forward.11} parent=11 // pred_check_branch
          %343 = sbr.rel (%p341) target = $region36
        $region35: #{fastspeech2_forward.11} parent=11 // pred_region
          _
        $region36: #{fastspeech2_forward.11} parent=11 // pred_fallthru
          _
        // Predicated region
        $region37: #{fastspeech2_forward.11} parent=11 // pred_check
          %p344 = pneg %p222
        $region38: #{fastspeech2_forward.11} parent=11 // pred_check_branch
          %346 = sbr.rel (%p344) target = $region40
        $region39: #{fastspeech2_forward.11} parent=11 // pred_region
          _
        $region40: #{fastspeech2_forward.11} parent=11 // pred_fallthru
          _
        // Predicated region
        $region41: #{fastspeech2_forward.11} parent=11 // pred_check
          %p347 = pneg %p243
        $region42: #{fastspeech2_forward.11} parent=11 // pred_check_branch
          %349 = sbr.rel (%p347) target = $region44
        $region43: #{fastspeech2_forward.11} parent=11 // pred_region
          _
        $region44: #{fastspeech2_forward.11} parent=11 // pred_fallthru
          _
        // Predicated region
        $region45: #{fastspeech2_forward.11} parent=11 // pred_check
          %p350 = pneg %p264
        $region46: #{fastspeech2_forward.11} parent=11 // pred_check_branch
          %352 = sbr.rel (%p350) target = $region48
        $region47: #{fastspeech2_forward.11} parent=11 // pred_region
          _
        $region48: #{fastspeech2_forward.11} parent=11 // pred_fallthru
          _
        // Predicated region
        $region49: #{fastspeech2_forward.11} parent=11 // pred_check
          %p353 = pneg %p285
        $region50: #{fastspeech2_forward.11} parent=11 // pred_check_branch
          %355 = sbr.rel (%p353) target = $region52
        $region51: #{fastspeech2_forward.11} parent=11 // pred_region
          _
        $region52: #{fastspeech2_forward.11} parent=11 // pred_fallthru
          _
      $region12: #{fastspeech2_forward.11} parent=5 // pred_fallthru
        _
      %p356 = scmp.lt.s32.totalorder %s23, 2
      // Predicated region
      $region53: #{fastspeech2_forward.11} parent=5 // pred_check
        %p357 = pneg %p356
      $region54: #{fastspeech2_forward.11} parent=5 // pred_check_branch
        %359 = sbr.rel (%p357) target = $region56
      $region55: #{fastspeech2_forward.11} parent=5 // pred_region
        // Predicated region
        $region57: #{fastspeech2_forward.11} parent=55 // pred_check
          %p360 = pneg %p43
        $region58: #{fastspeech2_forward.11} parent=55 // pred_check_branch
          %362 = sbr.rel (%p360) target = $region60
        $region59: #{fastspeech2_forward.11} parent=55 // pred_region
          %p363 = scmp.lt.s32.totalorder %s23, 1
          %s364 = scalar_select %p363, %s23, 1
          %s365 = smul.addr %s364, 3
          %s366 = smul.addr %s365, 8
          %s367 = scalar_lea.vmem %s0, %s366
        $region60: #{fastspeech2_forward.11} parent=55 // pred_fallthru
          _
        // Predicated region
        $region61: #{fastspeech2_forward.11} parent=55 // pred_check
          %p368 = pneg %p69
        $region62: #{fastspeech2_forward.11} parent=55 // pred_check_branch
          %370 = sbr.rel (%p368) target = $region64
        $region63: #{fastspeech2_forward.11} parent=55 // pred_region
          %p371 = scmp.lt.s32.totalorder %s23, 1
          %s372 = scalar_select %p371, %s23, 1
          %s373 = scalar_lea.vmem %s1, %s372
        $region64: #{fastspeech2_forward.11} parent=55 // pred_fallthru
          _
      $region56: #{fastspeech2_forward.11} parent=5 // pred_fallthru
        _
      %p374 = scmp.le.s32.totalorder 1, %s23
      %p375 = scmp.lt.s32.totalorder %s23, 3
      %p376 = pnand %p374, %p375
      %p377 = pneg %p376
      // Predicated region
      $region65: #{fastspeech2_forward.11} parent=5 // pred_check
        _
      $region66: #{fastspeech2_forward.11} parent=5 // pred_check_branch
        %379 = sbr.rel (%p376) target = $region68
      $region67: #{fastspeech2_forward.11} parent=5 // pred_region
        %s380 = ssub.s32 %s23, 1
        %p381 = scmp.lt.s32.totalorder %s28, 1
        %s382 = scalar_select %p381, %s28, 1
        %s383 = smul.addr %s382, 3
        %s384 = smul.addr %s383, 8
        %s385 = scalar_lea.vmem %s0, %s384
        %p386 = pneg %p49
        %p387 = pneg %p46
        %p388 = scmp.lt.s32.totalorder %s28, 1
        %s389 = scalar_select %p388, %s28, 1
        %s390 = scalar_lea.vmem %s1, %s389
        %p391 = pneg %p75
        %p392 = pneg %p72
        %p393 = pneg %p96
        %p394 = pneg %p93
        %p395 = pneg %p117
        %p396 = pneg %p114
        %p397 = pneg %p138
        %p398 = pneg %p135
        %p399 = pneg %p159
        %p400 = pneg %p156
        %p401 = pneg %p180
        %p402 = pneg %p177
        %p403 = pneg %p201
        %p404 = pneg %p198
        %p405 = pneg %p222
        %p406 = pneg %p219
        %p407 = pneg %p243
        %p408 = pneg %p240
        %p409 = pneg %p264
        %p410 = pneg %p261
        %p411 = pneg %p285
        %p412 = pneg %p282
        %p413 = pneg %p311
        %p414 = pneg %p308
        %s415 = sand.u32 %s298, 1
        %s416 = scalar_lea.sflag [#allocation4], %s415
        %s417 = sand.u32 %s298, 1
        %s418 = scalar_lea.vmem [#allocation3], %s417
        %p419 = scmp.lt.s32.totalorder %s28, 1
        %s420 = scalar_select %p419, %s28, 1
        %s421 = smul.addr %s420, 3
        %s422 = smul.addr %s421, 8
        %s423 = scalar_lea.vmem %s0, %s422
        %p424 = scmp.lt.s32.totalorder %s28, 1
        %s425 = scalar_select %p424, %s28, 1
        %s426 = scalar_lea.vmem %s1, %s425
        %v427 = vld [vmem:[%s423] sm:$0xff]
        %v428 = vld [vmem:[%s423 + $0x8] sm:$0xff]
        %v429 = vld [vmem:[%s423 + $0x10] sm:$0xff]
        %v430 = vld [vmem:[%s426] sm:$0x1]
        %v431 = vld [vmem:[%s2] sm:$0xff]
        %v432 = vld [vmem:[%s2 + $0x8] sm:$0xff]
        %v433 = vld [vmem:[%s2 + $0x10] sm:$0xff]
        %v434 = vld [vmem:[%s2 + $0x18] sm:$0xff]
        %v435 = vld [vmem:[%s2 + $0x20] sm:$0xff]
        %v436 = vld [vmem:[%s2 + $0x28] sm:$0xff]
        %v437 = vld [vmem:[%s2 + $0x30] sm:$0xff]
        %v438 = vld [vmem:[%s2 + $0x38] sm:$0xff]
        %v439 = vld [vmem:[%s2 + $0x40] sm:$0xff]
        %v440 = vld [vmem:[%s2 + $0x48] sm:$0xff]
        %v441 = vld [vmem:[%s2 + $0x50] sm:$0xff]
        %v442 = vld [vmem:[%s2 + $0x58] sm:$0xff]
        %v443 = vld [vmem:[%s3] sm:$0x1]
        %vm447 = vcmask 1040384
        %v448 = vrot.slane %v427, 7
        %v449 = vrot.slane %v428, 7
        %v450 = vsel %vm447, %v448, %v449
        %v451 = vrot.slane %v429, 7
        %v452 = vsel %vm447, %v449, %v451
        %v457 = vsel %vm447, 0.0, %v448
        %v458 = vsel %vm447, %v451, 0.0
        %vm461 = vcmask 1046528
        %v462 = vrot.slane %v457, 1
        %v463 = vrot.slane %v450, 1
        %v464 = vsel %vm461, %v462, %v463
        %v465 = vrot.slane %v452, 1
        %v466 = vsel %vm461, %v463, %v465
        %v467 = vrot.slane %v458, 1
        %v468 = vsel %vm461, %v465, %v467
        %469 = vrot.lane.b32.xlu0 %v464, 32
        %v470 = vpop.permute.xlu0 %469
        %471 = vrot.lane.b32.xlu0 %v466, 32
        %v472 = vpop.permute.xlu0 %471
        %473 = vrot.lane.b32.xlu0 %v468, 32
        %v474 = vpop.permute.xlu0 %473
        %vm478 = vcmask 1045504
        %v479 = vrot.slane %v457, 2
        %v480 = vrot.slane %v450, 2
        %v481 = vsel %vm478, %v479, %v480
        %v482 = vrot.slane %v452, 2
        %v483 = vsel %vm478, %v480, %v482
        %v484 = vrot.slane %v458, 2
        %v485 = vsel %vm478, %v482, %v484
        %486 = vrot.lane.b32.xlu0 %v481, 64
        %v487 = vpop.permute.xlu0 %486
        %488 = vrot.lane.b32.xlu0 %v483, 64
        %v489 = vpop.permute.xlu0 %488
        %490 = vrot.lane.b32.xlu0 %v485, 64
        %v491 = vpop.permute.xlu0 %490
        %vm495 = vcmask 261120
        %v496 = vsel %vm495, %v457, %v470
        %v497 = vsel %vm495, %v450, %v472
        %v498 = vsel %vm495, %v452, %v474
        %vm499 = vcmask 523264
        %v500 = vsel %vm499, %v496, %v487
        %v501 = vsel %vm499, %v497, %v489
        %v502 = vsel %vm499, %v498, %v491
        %v504 = vlaneseq
        %v505 = vshrl.u32 %v504, 7
        %v506 = vsub.s32 0, %v505
        %v507 = vrot.slane %v443, %v506
        %vm509 = vcmask 785408
        %v511 = vsel %vm509, %v500, 0
        %v514 = vsel %vm509, %v501, 0
        %v517 = vsel %vm509, %v502, 0
        %519 = vmatprep.subr.mxu0 0.0
        %520 = vmatpush1.msra.mxu0 %v431
        %521 = vmatprep.subr.mxu0 0.0
        %522 = vmatpush1.msra.mxu0 %v432
        %523 = vmatprep.subr.mxu0 0.0
        %524 = vmatpush1.msra.mxu0 %v433
        %525 = vmatprep.subr.mxu0 0.0
        %526 = vmatpush1.msra.mxu0 %v434
        %527 = vmatprep.subr.mxu0 0.0
        %528 = vmatpush1.msra.mxu0 %v435
        %529 = vmatprep.subr.mxu0 0.0
        %530 = vmatpush1.msra.mxu0 %v436
        %531 = vmatprep.subr.mxu0 0.0
        %532 = vmatpush1.msra.mxu0 %v437
        %533 = vmatprep.subr.mxu0 0.0
        %534 = vmatpush1.msra.mxu0 %v438
        %535 = vmatprep.subr.mxu0 0.0
        %536 = vmatpush1.msra.mxu0 %v439
        %537 = vmatprep.subr.mxu0 0.0
        %538 = vmatpush1.msra.mxu0 %v440
        %539 = vmatprep.subr.mxu0 0.0
        %540 = vmatpush1.msra.mxu0 %v441
        %541 = vmatprep.subr.mxu0 0.0
        %542 = vmatpush1.msra.mxu0 %v442
        %543 = vmatprep.subr.mxu0 0.0
        %544 = vmatpush1.msra.mxu0 0.0
        %545 = vmatprep.subr.mxu0 0.0
        %546 = vmatpush1.msra.mxu0 0.0
        %547 = vmatprep.subr.mxu0 0.0
        %548 = vmatpush1.msra.mxu0 0.0
        %549 = vmatprep.subr.mxu0 0.0
        %550 = vmatpush1.msra.mxu0 0.0
        %551 = vmatprep.subr.mxu0 0.0
        %552 = vmatpush1.msra.mxu0 0.0
        %553 = vmatprep.subr.mxu0 0.0
        %554 = vmatpush1.msra.mxu0 0.0
        %555 = vmatprep.subr.mxu0 0.0
        %556 = vmatpush1.msra.mxu0 0.0
        %557 = vmatprep.subr.mxu0 0.0
        %558 = vmatpush1.msra.mxu0 0.0
        %559 = vmatprep.subr.mxu0 0.0
        %560 = vmatpush1.msra.mxu0 0.0
        %561 = vmatprep.subr.mxu0 0.0
        %562 = vmatpush1.msra.mxu0 0.0
        %563 = vmatprep.subr.mxu0 0.0
        %564 = vmatpush1.msra.mxu0 0.0
        %565 = vmatprep.subr.mxu0 0.0
        %566 = vmatpush1.msra.mxu0 0.0
        %567 = vmatprep.subr.mxu0 0.0
        %568 = vmatpush1.msra.mxu0 0.0
        %569 = vmatprep.subr.mxu0 0.0
        %570 = vmatpush1.msra.mxu0 0.0
        %571 = vmatprep.subr.mxu0 0.0
        %572 = vmatpush1.msra.mxu0 0.0
        %573 = vmatprep.subr.mxu0 0.0
        %574 = vmatpush1.msra.mxu0 0.0
        %575 = vmatprep.subr.mxu0 0.0
        %576 = vmatpush1.msra.mxu0 0.0
        %577 = vmatprep.subr.mxu0 0.0
        %578 = vmatpush1.msra.mxu0 0.0
        %579 = vmatprep.subr.mxu0 0.0
        %580 = vmatpush1.msra.mxu0 0.0
        %581 = vmatprep.subr.mxu0 0.0
        %582 = vmatpush1.msra.mxu0 0.0
        %583 = vmatprep.mubr.f32.mxu0 0.0
        %584 = vmatmul.mubr.f32.gmra.mrb[0].mxu0 %v511
        %v585 = vpop.f32.mrb[0].mxu0
        %v586 = vadd.f32 %v507, %v585
        %v587 = vpop.f32.mrb[0].mxu0
        %588 = vmatprep.mubr.f32.mxu0 0.0
        %589 = vmatmul.mubr.f32.gmra.mrb[0].mxu0 %v514
        %v590 = vpop.f32.mrb[0].mxu0
        %v591 = vadd.f32 %v507, %v590
        %v592 = vpop.f32.mrb[0].mxu0
        %593 = vmatprep.mubr.f32.mxu0 0.0
        %594 = vmatmul.mubr.f32.gmra.mrb[0].mxu0 %v517
        %v595 = vpop.f32.mrb[0].mxu0
        %v596 = vadd.f32 %v507, %v595
        %v597 = vpop.f32.mrb[0].mxu0
        %598 = vdwg.mxu0
        %v599 = vmax.f32 %v586, 0.0
        %v600 = vmax.f32 %v591, 0.0
        %v601 = vmax.f32 %v596, 0.0
        %v602 = vld [vmem:[%s4] sm:$0x1]
        %v603 = vld [vmem:[%s5] sm:$0x1]
        %v604 = vsel %vm495, %v599, 0.0
        %605 = vadd.xlane.f32.xlu0 %v604
        %v606 = vpop.xlane.xlu0 %605
        %v607 = vsel %vm495, %v600, 0.0
        %608 = vadd.xlane.f32.xlu0 %v607
        %v609 = vpop.xlane.xlu0 %608
        %v610 = vsel %vm495, %v601, 0.0
        %611 = vadd.xlane.f32.xlu0 %v610
        %v612 = vpop.xlane.xlu0 %611
        %v613 = vrcp.pop 32.0
        %v614 = vmul.f32 %v606, %v613
        %v615 = vmul.f32 %v609, %v613
        %v616 = vmul.f32 %v612, %v613
        %v617 = vsub.f32 %v599, %v614
        %v618 = vsub.f32 %v600, %v615
        %v619 = vsub.f32 %v601, %v616
        %v620 = vmul.f32 %v617, %v617
        %v621 = vmul.f32 %v618, %v618
        %v622 = vmul.f32 %v619, %v619
        %v623 = vsel %vm495, %v620, 0.0
        %624 = vadd.xlane.f32.xlu0 %v623
        %v625 = vpop.xlane.xlu0 %624
        %v626 = vsel %vm495, %v621, 0.0
        %627 = vadd.xlane.f32.xlu0 %v626
        %v628 = vpop.xlane.xlu0 %627
        %v629 = vsel %vm495, %v622, 0.0
        %630 = vadd.xlane.f32.xlu0 %v629
        %v631 = vpop.xlane.xlu0 %630
        %v632 = vmul.f32 %v625, %v613
        %v633 = vmul.f32 %v628, %v613
        %v634 = vmul.f32 %v631, %v613
        %v635 = vadd.f32 %v632, 1e-05
        %v636 = vadd.f32 %v633, 1e-05
        %v637 = vadd.f32 %v634, 1e-05
        %v638 = vrsqrt.pop %v635
        %v639 = vrsqrt.pop %v636
        %v640 = vrsqrt.pop %v637
        %v641 = vmul.f32 %v617, %v638
        %v642 = vmul.f32 %v618, %v639
        %v643 = vmul.f32 %v619, %v640
        %v645 = vlaneseq
        %v646 = vshrl.u32 %v645, 7
        %v647 = vsub.s32 0, %v646
        %v648 = vrot.slane %v602, %v647
        %v650 = vmul.f32 %v641, %v648
        %v651 = vmul.f32 %v642, %v648
        %v652 = vmul.f32 %v643, %v648
        %v654 = vlaneseq
        %v655 = vshrl.u32 %v654, 7
        %v656 = vsub.s32 0, %v655
        %v657 = vrot.slane %v603, %v656
        %v659 = vadd.f32 %v650, %v657
        %v660 = vadd.f32 %v651, %v657
        %v661 = vadd.f32 %v652, %v657
        %v662 = vld [vmem:[%s6] sm:$0xff]
        %v663 = vld [vmem:[%s6 + $0x8] sm:$0xff]
        %v664 = vld [vmem:[%s6 + $0x10] sm:$0xff]
        %v665 = vld [vmem:[%s6 + $0x18] sm:$0xff]
        %v666 = vld [vmem:[%s6 + $0x20] sm:$0xff]
        %v667 = vld [vmem:[%s6 + $0x28] sm:$0xff]
        %v668 = vld [vmem:[%s6 + $0x30] sm:$0xff]
        %v669 = vld [vmem:[%s6 + $0x38] sm:$0xff]
        %v670 = vld [vmem:[%s6 + $0x40] sm:$0xff]
        %v671 = vld [vmem:[%s6 + $0x48] sm:$0xff]
        %v672 = vld [vmem:[%s6 + $0x50] sm:$0xff]
        %v673 = vld [vmem:[%s6 + $0x58] sm:$0xff]
        %v674 = vld [vmem:[%s7] sm:$0x1]
        %v678 = vrot.slane %v659, 7
        %v679 = vrot.slane %v660, 7
        %v680 = vsel %vm447, %v678, %v679
        %v681 = vrot.slane %v661, 7
        %v682 = vsel %vm447, %v679, %v681
        %v687 = vsel %vm447, 0.0, %v678
        %v688 = vsel %vm447, %v681, 0.0
        %v691 = vrot.slane %v687, 1
        %v692 = vrot.slane %v680, 1
        %v693 = vsel %vm461, %v691, %v692
        %v694 = vrot.slane %v682, 1
        %v695 = vsel %vm461, %v692, %v694
        %v696 = vrot.slane %v688, 1
        %v697 = vsel %vm461, %v694, %v696
        %698 = vrot.lane.b32.xlu0 %v693, 32
        %v699 = vpop.permute.xlu0 %698
        %700 = vrot.lane.b32.xlu0 %v695, 32
        %v701 = vpop.permute.xlu0 %700
        %702 = vrot.lane.b32.xlu0 %v697, 32
        %v703 = vpop.permute.xlu0 %702
        %v707 = vrot.slane %v687, 2
        %v708 = vrot.slane %v680, 2
        %v709 = vsel %vm478, %v707, %v708
        %v710 = vrot.slane %v682, 2
        %v711 = vsel %vm478, %v708, %v710
        %v712 = vrot.slane %v688, 2
        %v713 = vsel %vm478, %v710, %v712
        %714 = vrot.lane.b32.xlu0 %v709, 64
        %v715 = vpop.permute.xlu0 %714
        %716 = vrot.lane.b32.xlu0 %v711, 64
        %v717 = vpop.permute.xlu0 %716
        %718 = vrot.lane.b32.xlu0 %v713, 64
        %v719 = vpop.permute.xlu0 %718
        %v723 = vsel %vm495, %v687, %v699
        %v724 = vsel %vm495, %v680, %v701
        %v725 = vsel %vm495, %v682, %v703
        %v726 = vsel %vm499, %v723, %v715
        %v727 = vsel %vm499, %v724, %v717
        %v728 = vsel %vm499, %v725, %v719
        %v730 = vlaneseq
        %v731 = vshrl.u32 %v730, 7
        %v732 = vsub.s32 0, %v731
        %v733 = vrot.slane %v674, %v732
        %v736 = vsel %vm509, %v726, 0
        %v739 = vsel %vm509, %v727, 0
        %v742 = vsel %vm509, %v728, 0
        %744 = vmatprep.subr.mxu0 0.0
        %745 = vmatpush1.msra.mxu0 %v662
        %746 = vmatprep.subr.mxu0 0.0
        %747 = vmatpush1.msra.mxu0 %v663
        %748 = vmatprep.subr.mxu0 0.0
        %749 = vmatpush1.msra.mxu0 %v664
        %750 = vmatprep.subr.mxu0 0.0
        %751 = vmatpush1.msra.mxu0 %v665
        %752 = vmatprep.subr.mxu0 0.0
        %753 = vmatpush1.msra.mxu0 %v666
        %754 = vmatprep.subr.mxu0 0.0
        %755 = vmatpush1.msra.mxu0 %v667
        %756 = vmatprep.subr.mxu0 0.0
        %757 = vmatpush1.msra.mxu0 %v668
        %758 = vmatprep.subr.mxu0 0.0
        %759 = vmatpush1.msra.mxu0 %v669
        %760 = vmatprep.subr.mxu0 0.0
        %761 = vmatpush1.msra.mxu0 %v670
        %762 = vmatprep.subr.mxu0 0.0
        %763 = vmatpush1.msra.mxu0 %v671
        %764 = vmatprep.subr.mxu0 0.0
        %765 = vmatpush1.msra.mxu0 %v672
        %766 = vmatprep.subr.mxu0 0.0
        %767 = vmatpush1.msra.mxu0 %v673
        %768 = vmatprep.subr.mxu0 0.0
        %769 = vmatpush1.msra.mxu0 0.0
        %770 = vmatprep.subr.mxu0 0.0
        %771 = vmatpush1.msra.mxu0 0.0
        %772 = vmatprep.subr.mxu0 0.0
        %773 = vmatpush1.msra.mxu0 0.0
        %774 = vmatprep.subr.mxu0 0.0
        %775 = vmatpush1.msra.mxu0 0.0
        %776 = vmatprep.subr.mxu0 0.0
        %777 = vmatpush1.msra.mxu0 0.0
        %778 = vmatprep.subr.mxu0 0.0
        %779 = vmatpush1.msra.mxu0 0.0
        %780 = vmatprep.subr.mxu0 0.0
        %781 = vmatpush1.msra.mxu0 0.0
        %782 = vmatprep.subr.mxu0 0.0
        %783 = vmatpush1.msra.mxu0 0.0
        %784 = vmatprep.subr.mxu0 0.0
        %785 = vmatpush1.msra.mxu0 0.0
        %786 = vmatprep.subr.mxu0 0.0
        %787 = vmatpush1.msra.mxu0 0.0
        %788 = vmatprep.subr.mxu0 0.0
        %789 = vmatpush1.msra.mxu0 0.0
        %790 = vmatprep.subr.mxu0 0.0
        %791 = vmatpush1.msra.mxu0 0.0
        %792 = vmatprep.subr.mxu0 0.0
        %793 = vmatpush1.msra.mxu0 0.0
        %794 = vmatprep.subr.mxu0 0.0
        %795 = vmatpush1.msra.mxu0 0.0
        %796 = vmatprep.subr.mxu0 0.0
        %797 = vmatpush1.msra.mxu0 0.0
        %798 = vmatprep.subr.mxu0 0.0
        %799 = vmatpush1.msra.mxu0 0.0
        %800 = vmatprep.subr.mxu0 0.0
        %801 = vmatpush1.msra.mxu0 0.0
        %802 = vmatprep.subr.mxu0 0.0
        %803 = vmatpush1.msra.mxu0 0.0
        %804 = vmatprep.subr.mxu0 0.0
        %805 = vmatpush1.msra.mxu0 0.0
        %806 = vmatprep.subr.mxu0 0.0
        %807 = vmatpush1.msra.mxu0 0.0
        %808 = vmatprep.mubr.f32.mxu0 0.0
        %809 = vmatmul.mubr.f32.gmra.mrb[0].mxu0 %v736
        %v810 = vpop.f32.mrb[0].mxu0
        %v811 = vadd.f32 %v733, %v810
        %v812 = vpop.f32.mrb[0].mxu0
        %813 = vmatprep.mubr.f32.mxu0 0.0
        %814 = vmatmul.mubr.f32.gmra.mrb[0].mxu0 %v739
        %v815 = vpop.f32.mrb[0].mxu0
        %v816 = vadd.f32 %v733, %v815
        %v817 = vpop.f32.mrb[0].mxu0
        %818 = vmatprep.mubr.f32.mxu0 0.0
        %819 = vmatmul.mubr.f32.gmra.mrb[0].mxu0 %v742
        %v820 = vpop.f32.mrb[0].mxu0
        %v821 = vadd.f32 %v733, %v820
        %v822 = vpop.f32.mrb[0].mxu0
        %823 = vdwg.mxu0
        %v824 = vmax.f32 %v811, 0.0
        %v825 = vmax.f32 %v816, 0.0
        %v826 = vmax.f32 %v821, 0.0
        %v827 = vld [vmem:[%s8] sm:$0x1]
        %v828 = vld [vmem:[%s9] sm:$0x1]
        %v829 = vsel %vm495, %v824, 0.0
        %830 = vadd.xlane.f32.xlu0 %v829
        %v831 = vpop.xlane.xlu0 %830
        %v832 = vsel %vm495, %v825, 0.0
        %833 = vadd.xlane.f32.xlu0 %v832
        %v834 = vpop.xlane.xlu0 %833
        %v835 = vsel %vm495, %v826, 0.0
        %836 = vadd.xlane.f32.xlu0 %v835
        %v837 = vpop.xlane.xlu0 %836
        %v838 = vmul.f32 %v831, %v613
        %v839 = vmul.f32 %v834, %v613
        %v840 = vmul.f32 %v837, %v613
        %v841 = vsub.f32 %v824, %v838
        %v842 = vsub.f32 %v825, %v839
        %v843 = vsub.f32 %v826, %v840
        %v844 = vmul.f32 %v841, %v841
        %v845 = vmul.f32 %v842, %v842
        %v846 = vmul.f32 %v843, %v843
        %v847 = vsel %vm495, %v844, 0.0
        %848 = vadd.xlane.f32.xlu0 %v847
        %v849 = vpop.xlane.xlu0 %848
        %v850 = vsel %vm495, %v845, 0.0
        %851 = vadd.xlane.f32.xlu0 %v850
        %v852 = vpop.xlane.xlu0 %851
        %v853 = vsel %vm495, %v846, 0.0
        %854 = vadd.xlane.f32.xlu0 %v853
        %v855 = vpop.xlane.xlu0 %854
        %v856 = vmul.f32 %v849, %v613
        %v857 = vmul.f32 %v852, %v613
        %v858 = vmul.f32 %v855, %v613
        %v859 = vadd.f32 %v856, 1e-05
        %v860 = vadd.f32 %v857, 1e-05
        %v861 = vadd.f32 %v858, 1e-05
        %v862 = vrsqrt.pop %v859
        %v863 = vrsqrt.pop %v860
        %v864 = vrsqrt.pop %v861
        %v865 = vmul.f32 %v841, %v862
        %v866 = vmul.f32 %v842, %v863
        %v867 = vmul.f32 %v843, %v864
        %v869 = vlaneseq
        %v870 = vshrl.u32 %v869, 7
        %v871 = vsub.s32 0, %v870
        %v872 = vrot.slane %v827, %v871
        %v874 = vmul.f32 %v865, %v872
        %v875 = vmul.f32 %v866, %v872
        %v876 = vmul.f32 %v867, %v872
        %v878 = vlaneseq
        %v879 = vshrl.u32 %v878, 7
        %v880 = vsub.s32 0, %v879
        %v881 = vrot.slane %v828, %v880
        %v883 = vadd.f32 %v874, %v881
        %v884 = vadd.f32 %v875, %v881
        %v885 = vadd.f32 %v876, %v881
        %v886 = vld [vmem:[%s10] sm:$0x1]
        %v887 = vld [vmem:[#allocation2] sm:$0x1]
        %889 = vset.pattern.permute.xlu0 0
        %890 = vperm.xlu0 %889, %v887
        %v891 = vpop.permute.xlu0 %890
        %v893 = vlaneseq
        %v894 = vshrl.u32 %v893, 7
        %v895 = vsub.s32 0, %v894
        %v896 = vrot.slane %v891, %v895
        %v898 = vsel %vm495, %v886, 0
        %v901 = vsel %vm495, %v883, 0
        %v904 = vsel %vm495, %v884, 0
        %v907 = vsel %vm495, %v885, 0
        %909 = vmatprep.subr.mxu0 0.0
        %910 = vmatpush1.xpose.msra.mxu0 %v901
        %911 = vmatprep.subr.mxu0 0.0
        %912 = vmatpush1.xpose.msra.mxu0 %v904
        %913 = vmatprep.subr.mxu0 0.0
        %914 = vmatpush1.xpose.msra.mxu0 %v907
        %915 = vmatprep.subr.mxu0 0.0
        %916 = vmatpush1.xpose.msra.mxu0 0.0
        %917 = vmatprep.subr.mxu0 0.0
        %918 = vmatpush1.xpose.msra.mxu0 0.0
        %919 = vmatprep.subr.mxu0 0.0
        %920 = vmatpush1.xpose.msra.mxu0 0.0
        %921 = vmatprep.subr.mxu0 0.0
        %922 = vmatpush1.xpose.msra.mxu0 0.0
        %923 = vmatprep.subr.mxu0 0.0
        %924 = vmatpush1.xpose.msra.mxu0 0.0
        %925 = vmatprep.subr.mxu0 0.0
        %926 = vmatpush1.xpose.msra.mxu0 0.0
        %927 = vmatprep.subr.mxu0 0.0
        %928 = vmatpush1.xpose.msra.mxu0 0.0
        %929 = vmatprep.subr.mxu0 0.0
        %930 = vmatpush1.xpose.msra.mxu0 0.0
        %931 = vmatprep.subr.mxu0 0.0
        %932 = vmatpush1.xpose.msra.mxu0 0.0
        %933 = vmatprep.subr.mxu0 0.0
        %934 = vmatpush1.xpose.msra.mxu0 0.0
        %935 = vmatprep.subr.mxu0 0.0
        %936 = vmatpush1.xpose.msra.mxu0 0.0
        %937 = vmatprep.subr.mxu0 0.0
        %938 = vmatpush1.xpose.msra.mxu0 0.0
        %939 = vmatprep.subr.mxu0 0.0
        %940 = vmatpush1.xpose.msra.mxu0 0.0
        %941 = vmatprep.subr.mxu0 0.0
        %942 = vmatpush1.xpose.msra.mxu0 0.0
        %943 = vmatprep.subr.mxu0 0.0
        %944 = vmatpush1.xpose.msra.mxu0 0.0
        %945 = vmatprep.subr.mxu0 0.0
        %946 = vmatpush1.xpose.msra.mxu0 0.0
        %947 = vmatprep.subr.mxu0 0.0
        %948 = vmatpush1.xpose.msra.mxu0 0.0
        %949 = vmatprep.subr.mxu0 0.0
        %950 = vmatpush1.xpose.msra.mxu0 0.0
        %951 = vmatprep.subr.mxu0 0.0
        %952 = vmatpush1.xpose.msra.mxu0 0.0
        %953 = vmatprep.subr.mxu0 0.0
        %954 = vmatpush1.xpose.msra.mxu0 0.0
        %955 = vmatprep.subr.mxu0 0.0
        %956 = vmatpush1.xpose.msra.mxu0 0.0
        %957 = vmatprep.subr.mxu0 0.0
        %958 = vmatpush1.xpose.msra.mxu0 0.0
        %959 = vmatprep.subr.mxu0 0.0
        %960 = vmatpush1.xpose.msra.mxu0 0.0
        %961 = vmatprep.subr.mxu0 0.0
        %962 = vmatpush1.xpose.msra.mxu0 0.0
        %963 = vmatprep.subr.mxu0 0.0
        %964 = vmatpush1.xpose.msra.mxu0 0.0
        %965 = vmatprep.subr.mxu0 0.0
        %966 = vmatpush1.xpose.msra.mxu0 0.0
        %967 = vmatprep.subr.mxu0 0.0
        %968 = vmatpush1.xpose.msra.mxu0 0.0
        %969 = vmatprep.subr.mxu0 0.0
        %970 = vmatpush1.xpose.msra.mxu0 0.0
        %971 = vmatprep.subr.mxu0 0.0
        %972 = vmatpush1.xpose.msra.mxu0 0.0
        %973 = vmatprep.mubr.f32.mxu0 0.0
        %974 = vmatmul.mubr.f32.gmra.mrb[0].mxu0 %v898
        %v975 = vpop.f32.mrb[0].mxu0
        %v976 = vadd.f32 %v896, %v975
        %v977 = vpop.f32.mrb[0].mxu0
        %978 = vdwg.mxu0
        %vm979 = vcmp.gt.f32.partialorder %v430, 0.5
        %v980 = vsel %vm979, 0.0, %v976
        %vm981 = vcmask 188416
        %982 = vst.msk [vmem:[%s418] sm:$0x1] %vm981, %v980
        %s983 = sand.u32 %s298, 1
        %s984 = scalar_lea.sflag [#allocation4], %s983
        %s985 = sand.u32 %s298, 1
        %s986 = scalar_lea.vmem [#allocation3], %s985
        // Predicated region
        $region69: #{fastspeech2_forward.11} parent=67 // pred_check
          %p987 = pneg %p308
        $region70: #{fastspeech2_forward.11} parent=67 // pred_check_branch
          %989 = sbr.rel (%p987) target = $region72
        $region71: #{fastspeech2_forward.11} parent=67 // pred_region
          %s991 = ssub.s32 16, 16
          %992 = vsyncadd %s984, %s991
          %s993 = smul.addr %s28, 16
          %s994 = scalar_lea.hbm %s12, %s993
          %s996 = sshll.u32 %s986, 4
          %s997 = int_to_ptr.vmem [resolvable:$true] %s996
          %999 = dma.vmem_to_hbm [thread:$0]  %s997, 16, %s994, %s984
        $region72: #{fastspeech2_forward.11} parent=67 // pred_fallthru
          _
      $region68: #{fastspeech2_forward.11} parent=5 // pred_fallthru
        _
      %p1000 = scmp.le.s32.totalorder 2, %s23
      // Predicated region
      $region73: #{fastspeech2_forward.11} parent=5 // pred_check
        %p1001 = pneg %p1000
      $region74: #{fastspeech2_forward.11} parent=5 // pred_check_branch
        %1003 = sbr.rel (%p1001) target = $region76
      $region75: #{fastspeech2_forward.11} parent=5 // pred_region
        %s1004 = ssub.s32 %s23, 2
        // Predicated region
        $region77: #{fastspeech2_forward.11} parent=75 // pred_check
          %p1005 = pneg %p314
        $region78: #{fastspeech2_forward.11} parent=75 // pred_check_branch
          %1007 = sbr.rel (%p1005) target = $region80
        $region79: #{fastspeech2_forward.11} parent=75 // pred_region
          %s1008 = sand.u32 %s299, 1
          %s1009 = scalar_lea.sflag [#allocation4], %s1008
          %s1010 = sand.u32 %s299, 1
          %s1011 = scalar_lea.vmem [#allocation3], %s1010
          %1012 = dma.done %s1009, 16
        $region80: #{fastspeech2_forward.11} parent=75 // pred_fallthru
          _
      $region76: #{fastspeech2_forward.11} parent=5 // pred_fallthru
        _
    $region6: #{fastspeech2_forward.11} parent=1 // loop_footer
      %s27 = sadd.s32 1, %s23
    $region7: #{fastspeech2_forward.11} parent=1 // loop_footer_branch
      %22 = sbr.rel target = $region3
    $region8: #{fastspeech2_forward.11} parent=1 // loop_exit
      _
    %1013 = vsyncpa [#allocation4], 1
    %s1014 = scalar_lea.sflag [#allocation4], 1
    %1015 = vsyncpa %s1014, 1

// kernel: fastspeech2_forward.13
$region0: #{fastspeech2_forward.13}
  #allocation0 [shape = 'u32[]', space=smem, size = 0x4, offset = 0x4, fixed_abs, tag = 'smem constant byte address 0x4 - core index']
  #allocation1 [shape = 'u32[144,128]{1,0:T(1,128)}', space=vmem, size = 0x12000, scoped, tag = 'internal scratch']
  %s0 = inlined_call_operand.vmem [shape: f32[2,24,32], index: 0, kind: input, shape index: {}]
  %s1 = inlined_call_operand.vmem [shape: f32[2,1,24], index: 1, kind: input, shape index: {}]
  %s2 = inlined_call_operand.vmem [shape: f32[2,24,1], index: 2, kind: input, shape index: {}]
  %s3 = inlined_call_operand.vmem [shape: f32[32,96], index: 3, kind: input, shape index: {}]
  %s4 = inlined_call_operand.vmem [shape: f32[1,96], index: 4, kind: input, shape index: {}]
  %s5 = inlined_call_operand.vmem [shape: f32[32,32], index: 5, kind: input, shape index: {}]
  %s6 = inlined_call_operand.vmem [shape: f32[1,32], index: 6, kind: input, shape index: {}]
  %s7 = inlined_call_operand.vmem [shape: f32[1,32], index: 7, kind: input, shape index: {}, may-alias: {7,13}]
  %s8 = inlined_call_operand.vmem [shape: f32[1,32], index: 8, kind: input, shape index: {}, may-alias: {8,14}]
  %s9 = inlined_call_operand.vmem [shape: f32[288,64], index: 9, kind: input, shape index: {}]
  %s10 = inlined_call_operand.vmem [shape: f32[1,64], index: 10, kind: input, shape index: {}]
  %s11 = inlined_call_operand.vmem [shape: f32[64,32], index: 11, kind: input, shape index: {}]
  %s12 = inlined_call_operand.vmem [shape: f32[1,32], index: 12, kind: input, shape index: {}]
  %s13 = inlined_call_operand.vmem [shape: f32[1,32], index: 13, kind: input, shape index: {}, may-alias: {7,13}]
  %s14 = inlined_call_operand.vmem [shape: f32[1,32], index: 14, kind: input, shape index: {}, may-alias: {8,14}]
  %s15 = inlined_call_operand.vmem [shape: f32[2,24,32], index: 15, kind: output, shape index: {}]
  %s16 = sld [smem:[#allocation0]]
  $region93: #{fastspeech2_forward.13} parent=0
    _
  %s18 = ssub.s32 1, %s16
  %s19 = scalar_select 0, %s18, %s16
  loop: start=0, step=1, limit=4
  $region2: #{fastspeech2_forward.13} parent=0 // loop_pre_header
    _
  $region3: #{fastspeech2_forward.13} parent=0 // loop_header
    %s21 = sphi 0, %s25
    %p22 = scmp.ge.s32.totalorder %s21, 4
    %s31 = sphi 0, %s33
    %s34 = sphi 0, %s31
    %s35 = sphi 0, %s34
    %s51 = sphi 0, %s35
    %s57 = sphi 0, %s59
    %s60 = sphi 0, %s57
    %s61 = sphi 0, %s60
    %s77 = sphi 0, %s61
    %s83 = sphi 0, %s85
    %s86 = sphi 0, %s83
    %s87 = sphi 0, %s86
    %s103 = sphi 0, %s87
    %s107 = sphi 0, %s107
    %s109 = sphi 0, %s107
    %s110 = sphi 0, %s109
    %s124 = sphi 0, %s110
    %s128 = sphi 0, %s128
    %s130 = sphi 0, %s128
    %s131 = sphi 0, %s130
    %s145 = sphi 0, %s131
    %s149 = sphi 0, %s149
    %s151 = sphi 0, %s149
    %s152 = sphi 0, %s151
    %s166 = sphi 0, %s152
    %s170 = sphi 0, %s170
    %s172 = sphi 0, %s170
    %s173 = sphi 0, %s172
    %s187 = sphi 0, %s173
    %s191 = sphi 0, %s191
    %s193 = sphi 0, %s191
    %s194 = sphi 0, %s193
    %s208 = sphi 0, %s194
    %s212 = sphi 0, %s212
    %s214 = sphi 0, %s212
    %s215 = sphi 0, %s214
    %s229 = sphi 0, %s215
    %s233 = sphi 0, %s233
    %s235 = sphi 0, %s233
    %s236 = sphi 0, %s235
    %s250 = sphi 0, %s236
    %s254 = sphi 0, %s254
    %s256 = sphi 0, %s254
    %s257 = sphi 0, %s256
    %s271 = sphi 0, %s257
    %s275 = sphi 0, %s275
    %s277 = sphi 0, %s275
    %s278 = sphi 0, %s277
    %s292 = sphi 0, %s278
    %s296 = sphi 0, %s296
    %s298 = sphi 0, %s296
    %s299 = sphi 0, %s298
    %s313 = sphi 0, %s299
    %s317 = sphi 0, %s317
    %s319 = sphi 0, %s317
    %s320 = sphi 0, %s319
    %s334 = sphi 0, %s320
    %s338 = sphi 0, %s338
    %s340 = sphi 0, %s338
    %s341 = sphi 0, %s340
    %s355 = sphi 0, %s341
    %s361 = sphi 0, %s363
    %s364 = sphi 0, %s361
    %s365 = sphi 0, %s364
    %s381 = sphi 0, %s365
  $region4: #{fastspeech2_forward.13} parent=0 // loop_header_branch
    %24 = sbr.rel (%p22) target = $region8
  $region5: #{fastspeech2_forward.13} parent=0 // loop_body
    %s26 = ssub.s32 %s21, 1
    %s27 = ssub.s32 %s21, 2
    %s28 = sadd.s32 %s21, 1
    %s29 = ssub.s32 %s21, %s28
    %p30 = scmp.eq.s32.totalorder %s29, 0
    %s32 = sadd.s32 %s31, 1
    %s33 = scalar_select %p30, %s31, %s32
    %p36 = pneg %p30
    %p37 = scmp.eq.s32.totalorder %s21, 1
    %p38 = por %p36, %p37
    %p39 = scmp.ne.s32.totalorder %s31, %s34
    %p40 = scmp.eq.s32.totalorder %s21, 0
    %p41 = por %p39, %p40
    %p42 = scmp.ne.s32.totalorder %s31, %s34
    %p43 = scmp.eq.s32.totalorder %s26, 1
    %p44 = por %p42, %p43
    %p45 = scmp.ne.s32.totalorder %s34, %s35
    %p46 = scmp.eq.s32.totalorder %s26, 0
    %p47 = por %p45, %p46
    %p48 = scmp.ne.s32.totalorder %s34, %s35
    %p49 = scmp.eq.s32.totalorder %s27, 1
    %p50 = por %p48, %p49
    %p52 = scmp.ne.s32.totalorder %s35, %s51
    %p53 = scmp.eq.s32.totalorder %s27, 0
    %p54 = por %p52, %p53
    %s55 = ssub.s32 %s21, %s28
    %p56 = scmp.eq.s32.totalorder %s55, 0
    %s58 = sadd.s32 %s57, 1
    %s59 = scalar_select %p56, %s57, %s58
    %p62 = pneg %p56
    %p63 = scmp.eq.s32.totalorder %s21, 1
    %p64 = por %p62, %p63
    %p65 = scmp.ne.s32.totalorder %s57, %s60
    %p66 = scmp.eq.s32.totalorder %s21, 0
    %p67 = por %p65, %p66
    %p68 = scmp.ne.s32.totalorder %s57, %s60
    %p69 = scmp.eq.s32.totalorder %s26, 1
    %p70 = por %p68, %p69
    %p71 = scmp.ne.s32.totalorder %s60, %s61
    %p72 = scmp.eq.s32.totalorder %s26, 0
    %p73 = por %p71, %p72
    %p74 = scmp.ne.s32.totalorder %s60, %s61
    %p75 = scmp.eq.s32.totalorder %s27, 1
    %p76 = por %p74, %p75
    %p78 = scmp.ne.s32.totalorder %s61, %s77
    %p79 = scmp.eq.s32.totalorder %s27, 0
    %p80 = por %p78, %p79
    %s81 = ssub.s32 %s21, %s28
    %p82 = scmp.eq.s32.totalorder %s81, 0
    %s84 = sadd.s32 %s83, 1
    %s85 = scalar_select %p82, %s83, %s84
    %p88 = pneg %p82
    %p89 = scmp.eq.s32.totalorder %s21, 1
    %p90 = por %p88, %p89
    %p91 = scmp.ne.s32.totalorder %s83, %s86
    %p92 = scmp.eq.s32.totalorder %s21, 0
    %p93 = por %p91, %p92
    %p94 = scmp.ne.s32.totalorder %s83, %s86
    %p95 = scmp.eq.s32.totalorder %s26, 1
    %p96 = por %p94, %p95
    %p97 = scmp.ne.s32.totalorder %s86, %s87
    %p98 = scmp.eq.s32.totalorder %s26, 0
    %p99 = por %p97, %p98
    %p100 = scmp.ne.s32.totalorder %s86, %s87
    %p101 = scmp.eq.s32.totalorder %s27, 1
    %p102 = por %p100, %p101
    %p104 = scmp.ne.s32.totalorder %s87, %s103
    %p105 = scmp.eq.s32.totalorder %s27, 0
    %p106 = por %p104, %p105
    %s108 = sadd.s32 %s107, 1
    %p111 = scmp.eq.s32.totalorder %s21, 1
    %p112 = scmp.ne.s32.totalorder %s107, %s109
    %p113 = scmp.eq.s32.totalorder %s21, 0
    %p114 = por %p112, %p113
    %p115 = scmp.ne.s32.totalorder %s107, %s109
    %p116 = scmp.eq.s32.totalorder %s26, 1
    %p117 = por %p115, %p116
    %p118 = scmp.ne.s32.totalorder %s109, %s110
    %p119 = scmp.eq.s32.totalorder %s26, 0
    %p120 = por %p118, %p119
    %p121 = scmp.ne.s32.totalorder %s109, %s110
    %p122 = scmp.eq.s32.totalorder %s27, 1
    %p123 = por %p121, %p122
    %p125 = scmp.ne.s32.totalorder %s110, %s124
    %p126 = scmp.eq.s32.totalorder %s27, 0
    %p127 = por %p125, %p126
    %s129 = sadd.s32 %s128, 1
    %p132 = scmp.eq.s32.totalorder %s21, 1
    %p133 = scmp.ne.s32.totalorder %s128, %s130
    %p134 = scmp.eq.s32.totalorder %s21, 0
    %p135 = por %p133, %p134
    %p136 = scmp.ne.s32.totalorder %s128, %s130
    %p137 = scmp.eq.s32.totalorder %s26, 1
    %p138 = por %p136, %p137
    %p139 = scmp.ne.s32.totalorder %s130, %s131
    %p140 = scmp.eq.s32.totalorder %s26, 0
    %p141 = por %p139, %p140
    %p142 = scmp.ne.s32.totalorder %s130, %s131
    %p143 = scmp.eq.s32.totalorder %s27, 1
    %p144 = por %p142, %p143
    %p146 = scmp.ne.s32.totalorder %s131, %s145
    %p147 = scmp.eq.s32.totalorder %s27, 0
    %p148 = por %p146, %p147
    %s150 = sadd.s32 %s149, 1
    %p153 = scmp.eq.s32.totalorder %s21, 1
    %p154 = scmp.ne.s32.totalorder %s149, %s151
    %p155 = scmp.eq.s32.totalorder %s21, 0
    %p156 = por %p154, %p155
    %p157 = scmp.ne.s32.totalorder %s149, %s151
    %p158 = scmp.eq.s32.totalorder %s26, 1
    %p159 = por %p157, %p158
    %p160 = scmp.ne.s32.totalorder %s151, %s152
    %p161 = scmp.eq.s32.totalorder %s26, 0
    %p162 = por %p160, %p161
    %p163 = scmp.ne.s32.totalorder %s151, %s152
    %p164 = scmp.eq.s32.totalorder %s27, 1
    %p165 = por %p163, %p164
    %p167 = scmp.ne.s32.totalorder %s152, %s166
    %p168 = scmp.eq.s32.totalorder %s27, 0
    %p169 = por %p167, %p168
    %s171 = sadd.s32 %s170, 1
    %p174 = scmp.eq.s32.totalorder %s21, 1
    %p175 = scmp.ne.s32.totalorder %s170, %s172
    %p176 = scmp.eq.s32.totalorder %s21, 0
    %p177 = por %p175, %p176
    %p178 = scmp.ne.s32.totalorder %s170, %s172
    %p179 = scmp.eq.s32.totalorder %s26, 1
    %p180 = por %p178, %p179
    %p181 = scmp.ne.s32.totalorder %s172, %s173
    %p182 = scmp.eq.s32.totalorder %s26, 0
    %p183 = por %p181, %p182
    %p184 = scmp.ne.s32.totalorder %s172, %s173
    %p185 = scmp.eq.s32.totalorder %s27, 1
    %p186 = por %p184, %p185
    %p188 = scmp.ne.s32.totalorder %s173, %s187
    %p189 = scmp.eq.s32.totalorder %s27, 0
    %p190 = por %p188, %p189
    %s192 = sadd.s32 %s191, 1
    %p195 = scmp.eq.s32.totalorder %s21, 1
    %p196 = scmp.ne.s32.totalorder %s191, %s193
    %p197 = scmp.eq.s32.totalorder %s21, 0
    %p198 = por %p196, %p197
    %p199 = scmp.ne.s32.totalorder %s191, %s193
    %p200 = scmp.eq.s32.totalorder %s26, 1
    %p201 = por %p199, %p200
    %p202 = scmp.ne.s32.totalorder %s193, %s194
    %p203 = scmp.eq.s32.totalorder %s26, 0
    %p204 = por %p202, %p203
    %p205 = scmp.ne.s32.totalorder %s193, %s194
    %p206 = scmp.eq.s32.totalorder %s27, 1
    %p207 = por %p205, %p206
    %p209 = scmp.ne.s32.totalorder %s194, %s208
    %p210 = scmp.eq.s32.totalorder %s27, 0
    %p211 = por %p209, %p210
    %s213 = sadd.s32 %s212, 1
    %p216 = scmp.eq.s32.totalorder %s21, 1
    %p217 = scmp.ne.s32.totalorder %s212, %s214
    %p218 = scmp.eq.s32.totalorder %s21, 0
    %p219 = por %p217, %p218
    %p220 = scmp.ne.s32.totalorder %s212, %s214
    %p221 = scmp.eq.s32.totalorder %s26, 1
    %p222 = por %p220, %p221
    %p223 = scmp.ne.s32.totalorder %s214, %s215
    %p224 = scmp.eq.s32.totalorder %s26, 0
    %p225 = por %p223, %p224
    %p226 = scmp.ne.s32.totalorder %s214, %s215
    %p227 = scmp.eq.s32.totalorder %s27, 1
    %p228 = por %p226, %p227
    %p230 = scmp.ne.s32.totalorder %s215, %s229
    %p231 = scmp.eq.s32.totalorder %s27, 0
    %p232 = por %p230, %p231
    %s234 = sadd.s32 %s233, 1
    %p237 = scmp.eq.s32.totalorder %s21, 1
    %p238 = scmp.ne.s32.totalorder %s233, %s235
    %p239 = scmp.eq.s32.totalorder %s21, 0
    %p240 = por %p238, %p239
    %p241 = scmp.ne.s32.totalorder %s233, %s235
    %p242 = scmp.eq.s32.totalorder %s26, 1
    %p243 = por %p241, %p242
    %p244 = scmp.ne.s32.totalorder %s235, %s236
    %p245 = scmp.eq.s32.totalorder %s26, 0
    %p246 = por %p244, %p245
    %p247 = scmp.ne.s32.totalorder %s235, %s236
    %p248 = scmp.eq.s32.totalorder %s27, 1
    %p249 = por %p247, %p248
    %p251 = scmp.ne.s32.totalorder %s236, %s250
    %p252 = scmp.eq.s32.totalorder %s27, 0
    %p253 = por %p251, %p252
    %s255 = sadd.s32 %s254, 1
    %p258 = scmp.eq.s32.totalorder %s21, 1
    %p259 = scmp.ne.s32.totalorder %s254, %s256
    %p260 = scmp.eq.s32.totalorder %s21, 0
    %p261 = por %p259, %p260
    %p262 = scmp.ne.s32.totalorder %s254, %s256
    %p263 = scmp.eq.s32.totalorder %s26, 1
    %p264 = por %p262, %p263
    %p265 = scmp.ne.s32.totalorder %s256, %s257
    %p266 = scmp.eq.s32.totalorder %s26, 0
    %p267 = por %p265, %p266
    %p268 = scmp.ne.s32.totalorder %s256, %s257
    %p269 = scmp.eq.s32.totalorder %s27, 1
    %p270 = por %p268, %p269
    %p272 = scmp.ne.s32.totalorder %s257, %s271
    %p273 = scmp.eq.s32.totalorder %s27, 0
    %p274 = por %p272, %p273
    %s276 = sadd.s32 %s275, 1
    %p279 = scmp.eq.s32.totalorder %s21, 1
    %p280 = scmp.ne.s32.totalorder %s275, %s277
    %p281 = scmp.eq.s32.totalorder %s21, 0
    %p282 = por %p280, %p281
    %p283 = scmp.ne.s32.totalorder %s275, %s277
    %p284 = scmp.eq.s32.totalorder %s26, 1
    %p285 = por %p283, %p284
    %p286 = scmp.ne.s32.totalorder %s277, %s278
    %p287 = scmp.eq.s32.totalorder %s26, 0
    %p288 = por %p286, %p287
    %p289 = scmp.ne.s32.totalorder %s277, %s278
    %p290 = scmp.eq.s32.totalorder %s27, 1
    %p291 = por %p289, %p290
    %p293 = scmp.ne.s32.totalorder %s278, %s292
    %p294 = scmp.eq.s32.totalorder %s27, 0
    %p295 = por %p293, %p294
    %s297 = sadd.s32 %s296, 1
    %p300 = scmp.eq.s32.totalorder %s21, 1
    %p301 = scmp.ne.s32.totalorder %s296, %s298
    %p302 = scmp.eq.s32.totalorder %s21, 0
    %p303 = por %p301, %p302
    %p304 = scmp.ne.s32.totalorder %s296, %s298
    %p305 = scmp.eq.s32.totalorder %s26, 1
    %p306 = por %p304, %p305
    %p307 = scmp.ne.s32.totalorder %s298, %s299
    %p308 = scmp.eq.s32.totalorder %s26, 0
    %p309 = por %p307, %p308
    %p310 = scmp.ne.s32.totalorder %s298, %s299
    %p311 = scmp.eq.s32.totalorder %s27, 1
    %p312 = por %p310, %p311
    %p314 = scmp.ne.s32.totalorder %s299, %s313
    %p315 = scmp.eq.s32.totalorder %s27, 0
    %p316 = por %p314, %p315
    %s318 = sadd.s32 %s317, 1
    %p321 = scmp.eq.s32.totalorder %s21, 1
    %p322 = scmp.ne.s32.totalorder %s317, %s319
    %p323 = scmp.eq.s32.totalorder %s21, 0
    %p324 = por %p322, %p323
    %p325 = scmp.ne.s32.totalorder %s317, %s319
    %p326 = scmp.eq.s32.totalorder %s26, 1
    %p327 = por %p325, %p326
    %p328 = scmp.ne.s32.totalorder %s319, %s320
    %p329 = scmp.eq.s32.totalorder %s26, 0
    %p330 = por %p328, %p329
    %p331 = scmp.ne.s32.totalorder %s319, %s320
    %p332 = scmp.eq.s32.totalorder %s27, 1
    %p333 = por %p331, %p332
    %p335 = scmp.ne.s32.totalorder %s320, %s334
    %p336 = scmp.eq.s32.totalorder %s27, 0
    %p337 = por %p335, %p336
    %s339 = sadd.s32 %s338, 1
    %p342 = scmp.eq.s32.totalorder %s21, 1
    %p343 = scmp.ne.s32.totalorder %s338, %s340
    %p344 = scmp.eq.s32.totalorder %s21, 0
    %p345 = por %p343, %p344
    %p346 = scmp.ne.s32.totalorder %s338, %s340
    %p347 = scmp.eq.s32.totalorder %s26, 1
    %p348 = por %p346, %p347
    %p349 = scmp.ne.s32.totalorder %s340, %s341
    %p350 = scmp.eq.s32.totalorder %s26, 0
    %p351 = por %p349, %p350
    %p352 = scmp.ne.s32.totalorder %s340, %s341
    %p353 = scmp.eq.s32.totalorder %s27, 1
    %p354 = por %p352, %p353
    %p356 = scmp.ne.s32.totalorder %s341, %s355
    %p357 = scmp.eq.s32.totalorder %s27, 0
    %p358 = por %p356, %p357
    %s359 = ssub.s32 %s21, %s28
    %p360 = scmp.eq.s32.totalorder %s359, 0
    %s362 = sadd.s32 %s361, 1
    %s363 = scalar_select %p360, %s361, %s362
    %p366 = pneg %p360
    %p367 = scmp.eq.s32.totalorder %s21, 1
    %p368 = por %p366, %p367
    %p369 = scmp.ne.s32.totalorder %s361, %s364
    %p370 = scmp.eq.s32.totalorder %s21, 0
    %p371 = por %p369, %p370
    %p372 = scmp.ne.s32.totalorder %s361, %s364
    %p373 = scmp.eq.s32.totalorder %s26, 1
    %p374 = por %p372, %p373
    %p375 = scmp.ne.s32.totalorder %s364, %s365
    %p376 = scmp.eq.s32.totalorder %s26, 0
    %p377 = por %p375, %p376
    %p378 = scmp.ne.s32.totalorder %s364, %s365
    %p379 = scmp.eq.s32.totalorder %s27, 1
    %p380 = por %p378, %p379
    %p382 = scmp.ne.s32.totalorder %s365, %s381
    %p383 = scmp.eq.s32.totalorder %s27, 0
    %p384 = por %p382, %p383
    %p385 = scmp.le.s32.totalorder 1, %s21
    %p386 = scmp.lt.s32.totalorder %s21, 3
    %p387 = pnand %p385, %p386
    %p388 = pneg %p387
    // Predicated region
    $region9: #{fastspeech2_forward.13} parent=5 // pred_check
      _
    $region10: #{fastspeech2_forward.13} parent=5 // pred_check_branch
      %390 = sbr.rel (%p387) target = $region12
    $region11: #{fastspeech2_forward.13} parent=5 // pred_region
      %s391 = ssub.s32 %s21, 1
      // Predicated region
      $region13: #{fastspeech2_forward.13} parent=11 // pred_check
        %p392 = pneg %p120
      $region14: #{fastspeech2_forward.13} parent=11 // pred_check_branch
        %394 = sbr.rel (%p392) target = $region16
      $region15: #{fastspeech2_forward.13} parent=11 // pred_region
        _
      $region16: #{fastspeech2_forward.13} parent=11 // pred_fallthru
        _
      // Predicated region
      $region17: #{fastspeech2_forward.13} parent=11 // pred_check
        %p395 = pneg %p141
      $region18: #{fastspeech2_forward.13} parent=11 // pred_check_branch
        %397 = sbr.rel (%p395) target = $region20
      $region19: #{fastspeech2_forward.13} parent=11 // pred_region
        _
      $region20: #{fastspeech2_forward.13} parent=11 // pred_fallthru
        _
      // Predicated region
      $region21: #{fastspeech2_forward.13} parent=11 // pred_check
        %p398 = pneg %p162
      $region22: #{fastspeech2_forward.13} parent=11 // pred_check_branch
        %400 = sbr.rel (%p398) target = $region24
      $region23: #{fastspeech2_forward.13} parent=11 // pred_region
        _
      $region24: #{fastspeech2_forward.13} parent=11 // pred_fallthru
        _
      // Predicated region
      $region25: #{fastspeech2_forward.13} parent=11 // pred_check
        %p401 = pneg %p183
      $region26: #{fastspeech2_forward.13} parent=11 // pred_check_branch
        %403 = sbr.rel (%p401) target = $region28
      $region27: #{fastspeech2_forward.13} parent=11 // pred_region
        _
      $region28: #{fastspeech2_forward.13} parent=11 // pred_fallthru
        _
      // Predicated region
      $region29: #{fastspeech2_forward.13} parent=11 // pred_check
        %p404 = pneg %p204
      $region30: #{fastspeech2_forward.13} parent=11 // pred_check_branch
        %406 = sbr.rel (%p404) target = $region32
      $region31: #{fastspeech2_forward.13} parent=11 // pred_region
        _
      $region32: #{fastspeech2_forward.13} parent=11 // pred_fallthru
        _
      // Predicated region
      $region33: #{fastspeech2_forward.13} parent=11 // pred_check
        %p407 = pneg %p225
      $region34: #{fastspeech2_forward.13} parent=11 // pred_check_branch
        %409 = sbr.rel (%p407) target = $region36
      $region35: #{fastspeech2_forward.13} parent=11 // pred_region
        _
      $region36: #{fastspeech2_forward.13} parent=11 // pred_fallthru
        _
      // Predicated region
      $region37: #{fastspeech2_forward.13} parent=11 // pred_check
        %p410 = pneg %p246
      $region38: #{fastspeech2_forward.13} parent=11 // pred_check_branch
        %412 = sbr.rel (%p410) target = $region40
      $region39: #{fastspeech2_forward.13} parent=11 // pred_region
        _
      $region40: #{fastspeech2_forward.13} parent=11 // pred_fallthru
        _
      // Predicated region
      $region41: #{fastspeech2_forward.13} parent=11 // pred_check
        %p413 = pneg %p267
      $region42: #{fastspeech2_forward.13} parent=11 // pred_check_branch
        %415 = sbr.rel (%p413) target = $region44
      $region43: #{fastspeech2_forward.13} parent=11 // pred_region
        _
      $region44: #{fastspeech2_forward.13} parent=11 // pred_fallthru
        _
      // Predicated region
      $region45: #{fastspeech2_forward.13} parent=11 // pred_check
        %p416 = pneg %p288
      $region46: #{fastspeech2_forward.13} parent=11 // pred_check_branch
        %418 = sbr.rel (%p416) target = $region48
      $region47: #{fastspeech2_forward.13} parent=11 // pred_region
        _
      $region48: #{fastspeech2_forward.13} parent=11 // pred_fallthru
        _
      // Predicated region
      $region49: #{fastspeech2_forward.13} parent=11 // pred_check
        %p419 = pneg %p309
      $region50: #{fastspeech2_forward.13} parent=11 // pred_check_branch
        %421 = sbr.rel (%p419) target = $region52
      $region51: #{fastspeech2_forward.13} parent=11 // pred_region
        _
      $region52: #{fastspeech2_forward.13} parent=11 // pred_fallthru
        _
      // Predicated region
      $region53: #{fastspeech2_forward.13} parent=11 // pred_check
        %p422 = pneg %p330
      $region54: #{fastspeech2_forward.13} parent=11 // pred_check_branch
        %424 = sbr.rel (%p422) target = $region56
      $region55: #{fastspeech2_forward.13} parent=11 // pred_region
        _
      $region56: #{fastspeech2_forward.13} parent=11 // pred_fallthru
        _
      // Predicated region
      $region57: #{fastspeech2_forward.13} parent=11 // pred_check
        %p425 = pneg %p351
      $region58: #{fastspeech2_forward.13} parent=11 // pred_check_branch
        %427 = sbr.rel (%p425) target = $region60
      $region59: #{fastspeech2_forward.13} parent=11 // pred_region
        _
      $region60: #{fastspeech2_forward.13} parent=11 // pred_fallthru
        _
    $region12: #{fastspeech2_forward.13} parent=5 // pred_fallthru
      _
    %p428 = scmp.lt.s32.totalorder %s21, 2
    // Predicated region
    $region61: #{fastspeech2_forward.13} parent=5 // pred_check
      %p429 = pneg %p428
    $region62: #{fastspeech2_forward.13} parent=5 // pred_check_branch
      %431 = sbr.rel (%p429) target = $region64
    $region63: #{fastspeech2_forward.13} parent=5 // pred_region
      // Predicated region
      $region65: #{fastspeech2_forward.13} parent=63 // pred_check
        %p432 = pneg %p41
      $region66: #{fastspeech2_forward.13} parent=63 // pred_check_branch
        %434 = sbr.rel (%p432) target = $region68
      $region67: #{fastspeech2_forward.13} parent=63 // pred_region
        %p435 = scmp.lt.s32.totalorder %s21, 1
        %s436 = scalar_select %p435, %s21, 1
        %s437 = smul.addr %s436, 3
        %s438 = smul.addr %s437, 8
        %s439 = scalar_lea.vmem %s0, %s438
      $region68: #{fastspeech2_forward.13} parent=63 // pred_fallthru
        _
      // Predicated region
      $region69: #{fastspeech2_forward.13} parent=63 // pred_check
        %p440 = pneg %p67
      $region70: #{fastspeech2_forward.13} parent=63 // pred_check_branch
        %442 = sbr.rel (%p440) target = $region72
      $region71: #{fastspeech2_forward.13} parent=63 // pred_region
        %p443 = scmp.lt.s32.totalorder %s21, 1
        %s444 = scalar_select %p443, %s21, 1
        %s445 = scalar_lea.vmem %s1, %s444
      $region72: #{fastspeech2_forward.13} parent=63 // pred_fallthru
        _
      // Predicated region
      $region73: #{fastspeech2_forward.13} parent=63 // pred_check
        %p446 = pneg %p93
      $region74: #{fastspeech2_forward.13} parent=63 // pred_check_branch
        %448 = sbr.rel (%p446) target = $region76
      $region75: #{fastspeech2_forward.13} parent=63 // pred_region
        %p449 = scmp.lt.s32.totalorder %s21, 1
        %s450 = scalar_select %p449, %s21, 1
        %s451 = smul.addr %s450, 3
        %s452 = smul.addr %s451, 8
        %s453 = scalar_lea.vmem %s2, %s452
      $region76: #{fastspeech2_forward.13} parent=63 // pred_fallthru
        _
    $region64: #{fastspeech2_forward.13} parent=5 // pred_fallthru
      _
    %p454 = scmp.le.s32.totalorder 1, %s21
    %p455 = scmp.lt.s32.totalorder %s21, 3
    %p456 = pnand %p454, %p455
    %p457 = pneg %p456
    // Predicated region
    $region77: #{fastspeech2_forward.13} parent=5 // pred_check
      _
    $region78: #{fastspeech2_forward.13} parent=5 // pred_check_branch
      %459 = sbr.rel (%p456) target = $region80
    $region79: #{fastspeech2_forward.13} parent=5 // pred_region
      %s460 = ssub.s32 %s21, 1
      %p461 = scmp.lt.s32.totalorder %s26, 1
      %s462 = scalar_select %p461, %s26, 1
      %s463 = smul.addr %s462, 3
      %s464 = smul.addr %s463, 8
      %s465 = scalar_lea.vmem %s0, %s464
      %p466 = pneg %p47
      %p467 = pneg %p44
      %p468 = scmp.lt.s32.totalorder %s26, 1
      %s469 = scalar_select %p468, %s26, 1
      %s470 = scalar_lea.vmem %s1, %s469
      %p471 = pneg %p73
      %p472 = pneg %p70
      %p473 = scmp.lt.s32.totalorder %s26, 1
      %s474 = scalar_select %p473, %s26, 1
      %s475 = smul.addr %s474, 3
      %s476 = smul.addr %s475, 8
      %s477 = scalar_lea.vmem %s2, %s476
      %p478 = pneg %p99
      %p479 = pneg %p96
      %p480 = pneg %p120
      %p481 = pneg %p117
      %p482 = pneg %p141
      %p483 = pneg %p138
      %p484 = pneg %p162
      %p485 = pneg %p159
      %p486 = pneg %p183
      %p487 = pneg %p180
      %p488 = pneg %p204
      %p489 = pneg %p201
      %p490 = pneg %p225
      %p491 = pneg %p222
      %p492 = pneg %p246
      %p493 = pneg %p243
      %p494 = pneg %p267
      %p495 = pneg %p264
      %p496 = pneg %p288
      %p497 = pneg %p285
      %p498 = pneg %p309
      %p499 = pneg %p306
      %p500 = pneg %p330
      %p501 = pneg %p327
      %p502 = pneg %p351
      %p503 = pneg %p348
      %p504 = pneg %p377
      %p505 = pneg %p374
      %p506 = scmp.lt.s32.totalorder %s26, 1
      %s507 = scalar_select %p506, %s26, 1
      %s508 = smul.addr %s507, 3
      %s509 = smul.addr %s508, 8
      %s510 = scalar_lea.vmem %s15, %s509
      %p511 = scmp.lt.s32.totalorder %s26, 1
      %s512 = scalar_select %p511, %s26, 1
      %s513 = smul.addr %s512, 3
      %s514 = smul.addr %s513, 8
      %s515 = scalar_lea.vmem %s0, %s514
      %p516 = scmp.lt.s32.totalorder %s26, 1
      %s517 = scalar_select %p516, %s26, 1
      %s518 = scalar_lea.vmem %s1, %s517
      %p519 = scmp.lt.s32.totalorder %s26, 1
      %s520 = scalar_select %p519, %s26, 1
      %s521 = smul.addr %s520, 3
      %s522 = smul.addr %s521, 8
      %s523 = scalar_lea.vmem %s2, %s522
      %p524 = scmp.lt.s32.totalorder %s26, 1
      %s525 = scalar_select %p524, %s26, 1
      %s526 = smul.addr %s525, 3
      %s527 = smul.addr %s526, 8
      %s528 = scalar_lea.vmem %s15, %s527
      %v529 = vld [vmem:[%s515] sm:$0xff]
      %v530 = vld [vmem:[%s515 + $0x8] sm:$0xff]
      %v531 = vld [vmem:[%s515 + $0x10] sm:$0xff]
      %v532 = vld [vmem:[%s518] sm:$0x1]
      %v533 = vld [vmem:[%s523] sm:$0xff]
      %v534 = vld [vmem:[%s523 + $0x8] sm:$0xff]
      %v535 = vld [vmem:[%s523 + $0x10] sm:$0xff]
      %v536 = vld [vmem:[%s3] sm:$0xff]
      %v537 = vld [vmem:[%s3 + $0x8] sm:$0xff]
      %v538 = vld [vmem:[%s3 + $0x10] sm:$0xff]
      %v539 = vld [vmem:[%s3 + $0x18] sm:$0xff]
      %v540 = vld [vmem:[%s4] sm:$0x1]
      %v542 = vlaneseq
      %v543 = vshrl.u32 %v542, 7
      %v544 = vsub.s32 0, %v543
      %v545 = vrot.slane %v540, %v544
      %vm547 = vcmask 261120
      %v549 = vsel %vm547, %v529, 0
      %v552 = vsel %vm547, %v530, 0
      %v555 = vsel %vm547, %v531, 0
      %557 = vmatprep.subr.mxu0 0.0
      %558 = vmatpush1.msra.mxu0 %v536
      %559 = vmatprep.subr.mxu0 0.0
      %560 = vmatpush1.msra.mxu0 %v537
      %561 = vmatprep.subr.mxu0 0.0
      %562 = vmatpush1.msra.mxu0 %v538
      %563 = vmatprep.subr.mxu0 0.0
      %564 = vmatpush1.msra.mxu0 %v539
      %565 = vmatprep.subr.mxu0 0.0
      %566 = vmatpush1.msra.mxu0 0.0
      %567 = vmatprep.subr.mxu0 0.0
      %568 = vmatpush1.msra.mxu0 0.0
      %569 = vmatprep.subr.mxu0 0.0
      %570 = vmatpush1.msra.mxu0 0.0
      %571 = vmatprep.subr.mxu0 0.0
      %572 = vmatpush1.msra.mxu0 0.0
      %573 = vmatprep.subr.mxu0 0.0
      %574 = vmatpush1.msra.mxu0 0.0
      %575 = vmatprep.subr.mxu0 0.0
      %576 = vmatpush1.msra.mxu0 0.0
      %577 = vmatprep.subr.mxu0 0.0
      %578 = vmatpush1.msra.mxu0 0.0
      %579 = vmatprep.subr.mxu0 0.0
      %580 = vmatpush1.msra.mxu0 0.0
      %581 = vmatprep.subr.mxu0 0.0
      %582 = vmatpush1.msra.mxu0 0.0
      %583 = vmatprep.subr.mxu0 0.0
      %584 = vmatpush1.msra.mxu0 0.0
      %585 = vmatprep.subr.mxu0 0.0
      %586 = vmatpush1.msra.mxu0 0.0
      %587 = vmatprep.subr.mxu0 0.0
      %588 = vmatpush1.msra.mxu0 0.0
      %589 = vmatprep.subr.mxu0 0.0
      %590 = vmatpush1.msra.mxu0 0.0
      %591 = vmatprep.subr.mxu0 0.0
      %592 = vmatpush1.msra.mxu0 0.0
      %593 = vmatprep.subr.mxu0 0.0
      %594 = vmatpush1.msra.mxu0 0.0
      %595 = vmatprep.subr.mxu0 0.0
      %596 = vmatpush1.msra.mxu0 0.0
      %597 = vmatprep.subr.mxu0 0.0
      %598 = vmatpush1.msra.mxu0 0.0
      %599 = vmatprep.subr.mxu0 0.0
      %600 = vmatpush1.msra.mxu0 0.0
      %601 = vmatprep.subr.mxu0 0.0
      %602 = vmatpush1.msra.mxu0 0.0
      %603 = vmatprep.subr.mxu0 0.0
      %604 = vmatpush1.msra.mxu0 0.0
      %605 = vmatprep.subr.mxu0 0.0
      %606 = vmatpush1.msra.mxu0 0.0
      %607 = vmatprep.subr.mxu0 0.0
      %608 = vmatpush1.msra.mxu0 0.0
      %609 = vmatprep.subr.mxu0 0.0
      %610 = vmatpush1.msra.mxu0 0.0
      %611 = vmatprep.subr.mxu0 0.0
      %612 = vmatpush1.msra.mxu0 0.0
      %613 = vmatprep.subr.mxu0 0.0
      %614 = vmatpush1.msra.mxu0 0.0
      %615 = vmatprep.subr.mxu0 0.0
      %616 = vmatpush1.msra.mxu0 0.0
      %617 = vmatprep.subr.mxu0 0.0
      %618 = vmatpush1.msra.mxu0 0.0
      %619 = vmatprep.subr.mxu0 0.0
      %620 = vmatpush1.msra.mxu0 0.0
      %621 = vmatprep.mubr.f32.mxu0 0.0
      %622 = vmatmul.mubr.f32.gmra.mrb[0].mxu0 %v549
      %v623 = vpop.f32.mrb[0].mxu0
      %v624 = vadd.f32 %v545, %v623
      %v625 = vpop.f32.mrb[0].mxu0
      %626 = vmatprep.mubr.f32.mxu0 0.0
      %627 = vmatmul.mubr.f32.gmra.mrb[0].mxu0 %v552
      %v628 = vpop.f32.mrb[0].mxu0
      %v629 = vadd.f32 %v545, %v628
      %v630 = vpop.f32.mrb[0].mxu0
      %631 = vmatprep.mubr.f32.mxu0 0.0
      %632 = vmatmul.mubr.f32.gmra.mrb[0].mxu0 %v555
      %v633 = vpop.f32.mrb[0].mxu0
      %v634 = vadd.f32 %v545, %v633
      %v635 = vpop.f32.mrb[0].mxu0
      %636 = vdwg.mxu0
      %640 = vrot.lane.b32.xlu0 %v624, 96
      %v641 = vpop.permute.xlu0 %640
      %642 = vrot.lane.b32.xlu0 %v629, 96
      %v643 = vpop.permute.xlu0 %642
      %644 = vrot.lane.b32.xlu0 %v634, 96
      %v645 = vpop.permute.xlu0 %644
      %vm646 = vcmask 130048
      %v647 = vsel %vm646, %v624, 0
      %v649 = vsel %vm646, %v629, 0
      %v651 = vsel %vm646, %v634, 0
      %v653 = vsel %vm646, %v641, 0
      %v655 = vsel %vm646, %v643, 0
      %v657 = vsel %vm646, %v645, 0
      %659 = vmatprep.subr.mxu0 0.0
      %660 = vmatpush1.xpose.msra.mxu0 %v653
      %661 = vmatprep.subr.mxu0 0.0
      %662 = vmatpush1.xpose.msra.mxu0 %v655
      %663 = vmatprep.subr.mxu0 0.0
      %664 = vmatpush1.xpose.msra.mxu0 %v657
      %665 = vmatprep.subr.mxu0 0.0
      %666 = vmatpush1.xpose.msra.mxu0 0.0
      %667 = vmatprep.subr.mxu0 0.0
      %668 = vmatpush1.xpose.msra.mxu0 0.0
      %669 = vmatprep.subr.mxu0 0.0
      %670 = vmatpush1.xpose.msra.mxu0 0.0
      %671 = vmatprep.subr.mxu0 0.0
      %672 = vmatpush1.xpose.msra.mxu0 0.0
      %673 = vmatprep.subr.mxu0 0.0
      %674 = vmatpush1.xpose.msra.mxu0 0.0
      %675 = vmatprep.subr.mxu0 0.0
      %676 = vmatpush1.xpose.msra.mxu0 0.0
      %677 = vmatprep.subr.mxu0 0.0
      %678 = vmatpush1.xpose.msra.mxu0 0.0
      %679 = vmatprep.subr.mxu0 0.0
      %680 = vmatpush1.xpose.msra.mxu0 0.0
      %681 = vmatprep.subr.mxu0 0.0
      %682 = vmatpush1.xpose.msra.mxu0 0.0
      %683 = vmatprep.subr.mxu0 0.0
      %684 = vmatpush1.xpose.msra.mxu0 0.0
      %685 = vmatprep.subr.mxu0 0.0
      %686 = vmatpush1.xpose.msra.mxu0 0.0
      %687 = vmatprep.subr.mxu0 0.0
      %688 = vmatpush1.xpose.msra.mxu0 0.0
      %689 = vmatprep.subr.mxu0 0.0
      %690 = vmatpush1.xpose.msra.mxu0 0.0
      %691 = vmatprep.subr.mxu0 0.0
      %692 = vmatpush1.xpose.msra.mxu0 0.0
      %693 = vmatprep.subr.mxu0 0.0
      %694 = vmatpush1.xpose.msra.mxu0 0.0
      %695 = vmatprep.subr.mxu0 0.0
      %696 = vmatpush1.xpose.msra.mxu0 0.0
      %697 = vmatprep.subr.mxu0 0.0
      %698 = vmatpush1.xpose.msra.mxu0 0.0
      %699 = vmatprep.subr.mxu0 0.0
      %700 = vmatpush1.xpose.msra.mxu0 0.0
      %701 = vmatprep.subr.mxu0 0.0
      %702 = vmatpush1.xpose.msra.mxu0 0.0
      %703 = vmatprep.subr.mxu0 0.0
      %704 = vmatpush1.xpose.msra.mxu0 0.0
      %705 = vmatprep.subr.mxu0 0.0
      %706 = vmatpush1.xpose.msra.mxu0 0.0
      %707 = vmatprep.subr.mxu0 0.0
      %708 = vmatpush1.xpose.msra.mxu0 0.0
      %709 = vmatprep.subr.mxu0 0.0
      %710 = vmatpush1.xpose.msra.mxu0 0.0
      %711 = vmatprep.subr.mxu0 0.0
      %712 = vmatpush1.xpose.msra.mxu0 0.0
      %713 = vmatprep.subr.mxu0 0.0
      %714 = vmatpush1.xpose.msra.mxu0 0.0
      %715 = vmatprep.subr.mxu0 0.0
      %716 = vmatpush1.xpose.msra.mxu0 0.0
      %717 = vmatprep.subr.mxu0 0.0
      %718 = vmatpush1.xpose.msra.mxu0 0.0
      %719 = vmatprep.subr.mxu0 0.0
      %720 = vmatpush1.xpose.msra.mxu0 0.0
      %721 = vmatprep.subr.mxu0 0.0
      %722 = vmatpush1.xpose.msra.mxu0 0.0
      %723 = vmatprep.mubr.f32.mxu0 0.0
      %724 = vmatmul.mubr.f32.gmra.mrb[0].mxu0 %v647
      %v725 = vpop.f32.mrb[0].mxu0
      %v726 = vadd.f32 0.0, %v725
      %v727 = vpop.f32.mrb[0].mxu0
      %728 = vmatprep.mubr.f32.mxu0 0.0
      %729 = vmatmul.mubr.f32.gmra.mrb[0].mxu0 %v649
      %v730 = vpop.f32.mrb[0].mxu0
      %v731 = vadd.f32 0.0, %v730
      %v732 = vpop.f32.mrb[0].mxu0
      %733 = vmatprep.mubr.f32.mxu0 0.0
      %734 = vmatmul.mubr.f32.gmra.mrb[0].mxu0 %v651
      %v735 = vpop.f32.mrb[0].mxu0
      %v736 = vadd.f32 0.0, %v735
      %v737 = vpop.f32.mrb[0].mxu0
      %738 = vdwg.mxu0
      %v739 = vmul.f32 %v726, 0.25
      %v740 = vmul.f32 %v731, 0.25
      %v741 = vmul.f32 %v736, 0.25
      %vm742 = vcmp.gt.f32.partialorder %v532, 0.5
      %v743 = vsel %vm742, 1, 0
      %v744 = vlaneseq
      %v745 = vshrl.u32 %v744, 7
      %v746 = vsub.s32 0, %v745
      %v747 = vrot.slane %v743, %v746
      %vm748 = vcmp.eq.s32.totalorder %v747, 1
      %v749 = vsel %vm748, -1e+30, %v739
      %v750 = vsel %vm748, -1e+30, %v740
      %v751 = vsel %vm748, -1e+30, %v741
      %vm752 = vcmask 195584
      %v753 = vsel %vm752, %v749, -inf
      %754 = vmax.xlane.f32.xlu0 %v753
      %v755 = vpop.xlane.xlu0 %754
      %v756 = vsel %vm752, %v750, -inf
      %757 = vmax.xlane.f32.xlu0 %v756
      %v758 = vpop.xlane.xlu0 %757
      %v759 = vsel %vm752, %v751, -inf
      %760 = vmax.xlane.f32.xlu0 %v759
      %v761 = vpop.xlane.xlu0 %760
      %v762 = vsub.f32 %v749, %v755
      %v763 = vsub.f32 %v750, %v758
      %v764 = vsub.f32 %v751, %v761
      %v765 = vmul.f32 %v762, 1.442695
      %v766 = vpow.pop %v765
      %v767 = vmul.f32 %v763, 1.442695
      %v768 = vpow.pop %v767
      %v769 = vmul.f32 %v764, 1.442695
      %v770 = vpow.pop %v769
      %v771 = vsel %vm752, %v766, 0.0
      %772 = vadd.xlane.f32.xlu0 %v771
      %v773 = vpop.xlane.xlu0 %772
      %v774 = vsel %vm752, %v768, 0.0
      %775 = vadd.xlane.f32.xlu0 %v774
      %v776 = vpop.xlane.xlu0 %775
      %v777 = vsel %vm752, %v770, 0.0
      %778 = vadd.xlane.f32.xlu0 %v777
      %v779 = vpop.xlane.xlu0 %778
      %v780 = vrcp.pop %v773
      %v781 = vrcp.pop %v776
      %v782 = vrcp.pop %v779
      %v783 = vmul.f32 %v766, %v780
      %v784 = vmul.f32 %v768, %v781
      %v785 = vmul.f32 %v770, %v782
      %786 = vrot.lane.b32.xlu0 %v624, 64
      %v787 = vpop.permute.xlu0 %786
      %788 = vrot.lane.b32.xlu0 %v629, 64
      %v789 = vpop.permute.xlu0 %788
      %790 = vrot.lane.b32.xlu0 %v634, 64
      %v791 = vpop.permute.xlu0 %790
      %v796 = vsel %vm752, %v783, 0
      %v799 = vsel %vm752, %v784, 0
      %v802 = vsel %vm752, %v785, 0
      %804 = vmatprep.subr.mxu0 0.0
      %805 = vmatpush1.msra.mxu0 %v787
      %806 = vmatprep.subr.mxu0 0.0
      %807 = vmatpush1.msra.mxu0 %v789
      %808 = vmatprep.subr.mxu0 0.0
      %809 = vmatpush1.msra.mxu0 %v791
      %810 = vmatprep.subr.mxu0 0.0
      %811 = vmatpush1.msra.mxu0 0.0
      %812 = vmatprep.subr.mxu0 0.0
      %813 = vmatpush1.msra.mxu0 0.0
      %814 = vmatprep.subr.mxu0 0.0
      %815 = vmatpush1.msra.mxu0 0.0
      %816 = vmatprep.subr.mxu0 0.0
      %817 = vmatpush1.msra.mxu0 0.0
      %818 = vmatprep.subr.mxu0 0.0
      %819 = vmatpush1.msra.mxu0 0.0
      %820 = vmatprep.subr.mxu0 0.0
      %821 = vmatpush1.msra.mxu0 0.0
      %822 = vmatprep.subr.mxu0 0.0
      %823 = vmatpush1.msra.mxu0 0.0
      %824 = vmatprep.subr.mxu0 0.0
      %825 = vmatpush1.msra.mxu0 0.0
      %826 = vmatprep.subr.mxu0 0.0
      %827 = vmatpush1.msra.mxu0 0.0
      %828 = vmatprep.subr.mxu0 0.0
      %829 = vmatpush1.msra.mxu0 0.0
      %830 = vmatprep.subr.mxu0 0.0
      %831 = vmatpush1.msra.mxu0 0.0
      %832 = vmatprep.subr.mxu0 0.0
      %833 = vmatpush1.msra.mxu0 0.0
      %834 = vmatprep.subr.mxu0 0.0
      %835 = vmatpush1.msra.mxu0 0.0
      %836 = vmatprep.subr.mxu0 0.0
      %837 = vmatpush1.msra.mxu0 0.0
      %838 = vmatprep.subr.mxu0 0.0
      %839 = vmatpush1.msra.mxu0 0.0
      %840 = vmatprep.subr.mxu0 0.0
      %841 = vmatpush1.msra.mxu0 0.0
      %842 = vmatprep.subr.mxu0 0.0
      %843 = vmatpush1.msra.mxu0 0.0
      %844 = vmatprep.subr.mxu0 0.0
      %845 = vmatpush1.msra.mxu0 0.0
      %846 = vmatprep.subr.mxu0 0.0
      %847 = vmatpush1.msra.mxu0 0.0
      %848 = vmatprep.subr.mxu0 0.0
      %849 = vmatpush1.msra.mxu0 0.0
      %850 = vmatprep.subr.mxu0 0.0
      %851 = vmatpush1.msra.mxu0 0.0
      %852 = vmatprep.subr.mxu0 0.0
      %853 = vmatpush1.msra.mxu0 0.0
      %854 = vmatprep.subr.mxu0 0.0
      %855 = vmatpush1.msra.mxu0 0.0
      %856 = vmatprep.subr.mxu0 0.0
      %857 = vmatpush1.msra.mxu0 0.0
      %858 = vmatprep.subr.mxu0 0.0
      %859 = vmatpush1.msra.mxu0 0.0
      %860 = vmatprep.subr.mxu0 0.0
      %861 = vmatpush1.msra.mxu0 0.0
      %862 = vmatprep.subr.mxu0 0.0
      %863 = vmatpush1.msra.mxu0 0.0
      %864 = vmatprep.subr.mxu0 0.0
      %865 = vmatpush1.msra.mxu0 0.0
      %866 = vmatprep.subr.mxu0 0.0
      %867 = vmatpush1.msra.mxu0 0.0
      %868 = vmatprep.mubr.f32.mxu0 0.0
      %869 = vmatmul.mubr.f32.gmra.mrb[0].mxu0 %v796
      %v870 = vpop.f32.mrb[0].mxu0
      %v871 = vadd.f32 0.0, %v870
      %v872 = vpop.f32.mrb[0].mxu0
      %873 = vmatprep.mubr.f32.mxu0 0.0
      %874 = vmatmul.mubr.f32.gmra.mrb[0].mxu0 %v799
      %v875 = vpop.f32.mrb[0].mxu0
      %v876 = vadd.f32 0.0, %v875
      %v877 = vpop.f32.mrb[0].mxu0
      %878 = vmatprep.mubr.f32.mxu0 0.0
      %879 = vmatmul.mubr.f32.gmra.mrb[0].mxu0 %v802
      %v880 = vpop.f32.mrb[0].mxu0
      %v881 = vadd.f32 0.0, %v880
      %v882 = vpop.f32.mrb[0].mxu0
      %883 = vdwg.mxu0
      %884 = vrot.lane.b32.xlu0 %v624, 112
      %v885 = vpop.permute.xlu0 %884
      %886 = vrot.lane.b32.xlu0 %v629, 112
      %v887 = vpop.permute.xlu0 %886
      %888 = vrot.lane.b32.xlu0 %v634, 112
      %v889 = vpop.permute.xlu0 %888
      %890 = vrot.lane.b32.xlu0 %v624, 80
      %v891 = vpop.permute.xlu0 %890
      %892 = vrot.lane.b32.xlu0 %v629, 80
      %v893 = vpop.permute.xlu0 %892
      %894 = vrot.lane.b32.xlu0 %v634, 80
      %v895 = vpop.permute.xlu0 %894
      %v896 = vsel %vm646, %v885, 0
      %v898 = vsel %vm646, %v887, 0
      %v900 = vsel %vm646, %v889, 0
      %v902 = vsel %vm646, %v891, 0
      %v904 = vsel %vm646, %v893, 0
      %v906 = vsel %vm646, %v895, 0
      %908 = vmatprep.subr.mxu0 0.0
      %909 = vmatpush1.xpose.msra.mxu0 %v902
      %910 = vmatprep.subr.mxu0 0.0
      %911 = vmatpush1.xpose.msra.mxu0 %v904
      %912 = vmatprep.subr.mxu0 0.0
      %913 = vmatpush1.xpose.msra.mxu0 %v906
      %914 = vmatprep.subr.mxu0 0.0
      %915 = vmatpush1.xpose.msra.mxu0 0.0
      %916 = vmatprep.subr.mxu0 0.0
      %917 = vmatpush1.xpose.msra.mxu0 0.0
      %918 = vmatprep.subr.mxu0 0.0
      %919 = vmatpush1.xpose.msra.mxu0 0.0
      %920 = vmatprep.subr.mxu0 0.0
      %921 = vmatpush1.xpose.msra.mxu0 0.0
      %922 = vmatprep.subr.mxu0 0.0
      %923 = vmatpush1.xpose.msra.mxu0 0.0
      %924 = vmatprep.subr.mxu0 0.0
      %925 = vmatpush1.xpose.msra.mxu0 0.0
      %926 = vmatprep.subr.mxu0 0.0
      %927 = vmatpush1.xpose.msra.mxu0 0.0
      %928 = vmatprep.subr.mxu0 0.0
      %929 = vmatpush1.xpose.msra.mxu0 0.0
      %930 = vmatprep.subr.mxu0 0.0
      %931 = vmatpush1.xpose.msra.mxu0 0.0
      %932 = vmatprep.subr.mxu0 0.0
      %933 = vmatpush1.xpose.msra.mxu0 0.0
      %934 = vmatprep.subr.mxu0 0.0
      %935 = vmatpush1.xpose.msra.mxu0 0.0
      %936 = vmatprep.subr.mxu0 0.0
      %937 = vmatpush1.xpose.msra.mxu0 0.0
      %938 = vmatprep.subr.mxu0 0.0
      %939 = vmatpush1.xpose.msra.mxu0 0.0
      %940 = vmatprep.subr.mxu0 0.0
      %941 = vmatpush1.xpose.msra.mxu0 0.0
      %942 = vmatprep.subr.mxu0 0.0
      %943 = vmatpush1.xpose.msra.mxu0 0.0
      %944 = vmatprep.subr.mxu0 0.0
      %945 = vmatpush1.xpose.msra.mxu0 0.0
      %946 = vmatprep.subr.mxu0 0.0
      %947 = vmatpush1.xpose.msra.mxu0 0.0
      %948 = vmatprep.subr.mxu0 0.0
      %949 = vmatpush1.xpose.msra.mxu0 0.0
      %950 = vmatprep.subr.mxu0 0.0
      %951 = vmatpush1.xpose.msra.mxu0 0.0
      %952 = vmatprep.subr.mxu0 0.0
      %953 = vmatpush1.xpose.msra.mxu0 0.0
      %954 = vmatprep.subr.mxu0 0.0
      %955 = vmatpush1.xpose.msra.mxu0 0.0
      %956 = vmatprep.subr.mxu0 0.0
      %957 = vmatpush1.xpose.msra.mxu0 0.0
      %958 = vmatprep.subr.mxu0 0.0
      %959 = vmatpush1.xpose.msra.mxu0 0.0
      %960 = vmatprep.subr.mxu0 0.0
      %961 = vmatpush1.xpose.msra.mxu0 0.0
      %962 = vmatprep.subr.mxu0 0.0
      %963 = vmatpush1.xpose.msra.mxu0 0.0
      %964 = vmatprep.subr.mxu0 0.0
      %965 = vmatpush1.xpose.msra.mxu0 0.0
      %966 = vmatprep.subr.mxu0 0.0
      %967 = vmatpush1.xpose.msra.mxu0 0.0
      %968 = vmatprep.subr.mxu0 0.0
      %969 = vmatpush1.xpose.msra.mxu0 0.0
      %970 = vmatprep.subr.mxu0 0.0
      %971 = vmatpush1.xpose.msra.mxu0 0.0
      %972 = vmatprep.mubr.f32.mxu0 0.0
      %973 = vmatmul.mubr.f32.gmra.mrb[0].mxu0 %v896
      %v974 = vpop.f32.mrb[0].mxu0
      %v975 = vadd.f32 0.0, %v974
      %v976 = vpop.f32.mrb[0].mxu0
      %977 = vmatprep.mubr.f32.mxu0 0.0
      %978 = vmatmul.mubr.f32.gmra.mrb[0].mxu0 %v898
      %v979 = vpop.f32.mrb[0].mxu0
      %v980 = vadd.f32 0.0, %v979
      %v981 = vpop.f32.mrb[0].mxu0
      %982 = vmatprep.mubr.f32.mxu0 0.0
      %983 = vmatmul.mubr.f32.gmra.mrb[0].mxu0 %v900
      %v984 = vpop.f32.mrb[0].mxu0
      %v985 = vadd.f32 0.0, %v984
      %v986 = vpop.f32.mrb[0].mxu0
      %987 = vdwg.mxu0
      %v988 = vmul.f32 %v975, 0.25
      %v989 = vmul.f32 %v980, 0.25
      %v990 = vmul.f32 %v985, 0.25
      %v991 = vsel %vm748, -1e+30, %v988
      %v992 = vsel %vm748, -1e+30, %v989
      %v993 = vsel %vm748, -1e+30, %v990
      %v994 = vsel %vm752, %v991, -inf
      %995 = vmax.xlane.f32.xlu0 %v994
      %v996 = vpop.xlane.xlu0 %995
      %v997 = vsel %vm752, %v992, -inf
      %998 = vmax.xlane.f32.xlu0 %v997
      %v999 = vpop.xlane.xlu0 %998
      %v1000 = vsel %vm752, %v993, -inf
      %1001 = vmax.xlane.f32.xlu0 %v1000
      %v1002 = vpop.xlane.xlu0 %1001
      %v1003 = vsub.f32 %v991, %v996
      %v1004 = vsub.f32 %v992, %v999
      %v1005 = vsub.f32 %v993, %v1002
      %v1006 = vmul.f32 %v1003, 1.442695
      %v1007 = vpow.pop %v1006
      %v1008 = vmul.f32 %v1004, 1.442695
      %v1009 = vpow.pop %v1008
      %v1010 = vmul.f32 %v1005, 1.442695
      %v1011 = vpow.pop %v1010
      %v1012 = vsel %vm752, %v1007, 0.0
      %1013 = vadd.xlane.f32.xlu0 %v1012
      %v1014 = vpop.xlane.xlu0 %1013
      %v1015 = vsel %vm752, %v1009, 0.0
      %1016 = vadd.xlane.f32.xlu0 %v1015
      %v1017 = vpop.xlane.xlu0 %1016
      %v1018 = vsel %vm752, %v1011, 0.0
      %1019 = vadd.xlane.f32.xlu0 %v1018
      %v1020 = vpop.xlane.xlu0 %1019
      %v1021 = vrcp.pop %v1014
      %v1022 = vrcp.pop %v1017
      %v1023 = vrcp.pop %v1020
      %v1024 = vmul.f32 %v1007, %v1021
      %v1025 = vmul.f32 %v1009, %v1022
      %v1026 = vmul.f32 %v1011, %v1023
      %1027 = vrot.lane.b32.xlu0 %v624, 48
      %v1028 = vpop.permute.xlu0 %1027
      %1029 = vrot.lane.b32.xlu0 %v629, 48
      %v1030 = vpop.permute.xlu0 %1029
      %1031 = vrot.lane.b32.xlu0 %v634, 48
      %v1032 = vpop.permute.xlu0 %1031
      %v1037 = vsel %vm752, %v1024, 0
      %v1040 = vsel %vm752, %v1025, 0
      %v1043 = vsel %vm752, %v1026, 0
      %1045 = vmatprep.subr.mxu0 0.0
      %1046 = vmatpush1.msra.mxu0 %v1028
      %1047 = vmatprep.subr.mxu0 0.0
      %1048 = vmatpush1.msra.mxu0 %v1030
      %1049 = vmatprep.subr.mxu0 0.0
      %1050 = vmatpush1.msra.mxu0 %v1032
      %1051 = vmatprep.subr.mxu0 0.0
      %1052 = vmatpush1.msra.mxu0 0.0
      %1053 = vmatprep.subr.mxu0 0.0
      %1054 = vmatpush1.msra.mxu0 0.0
      %1055 = vmatprep.subr.mxu0 0.0
      %1056 = vmatpush1.msra.mxu0 0.0
      %1057 = vmatprep.subr.mxu0 0.0
      %1058 = vmatpush1.msra.mxu0 0.0
      %1059 = vmatprep.subr.mxu0 0.0
      %1060 = vmatpush1.msra.mxu0 0.0
      %1061 = vmatprep.subr.mxu0 0.0
      %1062 = vmatpush1.msra.mxu0 0.0
      %1063 = vmatprep.subr.mxu0 0.0
      %1064 = vmatpush1.msra.mxu0 0.0
      %1065 = vmatprep.subr.mxu0 0.0
      %1066 = vmatpush1.msra.mxu0 0.0
      %1067 = vmatprep.subr.mxu0 0.0
      %1068 = vmatpush1.msra.mxu0 0.0
      %1069 = vmatprep.subr.mxu0 0.0
      %1070 = vmatpush1.msra.mxu0 0.0
      %1071 = vmatprep.subr.mxu0 0.0
      %1072 = vmatpush1.msra.mxu0 0.0
      %1073 = vmatprep.subr.mxu0 0.0
      %1074 = vmatpush1.msra.mxu0 0.0
      %1075 = vmatprep.subr.mxu0 0.0
      %1076 = vmatpush1.msra.mxu0 0.0
      %1077 = vmatprep.subr.mxu0 0.0
      %1078 = vmatpush1.msra.mxu0 0.0
      %1079 = vmatprep.subr.mxu0 0.0
      %1080 = vmatpush1.msra.mxu0 0.0
      %1081 = vmatprep.subr.mxu0 0.0
      %1082 = vmatpush1.msra.mxu0 0.0
      %1083 = vmatprep.subr.mxu0 0.0
      %1084 = vmatpush1.msra.mxu0 0.0
      %1085 = vmatprep.subr.mxu0 0.0
      %1086 = vmatpush1.msra.mxu0 0.0
      %1087 = vmatprep.subr.mxu0 0.0
      %1088 = vmatpush1.msra.mxu0 0.0
      %1089 = vmatprep.subr.mxu0 0.0
      %1090 = vmatpush1.msra.mxu0 0.0
      %1091 = vmatprep.subr.mxu0 0.0
      %1092 = vmatpush1.msra.mxu0 0.0
      %1093 = vmatprep.subr.mxu0 0.0
      %1094 = vmatpush1.msra.mxu0 0.0
      %1095 = vmatprep.subr.mxu0 0.0
      %1096 = vmatpush1.msra.mxu0 0.0
      %1097 = vmatprep.subr.mxu0 0.0
      %1098 = vmatpush1.msra.mxu0 0.0
      %1099 = vmatprep.subr.mxu0 0.0
      %1100 = vmatpush1.msra.mxu0 0.0
      %1101 = vmatprep.subr.mxu0 0.0
      %1102 = vmatpush1.msra.mxu0 0.0
      %1103 = vmatprep.subr.mxu0 0.0
      %1104 = vmatpush1.msra.mxu0 0.0
      %1105 = vmatprep.subr.mxu0 0.0
      %1106 = vmatpush1.msra.mxu0 0.0
      %1107 = vmatprep.subr.mxu0 0.0
      %1108 = vmatpush1.msra.mxu0 0.0
      %1109 = vmatprep.mubr.f32.mxu0 0.0
      %1110 = vmatmul.mubr.f32.gmra.mrb[0].mxu0 %v1037
      %v1111 = vpop.f32.mrb[0].mxu0
      %v1112 = vadd.f32 0.0, %v1111
      %v1113 = vpop.f32.mrb[0].mxu0
      %1114 = vmatprep.mubr.f32.mxu0 0.0
      %1115 = vmatmul.mubr.f32.gmra.mrb[0].mxu0 %v1040
      %v1116 = vpop.f32.mrb[0].mxu0
      %v1117 = vadd.f32 0.0, %v1116
      %v1118 = vpop.f32.mrb[0].mxu0
      %1119 = vmatprep.mubr.f32.mxu0 0.0
      %1120 = vmatmul.mubr.f32.gmra.mrb[0].mxu0 %v1043
      %v1121 = vpop.f32.mrb[0].mxu0
      %v1122 = vadd.f32 0.0, %v1121
      %v1123 = vpop.f32.mrb[0].mxu0
      %1124 = vdwg.mxu0
      %1128 = vrot.lane.b32.xlu0 %v1112, 16
      %v1129 = vpop.permute.xlu0 %1128
      %1130 = vrot.lane.b32.xlu0 %v1117, 16
      %v1131 = vpop.permute.xlu0 %1130
      %1132 = vrot.lane.b32.xlu0 %v1122, 16
      %v1133 = vpop.permute.xlu0 %1132
      %v1137 = vsel %vm646, %v871, %v1129
      %v1138 = vsel %vm646, %v876, %v1131
      %v1139 = vsel %vm646, %v881, %v1133
      %v1140 = vld [vmem:[%s5] sm:$0xff]
      %v1141 = vld [vmem:[%s5 + $0x8] sm:$0xff]
      %v1142 = vld [vmem:[%s5 + $0x10] sm:$0xff]
      %v1143 = vld [vmem:[%s5 + $0x18] sm:$0xff]
      %v1144 = vld [vmem:[%s6] sm:$0x1]
      %v1146 = vlaneseq
      %v1147 = vshrl.u32 %v1146, 7
      %v1148 = vsub.s32 0, %v1147
      %v1149 = vrot.slane %v1144, %v1148
      %v1152 = vsel %vm547, %v1137, 0
      %v1155 = vsel %vm547, %v1138, 0
      %v1158 = vsel %vm547, %v1139, 0
      %1160 = vmatprep.subr.mxu0 0.0
      %1161 = vmatpush1.msra.mxu0 %v1140
      %1162 = vmatprep.subr.mxu0 0.0
      %1163 = vmatpush1.msra.mxu0 %v1141
      %1164 = vmatprep.subr.mxu0 0.0
      %1165 = vmatpush1.msra.mxu0 %v1142
      %1166 = vmatprep.subr.mxu0 0.0
      %1167 = vmatpush1.msra.mxu0 %v1143
      %1168 = vmatprep.subr.mxu0 0.0
      %1169 = vmatpush1.msra.mxu0 0.0
      %1170 = vmatprep.subr.mxu0 0.0
      %1171 = vmatpush1.msra.mxu0 0.0
      %1172 = vmatprep.subr.mxu0 0.0
      %1173 = vmatpush1.msra.mxu0 0.0
      %1174 = vmatprep.subr.mxu0 0.0
      %1175 = vmatpush1.msra.mxu0 0.0
      %1176 = vmatprep.subr.mxu0 0.0
      %1177 = vmatpush1.msra.mxu0 0.0
      %1178 = vmatprep.subr.mxu0 0.0
      %1179 = vmatpush1.msra.mxu0 0.0
      %1180 = vmatprep.subr.mxu0 0.0
      %1181 = vmatpush1.msra.mxu0 0.0
      %1182 = vmatprep.subr.mxu0 0.0
      %1183 = vmatpush1.msra.mxu0 0.0
      %1184 = vmatprep.subr.mxu0 0.0
      %1185 = vmatpush1.msra.mxu0 0.0
      %1186 = vmatprep.subr.mxu0 0.0
      %1187 = vmatpush1.msra.mxu0 0.0
      %1188 = vmatprep.subr.mxu0 0.0
      %1189 = vmatpush1.msra.mxu0 0.0
      %1190 = vmatprep.subr.mxu0 0.0
      %1191 = vmatpush1.msra.mxu0 0.0
      %1192 = vmatprep.subr.mxu0 0.0
      %1193 = vmatpush1.msra.mxu0 0.0
      %1194 = vmatprep.subr.mxu0 0.0
      %1195 = vmatpush1.msra.mxu0 0.0
      %1196 = vmatprep.subr.mxu0 0.0
      %1197 = vmatpush1.msra.mxu0 0.0
      %1198 = vmatprep.subr.mxu0 0.0
      %1199 = vmatpush1.msra.mxu0 0.0
      %1200 = vmatprep.subr.mxu0 0.0
      %1201 = vmatpush1.msra.mxu0 0.0
      %1202 = vmatprep.subr.mxu0 0.0
      %1203 = vmatpush1.msra.mxu0 0.0
      %1204 = vmatprep.subr.mxu0 0.0
      %1205 = vmatpush1.msra.mxu0 0.0
      %1206 = vmatprep.subr.mxu0 0.0
      %1207 = vmatpush1.msra.mxu0 0.0
      %1208 = vmatprep.subr.mxu0 0.0
      %1209 = vmatpush1.msra.mxu0 0.0
      %1210 = vmatprep.subr.mxu0 0.0
      %1211 = vmatpush1.msra.mxu0 0.0
      %1212 = vmatprep.subr.mxu0 0.0
      %1213 = vmatpush1.msra.mxu0 0.0
      %1214 = vmatprep.subr.mxu0 0.0
      %1215 = vmatpush1.msra.mxu0 0.0
      %1216 = vmatprep.subr.mxu0 0.0
      %1217 = vmatpush1.msra.mxu0 0.0
      %1218 = vmatprep.subr.mxu0 0.0
      %1219 = vmatpush1.msra.mxu0 0.0
      %1220 = vmatprep.subr.mxu0 0.0
      %1221 = vmatpush1.msra.mxu0 0.0
      %1222 = vmatprep.subr.mxu0 0.0
      %1223 = vmatpush1.msra.mxu0 0.0
      %1224 = vmatprep.mubr.f32.mxu0 0.0
      %1225 = vmatmul.mubr.f32.gmra.mrb[0].mxu0 %v1152
      %v1226 = vpop.f32.mrb[0].mxu0
      %v1227 = vadd.f32 %v1149, %v1226
      %v1228 = vpop.f32.mrb[0].mxu0
      %1229 = vmatprep.mubr.f32.mxu0 0.0
      %1230 = vmatmul.mubr.f32.gmra.mrb[0].mxu0 %v1155
      %v1231 = vpop.f32.mrb[0].mxu0
      %v1232 = vadd.f32 %v1149, %v1231
      %v1233 = vpop.f32.mrb[0].mxu0
      %1234 = vmatprep.mubr.f32.mxu0 0.0
      %1235 = vmatmul.mubr.f32.gmra.mrb[0].mxu0 %v1158
      %v1236 = vpop.f32.mrb[0].mxu0
      %v1237 = vadd.f32 %v1149, %v1236
      %v1238 = vpop.f32.mrb[0].mxu0
      %1239 = vdwg.mxu0
      %v1240 = vadd.f32 %v1227, %v529
      %v1241 = vadd.f32 %v1232, %v530
      %v1242 = vadd.f32 %v1237, %v531
      %v1243 = vld [vmem:[%s7] sm:$0x1]
      %v1244 = vld [vmem:[%s8] sm:$0x1]
      %v1245 = vsel %vm547, %v1240, 0.0
      %1246 = vadd.xlane.f32.xlu0 %v1245
      %v1247 = vpop.xlane.xlu0 %1246
      %v1248 = vsel %vm547, %v1241, 0.0
      %1249 = vadd.xlane.f32.xlu0 %v1248
      %v1250 = vpop.xlane.xlu0 %1249
      %v1251 = vsel %vm547, %v1242, 0.0
      %1252 = vadd.xlane.f32.xlu0 %v1251
      %v1253 = vpop.xlane.xlu0 %1252
      %v1254 = vrcp.pop 32.0
      %v1255 = vmul.f32 %v1247, %v1254
      %v1256 = vmul.f32 %v1250, %v1254
      %v1257 = vmul.f32 %v1253, %v1254
      %v1258 = vsub.f32 %v1240, %v1255
      %v1259 = vsub.f32 %v1241, %v1256
      %v1260 = vsub.f32 %v1242, %v1257
      %v1261 = vmul.f32 %v1258, %v1258
      %v1262 = vmul.f32 %v1259, %v1259
      %v1263 = vmul.f32 %v1260, %v1260
      %v1264 = vsel %vm547, %v1261, 0.0
      %1265 = vadd.xlane.f32.xlu0 %v1264
      %v1266 = vpop.xlane.xlu0 %1265
      %v1267 = vsel %vm547, %v1262, 0.0
      %1268 = vadd.xlane.f32.xlu0 %v1267
      %v1269 = vpop.xlane.xlu0 %1268
      %v1270 = vsel %vm547, %v1263, 0.0
      %1271 = vadd.xlane.f32.xlu0 %v1270
      %v1272 = vpop.xlane.xlu0 %1271
      %v1273 = vmul.f32 %v1266, %v1254
      %v1274 = vmul.f32 %v1269, %v1254
      %v1275 = vmul.f32 %v1272, %v1254
      %v1276 = vadd.f32 %v1273, 1e-05
      %v1277 = vadd.f32 %v1274, 1e-05
      %v1278 = vadd.f32 %v1275, 1e-05
      %v1279 = vrsqrt.pop %v1276
      %v1280 = vrsqrt.pop %v1277
      %v1281 = vrsqrt.pop %v1278
      %v1282 = vmul.f32 %v1258, %v1279
      %v1283 = vmul.f32 %v1259, %v1280
      %v1284 = vmul.f32 %v1260, %v1281
      %v1286 = vlaneseq
      %v1287 = vshrl.u32 %v1286, 7
      %v1288 = vsub.s32 0, %v1287
      %v1289 = vrot.slane %v1243, %v1288
      %v1291 = vmul.f32 %v1282, %v1289
      %v1292 = vmul.f32 %v1283, %v1289
      %v1293 = vmul.f32 %v1284, %v1289
      %v1295 = vlaneseq
      %v1296 = vshrl.u32 %v1295, 7
      %v1297 = vsub.s32 0, %v1296
      %v1298 = vrot.slane %v1244, %v1297
      %v1300 = vadd.f32 %v1291, %v1298
      %v1301 = vadd.f32 %v1292, %v1298
      %v1302 = vadd.f32 %v1293, %v1298
      %vm1303 = vcmp.gt.f32.partialorder %v533, 0.5
      %vm1304 = vcmp.gt.f32.partialorder %v534, 0.5
      %vm1305 = vcmp.gt.f32.partialorder %v535, 0.5
      %v1306 = vsel %vm1303, 1, 0
      %v1307 = vsel %vm1304, 1, 0
      %v1308 = vsel %vm1305, 1, 0
      %1309 = vset.pattern.permute.xlu0 0
      %1310 = vperm.xlu0 %1309, %v1306
      %v1311 = vpop.permute.xlu0 %1310
      %1312 = vset.pattern.permute.xlu0 0
      %1313 = vperm.xlu0 %1312, %v1307
      %v1314 = vpop.permute.xlu0 %1313
      %1315 = vset.pattern.permute.xlu0 0
      %1316 = vperm.xlu0 %1315, %v1308
      %v1317 = vpop.permute.xlu0 %1316
      %vm1318 = vcmp.eq.s32.totalorder %v1311, 1
      %vm1319 = vcmp.eq.s32.totalorder %v1314, 1
      %vm1320 = vcmp.eq.s32.totalorder %v1317, 1
      %v1321 = vsel %vm1318, 0.0, %v1300
      %v1322 = vsel %vm1319, 0.0, %v1301
      %v1323 = vsel %vm1320, 0.0, %v1302
      %v1324 = vld [vmem:[%s9] sm:$0xff]
      %v1325 = vld [vmem:[%s9 + $0x8] sm:$0xff]
      %v1326 = vld [vmem:[%s9 + $0x10] sm:$0xff]
      %v1327 = vld [vmem:[%s9 + $0x18] sm:$0xff]
      %v1328 = vld [vmem:[%s9 + $0x20] sm:$0xff]
      %v1329 = vld [vmem:[%s9 + $0x28] sm:$0xff]
      %v1330 = vld [vmem:[%s9 + $0x30] sm:$0xff]
      %v1331 = vld [vmem:[%s9 + $0x38] sm:$0xff]
      %v1332 = vld [vmem:[%s9 + $0x40] sm:$0xff]
      %v1333 = vld [vmem:[%s9 + $0x48] sm:$0xff]
      %v1334 = vld [vmem:[%s9 + $0x50] sm:$0xff]
      %v1335 = vld [vmem:[%s9 + $0x58] sm:$0xff]
      %v1336 = vld [vmem:[%s9 + $0x60] sm:$0xff]
      %v1337 = vld [vmem:[%s9 + $0x68] sm:$0xff]
      %v1338 = vld [vmem:[%s9 + $0x70] sm:$0xff]
      %v1339 = vld [vmem:[%s9 + $0x78] sm:$0xff]
      %v1340 = vld [vmem:[%s9 + $0x80] sm:$0xff]
      %v1341 = vld [vmem:[%s9 + $0x88] sm:$0xff]
      %v1342 = vld [vmem:[%s9 + $0x90] sm:$0xff]
      %v1343 = vld [vmem:[%s9 + $0x98] sm:$0xff]
      %v1344 = vld [vmem:[%s9 + $0xa0] sm:$0xff]
      %v1345 = vld [vmem:[%s9 + $0xa8] sm:$0xff]
      %v1346 = vld [vmem:[%s9 + $0xb0] sm:$0xff]
      %v1347 = vld [vmem:[%s9 + $0xb8] sm:$0xff]
      %v1348 = vld [vmem:[%s9 + $0xc0] sm:$0xff]
      %v1349 = vld [vmem:[%s9 + $0xc8] sm:$0xff]
      %v1350 = vld [vmem:[%s9 + $0xd0] sm:$0xff]
      %v1351 = vld [vmem:[%s9 + $0xd8] sm:$0xff]
      %v1352 = vld [vmem:[%s9 + $0xe0] sm:$0xff]
      %v1353 = vld [vmem:[%s9 + $0xe8] sm:$0xff]
      %v1354 = vld [vmem:[%s9 + $0xf0] sm:$0xff]
      %v1355 = vld [vmem:[%s9 + $0xf8] sm:$0xff]
      %v1356 = vld [vmem:[%s9 + $0x100] sm:$0xff]
      %v1357 = vld [vmem:[%s9 + $0x108] sm:$0xff]
      %v1358 = vld [vmem:[%s9 + $0x110] sm:$0xff]
      %v1359 = vld [vmem:[%s9 + $0x118] sm:$0xff]
      %v1360 = vld [vmem:[%s10] sm:$0x1]
      %vm1364 = vcmask 1043456
      %v1365 = vrot.slane %v1321, 4
      %v1366 = vrot.slane %v1322, 4
      %v1367 = vsel %vm1364, %v1365, %v1366
      %v1368 = vrot.slane %v1323, 4
      %v1369 = vsel %vm1364, %v1366, %v1368
      %v1374 = vsel %vm1364, 0.0, %v1365
      %v1375 = vsel %vm1364, %v1368, 0.0
      %vm1378 = vcmask 1046528
      %v1379 = vrot.slane %v1374, 1
      %v1380 = vrot.slane %v1367, 1
      %v1381 = vsel %vm1378, %v1379, %v1380
      %v1382 = vrot.slane %v1369, 1
      %v1383 = vsel %vm1378, %v1380, %v1382
      %v1384 = vrot.slane %v1375, 1
      %v1385 = vsel %vm1378, %v1382, %v1384
      %1386 = vrot.lane.b32.xlu0 %v1381, 32
      %v1387 = vpop.permute.xlu0 %1386
      %1388 = vrot.lane.b32.xlu0 %v1383, 32
      %v1389 = vpop.permute.xlu0 %1388
      %1390 = vrot.lane.b32.xlu0 %v1385, 32
      %v1391 = vpop.permute.xlu0 %1390
      %vm1395 = vcmask 1045504
      %v1396 = vrot.slane %v1374, 2
      %v1397 = vrot.slane %v1367, 2
      %v1398 = vsel %vm1395, %v1396, %v1397
      %v1399 = vrot.slane %v1369, 2
      %v1400 = vsel %vm1395, %v1397, %v1399
      %v1401 = vrot.slane %v1375, 2
      %v1402 = vsel %vm1395, %v1399, %v1401
      %1403 = vrot.lane.b32.xlu0 %v1398, 64
      %v1404 = vpop.permute.xlu0 %1403
      %1405 = vrot.lane.b32.xlu0 %v1400, 64
      %v1406 = vpop.permute.xlu0 %1405
      %1407 = vrot.lane.b32.xlu0 %v1402, 64
      %v1408 = vpop.permute.xlu0 %1407
      %vm1412 = vcmask 1044480
      %v1413 = vrot.slane %v1374, 3
      %v1414 = vrot.slane %v1367, 3
      %v1415 = vsel %vm1412, %v1413, %v1414
      %v1416 = vrot.slane %v1369, 3
      %v1417 = vsel %vm1412, %v1414, %v1416
      %v1418 = vrot.slane %v1375, 3
      %v1419 = vsel %vm1412, %v1416, %v1418
      %1420 = vrot.lane.b32.xlu0 %v1415, 96
      %v1421 = vpop.permute.xlu0 %1420
      %1422 = vrot.lane.b32.xlu0 %v1417, 96
      %v1423 = vpop.permute.xlu0 %1422
      %1424 = vrot.lane.b32.xlu0 %v1419, 96
      %v1425 = vpop.permute.xlu0 %1424
      %v1429 = vrot.slane %v1374, 4
      %v1430 = vrot.slane %v1367, 4
      %v1431 = vsel %vm1364, %v1429, %v1430
      %v1432 = vrot.slane %v1369, 4
      %v1433 = vsel %vm1364, %v1430, %v1432
      %v1434 = vrot.slane %v1375, 4
      %v1435 = vsel %vm1364, %v1432, %v1434
      %vm1439 = vcmask 1042432
      %v1440 = vrot.slane %v1374, 5
      %v1441 = vrot.slane %v1367, 5
      %v1442 = vsel %vm1439, %v1440, %v1441
      %v1443 = vrot.slane %v1369, 5
      %v1444 = vsel %vm1439, %v1441, %v1443
      %v1445 = vrot.slane %v1375, 5
      %v1446 = vsel %vm1439, %v1443, %v1445
      %1447 = vrot.lane.b32.xlu0 %v1442, 32
      %v1448 = vpop.permute.xlu0 %1447
      %1449 = vrot.lane.b32.xlu0 %v1444, 32
      %v1450 = vpop.permute.xlu0 %1449
      %1451 = vrot.lane.b32.xlu0 %v1446, 32
      %v1452 = vpop.permute.xlu0 %1451
      %vm1456 = vcmask 1041408
      %v1457 = vrot.slane %v1374, 6
      %v1458 = vrot.slane %v1367, 6
      %v1459 = vsel %vm1456, %v1457, %v1458
      %v1460 = vrot.slane %v1369, 6
      %v1461 = vsel %vm1456, %v1458, %v1460
      %v1462 = vrot.slane %v1375, 6
      %v1463 = vsel %vm1456, %v1460, %v1462
      %1464 = vrot.lane.b32.xlu0 %v1459, 64
      %v1465 = vpop.permute.xlu0 %1464
      %1466 = vrot.lane.b32.xlu0 %v1461, 64
      %v1467 = vpop.permute.xlu0 %1466
      %1468 = vrot.lane.b32.xlu0 %v1463, 64
      %v1469 = vpop.permute.xlu0 %1468
      %vm1473 = vcmask 1040384
      %v1474 = vrot.slane %v1374, 7
      %v1475 = vrot.slane %v1367, 7
      %v1476 = vsel %vm1473, %v1474, %v1475
      %v1477 = vrot.slane %v1369, 7
      %v1478 = vsel %vm1473, %v1475, %v1477
      %v1479 = vrot.slane %v1375, 7
      %v1480 = vsel %vm1473, %v1477, %v1479
      %1481 = vrot.lane.b32.xlu0 %v1476, 96
      %v1482 = vpop.permute.xlu0 %1481
      %1483 = vrot.lane.b32.xlu0 %v1478, 96
      %v1484 = vpop.permute.xlu0 %1483
      %1485 = vrot.lane.b32.xlu0 %v1480, 96
      %v1486 = vpop.permute.xlu0 %1485
      %v1490 = vsel %vm547, %v1374, %v1387
      %v1491 = vsel %vm547, %v1367, %v1389
      %v1492 = vsel %vm547, %v1369, %v1391
      %vm1493 = vcmask 523264
      %v1494 = vsel %vm1493, %v1490, %v1404
      %v1495 = vsel %vm1493, %v1491, %v1406
      %v1496 = vsel %vm1493, %v1492, %v1408
      %vm1497 = vcmask 785408
      %v1498 = vsel %vm1497, %v1494, %v1421
      %v1499 = vsel %vm1497, %v1495, %v1423
      %v1500 = vsel %vm1497, %v1496, %v1425
      %v1501 = vsel %vm547, %v1431, %v1448
      %v1502 = vsel %vm547, %v1433, %v1450
      %v1503 = vsel %vm547, %v1435, %v1452
      %v1504 = vsel %vm1493, %v1501, %v1465
      %v1505 = vsel %vm1493, %v1502, %v1467
      %v1506 = vsel %vm1493, %v1503, %v1469
      %v1507 = vsel %vm1497, %v1504, %v1482
      %v1508 = vsel %vm1497, %v1505, %v1484
      %v1509 = vsel %vm1497, %v1506, %v1486
      %v1511 = vlaneseq
      %v1512 = vshrl.u32 %v1511, 7
      %v1513 = vsub.s32 0, %v1512
      %v1514 = vrot.slane %v1360, %v1513
      %v1516 = vsel %vm547, %v1367, 0
      %v1518 = vsel %vm547, %v1369, 0
      %v1520 = vsel %vm547, %v1375, 0
      %1522 = vmatprep.subr.mxu0 0.0
      %1523 = vmatpush1.msra.mxu0 %v1324
      %1524 = vmatprep.subr.mxu0 0.0
      %1525 = vmatpush1.msra.mxu0 %v1325
      %1526 = vmatprep.subr.mxu0 0.0
      %1527 = vmatpush1.msra.mxu0 %v1326
      %1528 = vmatprep.subr.mxu0 0.0
      %1529 = vmatpush1.msra.mxu0 %v1327
      %1530 = vmatprep.subr.mxu0 0.0
      %1531 = vmatpush1.msra.mxu0 %v1328
      %1532 = vmatprep.subr.mxu0 0.0
      %1533 = vmatpush1.msra.mxu0 %v1329
      %1534 = vmatprep.subr.mxu0 0.0
      %1535 = vmatpush1.msra.mxu0 %v1330
      %1536 = vmatprep.subr.mxu0 0.0
      %1537 = vmatpush1.msra.mxu0 %v1331
      %1538 = vmatprep.subr.mxu0 0.0
      %1539 = vmatpush1.msra.mxu0 %v1332
      %1540 = vmatprep.subr.mxu0 0.0
      %1541 = vmatpush1.msra.mxu0 %v1333
      %1542 = vmatprep.subr.mxu0 0.0
      %1543 = vmatpush1.msra.mxu0 %v1334
      %1544 = vmatprep.subr.mxu0 0.0
      %1545 = vmatpush1.msra.mxu0 %v1335
      %1546 = vmatprep.subr.mxu0 0.0
      %1547 = vmatpush1.msra.mxu0 %v1336
      %1548 = vmatprep.subr.mxu0 0.0
      %1549 = vmatpush1.msra.mxu0 %v1337
      %1550 = vmatprep.subr.mxu0 0.0
      %1551 = vmatpush1.msra.mxu0 %v1338
      %1552 = vmatprep.subr.mxu0 0.0
      %1553 = vmatpush1.msra.mxu0 %v1339
      %1554 = vmatprep.subr.mxu0 0.0
      %1555 = vmatpush1.msra.mxu0 %v1340
      %1556 = vmatprep.subr.mxu0 0.0
      %1557 = vmatpush1.msra.mxu0 %v1341
      %1558 = vmatprep.subr.mxu0 0.0
      %1559 = vmatpush1.msra.mxu0 %v1342
      %1560 = vmatprep.subr.mxu0 0.0
      %1561 = vmatpush1.msra.mxu0 %v1343
      %1562 = vmatprep.subr.mxu0 0.0
      %1563 = vmatpush1.msra.mxu0 %v1344
      %1564 = vmatprep.subr.mxu0 0.0
      %1565 = vmatpush1.msra.mxu0 %v1345
      %1566 = vmatprep.subr.mxu0 0.0
      %1567 = vmatpush1.msra.mxu0 %v1346
      %1568 = vmatprep.subr.mxu0 0.0
      %1569 = vmatpush1.msra.mxu0 %v1347
      %1570 = vmatprep.subr.mxu0 0.0
      %1571 = vmatpush1.msra.mxu0 %v1348
      %1572 = vmatprep.subr.mxu0 0.0
      %1573 = vmatpush1.msra.mxu0 %v1349
      %1574 = vmatprep.subr.mxu0 0.0
      %1575 = vmatpush1.msra.mxu0 %v1350
      %1576 = vmatprep.subr.mxu0 0.0
      %1577 = vmatpush1.msra.mxu0 %v1351
      %1578 = vmatprep.subr.mxu0 0.0
      %1579 = vmatpush1.msra.mxu0 %v1352
      %1580 = vmatprep.subr.mxu0 0.0
      %1581 = vmatpush1.msra.mxu0 %v1353
      %1582 = vmatprep.subr.mxu0 0.0
      %1583 = vmatpush1.msra.mxu0 %v1354
      %1584 = vmatprep.subr.mxu0 0.0
      %1585 = vmatpush1.msra.mxu0 %v1355
      %1586 = vmatprep.mubr.f32.mxu0 %v1507
      %1587 = vmatmul.mubr.f32.gmra.mrb[0].mxu0 %v1498
      %v1588 = vpop.f32.mrb[0].mxu0
      %v1589 = vadd.f32 %v1514, %v1588
      %v1590 = vpop.f32.mrb[0].mxu0
      %1591 = vmatprep.mubr.f32.mxu0 %v1508
      %1592 = vmatmul.mubr.f32.gmra.mrb[0].mxu0 %v1499
      %v1593 = vpop.f32.mrb[0].mxu0
      %v1594 = vadd.f32 %v1514, %v1593
      %v1595 = vpop.f32.mrb[0].mxu0
      %1596 = vmatprep.mubr.f32.mxu0 %v1509
      %1597 = vmatmul.mubr.f32.gmra.mrb[0].mxu0 %v1500
      %v1598 = vpop.f32.mrb[0].mxu0
      %v1599 = vadd.f32 %v1514, %v1598
      %v1600 = vpop.f32.mrb[0].mxu0
      %1601 = vdwg.mxu0
      %1602 = vmatprep.subr.mxu0 0.0
      %1603 = vmatpush1.msra.mxu0 %v1356
      %1604 = vmatprep.subr.mxu0 0.0
      %1605 = vmatpush1.msra.mxu0 %v1357
      %1606 = vmatprep.subr.mxu0 0.0
      %1607 = vmatpush1.msra.mxu0 %v1358
      %1608 = vmatprep.subr.mxu0 0.0
      %1609 = vmatpush1.msra.mxu0 %v1359
      %1610 = vmatprep.subr.mxu0 0.0
      %1611 = vmatpush1.msra.mxu0 0.0
      %1612 = vmatprep.subr.mxu0 0.0
      %1613 = vmatpush1.msra.mxu0 0.0
      %1614 = vmatprep.subr.mxu0 0.0
      %1615 = vmatpush1.msra.mxu0 0.0
      %1616 = vmatprep.subr.mxu0 0.0
      %1617 = vmatpush1.msra.mxu0 0.0
      %1618 = vmatprep.subr.mxu0 0.0
      %1619 = vmatpush1.msra.mxu0 0.0
      %1620 = vmatprep.subr.mxu0 0.0
      %1621 = vmatpush1.msra.mxu0 0.0
      %1622 = vmatprep.subr.mxu0 0.0
      %1623 = vmatpush1.msra.mxu0 0.0
      %1624 = vmatprep.subr.mxu0 0.0
      %1625 = vmatpush1.msra.mxu0 0.0
      %1626 = vmatprep.subr.mxu0 0.0
      %1627 = vmatpush1.msra.mxu0 0.0
      %1628 = vmatprep.subr.mxu0 0.0
      %1629 = vmatpush1.msra.mxu0 0.0
      %1630 = vmatprep.subr.mxu0 0.0
      %1631 = vmatpush1.msra.mxu0 0.0
      %1632 = vmatprep.subr.mxu0 0.0
      %1633 = vmatpush1.msra.mxu0 0.0
      %1634 = vmatprep.subr.mxu0 0.0
      %1635 = vmatpush1.msra.mxu0 0.0
      %1636 = vmatprep.subr.mxu0 0.0
      %1637 = vmatpush1.msra.mxu0 0.0
      %1638 = vmatprep.subr.mxu0 0.0
      %1639 = vmatpush1.msra.mxu0 0.0
      %1640 = vmatprep.subr.mxu0 0.0
      %1641 = vmatpush1.msra.mxu0 0.0
      %1642 = vmatprep.subr.mxu0 0.0
      %1643 = vmatpush1.msra.mxu0 0.0
      %1644 = vmatprep.subr.mxu0 0.0
      %1645 = vmatpush1.msra.mxu0 0.0
      %1646 = vmatprep.subr.mxu0 0.0
      %1647 = vmatpush1.msra.mxu0 0.0
      %1648 = vmatprep.subr.mxu0 0.0
      %1649 = vmatpush1.msra.mxu0 0.0
      %1650 = vmatprep.subr.mxu0 0.0
      %1651 = vmatpush1.msra.mxu0 0.0
      %1652 = vmatprep.subr.mxu0 0.0
      %1653 = vmatpush1.msra.mxu0 0.0
      %1654 = vmatprep.subr.mxu0 0.0
      %1655 = vmatpush1.msra.mxu0 0.0
      %1656 = vmatprep.subr.mxu0 0.0
      %1657 = vmatpush1.msra.mxu0 0.0
      %1658 = vmatprep.subr.mxu0 0.0
      %1659 = vmatpush1.msra.mxu0 0.0
      %1660 = vmatprep.subr.mxu0 0.0
      %1661 = vmatpush1.msra.mxu0 0.0
      %1662 = vmatprep.subr.mxu0 0.0
      %1663 = vmatpush1.msra.mxu0 0.0
      %1664 = vmatprep.subr.mxu0 0.0
      %1665 = vmatpush1.msra.mxu0 0.0
      %1666 = vmatprep.mubr.f32.mxu0 0.0
      %1667 = vmatmul.mubr.f32.gmra.mrb[0].mxu0 %v1516
      %v1668 = vpop.f32.mrb[0].mxu0
      %v1669 = vadd.f32 %v1589, %v1668
      %v1670 = vpop.f32.mrb[0].mxu0
      %1671 = vmatprep.mubr.f32.mxu0 0.0
      %1672 = vmatmul.mubr.f32.gmra.mrb[0].mxu0 %v1518
      %v1673 = vpop.f32.mrb[0].mxu0
      %v1674 = vadd.f32 %v1594, %v1673
      %v1675 = vpop.f32.mrb[0].mxu0
      %1676 = vmatprep.mubr.f32.mxu0 0.0
      %1677 = vmatmul.mubr.f32.gmra.mrb[0].mxu0 %v1520
      %v1678 = vpop.f32.mrb[0].mxu0
      %v1679 = vadd.f32 %v1599, %v1678
      %v1680 = vpop.f32.mrb[0].mxu0
      %1681 = vdwg.mxu0
      %v1682 = vmax.f32 %v1669, 0.0
      %v1683 = vmax.f32 %v1674, 0.0
      %v1684 = vmax.f32 %v1679, 0.0
      %v1685 = vld [vmem:[%s11] sm:$0xff]
      %v1686 = vld [vmem:[%s11 + $0x8] sm:$0xff]
      %v1687 = vld [vmem:[%s11 + $0x10] sm:$0xff]
      %v1688 = vld [vmem:[%s11 + $0x18] sm:$0xff]
      %v1689 = vld [vmem:[%s11 + $0x20] sm:$0xff]
      %v1690 = vld [vmem:[%s11 + $0x28] sm:$0xff]
      %v1691 = vld [vmem:[%s11 + $0x30] sm:$0xff]
      %v1692 = vld [vmem:[%s11 + $0x38] sm:$0xff]
      %v1693 = vld [vmem:[%s12] sm:$0x1]
      %v1695 = vlaneseq
      %v1696 = vshrl.u32 %v1695, 7
      %v1697 = vsub.s32 0, %v1696
      %v1698 = vrot.slane %v1693, %v1697
      %v1701 = vsel %vm1493, %v1682, 0
      %v1704 = vsel %vm1493, %v1683, 0
      %v1707 = vsel %vm1493, %v1684, 0
      %1709 = vmatprep.subr.mxu0 0.0
      %1710 = vmatpush1.msra.mxu0 %v1685
      %1711 = vmatprep.subr.mxu0 0.0
      %1712 = vmatpush1.msra.mxu0 %v1686
      %1713 = vmatprep.subr.mxu0 0.0
      %1714 = vmatpush1.msra.mxu0 %v1687
      %1715 = vmatprep.subr.mxu0 0.0
      %1716 = vmatpush1.msra.mxu0 %v1688
      %1717 = vmatprep.subr.mxu0 0.0
      %1718 = vmatpush1.msra.mxu0 %v1689
      %1719 = vmatprep.subr.mxu0 0.0
      %1720 = vmatpush1.msra.mxu0 %v1690
      %1721 = vmatprep.subr.mxu0 0.0
      %1722 = vmatpush1.msra.mxu0 %v1691
      %1723 = vmatprep.subr.mxu0 0.0
      %1724 = vmatpush1.msra.mxu0 %v1692
      %1725 = vmatprep.subr.mxu0 0.0
      %1726 = vmatpush1.msra.mxu0 0.0
      %1727 = vmatprep.subr.mxu0 0.0
      %1728 = vmatpush1.msra.mxu0 0.0
      %1729 = vmatprep.subr.mxu0 0.0
      %1730 = vmatpush1.msra.mxu0 0.0
      %1731 = vmatprep.subr.mxu0 0.0
      %1732 = vmatpush1.msra.mxu0 0.0
      %1733 = vmatprep.subr.mxu0 0.0
      %1734 = vmatpush1.msra.mxu0 0.0
      %1735 = vmatprep.subr.mxu0 0.0
      %1736 = vmatpush1.msra.mxu0 0.0
      %1737 = vmatprep.subr.mxu0 0.0
      %1738 = vmatpush1.msra.mxu0 0.0
      %1739 = vmatprep.subr.mxu0 0.0
      %1740 = vmatpush1.msra.mxu0 0.0
      %1741 = vmatprep.subr.mxu0 0.0
      %1742 = vmatpush1.msra.mxu0 0.0
      %1743 = vmatprep.subr.mxu0 0.0
      %1744 = vmatpush1.msra.mxu0 0.0
      %1745 = vmatprep.subr.mxu0 0.0
      %1746 = vmatpush1.msra.mxu0 0.0
      %1747 = vmatprep.subr.mxu0 0.0
      %1748 = vmatpush1.msra.mxu0 0.0
      %1749 = vmatprep.subr.mxu0 0.0
      %1750 = vmatpush1.msra.mxu0 0.0
      %1751 = vmatprep.subr.mxu0 0.0
      %1752 = vmatpush1.msra.mxu0 0.0
      %1753 = vmatprep.subr.mxu0 0.0
      %1754 = vmatpush1.msra.mxu0 0.0
      %1755 = vmatprep.subr.mxu0 0.0
      %1756 = vmatpush1.msra.mxu0 0.0
      %1757 = vmatprep.subr.mxu0 0.0
      %1758 = vmatpush1.msra.mxu0 0.0
      %1759 = vmatprep.subr.mxu0 0.0
      %1760 = vmatpush1.msra.mxu0 0.0
      %1761 = vmatprep.subr.mxu0 0.0
      %1762 = vmatpush1.msra.mxu0 0.0
      %1763 = vmatprep.subr.mxu0 0.0
      %1764 = vmatpush1.msra.mxu0 0.0
      %1765 = vmatprep.subr.mxu0 0.0
      %1766 = vmatpush1.msra.mxu0 0.0
      %1767 = vmatprep.subr.mxu0 0.0
      %1768 = vmatpush1.msra.mxu0 0.0
      %1769 = vmatprep.subr.mxu0 0.0
      %1770 = vmatpush1.msra.mxu0 0.0
      %1771 = vmatprep.subr.mxu0 0.0
      %1772 = vmatpush1.msra.mxu0 0.0
      %1773 = vmatprep.mubr.f32.mxu0 0.0
      %1774 = vmatmul.mubr.f32.gmra.mrb[0].mxu0 %v1701
      %v1775 = vpop.f32.mrb[0].mxu0
      %v1776 = vadd.f32 %v1698, %v1775
      %v1777 = vpop.f32.mrb[0].mxu0
      %1778 = vmatprep.mubr.f32.mxu0 0.0
      %1779 = vmatmul.mubr.f32.gmra.mrb[0].mxu0 %v1704
      %v1780 = vpop.f32.mrb[0].mxu0
      %v1781 = vadd.f32 %v1698, %v1780
      %v1782 = vpop.f32.mrb[0].mxu0
      %1783 = vmatprep.mubr.f32.mxu0 0.0
      %1784 = vmatmul.mubr.f32.gmra.mrb[0].mxu0 %v1707
      %v1785 = vpop.f32.mrb[0].mxu0
      %v1786 = vadd.f32 %v1698, %v1785
      %v1787 = vpop.f32.mrb[0].mxu0
      %1788 = vdwg.mxu0
      %v1789 = vadd.f32 %v1776, %v1321
      %v1790 = vadd.f32 %v1781, %v1322
      %v1791 = vadd.f32 %v1786, %v1323
      %v1792 = vld [vmem:[%s13] sm:$0x1]
      %v1793 = vld [vmem:[%s14] sm:$0x1]
      %v1794 = vsel %vm547, %v1789, 0.0
      %1795 = vadd.xlane.f32.xlu0 %v1794
      %v1796 = vpop.xlane.xlu0 %1795
      %v1797 = vsel %vm547, %v1790, 0.0
      %1798 = vadd.xlane.f32.xlu0 %v1797
      %v1799 = vpop.xlane.xlu0 %1798
      %v1800 = vsel %vm547, %v1791, 0.0
      %1801 = vadd.xlane.f32.xlu0 %v1800
      %v1802 = vpop.xlane.xlu0 %1801
      %v1803 = vmul.f32 %v1796, %v1254
      %v1804 = vmul.f32 %v1799, %v1254
      %v1805 = vmul.f32 %v1802, %v1254
      %v1806 = vsub.f32 %v1789, %v1803
      %v1807 = vsub.f32 %v1790, %v1804
      %v1808 = vsub.f32 %v1791, %v1805
      %v1809 = vmul.f32 %v1806, %v1806
      %v1810 = vmul.f32 %v1807, %v1807
      %v1811 = vmul.f32 %v1808, %v1808
      %v1812 = vsel %vm547, %v1809, 0.0
      %1813 = vadd.xlane.f32.xlu0 %v1812
      %v1814 = vpop.xlane.xlu0 %1813
      %v1815 = vsel %vm547, %v1810, 0.0
      %1816 = vadd.xlane.f32.xlu0 %v1815
      %v1817 = vpop.xlane.xlu0 %1816
      %v1818 = vsel %vm547, %v1811, 0.0
      %1819 = vadd.xlane.f32.xlu0 %v1818
      %v1820 = vpop.xlane.xlu0 %1819
      %v1821 = vmul.f32 %v1814, %v1254
      %v1822 = vmul.f32 %v1817, %v1254
      %v1823 = vmul.f32 %v1820, %v1254
      %v1824 = vadd.f32 %v1821, 1e-05
      %v1825 = vadd.f32 %v1822, 1e-05
      %v1826 = vadd.f32 %v1823, 1e-05
      %v1827 = vrsqrt.pop %v1824
      %v1828 = vrsqrt.pop %v1825
      %v1829 = vrsqrt.pop %v1826
      %v1830 = vmul.f32 %v1806, %v1827
      %v1831 = vmul.f32 %v1807, %v1828
      %v1832 = vmul.f32 %v1808, %v1829
      %v1834 = vlaneseq
      %v1835 = vshrl.u32 %v1834, 7
      %v1836 = vsub.s32 0, %v1835
      %v1837 = vrot.slane %v1792, %v1836
      %v1839 = vmul.f32 %v1830, %v1837
      %v1840 = vmul.f32 %v1831, %v1837
      %v1841 = vmul.f32 %v1832, %v1837
      %v1843 = vlaneseq
      %v1844 = vshrl.u32 %v1843, 7
      %v1845 = vsub.s32 0, %v1844
      %v1846 = vrot.slane %v1793, %v1845
      %v1848 = vadd.f32 %v1839, %v1846
      %v1849 = vadd.f32 %v1840, %v1846
      %v1850 = vadd.f32 %v1841, %v1846
      %v1851 = vsel %vm1318, 0.0, %v1848
      %v1852 = vsel %vm1319, 0.0, %v1849
      %v1853 = vsel %vm1320, 0.0, %v1850
      %1854 = vst.msk [vmem:[%s528] sm:$0xff] %vm547, %v1851
      %1855 = vst.msk [vmem:[%s528 + $0x8] sm:$0xff] %vm547, %v1852
      %1856 = vst.msk [vmem:[%s528 + $0x10] sm:$0xff] %vm547, %v1853
      %p1857 = scmp.lt.s32.totalorder %s26, 1
      %s1858 = scalar_select %p1857, %s26, 1
      %s1859 = smul.addr %s1858, 3
      %s1860 = smul.addr %s1859, 8
      %s1861 = scalar_lea.vmem %s15, %s1860
      // Predicated region
      $region81: #{fastspeech2_forward.13} parent=79 // pred_check
        %p1862 = pneg %p374
      $region82: #{fastspeech2_forward.13} parent=79 // pred_check_branch
        %1864 = sbr.rel (%p1862) target = $region84
      $region83: #{fastspeech2_forward.13} parent=79 // pred_region
        _
      $region84: #{fastspeech2_forward.13} parent=79 // pred_fallthru
        _
    $region80: #{fastspeech2_forward.13} parent=5 // pred_fallthru
      _
    %p1865 = scmp.le.s32.totalorder 2, %s21
    // Predicated region
    $region85: #{fastspeech2_forward.13} parent=5 // pred_check
      %p1866 = pneg %p1865
    $region86: #{fastspeech2_forward.13} parent=5 // pred_check_branch
      %1868 = sbr.rel (%p1866) target = $region88
    $region87: #{fastspeech2_forward.13} parent=5 // pred_region
      %s1869 = ssub.s32 %s21, 2
      // Predicated region
      $region89: #{fastspeech2_forward.13} parent=87 // pred_check
        %p1870 = pneg %p380
      $region90: #{fastspeech2_forward.13} parent=87 // pred_check_branch
        %1872 = sbr.rel (%p1870) target = $region92
      $region91: #{fastspeech2_forward.13} parent=87 // pred_region
        %p1873 = scmp.lt.s32.totalorder %s27, 1
        %s1874 = scalar_select %p1873, %s27, 1
        %s1875 = smul.addr %s1874, 3
        %s1876 = smul.addr %s1875, 8
        %s1877 = scalar_lea.vmem %s15, %s1876
      $region92: #{fastspeech2_forward.13} parent=87 // pred_fallthru
        _
    $region88: #{fastspeech2_forward.13} parent=5 // pred_fallthru
      _
  $region6: #{fastspeech2_forward.13} parent=0 // loop_footer
    %s25 = sadd.s32 1, %s21
  $region7: #{fastspeech2_forward.13} parent=0 // loop_footer_branch
    %20 = sbr.rel target = $region3
  $region8: #{fastspeech2_forward.13} parent=0 // loop_exit
    _

// kernel: fastspeech2_forward.15
$region0: #{fastspeech2_forward.15}
  #allocation0 [shape = 'u32[]', space=smem, size = 0x4, offset = 0x4, fixed_abs, tag = 'smem constant byte address 0x4 - core index']
  #allocation1 [shape = 'u32[144,128]{1,0:T(1,128)}', space=vmem, size = 0x12000, scoped, tag = 'internal scratch']
  %s0 = inlined_call_operand.vmem [shape: f32[2,24,32], index: 0, kind: input, shape index: {}]
  %s1 = inlined_call_operand.vmem [shape: f32[32,20], index: 1, kind: input, shape index: {}]
  %s2 = inlined_call_operand.vmem [shape: f32[1,20], index: 2, kind: input, shape index: {}]
  %s3 = inlined_call_operand.vmem [shape: f32[100,32], index: 3, kind: input, shape index: {}]
  %s4 = inlined_call_operand.vmem [shape: f32[1,32], index: 4, kind: input, shape index: {}]
  %s5 = inlined_call_operand.vmem [shape: f32[160,32], index: 5, kind: input, shape index: {}]
  %s6 = inlined_call_operand.vmem [shape: f32[1,32], index: 6, kind: input, shape index: {}]
  %s7 = inlined_call_operand.vmem [shape: f32[160,32], index: 7, kind: input, shape index: {}]
  %s8 = inlined_call_operand.vmem [shape: f32[1,32], index: 8, kind: input, shape index: {}]
  %s9 = inlined_call_operand.vmem [shape: f32[160,32], index: 9, kind: input, shape index: {}]
  %s10 = inlined_call_operand.vmem [shape: f32[1,32], index: 10, kind: input, shape index: {}]
  %s11 = inlined_call_operand.vmem [shape: f32[160,20], index: 11, kind: input, shape index: {}]
  %s12 = inlined_call_operand.vmem [shape: f32[1,20], index: 12, kind: input, shape index: {}]
  %s13 = inlined_call_operand.vmem [shape: f32[2,24,20], index: 13, kind: output, shape index: {0}]
  %s14 = inlined_call_operand.vmem [shape: f32[2,24,20], index: 14, kind: output, shape index: {1}]
  %15 = xla_tuple %s13, %s14
  %s16 = sld [smem:[#allocation0]]
  $region93: #{fastspeech2_forward.15} parent=0
    _
  %s18 = ssub.s32 1, %s16
  %s19 = scalar_select 0, %s18, %s16
  loop: start=0, step=1, limit=4
  $region2: #{fastspeech2_forward.15} parent=0 // loop_pre_header
    _
  $region3: #{fastspeech2_forward.15} parent=0 // loop_header
    %s21 = sphi 0, %s25
    %p22 = scmp.ge.s32.totalorder %s21, 4
    %s31 = sphi 0, %s33
    %s34 = sphi 0, %s31
    %s35 = sphi 0, %s34
    %s51 = sphi 0, %s35
    %s55 = sphi 0, %s55
    %s57 = sphi 0, %s55
    %s58 = sphi 0, %s57
    %s72 = sphi 0, %s58
    %s76 = sphi 0, %s76
    %s78 = sphi 0, %s76
    %s79 = sphi 0, %s78
    %s93 = sphi 0, %s79
    %s97 = sphi 0, %s97
    %s99 = sphi 0, %s97
    %s100 = sphi 0, %s99
    %s114 = sphi 0, %s100
    %s118 = sphi 0, %s118
    %s120 = sphi 0, %s118
    %s121 = sphi 0, %s120
    %s135 = sphi 0, %s121
    %s139 = sphi 0, %s139
    %s141 = sphi 0, %s139
    %s142 = sphi 0, %s141
    %s156 = sphi 0, %s142
    %s160 = sphi 0, %s160
    %s162 = sphi 0, %s160
    %s163 = sphi 0, %s162
    %s177 = sphi 0, %s163
    %s181 = sphi 0, %s181
    %s183 = sphi 0, %s181
    %s184 = sphi 0, %s183
    %s198 = sphi 0, %s184
    %s202 = sphi 0, %s202
    %s204 = sphi 0, %s202
    %s205 = sphi 0, %s204
    %s219 = sphi 0, %s205
    %s223 = sphi 0, %s223
    %s225 = sphi 0, %s223
    %s226 = sphi 0, %s225
    %s240 = sphi 0, %s226
    %s244 = sphi 0, %s244
    %s246 = sphi 0, %s244
    %s247 = sphi 0, %s246
    %s261 = sphi 0, %s247
    %s265 = sphi 0, %s265
    %s267 = sphi 0, %s265
    %s268 = sphi 0, %s267
    %s282 = sphi 0, %s268
    %s286 = sphi 0, %s286
    %s288 = sphi 0, %s286
    %s289 = sphi 0, %s288
    %s303 = sphi 0, %s289
    %s309 = sphi 0, %s311
    %s312 = sphi 0, %s309
    %s313 = sphi 0, %s312
    %s329 = sphi 0, %s313
    %s335 = sphi 0, %s337
    %s338 = sphi 0, %s335
    %s339 = sphi 0, %s338
    %s355 = sphi 0, %s339
  $region4: #{fastspeech2_forward.15} parent=0 // loop_header_branch
    %24 = sbr.rel (%p22) target = $region8
  $region5: #{fastspeech2_forward.15} parent=0 // loop_body
    %s26 = ssub.s32 %s21, 1
    %s27 = ssub.s32 %s21, 2
    %s28 = sadd.s32 %s21, 1
    %s29 = ssub.s32 %s21, %s28
    %p30 = scmp.eq.s32.totalorder %s29, 0
    %s32 = sadd.s32 %s31, 1
    %s33 = scalar_select %p30, %s31, %s32
    %p36 = pneg %p30
    %p37 = scmp.eq.s32.totalorder %s21, 1
    %p38 = por %p36, %p37
    %p39 = scmp.ne.s32.totalorder %s31, %s34
    %p40 = scmp.eq.s32.totalorder %s21, 0
    %p41 = por %p39, %p40
    %p42 = scmp.ne.s32.totalorder %s31, %s34
    %p43 = scmp.eq.s32.totalorder %s26, 1
    %p44 = por %p42, %p43
    %p45 = scmp.ne.s32.totalorder %s34, %s35
    %p46 = scmp.eq.s32.totalorder %s26, 0
    %p47 = por %p45, %p46
    %p48 = scmp.ne.s32.totalorder %s34, %s35
    %p49 = scmp.eq.s32.totalorder %s27, 1
    %p50 = por %p48, %p49
    %p52 = scmp.ne.s32.totalorder %s35, %s51
    %p53 = scmp.eq.s32.totalorder %s27, 0
    %p54 = por %p52, %p53
    %s56 = sadd.s32 %s55, 1
    %p59 = scmp.eq.s32.totalorder %s21, 1
    %p60 = scmp.ne.s32.totalorder %s55, %s57
    %p61 = scmp.eq.s32.totalorder %s21, 0
    %p62 = por %p60, %p61
    %p63 = scmp.ne.s32.totalorder %s55, %s57
    %p64 = scmp.eq.s32.totalorder %s26, 1
    %p65 = por %p63, %p64
    %p66 = scmp.ne.s32.totalorder %s57, %s58
    %p67 = scmp.eq.s32.totalorder %s26, 0
    %p68 = por %p66, %p67
    %p69 = scmp.ne.s32.totalorder %s57, %s58
    %p70 = scmp.eq.s32.totalorder %s27, 1
    %p71 = por %p69, %p70
    %p73 = scmp.ne.s32.totalorder %s58, %s72
    %p74 = scmp.eq.s32.totalorder %s27, 0
    %p75 = por %p73, %p74
    %s77 = sadd.s32 %s76, 1
    %p80 = scmp.eq.s32.totalorder %s21, 1
    %p81 = scmp.ne.s32.totalorder %s76, %s78
    %p82 = scmp.eq.s32.totalorder %s21, 0
    %p83 = por %p81, %p82
    %p84 = scmp.ne.s32.totalorder %s76, %s78
    %p85 = scmp.eq.s32.totalorder %s26, 1
    %p86 = por %p84, %p85
    %p87 = scmp.ne.s32.totalorder %s78, %s79
    %p88 = scmp.eq.s32.totalorder %s26, 0
    %p89 = por %p87, %p88
    %p90 = scmp.ne.s32.totalorder %s78, %s79
    %p91 = scmp.eq.s32.totalorder %s27, 1
    %p92 = por %p90, %p91
    %p94 = scmp.ne.s32.totalorder %s79, %s93
    %p95 = scmp.eq.s32.totalorder %s27, 0
    %p96 = por %p94, %p95
    %s98 = sadd.s32 %s97, 1
    %p101 = scmp.eq.s32.totalorder %s21, 1
    %p102 = scmp.ne.s32.totalorder %s97, %s99
    %p103 = scmp.eq.s32.totalorder %s21, 0
    %p104 = por %p102, %p103
    %p105 = scmp.ne.s32.totalorder %s97, %s99
    %p106 = scmp.eq.s32.totalorder %s26, 1
    %p107 = por %p105, %p106
    %p108 = scmp.ne.s32.totalorder %s99, %s100
    %p109 = scmp.eq.s32.totalorder %s26, 0
    %p110 = por %p108, %p109
    %p111 = scmp.ne.s32.totalorder %s99, %s100
    %p112 = scmp.eq.s32.totalorder %s27, 1
    %p113 = por %p111, %p112
    %p115 = scmp.ne.s32.totalorder %s100, %s114
    %p116 = scmp.eq.s32.totalorder %s27, 0
    %p117 = por %p115, %p116
    %s119 = sadd.s32 %s118, 1
    %p122 = scmp.eq.s32.totalorder %s21, 1
    %p123 = scmp.ne.s32.totalorder %s118, %s120
    %p124 = scmp.eq.s32.totalorder %s21, 0
    %p125 = por %p123, %p124
    %p126 = scmp.ne.s32.totalorder %s118, %s120
    %p127 = scmp.eq.s32.totalorder %s26, 1
    %p128 = por %p126, %p127
    %p129 = scmp.ne.s32.totalorder %s120, %s121
    %p130 = scmp.eq.s32.totalorder %s26, 0
    %p131 = por %p129, %p130
    %p132 = scmp.ne.s32.totalorder %s120, %s121
    %p133 = scmp.eq.s32.totalorder %s27, 1
    %p134 = por %p132, %p133
    %p136 = scmp.ne.s32.totalorder %s121, %s135
    %p137 = scmp.eq.s32.totalorder %s27, 0
    %p138 = por %p136, %p137
    %s140 = sadd.s32 %s139, 1
    %p143 = scmp.eq.s32.totalorder %s21, 1
    %p144 = scmp.ne.s32.totalorder %s139, %s141
    %p145 = scmp.eq.s32.totalorder %s21, 0
    %p146 = por %p144, %p145
    %p147 = scmp.ne.s32.totalorder %s139, %s141
    %p148 = scmp.eq.s32.totalorder %s26, 1
    %p149 = por %p147, %p148
    %p150 = scmp.ne.s32.totalorder %s141, %s142
    %p151 = scmp.eq.s32.totalorder %s26, 0
    %p152 = por %p150, %p151
    %p153 = scmp.ne.s32.totalorder %s141, %s142
    %p154 = scmp.eq.s32.totalorder %s27, 1
    %p155 = por %p153, %p154
    %p157 = scmp.ne.s32.totalorder %s142, %s156
    %p158 = scmp.eq.s32.totalorder %s27, 0
    %p159 = por %p157, %p158
    %s161 = sadd.s32 %s160, 1
    %p164 = scmp.eq.s32.totalorder %s21, 1
    %p165 = scmp.ne.s32.totalorder %s160, %s162
    %p166 = scmp.eq.s32.totalorder %s21, 0
    %p167 = por %p165, %p166
    %p168 = scmp.ne.s32.totalorder %s160, %s162
    %p169 = scmp.eq.s32.totalorder %s26, 1
    %p170 = por %p168, %p169
    %p171 = scmp.ne.s32.totalorder %s162, %s163
    %p172 = scmp.eq.s32.totalorder %s26, 0
    %p173 = por %p171, %p172
    %p174 = scmp.ne.s32.totalorder %s162, %s163
    %p175 = scmp.eq.s32.totalorder %s27, 1
    %p176 = por %p174, %p175
    %p178 = scmp.ne.s32.totalorder %s163, %s177
    %p179 = scmp.eq.s32.totalorder %s27, 0
    %p180 = por %p178, %p179
    %s182 = sadd.s32 %s181, 1
    %p185 = scmp.eq.s32.totalorder %s21, 1
    %p186 = scmp.ne.s32.totalorder %s181, %s183
    %p187 = scmp.eq.s32.totalorder %s21, 0
    %p188 = por %p186, %p187
    %p189 = scmp.ne.s32.totalorder %s181, %s183
    %p190 = scmp.eq.s32.totalorder %s26, 1
    %p191 = por %p189, %p190
    %p192 = scmp.ne.s32.totalorder %s183, %s184
    %p193 = scmp.eq.s32.totalorder %s26, 0
    %p194 = por %p192, %p193
    %p195 = scmp.ne.s32.totalorder %s183, %s184
    %p196 = scmp.eq.s32.totalorder %s27, 1
    %p197 = por %p195, %p196
    %p199 = scmp.ne.s32.totalorder %s184, %s198
    %p200 = scmp.eq.s32.totalorder %s27, 0
    %p201 = por %p199, %p200
    %s203 = sadd.s32 %s202, 1
    %p206 = scmp.eq.s32.totalorder %s21, 1
    %p207 = scmp.ne.s32.totalorder %s202, %s204
    %p208 = scmp.eq.s32.totalorder %s21, 0
    %p209 = por %p207, %p208
    %p210 = scmp.ne.s32.totalorder %s202, %s204
    %p211 = scmp.eq.s32.totalorder %s26, 1
    %p212 = por %p210, %p211
    %p213 = scmp.ne.s32.totalorder %s204, %s205
    %p214 = scmp.eq.s32.totalorder %s26, 0
    %p215 = por %p213, %p214
    %p216 = scmp.ne.s32.totalorder %s204, %s205
    %p217 = scmp.eq.s32.totalorder %s27, 1
    %p218 = por %p216, %p217
    %p220 = scmp.ne.s32.totalorder %s205, %s219
    %p221 = scmp.eq.s32.totalorder %s27, 0
    %p222 = por %p220, %p221
    %s224 = sadd.s32 %s223, 1
    %p227 = scmp.eq.s32.totalorder %s21, 1
    %p228 = scmp.ne.s32.totalorder %s223, %s225
    %p229 = scmp.eq.s32.totalorder %s21, 0
    %p230 = por %p228, %p229
    %p231 = scmp.ne.s32.totalorder %s223, %s225
    %p232 = scmp.eq.s32.totalorder %s26, 1
    %p233 = por %p231, %p232
    %p234 = scmp.ne.s32.totalorder %s225, %s226
    %p235 = scmp.eq.s32.totalorder %s26, 0
    %p236 = por %p234, %p235
    %p237 = scmp.ne.s32.totalorder %s225, %s226
    %p238 = scmp.eq.s32.totalorder %s27, 1
    %p239 = por %p237, %p238
    %p241 = scmp.ne.s32.totalorder %s226, %s240
    %p242 = scmp.eq.s32.totalorder %s27, 0
    %p243 = por %p241, %p242
    %s245 = sadd.s32 %s244, 1
    %p248 = scmp.eq.s32.totalorder %s21, 1
    %p249 = scmp.ne.s32.totalorder %s244, %s246
    %p250 = scmp.eq.s32.totalorder %s21, 0
    %p251 = por %p249, %p250
    %p252 = scmp.ne.s32.totalorder %s244, %s246
    %p253 = scmp.eq.s32.totalorder %s26, 1
    %p254 = por %p252, %p253
    %p255 = scmp.ne.s32.totalorder %s246, %s247
    %p256 = scmp.eq.s32.totalorder %s26, 0
    %p257 = por %p255, %p256
    %p258 = scmp.ne.s32.totalorder %s246, %s247
    %p259 = scmp.eq.s32.totalorder %s27, 1
    %p260 = por %p258, %p259
    %p262 = scmp.ne.s32.totalorder %s247, %s261
    %p263 = scmp.eq.s32.totalorder %s27, 0
    %p264 = por %p262, %p263
    %s266 = sadd.s32 %s265, 1
    %p269 = scmp.eq.s32.totalorder %s21, 1
    %p270 = scmp.ne.s32.totalorder %s265, %s267
    %p271 = scmp.eq.s32.totalorder %s21, 0
    %p272 = por %p270, %p271
    %p273 = scmp.ne.s32.totalorder %s265, %s267
    %p274 = scmp.eq.s32.totalorder %s26, 1
    %p275 = por %p273, %p274
    %p276 = scmp.ne.s32.totalorder %s267, %s268
    %p277 = scmp.eq.s32.totalorder %s26, 0
    %p278 = por %p276, %p277
    %p279 = scmp.ne.s32.totalorder %s267, %s268
    %p280 = scmp.eq.s32.totalorder %s27, 1
    %p281 = por %p279, %p280
    %p283 = scmp.ne.s32.totalorder %s268, %s282
    %p284 = scmp.eq.s32.totalorder %s27, 0
    %p285 = por %p283, %p284
    %s287 = sadd.s32 %s286, 1
    %p290 = scmp.eq.s32.totalorder %s21, 1
    %p291 = scmp.ne.s32.totalorder %s286, %s288
    %p292 = scmp.eq.s32.totalorder %s21, 0
    %p293 = por %p291, %p292
    %p294 = scmp.ne.s32.totalorder %s286, %s288
    %p295 = scmp.eq.s32.totalorder %s26, 1
    %p296 = por %p294, %p295
    %p297 = scmp.ne.s32.totalorder %s288, %s289
    %p298 = scmp.eq.s32.totalorder %s26, 0
    %p299 = por %p297, %p298
    %p300 = scmp.ne.s32.totalorder %s288, %s289
    %p301 = scmp.eq.s32.totalorder %s27, 1
    %p302 = por %p300, %p301
    %p304 = scmp.ne.s32.totalorder %s289, %s303
    %p305 = scmp.eq.s32.totalorder %s27, 0
    %p306 = por %p304, %p305
    %s307 = ssub.s32 %s21, %s28
    %p308 = scmp.eq.s32.totalorder %s307, 0
    %s310 = sadd.s32 %s309, 1
    %s311 = scalar_select %p308, %s309, %s310
    %p314 = pneg %p308
    %p315 = scmp.eq.s32.totalorder %s21, 1
    %p316 = por %p314, %p315
    %p317 = scmp.ne.s32.totalorder %s309, %s312
    %p318 = scmp.eq.s32.totalorder %s21, 0
    %p319 = por %p317, %p318
    %p320 = scmp.ne.s32.totalorder %s309, %s312
    %p321 = scmp.eq.s32.totalorder %s26, 1
    %p322 = por %p320, %p321
    %p323 = scmp.ne.s32.totalorder %s312, %s313
    %p324 = scmp.eq.s32.totalorder %s26, 0
    %p325 = por %p323, %p324
    %p326 = scmp.ne.s32.totalorder %s312, %s313
    %p327 = scmp.eq.s32.totalorder %s27, 1
    %p328 = por %p326, %p327
    %p330 = scmp.ne.s32.totalorder %s313, %s329
    %p331 = scmp.eq.s32.totalorder %s27, 0
    %p332 = por %p330, %p331
    %s333 = ssub.s32 %s21, %s28
    %p334 = scmp.eq.s32.totalorder %s333, 0
    %s336 = sadd.s32 %s335, 1
    %s337 = scalar_select %p334, %s335, %s336
    %p340 = pneg %p334
    %p341 = scmp.eq.s32.totalorder %s21, 1
    %p342 = por %p340, %p341
    %p343 = scmp.ne.s32.totalorder %s335, %s338
    %p344 = scmp.eq.s32.totalorder %s21, 0
    %p345 = por %p343, %p344
    %p346 = scmp.ne.s32.totalorder %s335, %s338
    %p347 = scmp.eq.s32.totalorder %s26, 1
    %p348 = por %p346, %p347
    %p349 = scmp.ne.s32.totalorder %s338, %s339
    %p350 = scmp.eq.s32.totalorder %s26, 0
    %p351 = por %p349, %p350
    %p352 = scmp.ne.s32.totalorder %s338, %s339
    %p353 = scmp.eq.s32.totalorder %s27, 1
    %p354 = por %p352, %p353
    %p356 = scmp.ne.s32.totalorder %s339, %s355
    %p357 = scmp.eq.s32.totalorder %s27, 0
    %p358 = por %p356, %p357
    %p359 = scmp.le.s32.totalorder 1, %s21
    %p360 = scmp.lt.s32.totalorder %s21, 3
    %p361 = pnand %p359, %p360
    %p362 = pneg %p361
    // Predicated region
    $region9: #{fastspeech2_forward.15} parent=5 // pred_check
      _
    $region10: #{fastspeech2_forward.15} parent=5 // pred_check_branch
      %364 = sbr.rel (%p361) target = $region12
    $region11: #{fastspeech2_forward.15} parent=5 // pred_region
      %s365 = ssub.s32 %s21, 1
      // Predicated region
      $region13: #{fastspeech2_forward.15} parent=11 // pred_check
        %p366 = pneg %p68
      $region14: #{fastspeech2_forward.15} parent=11 // pred_check_branch
        %368 = sbr.rel (%p366) target = $region16
      $region15: #{fastspeech2_forward.15} parent=11 // pred_region
        _
      $region16: #{fastspeech2_forward.15} parent=11 // pred_fallthru
        _
      // Predicated region
      $region17: #{fastspeech2_forward.15} parent=11 // pred_check
        %p369 = pneg %p89
      $region18: #{fastspeech2_forward.15} parent=11 // pred_check_branch
        %371 = sbr.rel (%p369) target = $region20
      $region19: #{fastspeech2_forward.15} parent=11 // pred_region
        _
      $region20: #{fastspeech2_forward.15} parent=11 // pred_fallthru
        _
      // Predicated region
      $region21: #{fastspeech2_forward.15} parent=11 // pred_check
        %p372 = pneg %p110
      $region22: #{fastspeech2_forward.15} parent=11 // pred_check_branch
        %374 = sbr.rel (%p372) target = $region24
      $region23: #{fastspeech2_forward.15} parent=11 // pred_region
        _
      $region24: #{fastspeech2_forward.15} parent=11 // pred_fallthru
        _
      // Predicated region
      $region25: #{fastspeech2_forward.15} parent=11 // pred_check
        %p375 = pneg %p131
      $region26: #{fastspeech2_forward.15} parent=11 // pred_check_branch
        %377 = sbr.rel (%p375) target = $region28
      $region27: #{fastspeech2_forward.15} parent=11 // pred_region
        _
      $region28: #{fastspeech2_forward.15} parent=11 // pred_fallthru
        _
      // Predicated region
      $region29: #{fastspeech2_forward.15} parent=11 // pred_check
        %p378 = pneg %p152
      $region30: #{fastspeech2_forward.15} parent=11 // pred_check_branch
        %380 = sbr.rel (%p378) target = $region32
      $region31: #{fastspeech2_forward.15} parent=11 // pred_region
        _
      $region32: #{fastspeech2_forward.15} parent=11 // pred_fallthru
        _
      // Predicated region
      $region33: #{fastspeech2_forward.15} parent=11 // pred_check
        %p381 = pneg %p173
      $region34: #{fastspeech2_forward.15} parent=11 // pred_check_branch
        %383 = sbr.rel (%p381) target = $region36
      $region35: #{fastspeech2_forward.15} parent=11 // pred_region
        _
      $region36: #{fastspeech2_forward.15} parent=11 // pred_fallthru
        _
      // Predicated region
      $region37: #{fastspeech2_forward.15} parent=11 // pred_check
        %p384 = pneg %p194
      $region38: #{fastspeech2_forward.15} parent=11 // pred_check_branch
        %386 = sbr.rel (%p384) target = $region40
      $region39: #{fastspeech2_forward.15} parent=11 // pred_region
        _
      $region40: #{fastspeech2_forward.15} parent=11 // pred_fallthru
        _
      // Predicated region
      $region41: #{fastspeech2_forward.15} parent=11 // pred_check
        %p387 = pneg %p215
      $region42: #{fastspeech2_forward.15} parent=11 // pred_check_branch
        %389 = sbr.rel (%p387) target = $region44
      $region43: #{fastspeech2_forward.15} parent=11 // pred_region
        _
      $region44: #{fastspeech2_forward.15} parent=11 // pred_fallthru
        _
      // Predicated region
      $region45: #{fastspeech2_forward.15} parent=11 // pred_check
        %p390 = pneg %p236
      $region46: #{fastspeech2_forward.15} parent=11 // pred_check_branch
        %392 = sbr.rel (%p390) target = $region48
      $region47: #{fastspeech2_forward.15} parent=11 // pred_region
        _
      $region48: #{fastspeech2_forward.15} parent=11 // pred_fallthru
        _
      // Predicated region
      $region49: #{fastspeech2_forward.15} parent=11 // pred_check
        %p393 = pneg %p257
      $region50: #{fastspeech2_forward.15} parent=11 // pred_check_branch
        %395 = sbr.rel (%p393) target = $region52
      $region51: #{fastspeech2_forward.15} parent=11 // pred_region
        _
      $region52: #{fastspeech2_forward.15} parent=11 // pred_fallthru
        _
      // Predicated region
      $region53: #{fastspeech2_forward.15} parent=11 // pred_check
        %p396 = pneg %p278
      $region54: #{fastspeech2_forward.15} parent=11 // pred_check_branch
        %398 = sbr.rel (%p396) target = $region56
      $region55: #{fastspeech2_forward.15} parent=11 // pred_region
        _
      $region56: #{fastspeech2_forward.15} parent=11 // pred_fallthru
        _
      // Predicated region
      $region57: #{fastspeech2_forward.15} parent=11 // pred_check
        %p399 = pneg %p299
      $region58: #{fastspeech2_forward.15} parent=11 // pred_check_branch
        %401 = sbr.rel (%p399) target = $region60
      $region59: #{fastspeech2_forward.15} parent=11 // pred_region
        _
      $region60: #{fastspeech2_forward.15} parent=11 // pred_fallthru
        _
    $region12: #{fastspeech2_forward.15} parent=5 // pred_fallthru
      _
    %p402 = scmp.lt.s32.totalorder %s21, 2
    // Predicated region
    $region61: #{fastspeech2_forward.15} parent=5 // pred_check
      %p403 = pneg %p402
    $region62: #{fastspeech2_forward.15} parent=5 // pred_check_branch
      %405 = sbr.rel (%p403) target = $region64
    $region63: #{fastspeech2_forward.15} parent=5 // pred_region
      // Predicated region
      $region65: #{fastspeech2_forward.15} parent=63 // pred_check
        %p406 = pneg %p41
      $region66: #{fastspeech2_forward.15} parent=63 // pred_check_branch
        %408 = sbr.rel (%p406) target = $region68
      $region67: #{fastspeech2_forward.15} parent=63 // pred_region
        %p409 = scmp.lt.s32.totalorder %s21, 1
        %s410 = scalar_select %p409, %s21, 1
        %s411 = smul.addr %s410, 3
        %s412 = smul.addr %s411, 8
        %s413 = scalar_lea.vmem %s0, %s412
      $region68: #{fastspeech2_forward.15} parent=63 // pred_fallthru
        _
    $region64: #{fastspeech2_forward.15} parent=5 // pred_fallthru
      _
    %p414 = scmp.le.s32.totalorder 1, %s21
    %p415 = scmp.lt.s32.totalorder %s21, 3
    %p416 = pnand %p414, %p415
    %p417 = pneg %p416
    // Predicated region
    $region69: #{fastspeech2_forward.15} parent=5 // pred_check
      _
    $region70: #{fastspeech2_forward.15} parent=5 // pred_check_branch
      %419 = sbr.rel (%p416) target = $region72
    $region71: #{fastspeech2_forward.15} parent=5 // pred_region
      %s420 = ssub.s32 %s21, 1
      %p421 = scmp.lt.s32.totalorder %s26, 1
      %s422 = scalar_select %p421, %s26, 1
      %s423 = smul.addr %s422, 3
      %s424 = smul.addr %s423, 8
      %s425 = scalar_lea.vmem %s0, %s424
      %p426 = pneg %p47
      %p427 = pneg %p44
      %p428 = pneg %p68
      %p429 = pneg %p65
      %p430 = pneg %p89
      %p431 = pneg %p86
      %p432 = pneg %p110
      %p433 = pneg %p107
      %p434 = pneg %p131
      %p435 = pneg %p128
      %p436 = pneg %p152
      %p437 = pneg %p149
      %p438 = pneg %p173
      %p439 = pneg %p170
      %p440 = pneg %p194
      %p441 = pneg %p191
      %p442 = pneg %p215
      %p443 = pneg %p212
      %p444 = pneg %p236
      %p445 = pneg %p233
      %p446 = pneg %p257
      %p447 = pneg %p254
      %p448 = pneg %p278
      %p449 = pneg %p275
      %p450 = pneg %p299
      %p451 = pneg %p296
      %p452 = pneg %p325
      %p453 = pneg %p322
      %p454 = scmp.lt.s32.totalorder %s26, 1
      %s455 = scalar_select %p454, %s26, 1
      %s456 = smul.addr %s455, 3
      %s457 = smul.addr %s456, 8
      %s458 = scalar_lea.vmem %s13, %s457
      %p459 = pneg %p351
      %p460 = pneg %p348
      %p461 = scmp.lt.s32.totalorder %s26, 1
      %s462 = scalar_select %p461, %s26, 1
      %s463 = smul.addr %s462, 3
      %s464 = smul.addr %s463, 8
      %s465 = scalar_lea.vmem %s14, %s464
      %p466 = scmp.lt.s32.totalorder %s26, 1
      %s467 = scalar_select %p466, %s26, 1
      %s468 = smul.addr %s467, 3
      %s469 = smul.addr %s468, 8
      %s470 = scalar_lea.vmem %s0, %s469
      %p471 = scmp.lt.s32.totalorder %s26, 1
      %s472 = scalar_select %p471, %s26, 1
      %s473 = smul.addr %s472, 3
      %s474 = smul.addr %s473, 8
      %s475 = scalar_lea.vmem %s13, %s474
      %p476 = scmp.lt.s32.totalorder %s26, 1
      %s477 = scalar_select %p476, %s26, 1
      %s478 = smul.addr %s477, 3
      %s479 = smul.addr %s478, 8
      %s480 = scalar_lea.vmem %s14, %s479
      %v481 = vld [vmem:[%s470] sm:$0xff]
      %v482 = vld [vmem:[%s470 + $0x8] sm:$0xff]
      %v483 = vld [vmem:[%s470 + $0x10] sm:$0xff]
      %v484 = vld [vmem:[%s1] sm:$0xff]
      %v485 = vld [vmem:[%s1 + $0x8] sm:$0xff]
      %v486 = vld [vmem:[%s1 + $0x10] sm:$0xff]
      %v487 = vld [vmem:[%s1 + $0x18] sm:$0xff]
      %v488 = vld [vmem:[%s2] sm:$0x1]
      %v490 = vlaneseq
      %v491 = vshrl.u32 %v490, 7
      %v492 = vsub.s32 0, %v491
      %v493 = vrot.slane %v488, %v492
      %vm495 = vcmask 261120
      %v497 = vsel %vm495, %v481, 0
      %v500 = vsel %vm495, %v482, 0
      %v503 = vsel %vm495, %v483, 0
      %505 = vmatprep.subr.mxu0 0.0
      %506 = vmatpush1.msra.mxu0 %v484
      %507 = vmatprep.subr.mxu0 0.0
      %508 = vmatpush1.msra.mxu0 %v485
      %509 = vmatprep.subr.mxu0 0.0
      %510 = vmatpush1.msra.mxu0 %v486
      %511 = vmatprep.subr.mxu0 0.0
      %512 = vmatpush1.msra.mxu0 %v487
      %513 = vmatprep.subr.mxu0 0.0
      %514 = vmatpush1.msra.mxu0 0.0
      %515 = vmatprep.subr.mxu0 0.0
      %516 = vmatpush1.msra.mxu0 0.0
      %517 = vmatprep.subr.mxu0 0.0
      %518 = vmatpush1.msra.mxu0 0.0
      %519 = vmatprep.subr.mxu0 0.0
      %520 = vmatpush1.msra.mxu0 0.0
      %521 = vmatprep.subr.mxu0 0.0
      %522 = vmatpush1.msra.mxu0 0.0
      %523 = vmatprep.subr.mxu0 0.0
      %524 = vmatpush1.msra.mxu0 0.0
      %525 = vmatprep.subr.mxu0 0.0
      %526 = vmatpush1.msra.mxu0 0.0
      %527 = vmatprep.subr.mxu0 0.0
      %528 = vmatpush1.msra.mxu0 0.0
      %529 = vmatprep.subr.mxu0 0.0
      %530 = vmatpush1.msra.mxu0 0.0
      %531 = vmatprep.subr.mxu0 0.0
      %532 = vmatpush1.msra.mxu0 0.0
      %533 = vmatprep.subr.mxu0 0.0
      %534 = vmatpush1.msra.mxu0 0.0
      %535 = vmatprep.subr.mxu0 0.0
      %536 = vmatpush1.msra.mxu0 0.0
      %537 = vmatprep.subr.mxu0 0.0
      %538 = vmatpush1.msra.mxu0 0.0
      %539 = vmatprep.subr.mxu0 0.0
      %540 = vmatpush1.msra.mxu0 0.0
      %541 = vmatprep.subr.mxu0 0.0
      %542 = vmatpush1.msra.mxu0 0.0
      %543 = vmatprep.subr.mxu0 0.0
      %544 = vmatpush1.msra.mxu0 0.0
      %545 = vmatprep.subr.mxu0 0.0
      %546 = vmatpush1.msra.mxu0 0.0
      %547 = vmatprep.subr.mxu0 0.0
      %548 = vmatpush1.msra.mxu0 0.0
      %549 = vmatprep.subr.mxu0 0.0
      %550 = vmatpush1.msra.mxu0 0.0
      %551 = vmatprep.subr.mxu0 0.0
      %552 = vmatpush1.msra.mxu0 0.0
      %553 = vmatprep.subr.mxu0 0.0
      %554 = vmatpush1.msra.mxu0 0.0
      %555 = vmatprep.subr.mxu0 0.0
      %556 = vmatpush1.msra.mxu0 0.0
      %557 = vmatprep.subr.mxu0 0.0
      %558 = vmatpush1.msra.mxu0 0.0
      %559 = vmatprep.subr.mxu0 0.0
      %560 = vmatpush1.msra.mxu0 0.0
      %561 = vmatprep.subr.mxu0 0.0
      %562 = vmatpush1.msra.mxu0 0.0
      %563 = vmatprep.subr.mxu0 0.0
      %564 = vmatpush1.msra.mxu0 0.0
      %565 = vmatprep.subr.mxu0 0.0
      %566 = vmatpush1.msra.mxu0 0.0
      %567 = vmatprep.subr.mxu0 0.0
      %568 = vmatpush1.msra.mxu0 0.0
      %569 = vmatprep.mubr.f32.mxu0 0.0
      %570 = vmatmul.mubr.f32.gmra.mrb[0].mxu0 %v497
      %v571 = vpop.f32.mrb[0].mxu0
      %v572 = vadd.f32 %v493, %v571
      %v573 = vpop.f32.mrb[0].mxu0
      %574 = vmatprep.mubr.f32.mxu0 0.0
      %575 = vmatmul.mubr.f32.gmra.mrb[0].mxu0 %v500
      %v576 = vpop.f32.mrb[0].mxu0
      %v577 = vadd.f32 %v493, %v576
      %v578 = vpop.f32.mrb[0].mxu0
      %579 = vmatprep.mubr.f32.mxu0 0.0
      %580 = vmatmul.mubr.f32.gmra.mrb[0].mxu0 %v503
      %v581 = vpop.f32.mrb[0].mxu0
      %v582 = vadd.f32 %v493, %v581
      %v583 = vpop.f32.mrb[0].mxu0
      %584 = vdwg.mxu0
      %v585 = vld [vmem:[%s3] sm:$0xff]
      %v586 = vld [vmem:[%s3 + $0x8] sm:$0xff]
      %v587 = vld [vmem:[%s3 + $0x10] sm:$0xff]
      %v588 = vld [vmem:[%s3 + $0x18] sm:$0xff]
      %v589 = vld [vmem:[%s3 + $0x20] sm:$0xff]
      %v590 = vld [vmem:[%s3 + $0x28] sm:$0xff]
      %v591 = vld [vmem:[%s3 + $0x30] sm:$0xff]
      %v592 = vld [vmem:[%s3 + $0x38] sm:$0xff]
      %v593 = vld [vmem:[%s3 + $0x40] sm:$0xff]
      %v594 = vld [vmem:[%s3 + $0x48] sm:$0xff]
      %v595 = vld [vmem:[%s3 + $0x50] sm:$0xff]
      %v596 = vld [vmem:[%s3 + $0x58] sm:$0xff]
      %v597 = vld [vmem:[%s3 + $0x60] sm:$0xf]
      %v598 = vld [vmem:[%s4] sm:$0x1]
      %vm602 = vcmask 1041408
      %v603 = vrot.slane %v572, 6
      %v604 = vrot.slane %v577, 6
      %v605 = vsel %vm602, %v603, %v604
      %v606 = vrot.slane %v582, 6
      %v607 = vsel %vm602, %v604, %v606
      %v612 = vsel %vm602, 0.0, %v603
      %v613 = vsel %vm602, %v606, 0.0
      %vm616 = vcmask 1046528
      %v617 = vrot.slane %v612, 1
      %v618 = vrot.slane %v605, 1
      %v619 = vsel %vm616, %v617, %v618
      %v620 = vrot.slane %v607, 1
      %v621 = vsel %vm616, %v618, %v620
      %v622 = vrot.slane %v613, 1
      %v623 = vsel %vm616, %v620, %v622
      %624 = vrot.lane.b32.xlu0 %v619, 20
      %v625 = vpop.permute.xlu0 %624
      %626 = vrot.lane.b32.xlu0 %v621, 20
      %v627 = vpop.permute.xlu0 %626
      %628 = vrot.lane.b32.xlu0 %v623, 20
      %v629 = vpop.permute.xlu0 %628
      %vm633 = vcmask 1045504
      %v634 = vrot.slane %v612, 2
      %v635 = vrot.slane %v605, 2
      %v636 = vsel %vm633, %v634, %v635
      %v637 = vrot.slane %v607, 2
      %v638 = vsel %vm633, %v635, %v637
      %v639 = vrot.slane %v613, 2
      %v640 = vsel %vm633, %v637, %v639
      %641 = vrot.lane.b32.xlu0 %v636, 40
      %v642 = vpop.permute.xlu0 %641
      %643 = vrot.lane.b32.xlu0 %v638, 40
      %v644 = vpop.permute.xlu0 %643
      %645 = vrot.lane.b32.xlu0 %v640, 40
      %v646 = vpop.permute.xlu0 %645
      %vm650 = vcmask 1044480
      %v651 = vrot.slane %v612, 3
      %v652 = vrot.slane %v605, 3
      %v653 = vsel %vm650, %v651, %v652
      %v654 = vrot.slane %v607, 3
      %v655 = vsel %vm650, %v652, %v654
      %v656 = vrot.slane %v613, 3
      %v657 = vsel %vm650, %v654, %v656
      %658 = vrot.lane.b32.xlu0 %v653, 60
      %v659 = vpop.permute.xlu0 %658
      %660 = vrot.lane.b32.xlu0 %v655, 60
      %v661 = vpop.permute.xlu0 %660
      %662 = vrot.lane.b32.xlu0 %v657, 60
      %v663 = vpop.permute.xlu0 %662
      %vm667 = vcmask 1043456
      %v668 = vrot.slane %v612, 4
      %v669 = vrot.slane %v605, 4
      %v670 = vsel %vm667, %v668, %v669
      %v671 = vrot.slane %v607, 4
      %v672 = vsel %vm667, %v669, %v671
      %v673 = vrot.slane %v613, 4
      %v674 = vsel %vm667, %v671, %v673
      %675 = vrot.lane.b32.xlu0 %v670, 80
      %v676 = vpop.permute.xlu0 %675
      %677 = vrot.lane.b32.xlu0 %v672, 80
      %v678 = vpop.permute.xlu0 %677
      %679 = vrot.lane.b32.xlu0 %v674, 80
      %v680 = vpop.permute.xlu0 %679
      %vm684 = vcmask 162816
      %v685 = vsel %vm684, %v612, %v625
      %v686 = vsel %vm684, %v605, %v627
      %v687 = vsel %vm684, %v607, %v629
      %vm688 = vcmask 326656
      %v689 = vsel %vm688, %v685, %v642
      %v690 = vsel %vm688, %v686, %v644
      %v691 = vsel %vm688, %v687, %v646
      %vm692 = vcmask 490496
      %v693 = vsel %vm692, %v689, %v659
      %v694 = vsel %vm692, %v690, %v661
      %v695 = vsel %vm692, %v691, %v663
      %vm696 = vcmask 654336
      %v697 = vsel %vm696, %v693, %v676
      %v698 = vsel %vm696, %v694, %v678
      %v699 = vsel %vm696, %v695, %v680
      %v701 = vlaneseq
      %v702 = vshrl.u32 %v701, 7
      %v703 = vsub.s32 0, %v702
      %v704 = vrot.slane %v598, %v703
      %vm706 = vcmask 818176
      %v708 = vsel %vm706, %v697, 0
      %v711 = vsel %vm706, %v698, 0
      %v714 = vsel %vm706, %v699, 0
      %v717 = vsel %vm667, %v597, 0
      %719 = vmatprep.subr.mxu0 0.0
      %720 = vmatpush1.msra.mxu0 %v585
      %721 = vmatprep.subr.mxu0 0.0
      %722 = vmatpush1.msra.mxu0 %v586
      %723 = vmatprep.subr.mxu0 0.0
      %724 = vmatpush1.msra.mxu0 %v587
      %725 = vmatprep.subr.mxu0 0.0
      %726 = vmatpush1.msra.mxu0 %v588
      %727 = vmatprep.subr.mxu0 0.0
      %728 = vmatpush1.msra.mxu0 %v589
      %729 = vmatprep.subr.mxu0 0.0
      %730 = vmatpush1.msra.mxu0 %v590
      %731 = vmatprep.subr.mxu0 0.0
      %732 = vmatpush1.msra.mxu0 %v591
      %733 = vmatprep.subr.mxu0 0.0
      %734 = vmatpush1.msra.mxu0 %v592
      %735 = vmatprep.subr.mxu0 0.0
      %736 = vmatpush1.msra.mxu0 %v593
      %737 = vmatprep.subr.mxu0 0.0
      %738 = vmatpush1.msra.mxu0 %v594
      %739 = vmatprep.subr.mxu0 0.0
      %740 = vmatpush1.msra.mxu0 %v595
      %741 = vmatprep.subr.mxu0 0.0
      %742 = vmatpush1.msra.mxu0 %v596
      %743 = vmatprep.subr.mxu0 0.0
      %744 = vmatpush1.msra.mxu0 %v717
      %745 = vmatprep.subr.mxu0 0.0
      %746 = vmatpush1.msra.mxu0 0.0
      %747 = vmatprep.subr.mxu0 0.0
      %748 = vmatpush1.msra.mxu0 0.0
      %749 = vmatprep.subr.mxu0 0.0
      %750 = vmatpush1.msra.mxu0 0.0
      %751 = vmatprep.subr.mxu0 0.0
      %752 = vmatpush1.msra.mxu0 0.0
      %753 = vmatprep.subr.mxu0 0.0
      %754 = vmatpush1.msra.mxu0 0.0
      %755 = vmatprep.subr.mxu0 0.0
      %756 = vmatpush1.msra.mxu0 0.0
      %757 = vmatprep.subr.mxu0 0.0
      %758 = vmatpush1.msra.mxu0 0.0
      %759 = vmatprep.subr.mxu0 0.0
      %760 = vmatpush1.msra.mxu0 0.0
      %761 = vmatprep.subr.mxu0 0.0
      %762 = vmatpush1.msra.mxu0 0.0
      %763 = vmatprep.subr.mxu0 0.0
      %764 = vmatpush1.msra.mxu0 0.0
      %765 = vmatprep.subr.mxu0 0.0
      %766 = vmatpush1.msra.mxu0 0.0
      %767 = vmatprep.subr.mxu0 0.0
      %768 = vmatpush1.msra.mxu0 0.0
      %769 = vmatprep.subr.mxu0 0.0
      %770 = vmatpush1.msra.mxu0 0.0
      %771 = vmatprep.subr.mxu0 0.0
      %772 = vmatpush1.msra.mxu0 0.0
      %773 = vmatprep.subr.mxu0 0.0
      %774 = vmatpush1.msra.mxu0 0.0
      %775 = vmatprep.subr.mxu0 0.0
      %776 = vmatpush1.msra.mxu0 0.0
      %777 = vmatprep.subr.mxu0 0.0
      %778 = vmatpush1.msra.mxu0 0.0
      %779 = vmatprep.subr.mxu0 0.0
      %780 = vmatpush1.msra.mxu0 0.0
      %781 = vmatprep.subr.mxu0 0.0
      %782 = vmatpush1.msra.mxu0 0.0
      %783 = vmatprep.mubr.f32.mxu0 0.0
      %784 = vmatmul.mubr.f32.gmra.mrb[0].mxu0 %v708
      %v785 = vpop.f32.mrb[0].mxu0
      %v786 = vadd.f32 %v704, %v785
      %v787 = vpop.f32.mrb[0].mxu0
      %788 = vmatprep.mubr.f32.mxu0 0.0
      %789 = vmatmul.mubr.f32.gmra.mrb[0].mxu0 %v711
      %v790 = vpop.f32.mrb[0].mxu0
      %v791 = vadd.f32 %v704, %v790
      %v792 = vpop.f32.mrb[0].mxu0
      %793 = vmatprep.mubr.f32.mxu0 0.0
      %794 = vmatmul.mubr.f32.gmra.mrb[0].mxu0 %v714
      %v795 = vpop.f32.mrb[0].mxu0
      %v796 = vadd.f32 %v704, %v795
      %v797 = vpop.f32.mrb[0].mxu0
      %798 = vdwg.mxu0
      %v799 = vtanh.pop %v786
      %v800 = vtanh.pop %v791
      %v801 = vtanh.pop %v796
      %v802 = vld [vmem:[%s5] sm:$0xff]
      %v803 = vld [vmem:[%s5 + $0x8] sm:$0xff]
      %v804 = vld [vmem:[%s5 + $0x10] sm:$0xff]
      %v805 = vld [vmem:[%s5 + $0x18] sm:$0xff]
      %v806 = vld [vmem:[%s5 + $0x20] sm:$0xff]
      %v807 = vld [vmem:[%s5 + $0x28] sm:$0xff]
      %v808 = vld [vmem:[%s5 + $0x30] sm:$0xff]
      %v809 = vld [vmem:[%s5 + $0x38] sm:$0xff]
      %v810 = vld [vmem:[%s5 + $0x40] sm:$0xff]
      %v811 = vld [vmem:[%s5 + $0x48] sm:$0xff]
      %v812 = vld [vmem:[%s5 + $0x50] sm:$0xff]
      %v813 = vld [vmem:[%s5 + $0x58] sm:$0xff]
      %v814 = vld [vmem:[%s5 + $0x60] sm:$0xff]
      %v815 = vld [vmem:[%s5 + $0x68] sm:$0xff]
      %v816 = vld [vmem:[%s5 + $0x70] sm:$0xff]
      %v817 = vld [vmem:[%s5 + $0x78] sm:$0xff]
      %v818 = vld [vmem:[%s5 + $0x80] sm:$0xff]
      %v819 = vld [vmem:[%s5 + $0x88] sm:$0xff]
      %v820 = vld [vmem:[%s5 + $0x90] sm:$0xff]
      %v821 = vld [vmem:[%s5 + $0x98] sm:$0xff]
      %v822 = vld [vmem:[%s6] sm:$0x1]
      %v826 = vrot.slane %v799, 6
      %v827 = vrot.slane %v800, 6
      %v828 = vsel %vm602, %v826, %v827
      %v829 = vrot.slane %v801, 6
      %v830 = vsel %vm602, %v827, %v829
      %v835 = vsel %vm602, 0.0, %v826
      %v836 = vsel %vm602, %v829, 0.0
      %v839 = vrot.slane %v835, 1
      %v840 = vrot.slane %v828, 1
      %v841 = vsel %vm616, %v839, %v840
      %v842 = vrot.slane %v830, 1
      %v843 = vsel %vm616, %v840, %v842
      %v844 = vrot.slane %v836, 1
      %v845 = vsel %vm616, %v842, %v844
      %846 = vrot.lane.b32.xlu0 %v841, 32
      %v847 = vpop.permute.xlu0 %846
      %848 = vrot.lane.b32.xlu0 %v843, 32
      %v849 = vpop.permute.xlu0 %848
      %850 = vrot.lane.b32.xlu0 %v845, 32
      %v851 = vpop.permute.xlu0 %850
      %v855 = vrot.slane %v835, 2
      %v856 = vrot.slane %v828, 2
      %v857 = vsel %vm633, %v855, %v856
      %v858 = vrot.slane %v830, 2
      %v859 = vsel %vm633, %v856, %v858
      %v860 = vrot.slane %v836, 2
      %v861 = vsel %vm633, %v858, %v860
      %862 = vrot.lane.b32.xlu0 %v857, 64
      %v863 = vpop.permute.xlu0 %862
      %864 = vrot.lane.b32.xlu0 %v859, 64
      %v865 = vpop.permute.xlu0 %864
      %866 = vrot.lane.b32.xlu0 %v861, 64
      %v867 = vpop.permute.xlu0 %866
      %v871 = vrot.slane %v835, 3
      %v872 = vrot.slane %v828, 3
      %v873 = vsel %vm650, %v871, %v872
      %v874 = vrot.slane %v830, 3
      %v875 = vsel %vm650, %v872, %v874
      %v876 = vrot.slane %v836, 3
      %v877 = vsel %vm650, %v874, %v876
      %878 = vrot.lane.b32.xlu0 %v873, 96
      %v879 = vpop.permute.xlu0 %878
      %880 = vrot.lane.b32.xlu0 %v875, 96
      %v881 = vpop.permute.xlu0 %880
      %882 = vrot.lane.b32.xlu0 %v877, 96
      %v883 = vpop.permute.xlu0 %882
      %v887 = vrot.slane %v835, 4
      %v888 = vrot.slane %v828, 4
      %v889 = vsel %vm667, %v887, %v888
      %v890 = vrot.slane %v830, 4
      %v891 = vsel %vm667, %v888, %v890
      %v892 = vrot.slane %v836, 4
      %v893 = vsel %vm667, %v890, %v892
      %v894 = vsel %vm495, %v835, %v847
      %v895 = vsel %vm495, %v828, %v849
      %v896 = vsel %vm495, %v830, %v851
      %vm897 = vcmask 523264
      %v898 = vsel %vm897, %v894, %v863
      %v899 = vsel %vm897, %v895, %v865
      %v900 = vsel %vm897, %v896, %v867
      %vm901 = vcmask 785408
      %v902 = vsel %vm901, %v898, %v879
      %v903 = vsel %vm901, %v899, %v881
      %v904 = vsel %vm901, %v900, %v883
      %v906 = vlaneseq
      %v907 = vshrl.u32 %v906, 7
      %v908 = vsub.s32 0, %v907
      %v909 = vrot.slane %v822, %v908
      %v911 = vsel %vm495, %v889, 0
      %v913 = vsel %vm495, %v891, 0
      %v915 = vsel %vm495, %v893, 0
      %917 = vmatprep.subr.mxu0 0.0
      %918 = vmatpush1.msra.mxu0 %v802
      %919 = vmatprep.subr.mxu0 0.0
      %920 = vmatpush1.msra.mxu0 %v803
      %921 = vmatprep.subr.mxu0 0.0
      %922 = vmatpush1.msra.mxu0 %v804
      %923 = vmatprep.subr.mxu0 0.0
      %924 = vmatpush1.msra.mxu0 %v805
      %925 = vmatprep.subr.mxu0 0.0
      %926 = vmatpush1.msra.mxu0 %v806
      %927 = vmatprep.subr.mxu0 0.0
      %928 = vmatpush1.msra.mxu0 %v807
      %929 = vmatprep.subr.mxu0 0.0
      %930 = vmatpush1.msra.mxu0 %v808
      %931 = vmatprep.subr.mxu0 0.0
      %932 = vmatpush1.msra.mxu0 %v809
      %933 = vmatprep.subr.mxu0 0.0
      %934 = vmatpush1.msra.mxu0 %v810
      %935 = vmatprep.subr.mxu0 0.0
      %936 = vmatpush1.msra.mxu0 %v811
      %937 = vmatprep.subr.mxu0 0.0
      %938 = vmatpush1.msra.mxu0 %v812
      %939 = vmatprep.subr.mxu0 0.0
      %940 = vmatpush1.msra.mxu0 %v813
      %941 = vmatprep.subr.mxu0 0.0
      %942 = vmatpush1.msra.mxu0 %v814
      %943 = vmatprep.subr.mxu0 0.0
      %944 = vmatpush1.msra.mxu0 %v815
      %945 = vmatprep.subr.mxu0 0.0
      %946 = vmatpush1.msra.mxu0 %v816
      %947 = vmatprep.subr.mxu0 0.0
      %948 = vmatpush1.msra.mxu0 %v817
      %949 = vmatprep.subr.mxu0 0.0
      %950 = vmatpush1.msra.mxu0 %v818
      %951 = vmatprep.subr.mxu0 0.0
      %952 = vmatpush1.msra.mxu0 %v819
      %953 = vmatprep.subr.mxu0 0.0
      %954 = vmatpush1.msra.mxu0 %v820
      %955 = vmatprep.subr.mxu0 0.0
      %956 = vmatpush1.msra.mxu0 %v821
      %957 = vmatprep.subr.mxu0 0.0
      %958 = vmatpush1.msra.mxu0 0.0
      %959 = vmatprep.subr.mxu0 0.0
      %960 = vmatpush1.msra.mxu0 0.0
      %961 = vmatprep.subr.mxu0 0.0
      %962 = vmatpush1.msra.mxu0 0.0
      %963 = vmatprep.subr.mxu0 0.0
      %964 = vmatpush1.msra.mxu0 0.0
      %965 = vmatprep.subr.mxu0 0.0
      %966 = vmatpush1.msra.mxu0 0.0
      %967 = vmatprep.subr.mxu0 0.0
      %968 = vmatpush1.msra.mxu0 0.0
      %969 = vmatprep.subr.mxu0 0.0
      %970 = vmatpush1.msra.mxu0 0.0
      %971 = vmatprep.subr.mxu0 0.0
      %972 = vmatpush1.msra.mxu0 0.0
      %973 = vmatprep.subr.mxu0 0.0
      %974 = vmatpush1.msra.mxu0 0.0
      %975 = vmatprep.subr.mxu0 0.0
      %976 = vmatpush1.msra.mxu0 0.0
      %977 = vmatprep.subr.mxu0 0.0
      %978 = vmatpush1.msra.mxu0 0.0
      %979 = vmatprep.subr.mxu0 0.0
      %980 = vmatpush1.msra.mxu0 0.0
      %981 = vmatprep.mubr.f32.mxu0 %v911
      %982 = vmatmul.mubr.f32.gmra.mrb[0].mxu0 %v902
      %v983 = vpop.f32.mrb[0].mxu0
      %v984 = vadd.f32 %v909, %v983
      %v985 = vpop.f32.mrb[0].mxu0
      %986 = vmatprep.mubr.f32.mxu0 %v913
      %987 = vmatmul.mubr.f32.gmra.mrb[0].mxu0 %v903
      %v988 = vpop.f32.mrb[0].mxu0
      %v989 = vadd.f32 %v909, %v988
      %v990 = vpop.f32.mrb[0].mxu0
      %991 = vmatprep.mubr.f32.mxu0 %v915
      %992 = vmatmul.mubr.f32.gmra.mrb[0].mxu0 %v904
      %v993 = vpop.f32.mrb[0].mxu0
      %v994 = vadd.f32 %v909, %v993
      %v995 = vpop.f32.mrb[0].mxu0
      %996 = vdwg.mxu0
      %v997 = vtanh.pop %v984
      %v998 = vtanh.pop %v989
      %v999 = vtanh.pop %v994
      %v1000 = vld [vmem:[%s7] sm:$0xff]
      %v1001 = vld [vmem:[%s7 + $0x8] sm:$0xff]
      %v1002 = vld [vmem:[%s7 + $0x10] sm:$0xff]
      %v1003 = vld [vmem:[%s7 + $0x18] sm:$0xff]
      %v1004 = vld [vmem:[%s7 + $0x20] sm:$0xff]
      %v1005 = vld [vmem:[%s7 + $0x28] sm:$0xff]
      %v1006 = vld [vmem:[%s7 + $0x30] sm:$0xff]
      %v1007 = vld [vmem:[%s7 + $0x38] sm:$0xff]
      %v1008 = vld [vmem:[%s7 + $0x40] sm:$0xff]
      %v1009 = vld [vmem:[%s7 + $0x48] sm:$0xff]
      %v1010 = vld [vmem:[%s7 + $0x50] sm:$0xff]
      %v1011 = vld [vmem:[%s7 + $0x58] sm:$0xff]
      %v1012 = vld [vmem:[%s7 + $0x60] sm:$0xff]
      %v1013 = vld [vmem:[%s7 + $0x68] sm:$0xff]
      %v1014 = vld [vmem:[%s7 + $0x70] sm:$0xff]
      %v1015 = vld [vmem:[%s7 + $0x78] sm:$0xff]
      %v1016 = vld [vmem:[%s7 + $0x80] sm:$0xff]
      %v1017 = vld [vmem:[%s7 + $0x88] sm:$0xff]
      %v1018 = vld [vmem:[%s7 + $0x90] sm:$0xff]
      %v1019 = vld [vmem:[%s7 + $0x98] sm:$0xff]
      %v1020 = vld [vmem:[%s8] sm:$0x1]
      %v1024 = vrot.slane %v997, 6
      %v1025 = vrot.slane %v998, 6
      %v1026 = vsel %vm602, %v1024, %v1025
      %v1027 = vrot.slane %v999, 6
      %v1028 = vsel %vm602, %v1025, %v1027
      %v1033 = vsel %vm602, 0.0, %v1024
      %v1034 = vsel %vm602, %v1027, 0.0
      %v1037 = vrot.slane %v1033, 1
      %v1038 = vrot.slane %v1026, 1
      %v1039 = vsel %vm616, %v1037, %v1038
      %v1040 = vrot.slane %v1028, 1
      %v1041 = vsel %vm616, %v1038, %v1040
      %v1042 = vrot.slane %v1034, 1
      %v1043 = vsel %vm616, %v1040, %v1042
      %1044 = vrot.lane.b32.xlu0 %v1039, 32
      %v1045 = vpop.permute.xlu0 %1044
      %1046 = vrot.lane.b32.xlu0 %v1041, 32
      %v1047 = vpop.permute.xlu0 %1046
      %1048 = vrot.lane.b32.xlu0 %v1043, 32
      %v1049 = vpop.permute.xlu0 %1048
      %v1053 = vrot.slane %v1033, 2
      %v1054 = vrot.slane %v1026, 2
      %v1055 = vsel %vm633, %v1053, %v1054
      %v1056 = vrot.slane %v1028, 2
      %v1057 = vsel %vm633, %v1054, %v1056
      %v1058 = vrot.slane %v1034, 2
      %v1059 = vsel %vm633, %v1056, %v1058
      %1060 = vrot.lane.b32.xlu0 %v1055, 64
      %v1061 = vpop.permute.xlu0 %1060
      %1062 = vrot.lane.b32.xlu0 %v1057, 64
      %v1063 = vpop.permute.xlu0 %1062
      %1064 = vrot.lane.b32.xlu0 %v1059, 64
      %v1065 = vpop.permute.xlu0 %1064
      %v1069 = vrot.slane %v1033, 3
      %v1070 = vrot.slane %v1026, 3
      %v1071 = vsel %vm650, %v1069, %v1070
      %v1072 = vrot.slane %v1028, 3
      %v1073 = vsel %vm650, %v1070, %v1072
      %v1074 = vrot.slane %v1034, 3
      %v1075 = vsel %vm650, %v1072, %v1074
      %1076 = vrot.lane.b32.xlu0 %v1071, 96
      %v1077 = vpop.permute.xlu0 %1076
      %1078 = vrot.lane.b32.xlu0 %v1073, 96
      %v1079 = vpop.permute.xlu0 %1078
      %1080 = vrot.lane.b32.xlu0 %v1075, 96
      %v1081 = vpop.permute.xlu0 %1080
      %v1085 = vrot.slane %v1033, 4
      %v1086 = vrot.slane %v1026, 4
      %v1087 = vsel %vm667, %v1085, %v1086
      %v1088 = vrot.slane %v1028, 4
      %v1089 = vsel %vm667, %v1086, %v1088
      %v1090 = vrot.slane %v1034, 4
      %v1091 = vsel %vm667, %v1088, %v1090
      %v1092 = vsel %vm495, %v1033, %v1045
      %v1093 = vsel %vm495, %v1026, %v1047
      %v1094 = vsel %vm495, %v1028, %v1049
      %v1095 = vsel %vm897, %v1092, %v1061
      %v1096 = vsel %vm897, %v1093, %v1063
      %v1097 = vsel %vm897, %v1094, %v1065
      %v1098 = vsel %vm901, %v1095, %v1077
      %v1099 = vsel %vm901, %v1096, %v1079
      %v1100 = vsel %vm901, %v1097, %v1081
      %v1102 = vlaneseq
      %v1103 = vshrl.u32 %v1102, 7
      %v1104 = vsub.s32 0, %v1103
      %v1105 = vrot.slane %v1020, %v1104
      %v1107 = vsel %vm495, %v1087, 0
      %v1109 = vsel %vm495, %v1089, 0
      %v1111 = vsel %vm495, %v1091, 0
      %1113 = vmatprep.subr.mxu0 0.0
      %1114 = vmatpush1.msra.mxu0 %v1000
      %1115 = vmatprep.subr.mxu0 0.0
      %1116 = vmatpush1.msra.mxu0 %v1001
      %1117 = vmatprep.subr.mxu0 0.0
      %1118 = vmatpush1.msra.mxu0 %v1002
      %1119 = vmatprep.subr.mxu0 0.0
      %1120 = vmatpush1.msra.mxu0 %v1003
      %1121 = vmatprep.subr.mxu0 0.0
      %1122 = vmatpush1.msra.mxu0 %v1004
      %1123 = vmatprep.subr.mxu0 0.0
      %1124 = vmatpush1.msra.mxu0 %v1005
      %1125 = vmatprep.subr.mxu0 0.0
      %1126 = vmatpush1.msra.mxu0 %v1006
      %1127 = vmatprep.subr.mxu0 0.0
      %1128 = vmatpush1.msra.mxu0 %v1007
      %1129 = vmatprep.subr.mxu0 0.0
      %1130 = vmatpush1.msra.mxu0 %v1008
      %1131 = vmatprep.subr.mxu0 0.0
      %1132 = vmatpush1.msra.mxu0 %v1009
      %1133 = vmatprep.subr.mxu0 0.0
      %1134 = vmatpush1.msra.mxu0 %v1010
      %1135 = vmatprep.subr.mxu0 0.0
      %1136 = vmatpush1.msra.mxu0 %v1011
      %1137 = vmatprep.subr.mxu0 0.0
      %1138 = vmatpush1.msra.mxu0 %v1012
      %1139 = vmatprep.subr.mxu0 0.0
      %1140 = vmatpush1.msra.mxu0 %v1013
      %1141 = vmatprep.subr.mxu0 0.0
      %1142 = vmatpush1.msra.mxu0 %v1014
      %1143 = vmatprep.subr.mxu0 0.0
      %1144 = vmatpush1.msra.mxu0 %v1015
      %1145 = vmatprep.subr.mxu0 0.0
      %1146 = vmatpush1.msra.mxu0 %v1016
      %1147 = vmatprep.subr.mxu0 0.0
      %1148 = vmatpush1.msra.mxu0 %v1017
      %1149 = vmatprep.subr.mxu0 0.0
      %1150 = vmatpush1.msra.mxu0 %v1018
      %1151 = vmatprep.subr.mxu0 0.0
      %1152 = vmatpush1.msra.mxu0 %v1019
      %1153 = vmatprep.subr.mxu0 0.0
      %1154 = vmatpush1.msra.mxu0 0.0
      %1155 = vmatprep.subr.mxu0 0.0
      %1156 = vmatpush1.msra.mxu0 0.0
      %1157 = vmatprep.subr.mxu0 0.0
      %1158 = vmatpush1.msra.mxu0 0.0
      %1159 = vmatprep.subr.mxu0 0.0
      %1160 = vmatpush1.msra.mxu0 0.0
      %1161 = vmatprep.subr.mxu0 0.0
      %1162 = vmatpush1.msra.mxu0 0.0
      %1163 = vmatprep.subr.mxu0 0.0
      %1164 = vmatpush1.msra.mxu0 0.0
      %1165 = vmatprep.subr.mxu0 0.0
      %1166 = vmatpush1.msra.mxu0 0.0
      %1167 = vmatprep.subr.mxu0 0.0
      %1168 = vmatpush1.msra.mxu0 0.0
      %1169 = vmatprep.subr.mxu0 0.0
      %1170 = vmatpush1.msra.mxu0 0.0
      %1171 = vmatprep.subr.mxu0 0.0
      %1172 = vmatpush1.msra.mxu0 0.0
      %1173 = vmatprep.subr.mxu0 0.0
      %1174 = vmatpush1.msra.mxu0 0.0
      %1175 = vmatprep.subr.mxu0 0.0
      %1176 = vmatpush1.msra.mxu0 0.0
      %1177 = vmatprep.mubr.f32.mxu0 %v1107
      %1178 = vmatmul.mubr.f32.gmra.mrb[0].mxu0 %v1098
      %v1179 = vpop.f32.mrb[0].mxu0
      %v1180 = vadd.f32 %v1105, %v1179
      %v1181 = vpop.f32.mrb[0].mxu0
      %1182 = vmatprep.mubr.f32.mxu0 %v1109
      %1183 = vmatmul.mubr.f32.gmra.mrb[0].mxu0 %v1099
      %v1184 = vpop.f32.mrb[0].mxu0
      %v1185 = vadd.f32 %v1105, %v1184
      %v1186 = vpop.f32.mrb[0].mxu0
      %1187 = vmatprep.mubr.f32.mxu0 %v1111
      %1188 = vmatmul.mubr.f32.gmra.mrb[0].mxu0 %v1100
      %v1189 = vpop.f32.mrb[0].mxu0
      %v1190 = vadd.f32 %v1105, %v1189
      %v1191 = vpop.f32.mrb[0].mxu0
      %1192 = vdwg.mxu0
      %v1193 = vtanh.pop %v1180
      %v1194 = vtanh.pop %v1185
      %v1195 = vtanh.pop %v1190
      %v1196 = vld [vmem:[%s9] sm:$0xff]
      %v1197 = vld [vmem:[%s9 + $0x8] sm:$0xff]
      %v1198 = vld [vmem:[%s9 + $0x10] sm:$0xff]
      %v1199 = vld [vmem:[%s9 + $0x18] sm:$0xff]
      %v1200 = vld [vmem:[%s9 + $0x20] sm:$0xff]
      %v1201 = vld [vmem:[%s9 + $0x28] sm:$0xff]
      %v1202 = vld [vmem:[%s9 + $0x30] sm:$0xff]
      %v1203 = vld [vmem:[%s9 + $0x38] sm:$0xff]
      %v1204 = vld [vmem:[%s9 + $0x40] sm:$0xff]
      %v1205 = vld [vmem:[%s9 + $0x48] sm:$0xff]
      %v1206 = vld [vmem:[%s9 + $0x50] sm:$0xff]
      %v1207 = vld [vmem:[%s9 + $0x58] sm:$0xff]
      %v1208 = vld [vmem:[%s9 + $0x60] sm:$0xff]
      %v1209 = vld [vmem:[%s9 + $0x68] sm:$0xff]
      %v1210 = vld [vmem:[%s9 + $0x70] sm:$0xff]
      %v1211 = vld [vmem:[%s9 + $0x78] sm:$0xff]
      %v1212 = vld [vmem:[%s9 + $0x80] sm:$0xff]
      %v1213 = vld [vmem:[%s9 + $0x88] sm:$0xff]
      %v1214 = vld [vmem:[%s9 + $0x90] sm:$0xff]
      %v1215 = vld [vmem:[%s9 + $0x98] sm:$0xff]
      %v1216 = vld [vmem:[%s10] sm:$0x1]
      %v1220 = vrot.slane %v1193, 6
      %v1221 = vrot.slane %v1194, 6
      %v1222 = vsel %vm602, %v1220, %v1221
      %v1223 = vrot.slane %v1195, 6
      %v1224 = vsel %vm602, %v1221, %v1223
      %v1229 = vsel %vm602, 0.0, %v1220
      %v1230 = vsel %vm602, %v1223, 0.0
      %v1233 = vrot.slane %v1229, 1
      %v1234 = vrot.slane %v1222, 1
      %v1235 = vsel %vm616, %v1233, %v1234
      %v1236 = vrot.slane %v1224, 1
      %v1237 = vsel %vm616, %v1234, %v1236
      %v1238 = vrot.slane %v1230, 1
      %v1239 = vsel %vm616, %v1236, %v1238
      %1240 = vrot.lane.b32.xlu0 %v1235, 32
      %v1241 = vpop.permute.xlu0 %1240
      %1242 = vrot.lane.b32.xlu0 %v1237, 32
      %v1243 = vpop.permute.xlu0 %1242
      %1244 = vrot.lane.b32.xlu0 %v1239, 32
      %v1245 = vpop.permute.xlu0 %1244
      %v1249 = vrot.slane %v1229, 2
      %v1250 = vrot.slane %v1222, 2
      %v1251 = vsel %vm633, %v1249, %v1250
      %v1252 = vrot.slane %v1224, 2
      %v1253 = vsel %vm633, %v1250, %v1252
      %v1254 = vrot.slane %v1230, 2
      %v1255 = vsel %vm633, %v1252, %v1254
      %1256 = vrot.lane.b32.xlu0 %v1251, 64
      %v1257 = vpop.permute.xlu0 %1256
      %1258 = vrot.lane.b32.xlu0 %v1253, 64
      %v1259 = vpop.permute.xlu0 %1258
      %1260 = vrot.lane.b32.xlu0 %v1255, 64
      %v1261 = vpop.permute.xlu0 %1260
      %v1265 = vrot.slane %v1229, 3
      %v1266 = vrot.slane %v1222, 3
      %v1267 = vsel %vm650, %v1265, %v1266
      %v1268 = vrot.slane %v1224, 3
      %v1269 = vsel %vm650, %v1266, %v1268
      %v1270 = vrot.slane %v1230, 3
      %v1271 = vsel %vm650, %v1268, %v1270
      %1272 = vrot.lane.b32.xlu0 %v1267, 96
      %v1273 = vpop.permute.xlu0 %1272
      %1274 = vrot.lane.b32.xlu0 %v1269, 96
      %v1275 = vpop.permute.xlu0 %1274
      %1276 = vrot.lane.b32.xlu0 %v1271, 96
      %v1277 = vpop.permute.xlu0 %1276
      %v1281 = vrot.slane %v1229, 4
      %v1282 = vrot.slane %v1222, 4
      %v1283 = vsel %vm667, %v1281, %v1282
      %v1284 = vrot.slane %v1224, 4
      %v1285 = vsel %vm667, %v1282, %v1284
      %v1286 = vrot.slane %v1230, 4
      %v1287 = vsel %vm667, %v1284, %v1286
      %v1288 = vsel %vm495, %v1229, %v1241
      %v1289 = vsel %vm495, %v1222, %v1243
      %v1290 = vsel %vm495, %v1224, %v1245
      %v1291 = vsel %vm897, %v1288, %v1257
      %v1292 = vsel %vm897, %v1289, %v1259
      %v1293 = vsel %vm897, %v1290, %v1261
      %v1294 = vsel %vm901, %v1291, %v1273
      %v1295 = vsel %vm901, %v1292, %v1275
      %v1296 = vsel %vm901, %v1293, %v1277
      %v1298 = vlaneseq
      %v1299 = vshrl.u32 %v1298, 7
      %v1300 = vsub.s32 0, %v1299
      %v1301 = vrot.slane %v1216, %v1300
      %v1303 = vsel %vm495, %v1283, 0
      %v1305 = vsel %vm495, %v1285, 0
      %v1307 = vsel %vm495, %v1287, 0
      %1309 = vmatprep.subr.mxu0 0.0
      %1310 = vmatpush1.msra.mxu0 %v1196
      %1311 = vmatprep.subr.mxu0 0.0
      %1312 = vmatpush1.msra.mxu0 %v1197
      %1313 = vmatprep.subr.mxu0 0.0
      %1314 = vmatpush1.msra.mxu0 %v1198
      %1315 = vmatprep.subr.mxu0 0.0
      %1316 = vmatpush1.msra.mxu0 %v1199
      %1317 = vmatprep.subr.mxu0 0.0
      %1318 = vmatpush1.msra.mxu0 %v1200
      %1319 = vmatprep.subr.mxu0 0.0
      %1320 = vmatpush1.msra.mxu0 %v1201
      %1321 = vmatprep.subr.mxu0 0.0
      %1322 = vmatpush1.msra.mxu0 %v1202
      %1323 = vmatprep.subr.mxu0 0.0
      %1324 = vmatpush1.msra.mxu0 %v1203
      %1325 = vmatprep.subr.mxu0 0.0
      %1326 = vmatpush1.msra.mxu0 %v1204
      %1327 = vmatprep.subr.mxu0 0.0
      %1328 = vmatpush1.msra.mxu0 %v1205
      %1329 = vmatprep.subr.mxu0 0.0
      %1330 = vmatpush1.msra.mxu0 %v1206
      %1331 = vmatprep.subr.mxu0 0.0
      %1332 = vmatpush1.msra.mxu0 %v1207
      %1333 = vmatprep.subr.mxu0 0.0
      %1334 = vmatpush1.msra.mxu0 %v1208
      %1335 = vmatprep.subr.mxu0 0.0
      %1336 = vmatpush1.msra.mxu0 %v1209
      %1337 = vmatprep.subr.mxu0 0.0
      %1338 = vmatpush1.msra.mxu0 %v1210
      %1339 = vmatprep.subr.mxu0 0.0
      %1340 = vmatpush1.msra.mxu0 %v1211
      %1341 = vmatprep.subr.mxu0 0.0
      %1342 = vmatpush1.msra.mxu0 %v1212
      %1343 = vmatprep.subr.mxu0 0.0
      %1344 = vmatpush1.msra.mxu0 %v1213
      %1345 = vmatprep.subr.mxu0 0.0
      %1346 = vmatpush1.msra.mxu0 %v1214
      %1347 = vmatprep.subr.mxu0 0.0
      %1348 = vmatpush1.msra.mxu0 %v1215
      %1349 = vmatprep.subr.mxu0 0.0
      %1350 = vmatpush1.msra.mxu0 0.0
      %1351 = vmatprep.subr.mxu0 0.0
      %1352 = vmatpush1.msra.mxu0 0.0
      %1353 = vmatprep.subr.mxu0 0.0
      %1354 = vmatpush1.msra.mxu0 0.0
      %1355 = vmatprep.subr.mxu0 0.0
      %1356 = vmatpush1.msra.mxu0 0.0
      %1357 = vmatprep.subr.mxu0 0.0
      %1358 = vmatpush1.msra.mxu0 0.0
      %1359 = vmatprep.subr.mxu0 0.0
      %1360 = vmatpush1.msra.mxu0 0.0
      %1361 = vmatprep.subr.mxu0 0.0
      %1362 = vmatpush1.msra.mxu0 0.0
      %1363 = vmatprep.subr.mxu0 0.0
      %1364 = vmatpush1.msra.mxu0 0.0
      %1365 = vmatprep.subr.mxu0 0.0
      %1366 = vmatpush1.msra.mxu0 0.0
      %1367 = vmatprep.subr.mxu0 0.0
      %1368 = vmatpush1.msra.mxu0 0.0
      %1369 = vmatprep.subr.mxu0 0.0
      %1370 = vmatpush1.msra.mxu0 0.0
      %1371 = vmatprep.subr.mxu0 0.0
      %1372 = vmatpush1.msra.mxu0 0.0
      %1373 = vmatprep.mubr.f32.mxu0 %v1303
      %1374 = vmatmul.mubr.f32.gmra.mrb[0].mxu0 %v1294
      %v1375 = vpop.f32.mrb[0].mxu0
      %v1376 = vadd.f32 %v1301, %v1375
      %v1377 = vpop.f32.mrb[0].mxu0
      %1378 = vmatprep.mubr.f32.mxu0 %v1305
      %1379 = vmatmul.mubr.f32.gmra.mrb[0].mxu0 %v1295
      %v1380 = vpop.f32.mrb[0].mxu0
      %v1381 = vadd.f32 %v1301, %v1380
      %v1382 = vpop.f32.mrb[0].mxu0
      %1383 = vmatprep.mubr.f32.mxu0 %v1307
      %1384 = vmatmul.mubr.f32.gmra.mrb[0].mxu0 %v1296
      %v1385 = vpop.f32.mrb[0].mxu0
      %v1386 = vadd.f32 %v1301, %v1385
      %v1387 = vpop.f32.mrb[0].mxu0
      %1388 = vdwg.mxu0
      %v1389 = vtanh.pop %v1376
      %v1390 = vtanh.pop %v1381
      %v1391 = vtanh.pop %v1386
      %v1392 = vld [vmem:[%s11] sm:$0xff]
      %v1393 = vld [vmem:[%s11 + $0x8] sm:$0xff]
      %v1394 = vld [vmem:[%s11 + $0x10] sm:$0xff]
      %v1395 = vld [vmem:[%s11 + $0x18] sm:$0xff]
      %v1396 = vld [vmem:[%s11 + $0x20] sm:$0xff]
      %v1397 = vld [vmem:[%s11 + $0x28] sm:$0xff]
      %v1398 = vld [vmem:[%s11 + $0x30] sm:$0xff]
      %v1399 = vld [vmem:[%s11 + $0x38] sm:$0xff]
      %v1400 = vld [vmem:[%s11 + $0x40] sm:$0xff]
      %v1401 = vld [vmem:[%s11 + $0x48] sm:$0xff]
      %v1402 = vld [vmem:[%s11 + $0x50] sm:$0xff]
      %v1403 = vld [vmem:[%s11 + $0x58] sm:$0xff]
      %v1404 = vld [vmem:[%s11 + $0x60] sm:$0xff]
      %v1405 = vld [vmem:[%s11 + $0x68] sm:$0xff]
      %v1406 = vld [vmem:[%s11 + $0x70] sm:$0xff]
      %v1407 = vld [vmem:[%s11 + $0x78] sm:$0xff]
      %v1408 = vld [vmem:[%s11 + $0x80] sm:$0xff]
      %v1409 = vld [vmem:[%s11 + $0x88] sm:$0xff]
      %v1410 = vld [vmem:[%s11 + $0x90] sm:$0xff]
      %v1411 = vld [vmem:[%s11 + $0x98] sm:$0xff]
      %v1412 = vld [vmem:[%s12] sm:$0x1]
      %v1416 = vrot.slane %v1389, 6
      %v1417 = vrot.slane %v1390, 6
      %v1418 = vsel %vm602, %v1416, %v1417
      %v1419 = vrot.slane %v1391, 6
      %v1420 = vsel %vm602, %v1417, %v1419
      %v1425 = vsel %vm602, 0.0, %v1416
      %v1426 = vsel %vm602, %v1419, 0.0
      %v1429 = vrot.slane %v1425, 1
      %v1430 = vrot.slane %v1418, 1
      %v1431 = vsel %vm616, %v1429, %v1430
      %v1432 = vrot.slane %v1420, 1
      %v1433 = vsel %vm616, %v1430, %v1432
      %v1434 = vrot.slane %v1426, 1
      %v1435 = vsel %vm616, %v1432, %v1434
      %1436 = vrot.lane.b32.xlu0 %v1431, 32
      %v1437 = vpop.permute.xlu0 %1436
      %1438 = vrot.lane.b32.xlu0 %v1433, 32
      %v1439 = vpop.permute.xlu0 %1438
      %1440 = vrot.lane.b32.xlu0 %v1435, 32
      %v1441 = vpop.permute.xlu0 %1440
      %v1445 = vrot.slane %v1425, 2
      %v1446 = vrot.slane %v1418, 2
      %v1447 = vsel %vm633, %v1445, %v1446
      %v1448 = vrot.slane %v1420, 2
      %v1449 = vsel %vm633, %v1446, %v1448
      %v1450 = vrot.slane %v1426, 2
      %v1451 = vsel %vm633, %v1448, %v1450
      %1452 = vrot.lane.b32.xlu0 %v1447, 64
      %v1453 = vpop.permute.xlu0 %1452
      %1454 = vrot.lane.b32.xlu0 %v1449, 64
      %v1455 = vpop.permute.xlu0 %1454
      %1456 = vrot.lane.b32.xlu0 %v1451, 64
      %v1457 = vpop.permute.xlu0 %1456
      %v1461 = vrot.slane %v1425, 3
      %v1462 = vrot.slane %v1418, 3
      %v1463 = vsel %vm650, %v1461, %v1462
      %v1464 = vrot.slane %v1420, 3
      %v1465 = vsel %vm650, %v1462, %v1464
      %v1466 = vrot.slane %v1426, 3
      %v1467 = vsel %vm650, %v1464, %v1466
      %1468 = vrot.lane.b32.xlu0 %v1463, 96
      %v1469 = vpop.permute.xlu0 %1468
      %1470 = vrot.lane.b32.xlu0 %v1465, 96
      %v1471 = vpop.permute.xlu0 %1470
      %1472 = vrot.lane.b32.xlu0 %v1467, 96
      %v1473 = vpop.permute.xlu0 %1472
      %v1477 = vrot.slane %v1425, 4
      %v1478 = vrot.slane %v1418, 4
      %v1479 = vsel %vm667, %v1477, %v1478
      %v1480 = vrot.slane %v1420, 4
      %v1481 = vsel %vm667, %v1478, %v1480
      %v1482 = vrot.slane %v1426, 4
      %v1483 = vsel %vm667, %v1480, %v1482
      %v1484 = vsel %vm495, %v1425, %v1437
      %v1485 = vsel %vm495, %v1418, %v1439
      %v1486 = vsel %vm495, %v1420, %v1441
      %v1487 = vsel %vm897, %v1484, %v1453
      %v1488 = vsel %vm897, %v1485, %v1455
      %v1489 = vsel %vm897, %v1486, %v1457
      %v1490 = vsel %vm901, %v1487, %v1469
      %v1491 = vsel %vm901, %v1488, %v1471
      %v1492 = vsel %vm901, %v1489, %v1473
      %v1494 = vlaneseq
      %v1495 = vshrl.u32 %v1494, 7
      %v1496 = vsub.s32 0, %v1495
      %v1497 = vrot.slane %v1412, %v1496
      %v1499 = vsel %vm495, %v1479, 0
      %v1501 = vsel %vm495, %v1481, 0
      %v1503 = vsel %vm495, %v1483, 0
      %1505 = vmatprep.subr.mxu0 0.0
      %1506 = vmatpush1.msra.mxu0 %v1392
      %1507 = vmatprep.subr.mxu0 0.0
      %1508 = vmatpush1.msra.mxu0 %v1393
      %1509 = vmatprep.subr.mxu0 0.0
      %1510 = vmatpush1.msra.mxu0 %v1394
      %1511 = vmatprep.subr.mxu0 0.0
      %1512 = vmatpush1.msra.mxu0 %v1395
      %1513 = vmatprep.subr.mxu0 0.0
      %1514 = vmatpush1.msra.mxu0 %v1396
      %1515 = vmatprep.subr.mxu0 0.0
      %1516 = vmatpush1.msra.mxu0 %v1397
      %1517 = vmatprep.subr.mxu0 0.0
      %1518 = vmatpush1.msra.mxu0 %v1398
      %1519 = vmatprep.subr.mxu0 0.0
      %1520 = vmatpush1.msra.mxu0 %v1399
      %1521 = vmatprep.subr.mxu0 0.0
      %1522 = vmatpush1.msra.mxu0 %v1400
      %1523 = vmatprep.subr.mxu0 0.0
      %1524 = vmatpush1.msra.mxu0 %v1401
      %1525 = vmatprep.subr.mxu0 0.0
      %1526 = vmatpush1.msra.mxu0 %v1402
      %1527 = vmatprep.subr.mxu0 0.0
      %1528 = vmatpush1.msra.mxu0 %v1403
      %1529 = vmatprep.subr.mxu0 0.0
      %1530 = vmatpush1.msra.mxu0 %v1404
      %1531 = vmatprep.subr.mxu0 0.0
      %1532 = vmatpush1.msra.mxu0 %v1405
      %1533 = vmatprep.subr.mxu0 0.0
      %1534 = vmatpush1.msra.mxu0 %v1406
      %1535 = vmatprep.subr.mxu0 0.0
      %1536 = vmatpush1.msra.mxu0 %v1407
      %1537 = vmatprep.subr.mxu0 0.0
      %1538 = vmatpush1.msra.mxu0 %v1408
      %1539 = vmatprep.subr.mxu0 0.0
      %1540 = vmatpush1.msra.mxu0 %v1409
      %1541 = vmatprep.subr.mxu0 0.0
      %1542 = vmatpush1.msra.mxu0 %v1410
      %1543 = vmatprep.subr.mxu0 0.0
      %1544 = vmatpush1.msra.mxu0 %v1411
      %1545 = vmatprep.subr.mxu0 0.0
      %1546 = vmatpush1.msra.mxu0 0.0
      %1547 = vmatprep.subr.mxu0 0.0
      %1548 = vmatpush1.msra.mxu0 0.0
      %1549 = vmatprep.subr.mxu0 0.0
      %1550 = vmatpush1.msra.mxu0 0.0
      %1551 = vmatprep.subr.mxu0 0.0
      %1552 = vmatpush1.msra.mxu0 0.0
      %1553 = vmatprep.subr.mxu0 0.0
      %1554 = vmatpush1.msra.mxu0 0.0
      %1555 = vmatprep.subr.mxu0 0.0
      %1556 = vmatpush1.msra.mxu0 0.0
      %1557 = vmatprep.subr.mxu0 0.0
      %1558 = vmatpush1.msra.mxu0 0.0
      %1559 = vmatprep.subr.mxu0 0.0
      %1560 = vmatpush1.msra.mxu0 0.0
      %1561 = vmatprep.subr.mxu0 0.0
      %1562 = vmatpush1.msra.mxu0 0.0
      %1563 = vmatprep.subr.mxu0 0.0
      %1564 = vmatpush1.msra.mxu0 0.0
      %1565 = vmatprep.subr.mxu0 0.0
      %1566 = vmatpush1.msra.mxu0 0.0
      %1567 = vmatprep.subr.mxu0 0.0
      %1568 = vmatpush1.msra.mxu0 0.0
      %1569 = vmatprep.mubr.f32.mxu0 %v1499
      %1570 = vmatmul.mubr.f32.gmra.mrb[0].mxu0 %v1490
      %v1571 = vpop.f32.mrb[0].mxu0
      %v1572 = vadd.f32 %v1497, %v1571
      %v1573 = vpop.f32.mrb[0].mxu0
      %1574 = vmatprep.mubr.f32.mxu0 %v1501
      %1575 = vmatmul.mubr.f32.gmra.mrb[0].mxu0 %v1491
      %v1576 = vpop.f32.mrb[0].mxu0
      %v1577 = vadd.f32 %v1497, %v1576
      %v1578 = vpop.f32.mrb[0].mxu0
      %1579 = vmatprep.mubr.f32.mxu0 %v1503
      %1580 = vmatmul.mubr.f32.gmra.mrb[0].mxu0 %v1492
      %v1581 = vpop.f32.mrb[0].mxu0
      %v1582 = vadd.f32 %v1497, %v1581
      %v1583 = vpop.f32.mrb[0].mxu0
      %1584 = vdwg.mxu0
      %1585 = vst.msk [vmem:[%s475] sm:$0xff] %vm684, %v572
      %1586 = vst.msk [vmem:[%s475 + $0x8] sm:$0xff] %vm684, %v577
      %1587 = vst.msk [vmem:[%s475 + $0x10] sm:$0xff] %vm684, %v582
      %v1588 = vadd.f32 %v1572, %v572
      %v1589 = vadd.f32 %v1577, %v577
      %v1590 = vadd.f32 %v1582, %v582
      %1591 = vst.msk [vmem:[%s480] sm:$0xff] %vm684, %v1588
      %1592 = vst.msk [vmem:[%s480 + $0x8] sm:$0xff] %vm684, %v1589
      %1593 = vst.msk [vmem:[%s480 + $0x10] sm:$0xff] %vm684, %v1590
      %p1594 = scmp.lt.s32.totalorder %s26, 1
      %s1595 = scalar_select %p1594, %s26, 1
      %s1596 = smul.addr %s1595, 3
      %s1597 = smul.addr %s1596, 8
      %s1598 = scalar_lea.vmem %s13, %s1597
      %p1599 = scmp.lt.s32.totalorder %s26, 1
      %s1600 = scalar_select %p1599, %s26, 1
      %s1601 = smul.addr %s1600, 3
      %s1602 = smul.addr %s1601, 8
      %s1603 = scalar_lea.vmem %s14, %s1602
      // Predicated region
      $region73: #{fastspeech2_forward.15} parent=71 // pred_check
        %p1604 = pneg %p322
      $region74: #{fastspeech2_forward.15} parent=71 // pred_check_branch
        %1606 = sbr.rel (%p1604) target = $region76
      $region75: #{fastspeech2_forward.15} parent=71 // pred_region
        _
      $region76: #{fastspeech2_forward.15} parent=71 // pred_fallthru
        _
      // Predicated region
      $region77: #{fastspeech2_forward.15} parent=71 // pred_check
        %p1607 = pneg %p348
      $region78: #{fastspeech2_forward.15} parent=71 // pred_check_branch
        %1609 = sbr.rel (%p1607) target = $region80
      $region79: #{fastspeech2_forward.15} parent=71 // pred_region
        _
      $region80: #{fastspeech2_forward.15} parent=71 // pred_fallthru
        _
    $region72: #{fastspeech2_forward.15} parent=5 // pred_fallthru
      _
    %p1610 = scmp.le.s32.totalorder 2, %s21
    // Predicated region
    $region81: #{fastspeech2_forward.15} parent=5 // pred_check
      %p1611 = pneg %p1610
    $region82: #{fastspeech2_forward.15} parent=5 // pred_check_branch
      %1613 = sbr.rel (%p1611) target = $region84
    $region83: #{fastspeech2_forward.15} parent=5 // pred_region
      %s1614 = ssub.s32 %s21, 2
      // Predicated region
      $region85: #{fastspeech2_forward.15} parent=83 // pred_check
        %p1615 = pneg %p328
      $region86: #{fastspeech2_forward.15} parent=83 // pred_check_branch
        %1617 = sbr.rel (%p1615) target = $region88
      $region87: #{fastspeech2_forward.15} parent=83 // pred_region
        %p1618 = scmp.lt.s32.totalorder %s27, 1
        %s1619 = scalar_select %p1618, %s27, 1
        %s1620 = smul.addr %s1619, 3
        %s1621 = smul.addr %s1620, 8
        %s1622 = scalar_lea.vmem %s13, %s1621
      $region88: #{fastspeech2_forward.15} parent=83 // pred_fallthru
        _
      // Predicated region
      $region89: #{fastspeech2_forward.15} parent=83 // pred_check
        %p1623 = pneg %p354
      $region90: #{fastspeech2_forward.15} parent=83 // pred_check_branch
        %1625 = sbr.rel (%p1623) target = $region92
      $region91: #{fastspeech2_forward.15} parent=83 // pred_region
        %p1626 = scmp.lt.s32.totalorder %s27, 1
        %s1627 = scalar_select %p1626, %s27, 1
        %s1628 = smul.addr %s1627, 3
        %s1629 = smul.addr %s1628, 8
        %s1630 = scalar_lea.vmem %s14, %s1629
      $region92: #{fastspeech2_forward.15} parent=83 // pred_fallthru
        _
    $region84: #{fastspeech2_forward.15} parent=5 // pred_fallthru
      _
  $region6: #{fastspeech2_forward.15} parent=0 // loop_footer
    %s25 = sadd.s32 1, %s21
  $region7: #{fastspeech2_forward.15} parent=0 // loop_footer_branch
    %20 = sbr.rel target = $region3
  $region8: #{fastspeech2_forward.15} parent=0 // loop_exit
    _

</llo_original>
